<compile_context>
chip_gen: v6e
topology: v6e:2x2x1
jax: 0.10.0
libtpu: 0.0.40
codegen_flags: <defaults>
</compile_context>

<pallas_src>
import functools

import jax
import jax.numpy as jnp
from jax import lax
from jax.experimental import pallas as pl
from jax.experimental.pallas import tpu as pltpu


# ----------------------------- kernel ----------------------------------------

def _layer_norm(x, w, b, eps=1e-5):
    mu = jnp.mean(x, axis=-1, keepdims=True)
    xc = x - mu
    var = jnp.mean(xc * xc, axis=-1, keepdims=True)
    return xc * lax.rsqrt(var + eps) * w + b


def bert_stack_kernel(tok_ref, seg_ref, pos_ref,
                      wqkv_ref, bqkv_ref, wo_ref, bo_ref,
                      ln1w_ref, ln1b_ref, ln2w_ref, ln2b_ref,
                      w1_ref, b1_ref, w2_ref, b2_ref,
                      o_ref, *, num_heads, batch):
    """Grid = (position_tiles, n_layers); layer axis innermost ("arbitrary").

    o_ref block (R, E) with R = Tn * batch rows in (position, batch) order is
    the resident activation: initialized from the embeddings at layer 0,
    updated in place by each encoder layer, written back to HBM once per
    position tile.  Attention is over the batch axis within each position,
    matching the batch_first=False reference fed with (batch, max_len, embed).
    """
    layer = pl.program_id(1)

    @pl.when(layer == 0)
    def _():
        emb = tok_ref[...] + seg_ref[...] + pos_ref[...][:, None, :]
        tl, b, ed = emb.shape
        o_ref[...] = emb.reshape(tl * b, ed)

    x = o_ref[...]                               # (R, E) f32, resident in VMEM
    R, E = x.shape
    Tn = R // batch
    H = num_heads
    Dh = E // H
    scale = 1.0 / (Dh ** 0.5)

    # Fused QKV projection: one big lane-aligned bf16 MXU matmul, f32 acc.
    xb = x.astype(jnp.bfloat16)
    qkv = jnp.dot(xb, wqkv_ref[0], preferred_element_type=jnp.float32) + bqkv_ref[0]
    q3 = qkv[:, :E].reshape(Tn, batch, E)
    k3 = qkv[:, E:2 * E].reshape(Tn, batch, E)
    v3 = qkv[:, 2 * E:].reshape(Tn, batch, E)

    # Per-position (tiny B x B) attention, batched over the Tn positions.
    head_outs = []
    for h in range(H):                           # unrolled at trace time
        sl = slice(h * Dh, (h + 1) * Dh)
        qh, kh, vh = q3[:, :, sl], k3[:, :, sl], v3[:, :, sl]     # (Tn, B, Dh)
        s = jnp.einsum('nbd,ncd->nbc', qh, kh,
                       preferred_element_type=jnp.float32) * scale
        s = s - jnp.max(s, axis=-1, keepdims=True)
        ex = jnp.exp(s)
        p = ex * pl.reciprocal(jnp.sum(ex, axis=-1, keepdims=True), approx=True)
        head_outs.append(jnp.einsum('nbc,ncd->nbd', p, vh,
                                    preferred_element_type=jnp.float32))
    ctx = jnp.concatenate(head_outs, axis=-1).reshape(R, E)

    attn = jnp.dot(ctx.astype(jnp.bfloat16), wo_ref[0],
                   preferred_element_type=jnp.float32) + bo_ref[0]

    # residual + LayerNorm 1
    x1 = _layer_norm(x + attn, ln1w_ref[0], ln1b_ref[0])

    # feed-forward (ReLU), residual + LayerNorm 2
    h1 = jnp.dot(x1.astype(jnp.bfloat16), w1_ref[0],
                 preferred_element_type=jnp.float32) + b1_ref[0]
    h1 = jnp.maximum(h1, 0.0)
    ff = jnp.dot(h1.astype(jnp.bfloat16), w2_ref[0],
                 preferred_element_type=jnp.float32) + b2_ref[0]
    o_ref[...] = _layer_norm(x1 + ff, ln2w_ref[0], ln2b_ref[0])


# ----------------------------- wrapper ----------------------------------------

_STACKED = ("wqkv_t", "bqkv", "wo_t", "bo", "ln1_w", "ln1_b", "ln2_w", "ln2_b",
            "w1_t", "b1", "w2_t", "b2")


def _choose_pos_tile(L, B):
    # Aim for >= 256 rows per block (MXU-friendly); fall back to a single block
    # if that would violate grid divisibility or the (8,128) tiling rule.
    Tn = min(L, max(1, 256 // B))
    if L % Tn != 0 or (Tn != L and (Tn % 8 != 0 or (Tn * B) % 8 != 0)):
        Tn = L
    return Tn


def bert_forward(seq, seg, params, num_heads):
    B, L = seq.shape
    emb = params["embedding"]
    stack = params["stack"]
    E = emb["tok_emb"].shape[1]
    n_layers = stack["wqkv_t"].shape[0]
    F = stack["w1_t"].shape[2]

    # TODO(synk): embedding-table gathers stay as XLA jnp.take (data-dependent
    # HBM gather; real vocab tables don't fit VMEM).  Indices are gathered in
    # (L, B) order so the kernel's resident activation is emitted directly in
    # flattened (position, batch) row order -- no activation transpose needed.
    tok_e = jnp.take(emb["tok_emb"], seq.T, axis=0)    # (L, B, E)
    seg_e = jnp.take(emb["seg_emb"], seg.T, axis=0)    # (L, B, E)
    pos_e = emb["pos_emb"]                             # (L, E)

    Tn = _choose_pos_tile(L, B)
    R = Tn * B
    grid = (L // Tn, n_layers)

    weight_args = [stack[k] for k in _STACKED]          # each (n_layers, a, b)
    w_specs = [pl.BlockSpec((1,) + w.shape[1:], lambda i, l: (l, 0, 0))
               for w in weight_args]
    in_specs = [
        pl.BlockSpec((Tn, B, E), lambda i, l: (i, 0, 0)),   # token embeddings
        pl.BlockSpec((Tn, B, E), lambda i, l: (i, 0, 0)),   # segment embeddings
        pl.BlockSpec((Tn, E), lambda i, l: (i, 0)),         # position embeddings
    ] + w_specs

    T = L * B
    # Advisory cost estimate for XLA scheduling around the custom call.
    flops = n_layers * (2 * T * (4 * E * E + 2 * E * F) + 4 * L * B * B * E)
    transcendentals = n_layers * (L * num_heads * B * B + 2 * T)
    bytes_accessed = (3 * T * E * 4 + L * E * 4
                      + n_layers * (4 * E * E + 2 * E * F) * 2
                      + n_layers * (8 * E + F) * 4)

    kernel = functools.partial(bert_stack_kernel, num_heads=num_heads, batch=B)
    x2 = pl.pallas_call(
        kernel,
        out_shape=jax.ShapeDtypeStruct((T, E), jnp.float32),
        grid=grid,
        in_specs=in_specs,
        out_specs=pl.BlockSpec((R, E), lambda i, l: (i, 0)),
        compiler_params=pltpu.CompilerParams(
            dimension_semantics=("parallel", "arbitrary")),
        cost_estimate=pl.CostEstimate(flops=int(flops),
                                      transcendentals=int(transcendentals),
                                      bytes_accessed=int(bytes_accessed)),
    )(tok_e, seg_e, pos_e, *weight_args)

    # Single output-formatting transpose back to reference (batch, max_len, E).
    return jnp.transpose(x2.reshape(L, B, E), (1, 0, 2))


# ----------------------------- params ----------------------------------------

def init_params(key, vocab_size, n_segments, max_len, embed_dim, n_layers,
                attn_heads, dim_feedforward=2048):
    assert embed_dim % attn_heads == 0
    keys = jax.random.split(key, 3 + n_layers)

    def nrm(k, shape, scale=0.02, dtype=jnp.float32):
        return (scale * jax.random.normal(k, shape)).astype(dtype)

    emb = {
        "tok_emb": nrm(keys[0], (vocab_size, embed_dim), 1.0),
        "seg_emb": nrm(keys[1], (n_segments, embed_dim), 1.0),
        "pos_emb": nrm(keys[2], (max_len, embed_dim), 1.0),
    }
    E, F = embed_dim, dim_feedforward
    per = {k: [] for k in _STACKED}
    for i in range(n_layers):
        lk = jax.random.split(keys[3 + i], 4)
        # matmul weights pre-transposed to (in, out) and stored bf16 (MXU inputs)
        per["wqkv_t"].append(nrm(lk[0], (E, 3 * E), dtype=jnp.bfloat16))
        per["bqkv"].append(jnp.zeros((1, 3 * E), jnp.float32))
        per["wo_t"].append(nrm(lk[1], (E, E), dtype=jnp.bfloat16))
        per["bo"].append(jnp.zeros((1, E), jnp.float32))
        per["ln1_w"].append(jnp.ones((1, E), jnp.float32))
        per["ln1_b"].append(jnp.zeros((1, E), jnp.float32))
        per["ln2_w"].append(jnp.ones((1, E), jnp.float32))
        per["ln2_b"].append(jnp.zeros((1, E), jnp.float32))
        per["w1_t"].append(nrm(lk[2], (E, F), dtype=jnp.bfloat16))
        per["b1"].append(jnp.zeros((1, F), jnp.float32))
        per["w2_t"].append(nrm(lk[3], (F, E), dtype=jnp.bfloat16))
        per["b2"].append(jnp.zeros((1, E), jnp.float32))
    stack = {k: jnp.stack(v, axis=0) for k, v in per.items()}   # (n_layers, ...)
    return {"embedding": emb, "stack": stack}


# ----------------------------- main ------------------------------------------

if __name__ == "__main__":
    vocab_size, n_segments, max_len = 100, 2, 8
    embed_dim, n_layers, attn_heads, dropout = 32, 2, 4, 0.1
    batch = 2

    key = jax.random.PRNGKey(0)
    pk, sk1, sk2 = jax.random.split(key, 3)
    params = init_params(pk, vocab_size, n_segments, max_len, embed_dim,
                         n_layers, attn_heads)

    seq = jax.random.randint(sk1, (batch, max_len), 0, vocab_size, dtype=jnp.int32)
    seg = jax.random.randint(sk2, (batch, max_len), 0, n_segments, dtype=jnp.int32)

    out = bert_forward(seq, seg, params, attn_heads)
    out = jax.block_until_ready(out)

    assert out.shape == (batch, max_len, embed_dim), out.shape
    assert bool(jnp.all(jnp.isfinite(out)))
    print("KERNEL_OK")
</pallas_src>

<mosaic_0001>
module attributes {stable_mosaic.version = 11 : i64} {
  func.func @bert_stack_kernel(%arg0: i32, %arg1: i32, %arg2: memref<8x2x32xf32, #tpu.memory_space<vmem>>, %arg3: memref<8x2x32xf32, #tpu.memory_space<vmem>>, %arg4: memref<8x32xf32, #tpu.memory_space<vmem>>, %arg5: memref<1x32x96xbf16, #tpu.memory_space<vmem>>, %arg6: memref<1x1x96xf32, #tpu.memory_space<vmem>>, %arg7: memref<1x32x32xbf16, #tpu.memory_space<vmem>>, %arg8: memref<1x1x32xf32, #tpu.memory_space<vmem>>, %arg9: memref<1x1x32xf32, #tpu.memory_space<vmem>>, %arg10: memref<1x1x32xf32, #tpu.memory_space<vmem>>, %arg11: memref<1x1x32xf32, #tpu.memory_space<vmem>>, %arg12: memref<1x1x32xf32, #tpu.memory_space<vmem>>, %arg13: memref<1x32x2048xbf16, #tpu.memory_space<vmem>>, %arg14: memref<1x1x2048xf32, #tpu.memory_space<vmem>>, %arg15: memref<1x2048x32xbf16, #tpu.memory_space<vmem>>, %arg16: memref<1x1x32xf32, #tpu.memory_space<vmem>>, %arg17: memref<16x32xf32, #tpu.memory_space<vmem>>) attributes {dimension_semantics = [#tpu.dimension_semantics<parallel>, #tpu.dimension_semantics<arbitrary>], iteration_bounds = array<i64: 1, 2>, scalar_prefetch = 0 : i64, scratch_operands = 0 : i64, tpu.core_type = #tpu.core_type<tc>, window_params = [{transform_indices = @transform_0, window_bounds = array<i64: 8, 2, 32>}, {transform_indices = @transform_1, window_bounds = array<i64: 8, 2, 32>}, {transform_indices = @transform_2, window_bounds = array<i64: 8, 32>}, {transform_indices = @transform_3, window_bounds = array<i64: 1, 32, 96>}, {transform_indices = @transform_4, window_bounds = array<i64: 1, 1, 96>}, {transform_indices = @transform_5, window_bounds = array<i64: 1, 32, 32>}, {transform_indices = @transform_6, window_bounds = array<i64: 1, 1, 32>}, {transform_indices = @transform_7, window_bounds = array<i64: 1, 1, 32>}, {transform_indices = @transform_8, window_bounds = array<i64: 1, 1, 32>}, {transform_indices = @transform_9, window_bounds = array<i64: 1, 1, 32>}, {transform_indices = @transform_10, window_bounds = array<i64: 1, 1, 32>}, {transform_indices = @transform_11, window_bounds = array<i64: 1, 32, 2048>}, {transform_indices = @transform_12, window_bounds = array<i64: 1, 1, 2048>}, {transform_indices = @transform_13, window_bounds = array<i64: 1, 2048, 32>}, {transform_indices = @transform_14, window_bounds = array<i64: 1, 1, 32>}, {transform_indices = @transform_15, window_bounds = array<i64: 16, 32>}]} {
    %c0_i32 = arith.constant 0 : i32
    %0 = arith.cmpi eq, %arg1, %c0_i32 : i32
    %1 = arith.extui %0 : i1 to i32
    %c0_i32_0 = arith.constant 0 : i32
    %2 = arith.cmpi ne, %1, %c0_i32_0 : i32
    scf.if %2 {
      %c0_74 = arith.constant 0 : index
      %c0_75 = arith.constant 0 : index
      %c0_76 = arith.constant 0 : index
      %165 = vector.load %arg2[%c0_74, %c0_75, %c0_76] : memref<8x2x32xf32, #tpu.memory_space<vmem>>, vector<8x2x32xf32>
      %c0_77 = arith.constant 0 : index
      %c0_78 = arith.constant 0 : index
      %c0_79 = arith.constant 0 : index
      %166 = vector.load %arg3[%c0_77, %c0_78, %c0_79] : memref<8x2x32xf32, #tpu.memory_space<vmem>>, vector<8x2x32xf32>
      %167 = arith.addf %165, %166 : vector<8x2x32xf32>
      %c0_80 = arith.constant 0 : index
      %c0_81 = arith.constant 0 : index
      %168 = vector.load %arg4[%c0_80, %c0_81] : memref<8x32xf32, #tpu.memory_space<vmem>>, vector<8x32xf32>
      %169 = vector.shape_cast %168 : vector<8x32xf32> to vector<8x1x32xf32>
      %170 = vector.broadcast %169 : vector<8x1x32xf32> to vector<8x2x32xf32>
      %171 = arith.addf %167, %170 : vector<8x2x32xf32>
      %172 = vector.shape_cast %171 : vector<8x2x32xf32> to vector<16x32xf32>
      %c0_82 = arith.constant 0 : index
      %c0_83 = arith.constant 0 : index
      %173 = vector.load %arg17[%c0_82, %c0_83] : memref<16x32xf32, #tpu.memory_space<vmem>>, vector<16x32xf32>
      tpu.vector_store %arg17[%c0_82, %c0_83], %172 {strides = array<i32>} : memref<16x32xf32, #tpu.memory_space<vmem>>, vector<16x32xf32>,
    } else {
    }
    %c0 = arith.constant 0 : index
    %c0_1 = arith.constant 0 : index
    %3 = vector.load %arg17[%c0, %c0_1] : memref<16x32xf32, #tpu.memory_space<vmem>>, vector<16x32xf32>
    %4 = arith.truncf %3 : vector<16x32xf32> to vector<16x32xbf16>
    %c0_2 = arith.constant 0 : index
    %c0_3 = arith.constant 0 : index
    %c0_4 = arith.constant 0 : index
    %5 = vector.load %arg5[%c0_2, %c0_3, %c0_4] : memref<1x32x96xbf16, #tpu.memory_space<vmem>>, vector<1x32x96xbf16>
    %6 = vector.shape_cast %5 : vector<1x32x96xbf16> to vector<32x96xbf16>
    %cst = arith.constant dense<0.000000e+00> : vector<16x96xf32>
    %7 = tpu.matmul %4, %6, %cst {dimension_numbers = #tpu.dot_dimension_numbers<[1], [0], [0], [1], [0, 0, 1, 1], [], []>} : vector<16x32xbf16>, vector<32x96xbf16>, vector<16x96xf32> -> vector<16x96xf32>
    %c0_5 = arith.constant 0 : index
    %c0_6 = arith.constant 0 : index
    %c0_7 = arith.constant 0 : index
    %8 = vector.load %arg6[%c0_5, %c0_6, %c0_7] : memref<1x1x96xf32, #tpu.memory_space<vmem>>, vector<1x1x96xf32>
    %9 = vector.shape_cast %8 : vector<1x1x96xf32> to vector<1x96xf32>
    %10 = vector.broadcast %9 : vector<1x96xf32> to vector<16x96xf32>
    %11 = arith.addf %7, %10 : vector<16x96xf32>
    %12 = vector.extract_strided_slice %11 {offsets = [0, 0], sizes = [16, 32], strides = [1, 1]} : vector<16x96xf32> to vector<16x32xf32>
    %13 = vector.shape_cast %12 : vector<16x32xf32> to vector<8x2x32xf32>
    %14 = vector.extract_strided_slice %11 {offsets = [0, 32], sizes = [16, 32], strides = [1, 1]} : vector<16x96xf32> to vector<16x32xf32>
    %15 = vector.shape_cast %14 : vector<16x32xf32> to vector<8x2x32xf32>
    %16 = vector.extract_strided_slice %11 {offsets = [0, 64], sizes = [16, 32], strides = [1, 1]} : vector<16x96xf32> to vector<16x32xf32>
    %17 = vector.shape_cast %16 : vector<16x32xf32> to vector<8x2x32xf32>
    %18 = vector.extract_strided_slice %13 {offsets = [0, 0, 0], sizes = [8, 2, 8], strides = [1, 1, 1]} : vector<8x2x32xf32> to vector<8x2x8xf32>
    %19 = vector.extract_strided_slice %15 {offsets = [0, 0, 0], sizes = [8, 2, 8], strides = [1, 1, 1]} : vector<8x2x32xf32> to vector<8x2x8xf32>
    %20 = vector.extract_strided_slice %17 {offsets = [0, 0, 0], sizes = [8, 2, 8], strides = [1, 1, 1]} : vector<8x2x32xf32> to vector<8x2x8xf32>
    "tpu.trace_start"() <{level = 10 : i32, message = "nbd,ncd->nbc"}> : () -> ()
    %cst_8 = arith.constant dense<0.000000e+00> : vector<8x2x2xf32>
    %21 = tpu.matmul %18, %19, %cst_8 {dimension_numbers = #tpu.dot_dimension_numbers<[2], [2], [1], [1], [0, 0, 0, 1, 1, 1], [0], [0]>} : vector<8x2x8xf32>, vector<8x2x8xf32>, vector<8x2x2xf32> -> vector<8x2x2xf32>
    "tpu.trace_stop"() : () -> ()
    %cst_9 = arith.constant 0.353553385 : f32
    %22 = vector.broadcast %cst_9 : f32 to vector<8x2x2xf32>
    %23 = arith.mulf %21, %22 : vector<8x2x2xf32>
    %cst_10 = arith.constant dense<0xFF800000> : vector<8x2xf32>
    %24 = vector.multi_reduction <maximumf>, %23, %cst_10 [2] : vector<8x2x2xf32> to vector<8x2xf32>
    %25 = vector.shape_cast %24 : vector<8x2xf32> to vector<8x2x1xf32>
    %26 = vector.broadcast %25 : vector<8x2x1xf32> to vector<8x2x2xf32>
    %27 = arith.subf %23, %26 : vector<8x2x2xf32>
    %28 = math.exp %27 : vector<8x2x2xf32>
    %cst_11 = arith.constant dense<0.000000e+00> : vector<8x2xf32>
    %29 = vector.multi_reduction <add>, %28, %cst_11 [2] : vector<8x2x2xf32> to vector<8x2xf32>
    %30 = vector.shape_cast %29 : vector<8x2xf32> to vector<8x2x1xf32>
    %31 = tpu.reciprocal %30 {approx = true} : vector<8x2x1xf32> -> vector<8x2x1xf32>
    %32 = vector.broadcast %31 : vector<8x2x1xf32> to vector<8x2x2xf32>
    %33 = arith.mulf %28, %32 : vector<8x2x2xf32>
    "tpu.trace_start"() <{level = 10 : i32, message = "nbc,ncd->nbd"}> : () -> ()
    %cst_12 = arith.constant dense<0.000000e+00> : vector<8x2x8xf32>
    %34 = tpu.matmul %33, %20, %cst_12 {dimension_numbers = #tpu.dot_dimension_numbers<[2], [1], [1], [2], [0, 0, 0, 1, 1, 2], [0], [0]>} : vector<8x2x2xf32>, vector<8x2x8xf32>, vector<8x2x8xf32> -> vector<8x2x8xf32>
    "tpu.trace_stop"() : () -> ()
    %35 = vector.extract_strided_slice %13 {offsets = [0, 0, 8], sizes = [8, 2, 8], strides = [1, 1, 1]} : vector<8x2x32xf32> to vector<8x2x8xf32>
    %36 = vector.extract_strided_slice %15 {offsets = [0, 0, 8], sizes = [8, 2, 8], strides = [1, 1, 1]} : vector<8x2x32xf32> to vector<8x2x8xf32>
    %37 = vector.extract_strided_slice %17 {offsets = [0, 0, 8], sizes = [8, 2, 8], strides = [1, 1, 1]} : vector<8x2x32xf32> to vector<8x2x8xf32>
    "tpu.trace_start"() <{level = 10 : i32, message = "nbd,ncd->nbc"}> : () -> ()
    %cst_13 = arith.constant dense<0.000000e+00> : vector<8x2x2xf32>
    %38 = tpu.matmul %35, %36, %cst_13 {dimension_numbers = #tpu.dot_dimension_numbers<[2], [2], [1], [1], [0, 0, 0, 1, 1, 1], [0], [0]>} : vector<8x2x8xf32>, vector<8x2x8xf32>, vector<8x2x2xf32> -> vector<8x2x2xf32>
    "tpu.trace_stop"() : () -> ()
    %cst_14 = arith.constant 0.353553385 : f32
    %39 = vector.broadcast %cst_14 : f32 to vector<8x2x2xf32>
    %40 = arith.mulf %38, %39 : vector<8x2x2xf32>
    %cst_15 = arith.constant dense<0xFF800000> : vector<8x2xf32>
    %41 = vector.multi_reduction <maximumf>, %40, %cst_15 [2] : vector<8x2x2xf32> to vector<8x2xf32>
    %42 = vector.shape_cast %41 : vector<8x2xf32> to vector<8x2x1xf32>
    %43 = vector.broadcast %42 : vector<8x2x1xf32> to vector<8x2x2xf32>
    %44 = arith.subf %40, %43 : vector<8x2x2xf32>
    %45 = math.exp %44 : vector<8x2x2xf32>
    %cst_16 = arith.constant dense<0.000000e+00> : vector<8x2xf32>
    %46 = vector.multi_reduction <add>, %45, %cst_16 [2] : vector<8x2x2xf32> to vector<8x2xf32>
    %47 = vector.shape_cast %46 : vector<8x2xf32> to vector<8x2x1xf32>
    %48 = tpu.reciprocal %47 {approx = true} : vector<8x2x1xf32> -> vector<8x2x1xf32>
    %49 = vector.broadcast %48 : vector<8x2x1xf32> to vector<8x2x2xf32>
    %50 = arith.mulf %45, %49 : vector<8x2x2xf32>
    "tpu.trace_start"() <{level = 10 : i32, message = "nbc,ncd->nbd"}> : () -> ()
    %cst_17 = arith.constant dense<0.000000e+00> : vector<8x2x8xf32>
    %51 = tpu.matmul %50, %37, %cst_17 {dimension_numbers = #tpu.dot_dimension_numbers<[2], [1], [1], [2], [0, 0, 0, 1, 1, 2], [0], [0]>} : vector<8x2x2xf32>, vector<8x2x8xf32>, vector<8x2x8xf32> -> vector<8x2x8xf32>
    "tpu.trace_stop"() : () -> ()
    %52 = vector.extract_strided_slice %13 {offsets = [0, 0, 16], sizes = [8, 2, 8], strides = [1, 1, 1]} : vector<8x2x32xf32> to vector<8x2x8xf32>
    %53 = vector.extract_strided_slice %15 {offsets = [0, 0, 16], sizes = [8, 2, 8], strides = [1, 1, 1]} : vector<8x2x32xf32> to vector<8x2x8xf32>
    %54 = vector.extract_strided_slice %17 {offsets = [0, 0, 16], sizes = [8, 2, 8], strides = [1, 1, 1]} : vector<8x2x32xf32> to vector<8x2x8xf32>
    "tpu.trace_start"() <{level = 10 : i32, message = "nbd,ncd->nbc"}> : () -> ()
    %cst_18 = arith.constant dense<0.000000e+00> : vector<8x2x2xf32>
    %55 = tpu.matmul %52, %53, %cst_18 {dimension_numbers = #tpu.dot_dimension_numbers<[2], [2], [1], [1], [0, 0, 0, 1, 1, 1], [0], [0]>} : vector<8x2x8xf32>, vector<8x2x8xf32>, vector<8x2x2xf32> -> vector<8x2x2xf32>
    "tpu.trace_stop"() : () -> ()
    %cst_19 = arith.constant 0.353553385 : f32
    %56 = vector.broadcast %cst_19 : f32 to vector<8x2x2xf32>
    %57 = arith.mulf %55, %56 : vector<8x2x2xf32>
    %cst_20 = arith.constant dense<0xFF800000> : vector<8x2xf32>
    %58 = vector.multi_reduction <maximumf>, %57, %cst_20 [2] : vector<8x2x2xf32> to vector<8x2xf32>
    %59 = vector.shape_cast %58 : vector<8x2xf32> to vector<8x2x1xf32>
    %60 = vector.broadcast %59 : vector<8x2x1xf32> to vector<8x2x2xf32>
    %61 = arith.subf %57, %60 : vector<8x2x2xf32>
    %62 = math.exp %61 : vector<8x2x2xf32>
    %cst_21 = arith.constant dense<0.000000e+00> : vector<8x2xf32>
    %63 = vector.multi_reduction <add>, %62, %cst_21 [2] : vector<8x2x2xf32> to vector<8x2xf32>
    %64 = vector.shape_cast %63 : vector<8x2xf32> to vector<8x2x1xf32>
    %65 = tpu.reciprocal %64 {approx = true} : vector<8x2x1xf32> -> vector<8x2x1xf32>
    %66 = vector.broadcast %65 : vector<8x2x1xf32> to vector<8x2x2xf32>
    %67 = arith.mulf %62, %66 : vector<8x2x2xf32>
    "tpu.trace_start"() <{level = 10 : i32, message = "nbc,ncd->nbd"}> : () -> ()
    %cst_22 = arith.constant dense<0.000000e+00> : vector<8x2x8xf32>
    %68 = tpu.matmul %67, %54, %cst_22 {dimension_numbers = #tpu.dot_dimension_numbers<[2], [1], [1], [2], [0, 0, 0, 1, 1, 2], [0], [0]>} : vector<8x2x2xf32>, vector<8x2x8xf32>, vector<8x2x8xf32> -> vector<8x2x8xf32>
    "tpu.trace_stop"() : () -> ()
    %69 = vector.extract_strided_slice %13 {offsets = [0, 0, 24], sizes = [8, 2, 8], strides = [1, 1, 1]} : vector<8x2x32xf32> to vector<8x2x8xf32>
    %70 = vector.extract_strided_slice %15 {offsets = [0, 0, 24], sizes = [8, 2, 8], strides = [1, 1, 1]} : vector<8x2x32xf32> to vector<8x2x8xf32>
    %71 = vector.extract_strided_slice %17 {offsets = [0, 0, 24], sizes = [8, 2, 8], strides = [1, 1, 1]} : vector<8x2x32xf32> to vector<8x2x8xf32>
    "tpu.trace_start"() <{level = 10 : i32, message = "nbd,ncd->nbc"}> : () -> ()
    %cst_23 = arith.constant dense<0.000000e+00> : vector<8x2x2xf32>
    %72 = tpu.matmul %69, %70, %cst_23 {dimension_numbers = #tpu.dot_dimension_numbers<[2], [2], [1], [1], [0, 0, 0, 1, 1, 1], [0], [0]>} : vector<8x2x8xf32>, vector<8x2x8xf32>, vector<8x2x2xf32> -> vector<8x2x2xf32>
    "tpu.trace_stop"() : () -> ()
    %cst_24 = arith.constant 0.353553385 : f32
    %73 = vector.broadcast %cst_24 : f32 to vector<8x2x2xf32>
    %74 = arith.mulf %72, %73 : vector<8x2x2xf32>
    %cst_25 = arith.constant dense<0xFF800000> : vector<8x2xf32>
    %75 = vector.multi_reduction <maximumf>, %74, %cst_25 [2] : vector<8x2x2xf32> to vector<8x2xf32>
    %76 = vector.shape_cast %75 : vector<8x2xf32> to vector<8x2x1xf32>
    %77 = vector.broadcast %76 : vector<8x2x1xf32> to vector<8x2x2xf32>
    %78 = arith.subf %74, %77 : vector<8x2x2xf32>
    %79 = math.exp %78 : vector<8x2x2xf32>
    %cst_26 = arith.constant dense<0.000000e+00> : vector<8x2xf32>
    %80 = vector.multi_reduction <add>, %79, %cst_26 [2] : vector<8x2x2xf32> to vector<8x2xf32>
    %81 = vector.shape_cast %80 : vector<8x2xf32> to vector<8x2x1xf32>
    %82 = tpu.reciprocal %81 {approx = true} : vector<8x2x1xf32> -> vector<8x2x1xf32>
    %83 = vector.broadcast %82 : vector<8x2x1xf32> to vector<8x2x2xf32>
    %84 = arith.mulf %79, %83 : vector<8x2x2xf32>
    "tpu.trace_start"() <{level = 10 : i32, message = "nbc,ncd->nbd"}> : () -> ()
    %cst_27 = arith.constant dense<0.000000e+00> : vector<8x2x8xf32>
    %85 = tpu.matmul %84, %71, %cst_27 {dimension_numbers = #tpu.dot_dimension_numbers<[2], [1], [1], [2], [0, 0, 0, 1, 1, 2], [0], [0]>} : vector<8x2x2xf32>, vector<8x2x8xf32>, vector<8x2x8xf32> -> vector<8x2x8xf32>
    "tpu.trace_stop"() : () -> ()
    %86 = tpu.concatenate %34, %51, %68, %85 in 2 : vector<8x2x8xf32>, vector<8x2x8xf32>, vector<8x2x8xf32>, vector<8x2x8xf32> -> vector<8x2x32xf32>
    %87 = vector.shape_cast %86 : vector<8x2x32xf32> to vector<16x32xf32>
    %88 = arith.truncf %87 : vector<16x32xf32> to vector<16x32xbf16>
    %c0_28 = arith.constant 0 : index
    %c0_29 = arith.constant 0 : index
    %c0_30 = arith.constant 0 : index
    %89 = vector.load %arg7[%c0_28, %c0_29, %c0_30] : memref<1x32x32xbf16, #tpu.memory_space<vmem>>, vector<1x32x32xbf16>
    %90 = vector.shape_cast %89 : vector<1x32x32xbf16> to vector<32x32xbf16>
    %cst_31 = arith.constant dense<0.000000e+00> : vector<16x32xf32>
    %91 = tpu.matmul %88, %90, %cst_31 {dimension_numbers = #tpu.dot_dimension_numbers<[1], [0], [0], [1], [0, 0, 1, 1], [], []>} : vector<16x32xbf16>, vector<32x32xbf16>, vector<16x32xf32> -> vector<16x32xf32>
    %c0_32 = arith.constant 0 : index
    %c0_33 = arith.constant 0 : index
    %c0_34 = arith.constant 0 : index
    %92 = vector.load %arg8[%c0_32, %c0_33, %c0_34] : memref<1x1x32xf32, #tpu.memory_space<vmem>>, vector<1x1x32xf32>
    %93 = vector.shape_cast %92 : vector<1x1x32xf32> to vector<1x32xf32>
    %94 = vector.broadcast %93 : vector<1x32xf32> to vector<16x32xf32>
    %95 = arith.addf %91, %94 : vector<16x32xf32>
    %96 = arith.addf %3, %95 : vector<16x32xf32>
    %c0_35 = arith.constant 0 : index
    %c0_36 = arith.constant 0 : index
    %c0_37 = arith.constant 0 : index
    %97 = vector.load %arg9[%c0_35, %c0_36, %c0_37] : memref<1x1x32xf32, #tpu.memory_space<vmem>>, vector<1x1x32xf32>
    %98 = vector.shape_cast %97 : vector<1x1x32xf32> to vector<1x32xf32>
    %c0_38 = arith.constant 0 : index
    %c0_39 = arith.constant 0 : index
    %c0_40 = arith.constant 0 : index
    %99 = vector.load %arg10[%c0_38, %c0_39, %c0_40] : memref<1x1x32xf32, #tpu.memory_space<vmem>>, vector<1x1x32xf32>
    %100 = vector.shape_cast %99 : vector<1x1x32xf32> to vector<1x32xf32>
    %cst_41 = arith.constant dense<0.000000e+00> : vector<16xf32>
    %101 = vector.multi_reduction <add>, %96, %cst_41 [1] : vector<16x32xf32> to vector<16xf32>
    %102 = vector.shape_cast %101 : vector<16xf32> to vector<16x1xf32>
    %cst_42 = arith.constant 3.200000e+01 : f32
    %103 = vector.broadcast %cst_42 : f32 to vector<16x1xf32>
    %104 = arith.divf %102, %103 : vector<16x1xf32>
    %105 = vector.broadcast %104 : vector<16x1xf32> to vector<16x32xf32>
    %106 = arith.subf %96, %105 : vector<16x32xf32>
    %107 = arith.mulf %106, %106 : vector<16x32xf32>
    %cst_43 = arith.constant dense<0.000000e+00> : vector<16xf32>
    %108 = vector.multi_reduction <add>, %107, %cst_43 [1] : vector<16x32xf32> to vector<16xf32>
    %109 = vector.shape_cast %108 : vector<16xf32> to vector<16x1xf32>
    %cst_44 = arith.constant 3.200000e+01 : f32
    %110 = vector.broadcast %cst_44 : f32 to vector<16x1xf32>
    %111 = arith.divf %109, %110 : vector<16x1xf32>
    %cst_45 = arith.constant 9.99999974E-6 : f32
    %112 = vector.broadcast %cst_45 : f32 to vector<16x1xf32>
    %113 = arith.addf %111, %112 : vector<16x1xf32>
    %114 = math.rsqrt %113 : vector<16x1xf32>
    %115 = vector.broadcast %114 : vector<16x1xf32> to vector<16x32xf32>
    %116 = arith.mulf %106, %115 : vector<16x32xf32>
    %117 = vector.broadcast %98 : vector<1x32xf32> to vector<16x32xf32>
    %118 = arith.mulf %116, %117 : vector<16x32xf32>
    %119 = vector.broadcast %100 : vector<1x32xf32> to vector<16x32xf32>
    %120 = arith.addf %118, %119 : vector<16x32xf32>
    %121 = arith.truncf %120 : vector<16x32xf32> to vector<16x32xbf16>
    %c0_46 = arith.constant 0 : index
    %c0_47 = arith.constant 0 : index
    %c0_48 = arith.constant 0 : index
    %122 = vector.load %arg13[%c0_46, %c0_47, %c0_48] : memref<1x32x2048xbf16, #tpu.memory_space<vmem>>, vector<1x32x2048xbf16>
    %123 = vector.shape_cast %122 : vector<1x32x2048xbf16> to vector<32x2048xbf16>
    %cst_49 = arith.constant dense<0.000000e+00> : vector<16x2048xf32>
    %124 = tpu.matmul %121, %123, %cst_49 {dimension_numbers = #tpu.dot_dimension_numbers<[1], [0], [0], [1], [0, 0, 1, 1], [], []>} : vector<16x32xbf16>, vector<32x2048xbf16>, vector<16x2048xf32> -> vector<16x2048xf32>
    %c0_50 = arith.constant 0 : index
    %c0_51 = arith.constant 0 : index
    %c0_52 = arith.constant 0 : index
    %125 = vector.load %arg14[%c0_50, %c0_51, %c0_52] : memref<1x1x2048xf32, #tpu.memory_space<vmem>>, vector<1x1x2048xf32>
    %126 = vector.shape_cast %125 : vector<1x1x2048xf32> to vector<1x2048xf32>
    %127 = vector.broadcast %126 : vector<1x2048xf32> to vector<16x2048xf32>
    %128 = arith.addf %124, %127 : vector<16x2048xf32>
    %cst_53 = arith.constant 0.000000e+00 : f32
    %129 = vector.broadcast %cst_53 : f32 to vector<16x2048xf32>
    %130 = arith.maximumf %128, %129 : vector<16x2048xf32>
    %131 = arith.truncf %130 : vector<16x2048xf32> to vector<16x2048xbf16>
    %c0_54 = arith.constant 0 : index
    %c0_55 = arith.constant 0 : index
    %c0_56 = arith.constant 0 : index
    %132 = vector.load %arg15[%c0_54, %c0_55, %c0_56] : memref<1x2048x32xbf16, #tpu.memory_space<vmem>>, vector<1x2048x32xbf16>
    %133 = vector.shape_cast %132 : vector<1x2048x32xbf16> to vector<2048x32xbf16>
    %cst_57 = arith.constant dense<0.000000e+00> : vector<16x32xf32>
    %134 = tpu.matmul %131, %133, %cst_57 {dimension_numbers = #tpu.dot_dimension_numbers<[1], [0], [0], [1], [0, 0, 1, 1], [], []>} : vector<16x2048xbf16>, vector<2048x32xbf16>, vector<16x32xf32> -> vector<16x32xf32>
    %c0_58 = arith.constant 0 : index
    %c0_59 = arith.constant 0 : index
    %c0_60 = arith.constant 0 : index
    %135 = vector.load %arg16[%c0_58, %c0_59, %c0_60] : memref<1x1x32xf32, #tpu.memory_space<vmem>>, vector<1x1x32xf32>
    %136 = vector.shape_cast %135 : vector<1x1x32xf32> to vector<1x32xf32>
    %137 = vector.broadcast %136 : vector<1x32xf32> to vector<16x32xf32>
    %138 = arith.addf %134, %137 : vector<16x32xf32>
    %139 = arith.addf %120, %138 : vector<16x32xf32>
    %c0_61 = arith.constant 0 : index
    %c0_62 = arith.constant 0 : index
    %c0_63 = arith.constant 0 : index
    %140 = vector.load %arg11[%c0_61, %c0_62, %c0_63] : memref<1x1x32xf32, #tpu.memory_space<vmem>>, vector<1x1x32xf32>
    %141 = vector.shape_cast %140 : vector<1x1x32xf32> to vector<1x32xf32>
    %c0_64 = arith.constant 0 : index
    %c0_65 = arith.constant 0 : index
    %c0_66 = arith.constant 0 : index
    %142 = vector.load %arg12[%c0_64, %c0_65, %c0_66] : memref<1x1x32xf32, #tpu.memory_space<vmem>>, vector<1x1x32xf32>
    %143 = vector.shape_cast %142 : vector<1x1x32xf32> to vector<1x32xf32>
    %cst_67 = arith.constant dense<0.000000e+00> : vector<16xf32>
    %144 = vector.multi_reduction <add>, %139, %cst_67 [1] : vector<16x32xf32> to vector<16xf32>
    %145 = vector.shape_cast %144 : vector<16xf32> to vector<16x1xf32>
    %cst_68 = arith.constant 3.200000e+01 : f32
    %146 = vector.broadcast %cst_68 : f32 to vector<16x1xf32>
    %147 = arith.divf %145, %146 : vector<16x1xf32>
    %148 = vector.broadcast %147 : vector<16x1xf32> to vector<16x32xf32>
    %149 = arith.subf %139, %148 : vector<16x32xf32>
    %150 = arith.mulf %149, %149 : vector<16x32xf32>
    %cst_69 = arith.constant dense<0.000000e+00> : vector<16xf32>
    %151 = vector.multi_reduction <add>, %150, %cst_69 [1] : vector<16x32xf32> to vector<16xf32>
    %152 = vector.shape_cast %151 : vector<16xf32> to vector<16x1xf32>
    %cst_70 = arith.constant 3.200000e+01 : f32
    %153 = vector.broadcast %cst_70 : f32 to vector<16x1xf32>
    %154 = arith.divf %152, %153 : vector<16x1xf32>
    %cst_71 = arith.constant 9.99999974E-6 : f32
    %155 = vector.broadcast %cst_71 : f32 to vector<16x1xf32>
    %156 = arith.addf %154, %155 : vector<16x1xf32>
    %157 = math.rsqrt %156 : vector<16x1xf32>
    %158 = vector.broadcast %157 : vector<16x1xf32> to vector<16x32xf32>
    %159 = arith.mulf %149, %158 : vector<16x32xf32>
    %160 = vector.broadcast %141 : vector<1x32xf32> to vector<16x32xf32>
    %161 = arith.mulf %159, %160 : vector<16x32xf32>
    %162 = vector.broadcast %143 : vector<1x32xf32> to vector<16x32xf32>
    %163 = arith.addf %161, %162 : vector<16x32xf32>
    %c0_72 = arith.constant 0 : index
    %c0_73 = arith.constant 0 : index
    %164 = vector.load %arg17[%c0_72, %c0_73] : memref<16x32xf32, #tpu.memory_space<vmem>>, vector<16x32xf32>
    tpu.vector_store %arg17[%c0_72, %c0_73], %163 {strides = array<i32>} : memref<16x32xf32, #tpu.memory_space<vmem>>, vector<16x32xf32>,
    return
  }
  func.func @transform_0(%arg0: i32, %arg1: i32) -> (i32, i32, i32) {
    %c0_i32 = arith.constant 0 : i32
    %c0_i32_0 = arith.constant 0 : i32
    %c0_i32_1 = arith.constant 0 : i32
    return %arg0, %c0_i32, %c0_i32_0 : i32, i32, i32
  }
  func.func @transform_1(%arg0: i32, %arg1: i32) -> (i32, i32, i32) {
    %c0_i32 = arith.constant 0 : i32
    %c0_i32_0 = arith.constant 0 : i32
    %c0_i32_1 = arith.constant 0 : i32
    return %arg0, %c0_i32, %c0_i32_0 : i32, i32, i32
  }
  func.func @transform_2(%arg0: i32, %arg1: i32) -> (i32, i32) {
    %c0_i32 = arith.constant 0 : i32
    %c0_i32_0 = arith.constant 0 : i32
    return %arg0, %c0_i32 : i32, i32
  }
  func.func @transform_3(%arg0: i32, %arg1: i32) -> (i32, i32, i32) {
    %c0_i32 = arith.constant 0 : i32
    %c0_i32_0 = arith.constant 0 : i32
    %c0_i32_1 = arith.constant 0 : i32
    return %arg1, %c0_i32, %c0_i32_0 : i32, i32, i32
  }
  func.func @transform_4(%arg0: i32, %arg1: i32) -> (i32, i32, i32) {
    %c0_i32 = arith.constant 0 : i32
    %c0_i32_0 = arith.constant 0 : i32
    %c0_i32_1 = arith.constant 0 : i32
    return %arg1, %c0_i32, %c0_i32_0 : i32, i32, i32
  }
  func.func @transform_5(%arg0: i32, %arg1: i32) -> (i32, i32, i32) {
    %c0_i32 = arith.constant 0 : i32
    %c0_i32_0 = arith.constant 0 : i32
    %c0_i32_1 = arith.constant 0 : i32
    return %arg1, %c0_i32, %c0_i32_0 : i32, i32, i32
  }
  func.func @transform_6(%arg0: i32, %arg1: i32) -> (i32, i32, i32) {
    %c0_i32 = arith.constant 0 : i32
    %c0_i32_0 = arith.constant 0 : i32
    %c0_i32_1 = arith.constant 0 : i32
    return %arg1, %c0_i32, %c0_i32_0 : i32, i32, i32
  }
  func.func @transform_7(%arg0: i32, %arg1: i32) -> (i32, i32, i32) {
    %c0_i32 = arith.constant 0 : i32
    %c0_i32_0 = arith.constant 0 : i32
    %c0_i32_1 = arith.constant 0 : i32
    return %arg1, %c0_i32, %c0_i32_0 : i32, i32, i32
  }
  func.func @transform_8(%arg0: i32, %arg1: i32) -> (i32, i32, i32) {
    %c0_i32 = arith.constant 0 : i32
    %c0_i32_0 = arith.constant 0 : i32
    %c0_i32_1 = arith.constant 0 : i32
    return %arg1, %c0_i32, %c0_i32_0 : i32, i32, i32
  }
  func.func @transform_9(%arg0: i32, %arg1: i32) -> (i32, i32, i32) {
    %c0_i32 = arith.constant 0 : i32
    %c0_i32_0 = arith.constant 0 : i32
    %c0_i32_1 = arith.constant 0 : i32
    return %arg1, %c0_i32, %c0_i32_0 : i32, i32, i32
  }
  func.func @transform_10(%arg0: i32, %arg1: i32) -> (i32, i32, i32) {
    %c0_i32 = arith.constant 0 : i32
    %c0_i32_0 = arith.constant 0 : i32
    %c0_i32_1 = arith.constant 0 : i32
    return %arg1, %c0_i32, %c0_i32_0 : i32, i32, i32
  }
  func.func @transform_11(%arg0: i32, %arg1: i32) -> (i32, i32, i32) {
    %c0_i32 = arith.constant 0 : i32
    %c0_i32_0 = arith.constant 0 : i32
    %c0_i32_1 = arith.constant 0 : i32
    return %arg1, %c0_i32, %c0_i32_0 : i32, i32, i32
  }
  func.func @transform_12(%arg0: i32, %arg1: i32) -> (i32, i32, i32) {
    %c0_i32 = arith.constant 0 : i32
    %c0_i32_0 = arith.constant 0 : i32
    %c0_i32_1 = arith.constant 0 : i32
    return %arg1, %c0_i32, %c0_i32_0 : i32, i32, i32
  }
  func.func @transform_13(%arg0: i32, %arg1: i32) -> (i32, i32, i32) {
    %c0_i32 = arith.constant 0 : i32
    %c0_i32_0 = arith.constant 0 : i32
    %c0_i32_1 = arith.constant 0 : i32
    return %arg1, %c0_i32, %c0_i32_0 : i32, i32, i32
  }
  func.func @transform_14(%arg0: i32, %arg1: i32) -> (i32, i32, i32) {
    %c0_i32 = arith.constant 0 : i32
    %c0_i32_0 = arith.constant 0 : i32
    %c0_i32_1 = arith.constant 0 : i32
    return %arg1, %c0_i32, %c0_i32_0 : i32, i32, i32
  }
  func.func @transform_15(%arg0: i32, %arg1: i32) -> (i32, i32) {
    %c0_i32 = arith.constant 0 : i32
    %c0_i32_0 = arith.constant 0 : i32
    return %arg0, %c0_i32 : i32, i32
  }
}

</mosaic_0001>

<llo_original>
// kernel: tpu_custom_call.1
$region0: #{tpu_custom_call.1}
  #allocation0 [shape = 'u32[]', space=smem, size = 0x4, offset = 0x4, fixed_abs, tag = 'smem constant byte address 0x4 - core index']
  #allocation1 [shape = 'u32[144,128]{1,0:T(1,128)}', space=vmem, size = 0x12000, scoped, tag = 'internal scratch']
  %s0 = inlined_call_operand.vmem [shape: f32[8,2,32], index: 0, kind: input, shape index: {}]
  %s1 = inlined_call_operand.vmem [shape: f32[8,2,32], index: 1, kind: input, shape index: {}]
  %s2 = inlined_call_operand.vmem [shape: f32[8,32], index: 2, kind: input, shape index: {}]
  %s3 = inlined_call_operand.vmem [shape: bf16[2,32,96], index: 3, kind: input, shape index: {}]
  %s4 = inlined_call_operand.vmem [shape: f32[2,1,96], index: 4, kind: input, shape index: {}]
  %s5 = inlined_call_operand.vmem [shape: bf16[2,32,32], index: 5, kind: input, shape index: {}]
  %s6 = inlined_call_operand.vmem [shape: f32[2,1,32], index: 6, kind: input, shape index: {}]
  %s7 = inlined_call_operand.vmem [shape: f32[2,1,32], index: 7, kind: input, shape index: {}]
  %s8 = inlined_call_operand.vmem [shape: f32[2,1,32], index: 8, kind: input, shape index: {}]
  %s9 = inlined_call_operand.vmem [shape: f32[2,1,32], index: 9, kind: input, shape index: {}]
  %s10 = inlined_call_operand.vmem [shape: f32[2,1,32], index: 10, kind: input, shape index: {}]
  %s11 = inlined_call_operand.vmem [shape: bf16[2,32,2048], index: 11, kind: input, shape index: {}]
  %s12 = inlined_call_operand.vmem [shape: f32[2,1,2048], index: 12, kind: input, shape index: {}]
  %s13 = inlined_call_operand.vmem [shape: bf16[2,2048,32], index: 13, kind: input, shape index: {}]
  %s14 = inlined_call_operand.vmem [shape: f32[2,1,32], index: 14, kind: input, shape index: {}]
  %s15 = inlined_call_operand.hbm [shape: f32[16,32], index: 15, kind: output, shape index: {}]
  %s16 = sld [smem:[#allocation0]]
  $region97: #{tpu_custom_call.1} parent=0
    _
  %s18 = ssub.s32 1, %s16
  %s19 = scalar_select 0, %s18, %s16
  $region1: #{tpu_custom_call.1} parent=0
    #allocation2 [shape = 'u8[8192]{0}', space=vmem, size = 0x2000, scoped, tag = 'output window, operand 0, single buffered']
    #allocation3 [shape = 's32[2]{0}', space=sflag, size = 0x8, scoped, tag = 'scoped memory for tpu_custom_call.1']
    %20 = vsyncpa [#allocation3], 0
    loop: start=0, step=1, limit=4
    $region2: #{tpu_custom_call.1} parent=1 // loop_pre_header
      _
    $region3: #{tpu_custom_call.1} parent=1 // loop_header
      %s22 = sphi 0, %s26
      %p23 = scmp.ge.s32.totalorder %s22, 4
      %s29 = sphi 0, %s41
      %s30 = sphi 0, %s37
      %s31 = sphi 0, %s29
      %s32 = sphi 0, %s30
      %s33 = sphi 0, %s31
      %s34 = sphi 0, %s32
      %s44 = sphi 0, %s46
      %s47 = sphi 0, %s44
      %s48 = sphi 0, %s47
      %s64 = sphi 0, %s48
      %s70 = sphi 0, %s72
      %s73 = sphi 0, %s70
      %s74 = sphi 0, %s73
      %s90 = sphi 0, %s74
      %s96 = sphi 0, %s98
      %s99 = sphi 0, %s96
      %s100 = sphi 0, %s99
      %s116 = sphi 0, %s100
      %s122 = sphi 0, %s124
      %s125 = sphi 0, %s122
      %s126 = sphi 0, %s125
      %s142 = sphi 0, %s126
      %s148 = sphi 0, %s150
      %s151 = sphi 0, %s148
      %s152 = sphi 0, %s151
      %s168 = sphi 0, %s152
      %s174 = sphi 0, %s176
      %s177 = sphi 0, %s174
      %s178 = sphi 0, %s177
      %s194 = sphi 0, %s178
      %s200 = sphi 0, %s202
      %s203 = sphi 0, %s200
      %s204 = sphi 0, %s203
      %s220 = sphi 0, %s204
      %s226 = sphi 0, %s228
      %s229 = sphi 0, %s226
      %s230 = sphi 0, %s229
      %s246 = sphi 0, %s230
      %s252 = sphi 0, %s254
      %s255 = sphi 0, %s252
      %s256 = sphi 0, %s255
      %s272 = sphi 0, %s256
      %s278 = sphi 0, %s280
      %s281 = sphi 0, %s278
      %s282 = sphi 0, %s281
      %s298 = sphi 0, %s282
      %s304 = sphi 0, %s306
      %s307 = sphi 0, %s304
      %s308 = sphi 0, %s307
      %s324 = sphi 0, %s308
      %s330 = sphi 0, %s332
      %s333 = sphi 0, %s330
      %s334 = sphi 0, %s333
      %s350 = sphi 0, %s334
      %s356 = sphi 0, %s358
      %s359 = sphi 0, %s356
      %s360 = sphi 0, %s359
      %s376 = sphi 0, %s360
      %s382 = sphi 0, %s384
      %s385 = sphi 0, %s382
      %s386 = sphi 0, %s385
      %s402 = sphi 0, %s386
      %s408 = sphi 0, %s410
      %s411 = sphi 0, %s408
      %s412 = sphi 0, %s411
      %s428 = sphi 0, %s412
      %s434 = sphi 0, %s436
      %s437 = sphi 0, %s434
      %s438 = sphi 0, %s437
      %s454 = sphi 0, %s438
    $region4: #{tpu_custom_call.1} parent=1 // loop_header_branch
      %25 = sbr.rel (%p23) target = $region8
    $region5: #{tpu_custom_call.1} parent=1 // loop_body
      %s27 = ssub.s32 %s22, 1
      %s28 = ssub.s32 %s22, 2
      %s35 = sadd.s32 1, %s30
      %p36 = scmp.ge.s32.totalorder %s35, 2
      %s37 = scalar_select %p36, 0, %s35
      %s38 = sadd.s32 1, %s29
      %s39 = scalar_select %p36, %s38, %s29
      %p40 = scmp.ge.s32.totalorder %s39, 1
      %s41 = scalar_select %p40, 0, %s39
      %s42 = ssub.s32 %s29, %s41
      %p43 = scmp.eq.s32.totalorder %s42, 0
      %s45 = sadd.s32 %s44, 1
      %s46 = scalar_select %p43, %s44, %s45
      %p49 = pneg %p43
      %p50 = scmp.eq.s32.totalorder %s22, 1
      %p51 = por %p49, %p50
      %p52 = scmp.ne.s32.totalorder %s44, %s47
      %p53 = scmp.eq.s32.totalorder %s22, 0
      %p54 = por %p52, %p53
      %p55 = scmp.ne.s32.totalorder %s44, %s47
      %p56 = scmp.eq.s32.totalorder %s27, 1
      %p57 = por %p55, %p56
      %p58 = scmp.ne.s32.totalorder %s47, %s48
      %p59 = scmp.eq.s32.totalorder %s27, 0
      %p60 = por %p58, %p59
      %p61 = scmp.ne.s32.totalorder %s47, %s48
      %p62 = scmp.eq.s32.totalorder %s28, 1
      %p63 = por %p61, %p62
      %p65 = scmp.ne.s32.totalorder %s48, %s64
      %p66 = scmp.eq.s32.totalorder %s28, 0
      %p67 = por %p65, %p66
      %s68 = ssub.s32 %s29, %s41
      %p69 = scmp.eq.s32.totalorder %s68, 0
      %s71 = sadd.s32 %s70, 1
      %s72 = scalar_select %p69, %s70, %s71
      %p75 = pneg %p69
      %p76 = scmp.eq.s32.totalorder %s22, 1
      %p77 = por %p75, %p76
      %p78 = scmp.ne.s32.totalorder %s70, %s73
      %p79 = scmp.eq.s32.totalorder %s22, 0
      %p80 = por %p78, %p79
      %p81 = scmp.ne.s32.totalorder %s70, %s73
      %p82 = scmp.eq.s32.totalorder %s27, 1
      %p83 = por %p81, %p82
      %p84 = scmp.ne.s32.totalorder %s73, %s74
      %p85 = scmp.eq.s32.totalorder %s27, 0
      %p86 = por %p84, %p85
      %p87 = scmp.ne.s32.totalorder %s73, %s74
      %p88 = scmp.eq.s32.totalorder %s28, 1
      %p89 = por %p87, %p88
      %p91 = scmp.ne.s32.totalorder %s74, %s90
      %p92 = scmp.eq.s32.totalorder %s28, 0
      %p93 = por %p91, %p92
      %s94 = ssub.s32 %s29, %s41
      %p95 = scmp.eq.s32.totalorder %s94, 0
      %s97 = sadd.s32 %s96, 1
      %s98 = scalar_select %p95, %s96, %s97
      %p101 = pneg %p95
      %p102 = scmp.eq.s32.totalorder %s22, 1
      %p103 = por %p101, %p102
      %p104 = scmp.ne.s32.totalorder %s96, %s99
      %p105 = scmp.eq.s32.totalorder %s22, 0
      %p106 = por %p104, %p105
      %p107 = scmp.ne.s32.totalorder %s96, %s99
      %p108 = scmp.eq.s32.totalorder %s27, 1
      %p109 = por %p107, %p108
      %p110 = scmp.ne.s32.totalorder %s99, %s100
      %p111 = scmp.eq.s32.totalorder %s27, 0
      %p112 = por %p110, %p111
      %p113 = scmp.ne.s32.totalorder %s99, %s100
      %p114 = scmp.eq.s32.totalorder %s28, 1
      %p115 = por %p113, %p114
      %p117 = scmp.ne.s32.totalorder %s100, %s116
      %p118 = scmp.eq.s32.totalorder %s28, 0
      %p119 = por %p117, %p118
      %s120 = ssub.s32 %s30, %s37
      %p121 = scmp.eq.s32.totalorder %s120, 0
      %s123 = sadd.s32 %s122, 1
      %s124 = scalar_select %p121, %s122, %s123
      %p127 = pneg %p121
      %p128 = scmp.eq.s32.totalorder %s22, 1
      %p129 = por %p127, %p128
      %p130 = scmp.ne.s32.totalorder %s122, %s125
      %p131 = scmp.eq.s32.totalorder %s22, 0
      %p132 = por %p130, %p131
      %p133 = scmp.ne.s32.totalorder %s122, %s125
      %p134 = scmp.eq.s32.totalorder %s27, 1
      %p135 = por %p133, %p134
      %p136 = scmp.ne.s32.totalorder %s125, %s126
      %p137 = scmp.eq.s32.totalorder %s27, 0
      %p138 = por %p136, %p137
      %p139 = scmp.ne.s32.totalorder %s125, %s126
      %p140 = scmp.eq.s32.totalorder %s28, 1
      %p141 = por %p139, %p140
      %p143 = scmp.ne.s32.totalorder %s126, %s142
      %p144 = scmp.eq.s32.totalorder %s28, 0
      %p145 = por %p143, %p144
      %s146 = ssub.s32 %s30, %s37
      %p147 = scmp.eq.s32.totalorder %s146, 0
      %s149 = sadd.s32 %s148, 1
      %s150 = scalar_select %p147, %s148, %s149
      %p153 = pneg %p147
      %p154 = scmp.eq.s32.totalorder %s22, 1
      %p155 = por %p153, %p154
      %p156 = scmp.ne.s32.totalorder %s148, %s151
      %p157 = scmp.eq.s32.totalorder %s22, 0
      %p158 = por %p156, %p157
      %p159 = scmp.ne.s32.totalorder %s148, %s151
      %p160 = scmp.eq.s32.totalorder %s27, 1
      %p161 = por %p159, %p160
      %p162 = scmp.ne.s32.totalorder %s151, %s152
      %p163 = scmp.eq.s32.totalorder %s27, 0
      %p164 = por %p162, %p163
      %p165 = scmp.ne.s32.totalorder %s151, %s152
      %p166 = scmp.eq.s32.totalorder %s28, 1
      %p167 = por %p165, %p166
      %p169 = scmp.ne.s32.totalorder %s152, %s168
      %p170 = scmp.eq.s32.totalorder %s28, 0
      %p171 = por %p169, %p170
      %s172 = ssub.s32 %s30, %s37
      %p173 = scmp.eq.s32.totalorder %s172, 0
      %s175 = sadd.s32 %s174, 1
      %s176 = scalar_select %p173, %s174, %s175
      %p179 = pneg %p173
      %p180 = scmp.eq.s32.totalorder %s22, 1
      %p181 = por %p179, %p180
      %p182 = scmp.ne.s32.totalorder %s174, %s177
      %p183 = scmp.eq.s32.totalorder %s22, 0
      %p184 = por %p182, %p183
      %p185 = scmp.ne.s32.totalorder %s174, %s177
      %p186 = scmp.eq.s32.totalorder %s27, 1
      %p187 = por %p185, %p186
      %p188 = scmp.ne.s32.totalorder %s177, %s178
      %p189 = scmp.eq.s32.totalorder %s27, 0
      %p190 = por %p188, %p189
      %p191 = scmp.ne.s32.totalorder %s177, %s178
      %p192 = scmp.eq.s32.totalorder %s28, 1
      %p193 = por %p191, %p192
      %p195 = scmp.ne.s32.totalorder %s178, %s194
      %p196 = scmp.eq.s32.totalorder %s28, 0
      %p197 = por %p195, %p196
      %s198 = ssub.s32 %s30, %s37
      %p199 = scmp.eq.s32.totalorder %s198, 0
      %s201 = sadd.s32 %s200, 1
      %s202 = scalar_select %p199, %s200, %s201
      %p205 = pneg %p199
      %p206 = scmp.eq.s32.totalorder %s22, 1
      %p207 = por %p205, %p206
      %p208 = scmp.ne.s32.totalorder %s200, %s203
      %p209 = scmp.eq.s32.totalorder %s22, 0
      %p210 = por %p208, %p209
      %p211 = scmp.ne.s32.totalorder %s200, %s203
      %p212 = scmp.eq.s32.totalorder %s27, 1
      %p213 = por %p211, %p212
      %p214 = scmp.ne.s32.totalorder %s203, %s204
      %p215 = scmp.eq.s32.totalorder %s27, 0
      %p216 = por %p214, %p215
      %p217 = scmp.ne.s32.totalorder %s203, %s204
      %p218 = scmp.eq.s32.totalorder %s28, 1
      %p219 = por %p217, %p218
      %p221 = scmp.ne.s32.totalorder %s204, %s220
      %p222 = scmp.eq.s32.totalorder %s28, 0
      %p223 = por %p221, %p222
      %s224 = ssub.s32 %s30, %s37
      %p225 = scmp.eq.s32.totalorder %s224, 0
      %s227 = sadd.s32 %s226, 1
      %s228 = scalar_select %p225, %s226, %s227
      %p231 = pneg %p225
      %p232 = scmp.eq.s32.totalorder %s22, 1
      %p233 = por %p231, %p232
      %p234 = scmp.ne.s32.totalorder %s226, %s229
      %p235 = scmp.eq.s32.totalorder %s22, 0
      %p236 = por %p234, %p235
      %p237 = scmp.ne.s32.totalorder %s226, %s229
      %p238 = scmp.eq.s32.totalorder %s27, 1
      %p239 = por %p237, %p238
      %p240 = scmp.ne.s32.totalorder %s229, %s230
      %p241 = scmp.eq.s32.totalorder %s27, 0
      %p242 = por %p240, %p241
      %p243 = scmp.ne.s32.totalorder %s229, %s230
      %p244 = scmp.eq.s32.totalorder %s28, 1
      %p245 = por %p243, %p244
      %p247 = scmp.ne.s32.totalorder %s230, %s246
      %p248 = scmp.eq.s32.totalorder %s28, 0
      %p249 = por %p247, %p248
      %s250 = ssub.s32 %s30, %s37
      %p251 = scmp.eq.s32.totalorder %s250, 0
      %s253 = sadd.s32 %s252, 1
      %s254 = scalar_select %p251, %s252, %s253
      %p257 = pneg %p251
      %p258 = scmp.eq.s32.totalorder %s22, 1
      %p259 = por %p257, %p258
      %p260 = scmp.ne.s32.totalorder %s252, %s255
      %p261 = scmp.eq.s32.totalorder %s22, 0
      %p262 = por %p260, %p261
      %p263 = scmp.ne.s32.totalorder %s252, %s255
      %p264 = scmp.eq.s32.totalorder %s27, 1
      %p265 = por %p263, %p264
      %p266 = scmp.ne.s32.totalorder %s255, %s256
      %p267 = scmp.eq.s32.totalorder %s27, 0
      %p268 = por %p266, %p267
      %p269 = scmp.ne.s32.totalorder %s255, %s256
      %p270 = scmp.eq.s32.totalorder %s28, 1
      %p271 = por %p269, %p270
      %p273 = scmp.ne.s32.totalorder %s256, %s272
      %p274 = scmp.eq.s32.totalorder %s28, 0
      %p275 = por %p273, %p274
      %s276 = ssub.s32 %s30, %s37
      %p277 = scmp.eq.s32.totalorder %s276, 0
      %s279 = sadd.s32 %s278, 1
      %s280 = scalar_select %p277, %s278, %s279
      %p283 = pneg %p277
      %p284 = scmp.eq.s32.totalorder %s22, 1
      %p285 = por %p283, %p284
      %p286 = scmp.ne.s32.totalorder %s278, %s281
      %p287 = scmp.eq.s32.totalorder %s22, 0
      %p288 = por %p286, %p287
      %p289 = scmp.ne.s32.totalorder %s278, %s281
      %p290 = scmp.eq.s32.totalorder %s27, 1
      %p291 = por %p289, %p290
      %p292 = scmp.ne.s32.totalorder %s281, %s282
      %p293 = scmp.eq.s32.totalorder %s27, 0
      %p294 = por %p292, %p293
      %p295 = scmp.ne.s32.totalorder %s281, %s282
      %p296 = scmp.eq.s32.totalorder %s28, 1
      %p297 = por %p295, %p296
      %p299 = scmp.ne.s32.totalorder %s282, %s298
      %p300 = scmp.eq.s32.totalorder %s28, 0
      %p301 = por %p299, %p300
      %s302 = ssub.s32 %s30, %s37
      %p303 = scmp.eq.s32.totalorder %s302, 0
      %s305 = sadd.s32 %s304, 1
      %s306 = scalar_select %p303, %s304, %s305
      %p309 = pneg %p303
      %p310 = scmp.eq.s32.totalorder %s22, 1
      %p311 = por %p309, %p310
      %p312 = scmp.ne.s32.totalorder %s304, %s307
      %p313 = scmp.eq.s32.totalorder %s22, 0
      %p314 = por %p312, %p313
      %p315 = scmp.ne.s32.totalorder %s304, %s307
      %p316 = scmp.eq.s32.totalorder %s27, 1
      %p317 = por %p315, %p316
      %p318 = scmp.ne.s32.totalorder %s307, %s308
      %p319 = scmp.eq.s32.totalorder %s27, 0
      %p320 = por %p318, %p319
      %p321 = scmp.ne.s32.totalorder %s307, %s308
      %p322 = scmp.eq.s32.totalorder %s28, 1
      %p323 = por %p321, %p322
      %p325 = scmp.ne.s32.totalorder %s308, %s324
      %p326 = scmp.eq.s32.totalorder %s28, 0
      %p327 = por %p325, %p326
      %s328 = ssub.s32 %s30, %s37
      %p329 = scmp.eq.s32.totalorder %s328, 0
      %s331 = sadd.s32 %s330, 1
      %s332 = scalar_select %p329, %s330, %s331
      %p335 = pneg %p329
      %p336 = scmp.eq.s32.totalorder %s22, 1
      %p337 = por %p335, %p336
      %p338 = scmp.ne.s32.totalorder %s330, %s333
      %p339 = scmp.eq.s32.totalorder %s22, 0
      %p340 = por %p338, %p339
      %p341 = scmp.ne.s32.totalorder %s330, %s333
      %p342 = scmp.eq.s32.totalorder %s27, 1
      %p343 = por %p341, %p342
      %p344 = scmp.ne.s32.totalorder %s333, %s334
      %p345 = scmp.eq.s32.totalorder %s27, 0
      %p346 = por %p344, %p345
      %p347 = scmp.ne.s32.totalorder %s333, %s334
      %p348 = scmp.eq.s32.totalorder %s28, 1
      %p349 = por %p347, %p348
      %p351 = scmp.ne.s32.totalorder %s334, %s350
      %p352 = scmp.eq.s32.totalorder %s28, 0
      %p353 = por %p351, %p352
      %s354 = ssub.s32 %s30, %s37
      %p355 = scmp.eq.s32.totalorder %s354, 0
      %s357 = sadd.s32 %s356, 1
      %s358 = scalar_select %p355, %s356, %s357
      %p361 = pneg %p355
      %p362 = scmp.eq.s32.totalorder %s22, 1
      %p363 = por %p361, %p362
      %p364 = scmp.ne.s32.totalorder %s356, %s359
      %p365 = scmp.eq.s32.totalorder %s22, 0
      %p366 = por %p364, %p365
      %p367 = scmp.ne.s32.totalorder %s356, %s359
      %p368 = scmp.eq.s32.totalorder %s27, 1
      %p369 = por %p367, %p368
      %p370 = scmp.ne.s32.totalorder %s359, %s360
      %p371 = scmp.eq.s32.totalorder %s27, 0
      %p372 = por %p370, %p371
      %p373 = scmp.ne.s32.totalorder %s359, %s360
      %p374 = scmp.eq.s32.totalorder %s28, 1
      %p375 = por %p373, %p374
      %p377 = scmp.ne.s32.totalorder %s360, %s376
      %p378 = scmp.eq.s32.totalorder %s28, 0
      %p379 = por %p377, %p378
      %s380 = ssub.s32 %s30, %s37
      %p381 = scmp.eq.s32.totalorder %s380, 0
      %s383 = sadd.s32 %s382, 1
      %s384 = scalar_select %p381, %s382, %s383
      %p387 = pneg %p381
      %p388 = scmp.eq.s32.totalorder %s22, 1
      %p389 = por %p387, %p388
      %p390 = scmp.ne.s32.totalorder %s382, %s385
      %p391 = scmp.eq.s32.totalorder %s22, 0
      %p392 = por %p390, %p391
      %p393 = scmp.ne.s32.totalorder %s382, %s385
      %p394 = scmp.eq.s32.totalorder %s27, 1
      %p395 = por %p393, %p394
      %p396 = scmp.ne.s32.totalorder %s385, %s386
      %p397 = scmp.eq.s32.totalorder %s27, 0
      %p398 = por %p396, %p397
      %p399 = scmp.ne.s32.totalorder %s385, %s386
      %p400 = scmp.eq.s32.totalorder %s28, 1
      %p401 = por %p399, %p400
      %p403 = scmp.ne.s32.totalorder %s386, %s402
      %p404 = scmp.eq.s32.totalorder %s28, 0
      %p405 = por %p403, %p404
      %s406 = ssub.s32 %s30, %s37
      %p407 = scmp.eq.s32.totalorder %s406, 0
      %s409 = sadd.s32 %s408, 1
      %s410 = scalar_select %p407, %s408, %s409
      %p413 = pneg %p407
      %p414 = scmp.eq.s32.totalorder %s22, 1
      %p415 = por %p413, %p414
      %p416 = scmp.ne.s32.totalorder %s408, %s411
      %p417 = scmp.eq.s32.totalorder %s22, 0
      %p418 = por %p416, %p417
      %p419 = scmp.ne.s32.totalorder %s408, %s411
      %p420 = scmp.eq.s32.totalorder %s27, 1
      %p421 = por %p419, %p420
      %p422 = scmp.ne.s32.totalorder %s411, %s412
      %p423 = scmp.eq.s32.totalorder %s27, 0
      %p424 = por %p422, %p423
      %p425 = scmp.ne.s32.totalorder %s411, %s412
      %p426 = scmp.eq.s32.totalorder %s28, 1
      %p427 = por %p425, %p426
      %p429 = scmp.ne.s32.totalorder %s412, %s428
      %p430 = scmp.eq.s32.totalorder %s28, 0
      %p431 = por %p429, %p430
      %s432 = ssub.s32 %s29, %s41
      %p433 = scmp.eq.s32.totalorder %s432, 0
      %s435 = sadd.s32 %s434, 1
      %s436 = scalar_select %p433, %s434, %s435
      %p439 = pneg %p433
      %p440 = scmp.eq.s32.totalorder %s22, 1
      %p441 = por %p439, %p440
      %p442 = scmp.ne.s32.totalorder %s434, %s437
      %p443 = scmp.eq.s32.totalorder %s22, 0
      %p444 = por %p442, %p443
      %p445 = scmp.ne.s32.totalorder %s434, %s437
      %p446 = scmp.eq.s32.totalorder %s27, 1
      %p447 = por %p445, %p446
      %p448 = scmp.ne.s32.totalorder %s437, %s438
      %p449 = scmp.eq.s32.totalorder %s27, 0
      %p450 = por %p448, %p449
      %p451 = scmp.ne.s32.totalorder %s437, %s438
      %p452 = scmp.eq.s32.totalorder %s28, 1
      %p453 = por %p451, %p452
      %p455 = scmp.ne.s32.totalorder %s438, %s454
      %p456 = scmp.eq.s32.totalorder %s28, 0
      %p457 = por %p455, %p456
      %p458 = scmp.le.s32.totalorder 1, %s22
      %p459 = scmp.lt.s32.totalorder %s22, 3
      %p460 = pnand %p458, %p459
      %p461 = pneg %p460
      // Predicated region
      $region9: #{tpu_custom_call.1} parent=5 // pred_check
        _
      $region10: #{tpu_custom_call.1} parent=5 // pred_check_branch
        %463 = sbr.rel (%p460) target = $region12
      $region11: #{tpu_custom_call.1} parent=5 // pred_region
        %s464 = ssub.s32 %s22, 1
        // Predicated region
        $region13: #{tpu_custom_call.1} parent=11 // pred_check
          %p465 = pneg %p60
        $region14: #{tpu_custom_call.1} parent=11 // pred_check_branch
          %467 = sbr.rel (%p465) target = $region16
        $region15: #{tpu_custom_call.1} parent=11 // pred_region
          %s468 = smul.u32 8, %s31
          %p469 = scmp.lt.s32.totalorder %s468, 7
          %s470 = scalar_select %p469, %s468, 7
          %s471 = smul.addr %s470, 2
          %s472 = scalar_lea.vmem %s0, %s471
          %s473 = smul.u32 8, %s31
        $region16: #{tpu_custom_call.1} parent=11 // pred_fallthru
          _
        // Predicated region
        $region17: #{tpu_custom_call.1} parent=11 // pred_check
          %p474 = pneg %p86
        $region18: #{tpu_custom_call.1} parent=11 // pred_check_branch
          %476 = sbr.rel (%p474) target = $region20
        $region19: #{tpu_custom_call.1} parent=11 // pred_region
          %s477 = smul.u32 8, %s31
          %p478 = scmp.lt.s32.totalorder %s477, 7
          %s479 = scalar_select %p478, %s477, 7
          %s480 = smul.addr %s479, 2
          %s481 = scalar_lea.vmem %s1, %s480
          %s482 = smul.u32 8, %s31
        $region20: #{tpu_custom_call.1} parent=11 // pred_fallthru
          _
        // Predicated region
        $region21: #{tpu_custom_call.1} parent=11 // pred_check
          %p483 = pneg %p112
        $region22: #{tpu_custom_call.1} parent=11 // pred_check_branch
          %485 = sbr.rel (%p483) target = $region24
        $region23: #{tpu_custom_call.1} parent=11 // pred_region
          %p486 = scmp.lt.s32.totalorder %s31, 0
          %s487 = scalar_select %p486, %s31, 0
          %s488 = smul.addr %s487, 8
          %s489 = scalar_lea.vmem %s2, %s488
        $region24: #{tpu_custom_call.1} parent=11 // pred_fallthru
          _
      $region12: #{tpu_custom_call.1} parent=5 // pred_fallthru
        _
      %p490 = scmp.lt.s32.totalorder %s22, 2
      // Predicated region
      $region25: #{tpu_custom_call.1} parent=5 // pred_check
        %p491 = pneg %p490
      $region26: #{tpu_custom_call.1} parent=5 // pred_check_branch
        %493 = sbr.rel (%p491) target = $region28
      $region27: #{tpu_custom_call.1} parent=5 // pred_region
        // Predicated region
        $region29: #{tpu_custom_call.1} parent=27 // pred_check
          %p494 = pneg %p132
        $region30: #{tpu_custom_call.1} parent=27 // pred_check_branch
          %496 = sbr.rel (%p494) target = $region32
        $region31: #{tpu_custom_call.1} parent=27 // pred_region
          %p497 = scmp.lt.s32.totalorder %s30, 1
          %s498 = scalar_select %p497, %s30, 1
          %s499 = smul.addr %s498, 4
          %s500 = smul.addr %s499, 4
          %s501 = scalar_lea.vmem %s3, %s500
        $region32: #{tpu_custom_call.1} parent=27 // pred_fallthru
          _
        // Predicated region
        $region33: #{tpu_custom_call.1} parent=27 // pred_check
          %p502 = pneg %p158
        $region34: #{tpu_custom_call.1} parent=27 // pred_check_branch
          %504 = sbr.rel (%p502) target = $region36
        $region35: #{tpu_custom_call.1} parent=27 // pred_region
          %p505 = scmp.lt.s32.totalorder %s30, 1
          %s506 = scalar_select %p505, %s30, 1
          %s507 = scalar_lea.vmem %s4, %s506
        $region36: #{tpu_custom_call.1} parent=27 // pred_fallthru
          _
        // Predicated region
        $region37: #{tpu_custom_call.1} parent=27 // pred_check
          %p508 = pneg %p184
        $region38: #{tpu_custom_call.1} parent=27 // pred_check_branch
          %510 = sbr.rel (%p508) target = $region40
        $region39: #{tpu_custom_call.1} parent=27 // pred_region
          %p511 = scmp.lt.s32.totalorder %s30, 1
          %s512 = scalar_select %p511, %s30, 1
          %s513 = smul.addr %s512, 4
          %s514 = smul.addr %s513, 4
          %s515 = scalar_lea.vmem %s5, %s514
        $region40: #{tpu_custom_call.1} parent=27 // pred_fallthru
          _
        // Predicated region
        $region41: #{tpu_custom_call.1} parent=27 // pred_check
          %p516 = pneg %p210
        $region42: #{tpu_custom_call.1} parent=27 // pred_check_branch
          %518 = sbr.rel (%p516) target = $region44
        $region43: #{tpu_custom_call.1} parent=27 // pred_region
          %p519 = scmp.lt.s32.totalorder %s30, 1
          %s520 = scalar_select %p519, %s30, 1
          %s521 = scalar_lea.vmem %s6, %s520
        $region44: #{tpu_custom_call.1} parent=27 // pred_fallthru
          _
        // Predicated region
        $region45: #{tpu_custom_call.1} parent=27 // pred_check
          %p522 = pneg %p236
        $region46: #{tpu_custom_call.1} parent=27 // pred_check_branch
          %524 = sbr.rel (%p522) target = $region48
        $region47: #{tpu_custom_call.1} parent=27 // pred_region
          %p525 = scmp.lt.s32.totalorder %s30, 1
          %s526 = scalar_select %p525, %s30, 1
          %s527 = scalar_lea.vmem %s7, %s526
        $region48: #{tpu_custom_call.1} parent=27 // pred_fallthru
          _
        // Predicated region
        $region49: #{tpu_custom_call.1} parent=27 // pred_check
          %p528 = pneg %p262
        $region50: #{tpu_custom_call.1} parent=27 // pred_check_branch
          %530 = sbr.rel (%p528) target = $region52
        $region51: #{tpu_custom_call.1} parent=27 // pred_region
          %p531 = scmp.lt.s32.totalorder %s30, 1
          %s532 = scalar_select %p531, %s30, 1
          %s533 = scalar_lea.vmem %s8, %s532
        $region52: #{tpu_custom_call.1} parent=27 // pred_fallthru
          _
        // Predicated region
        $region53: #{tpu_custom_call.1} parent=27 // pred_check
          %p534 = pneg %p288
        $region54: #{tpu_custom_call.1} parent=27 // pred_check_branch
          %536 = sbr.rel (%p534) target = $region56
        $region55: #{tpu_custom_call.1} parent=27 // pred_region
          %p537 = scmp.lt.s32.totalorder %s30, 1
          %s538 = scalar_select %p537, %s30, 1
          %s539 = scalar_lea.vmem %s9, %s538
        $region56: #{tpu_custom_call.1} parent=27 // pred_fallthru
          _
        // Predicated region
        $region57: #{tpu_custom_call.1} parent=27 // pred_check
          %p540 = pneg %p314
        $region58: #{tpu_custom_call.1} parent=27 // pred_check_branch
          %542 = sbr.rel (%p540) target = $region60
        $region59: #{tpu_custom_call.1} parent=27 // pred_region
          %p543 = scmp.lt.s32.totalorder %s30, 1
          %s544 = scalar_select %p543, %s30, 1
          %s545 = scalar_lea.vmem %s10, %s544
        $region60: #{tpu_custom_call.1} parent=27 // pred_fallthru
          _
        // Predicated region
        $region61: #{tpu_custom_call.1} parent=27 // pred_check
          %p546 = pneg %p340
        $region62: #{tpu_custom_call.1} parent=27 // pred_check_branch
          %548 = sbr.rel (%p546) target = $region64
        $region63: #{tpu_custom_call.1} parent=27 // pred_region
          %p549 = scmp.lt.s32.totalorder %s30, 1
          %s550 = scalar_select %p549, %s30, 1
          %s551 = smul.addr %s550, 64
          %s552 = smul.addr %s551, 4
          %s553 = scalar_lea.vmem %s11, %s552
        $region64: #{tpu_custom_call.1} parent=27 // pred_fallthru
          _
        // Predicated region
        $region65: #{tpu_custom_call.1} parent=27 // pred_check
          %p554 = pneg %p366
        $region66: #{tpu_custom_call.1} parent=27 // pred_check_branch
          %556 = sbr.rel (%p554) target = $region68
        $region67: #{tpu_custom_call.1} parent=27 // pred_region
          %p557 = scmp.lt.s32.totalorder %s30, 1
          %s558 = scalar_select %p557, %s30, 1
          %s559 = smul.addr %s558, 16
          %s560 = scalar_lea.vmem %s12, %s559
        $region68: #{tpu_custom_call.1} parent=27 // pred_fallthru
          _
        // Predicated region
        $region69: #{tpu_custom_call.1} parent=27 // pred_check
          %p561 = pneg %p392
        $region70: #{tpu_custom_call.1} parent=27 // pred_check_branch
          %563 = sbr.rel (%p561) target = $region72
        $region71: #{tpu_custom_call.1} parent=27 // pred_region
          %p564 = scmp.lt.s32.totalorder %s30, 1
          %s565 = scalar_select %p564, %s30, 1
          %s566 = smul.addr %s565, 256
          %s567 = smul.addr %s566, 4
          %s568 = scalar_lea.vmem %s13, %s567
        $region72: #{tpu_custom_call.1} parent=27 // pred_fallthru
          _
        // Predicated region
        $region73: #{tpu_custom_call.1} parent=27 // pred_check
          %p569 = pneg %p418
        $region74: #{tpu_custom_call.1} parent=27 // pred_check_branch
          %571 = sbr.rel (%p569) target = $region76
        $region75: #{tpu_custom_call.1} parent=27 // pred_region
          %p572 = scmp.lt.s32.totalorder %s30, 1
          %s573 = scalar_select %p572, %s30, 1
          %s574 = scalar_lea.vmem %s14, %s573
        $region76: #{tpu_custom_call.1} parent=27 // pred_fallthru
          _
      $region28: #{tpu_custom_call.1} parent=5 // pred_fallthru
        _
      %p575 = scmp.le.s32.totalorder 1, %s22
      %p576 = scmp.lt.s32.totalorder %s22, 3
      %p577 = pnand %p575, %p576
      %p578 = pneg %p577
      // Predicated region
      $region77: #{tpu_custom_call.1} parent=5 // pred_check
        _
      $region78: #{tpu_custom_call.1} parent=5 // pred_check_branch
        %580 = sbr.rel (%p577) target = $region80
      $region79: #{tpu_custom_call.1} parent=5 // pred_region
        %s581 = ssub.s32 %s22, 1
        %s582 = smul.u32 8, %s31
        %p583 = scmp.lt.s32.totalorder %s582, 7
        %s584 = scalar_select %p583, %s582, 7
        %s585 = smul.addr %s584, 2
        %s586 = scalar_lea.vmem %s0, %s585
        %p587 = pneg %p60
        %p588 = pneg %p57
        %s589 = smul.u32 8, %s31
        %p590 = scmp.lt.s32.totalorder %s589, 7
        %s591 = scalar_select %p590, %s589, 7
        %s592 = smul.addr %s591, 2
        %s593 = scalar_lea.vmem %s1, %s592
        %p594 = pneg %p86
        %p595 = pneg %p83
        %p596 = scmp.lt.s32.totalorder %s31, 0
        %s597 = scalar_select %p596, %s31, 0
        %s598 = smul.addr %s597, 8
        %s599 = scalar_lea.vmem %s2, %s598
        %p600 = pneg %p112
        %p601 = pneg %p109
        %p602 = scmp.lt.s32.totalorder %s32, 1
        %s603 = scalar_select %p602, %s32, 1
        %s604 = smul.addr %s603, 4
        %s605 = smul.addr %s604, 4
        %s606 = scalar_lea.vmem %s3, %s605
        %p607 = pneg %p138
        %p608 = pneg %p135
        %p609 = scmp.lt.s32.totalorder %s32, 1
        %s610 = scalar_select %p609, %s32, 1
        %s611 = scalar_lea.vmem %s4, %s610
        %p612 = pneg %p164
        %p613 = pneg %p161
        %p614 = scmp.lt.s32.totalorder %s32, 1
        %s615 = scalar_select %p614, %s32, 1
        %s616 = smul.addr %s615, 4
        %s617 = smul.addr %s616, 4
        %s618 = scalar_lea.vmem %s5, %s617
        %p619 = pneg %p190
        %p620 = pneg %p187
        %p621 = scmp.lt.s32.totalorder %s32, 1
        %s622 = scalar_select %p621, %s32, 1
        %s623 = scalar_lea.vmem %s6, %s622
        %p624 = pneg %p216
        %p625 = pneg %p213
        %p626 = scmp.lt.s32.totalorder %s32, 1
        %s627 = scalar_select %p626, %s32, 1
        %s628 = scalar_lea.vmem %s7, %s627
        %p629 = pneg %p242
        %p630 = pneg %p239
        %p631 = scmp.lt.s32.totalorder %s32, 1
        %s632 = scalar_select %p631, %s32, 1
        %s633 = scalar_lea.vmem %s8, %s632
        %p634 = pneg %p268
        %p635 = pneg %p265
        %p636 = scmp.lt.s32.totalorder %s32, 1
        %s637 = scalar_select %p636, %s32, 1
        %s638 = scalar_lea.vmem %s9, %s637
        %p639 = pneg %p294
        %p640 = pneg %p291
        %p641 = scmp.lt.s32.totalorder %s32, 1
        %s642 = scalar_select %p641, %s32, 1
        %s643 = scalar_lea.vmem %s10, %s642
        %p644 = pneg %p320
        %p645 = pneg %p317
        %p646 = scmp.lt.s32.totalorder %s32, 1
        %s647 = scalar_select %p646, %s32, 1
        %s648 = smul.addr %s647, 64
        %s649 = smul.addr %s648, 4
        %s650 = scalar_lea.vmem %s11, %s649
        %p651 = pneg %p346
        %p652 = pneg %p343
        %p653 = scmp.lt.s32.totalorder %s32, 1
        %s654 = scalar_select %p653, %s32, 1
        %s655 = smul.addr %s654, 16
        %s656 = scalar_lea.vmem %s12, %s655
        %p657 = pneg %p372
        %p658 = pneg %p369
        %p659 = scmp.lt.s32.totalorder %s32, 1
        %s660 = scalar_select %p659, %s32, 1
        %s661 = smul.addr %s660, 256
        %s662 = smul.addr %s661, 4
        %s663 = scalar_lea.vmem %s13, %s662
        %p664 = pneg %p398
        %p665 = pneg %p395
        %p666 = scmp.lt.s32.totalorder %s32, 1
        %s667 = scalar_select %p666, %s32, 1
        %s668 = scalar_lea.vmem %s14, %s667
        %p669 = pneg %p424
        %p670 = pneg %p421
        %p671 = pneg %p450
        %p672 = pneg %p447
        %s673 = smul.u32 8, %s31
        %p674 = scmp.lt.s32.totalorder %s673, 7
        %s675 = scalar_select %p674, %s673, 7
        %s676 = smul.addr %s675, 2
        %s677 = scalar_lea.vmem %s0, %s676
        %s678 = smul.u32 8, %s31
        %s679 = smul.u32 8, %s31
        %p680 = scmp.lt.s32.totalorder %s679, 7
        %s681 = scalar_select %p680, %s679, 7
        %s682 = smul.addr %s681, 2
        %s683 = scalar_lea.vmem %s1, %s682
        %s684 = smul.u32 8, %s31
        %p685 = scmp.lt.s32.totalorder %s31, 0
        %s686 = scalar_select %p685, %s31, 0
        %s687 = smul.addr %s686, 8
        %s688 = scalar_lea.vmem %s2, %s687
        %p689 = scmp.lt.s32.totalorder %s32, 1
        %s690 = scalar_select %p689, %s32, 1
        %s691 = smul.addr %s690, 4
        %s692 = smul.addr %s691, 4
        %s693 = scalar_lea.vmem %s3, %s692
        %p694 = scmp.lt.s32.totalorder %s32, 1
        %s695 = scalar_select %p694, %s32, 1
        %s696 = scalar_lea.vmem %s4, %s695
        %p697 = scmp.lt.s32.totalorder %s32, 1
        %s698 = scalar_select %p697, %s32, 1
        %s699 = smul.addr %s698, 4
        %s700 = smul.addr %s699, 4
        %s701 = scalar_lea.vmem %s5, %s700
        %p702 = scmp.lt.s32.totalorder %s32, 1
        %s703 = scalar_select %p702, %s32, 1
        %s704 = scalar_lea.vmem %s6, %s703
        %p705 = scmp.lt.s32.totalorder %s32, 1
        %s706 = scalar_select %p705, %s32, 1
        %s707 = scalar_lea.vmem %s7, %s706
        %p708 = scmp.lt.s32.totalorder %s32, 1
        %s709 = scalar_select %p708, %s32, 1
        %s710 = scalar_lea.vmem %s8, %s709
        %p711 = scmp.lt.s32.totalorder %s32, 1
        %s712 = scalar_select %p711, %s32, 1
        %s713 = scalar_lea.vmem %s9, %s712
        %p714 = scmp.lt.s32.totalorder %s32, 1
        %s715 = scalar_select %p714, %s32, 1
        %s716 = scalar_lea.vmem %s10, %s715
        %p717 = scmp.lt.s32.totalorder %s32, 1
        %s718 = scalar_select %p717, %s32, 1
        %s719 = smul.addr %s718, 64
        %s720 = smul.addr %s719, 4
        %s721 = scalar_lea.vmem %s11, %s720
        %p722 = scmp.lt.s32.totalorder %s32, 1
        %s723 = scalar_select %p722, %s32, 1
        %s724 = smul.addr %s723, 16
        %s725 = scalar_lea.vmem %s12, %s724
        %p726 = scmp.lt.s32.totalorder %s32, 1
        %s727 = scalar_select %p726, %s32, 1
        %s728 = smul.addr %s727, 256
        %s729 = smul.addr %s728, 4
        %s730 = scalar_lea.vmem %s13, %s729
        %p731 = scmp.lt.s32.totalorder %s32, 1
        %s732 = scalar_select %p731, %s32, 1
        %s733 = scalar_lea.vmem %s14, %s732
        %s734 = smul.u32 2, %s31
        %p736 = scmp.eq.s32.totalorder %s32, 0
        // Predicated region
        $region81: #{tpu_custom_call.1} parent=79 // pred_check
          %p737 = pneg %p736
        $region82: #{tpu_custom_call.1} parent=79 // pred_check_branch
          %739 = sbr.rel (%p737) target = $region84
        $region83: #{tpu_custom_call.1} parent=79 // pred_region
          %v740 = vld [vmem:[%s677] sm:$0x3]
          %v741 = vld [vmem:[%s677 + $0x2] sm:$0x3]
          %v742 = vld [vmem:[%s677 + $0x4] sm:$0x3]
          %v743 = vld [vmem:[%s677 + $0x6] sm:$0x3]
          %v744 = vld [vmem:[%s677 + $0x8] sm:$0x3]
          %v745 = vld [vmem:[%s677 + $0xa] sm:$0x3]
          %v746 = vld [vmem:[%s677 + $0xc] sm:$0x3]
          %v747 = vld [vmem:[%s677 + $0xe] sm:$0x3]
          %v748 = vld [vmem:[%s683] sm:$0x3]
          %v749 = vld [vmem:[%s683 + $0x2] sm:$0x3]
          %v750 = vld [vmem:[%s683 + $0x4] sm:$0x3]
          %v751 = vld [vmem:[%s683 + $0x6] sm:$0x3]
          %v752 = vld [vmem:[%s683 + $0x8] sm:$0x3]
          %v753 = vld [vmem:[%s683 + $0xa] sm:$0x3]
          %v754 = vld [vmem:[%s683 + $0xc] sm:$0x3]
          %v755 = vld [vmem:[%s683 + $0xe] sm:$0x3]
          %v756 = vadd.f32 %v740, %v748
          %v757 = vadd.f32 %v741, %v749
          %v758 = vadd.f32 %v742, %v750
          %v759 = vadd.f32 %v743, %v751
          %v760 = vadd.f32 %v744, %v752
          %v761 = vadd.f32 %v745, %v753
          %v762 = vadd.f32 %v746, %v754
          %v763 = vadd.f32 %v747, %v755
          %v764 = vld [vmem:[%s688] sm:$0xff]
          %v766 = vcombine.high %v764, %v764
          %v768 = vunpack.c.l.s4 1966171168
          %v769 = vunpack.c.0.s8 %v768
          %v770 = vlaneseq
          %v771 = vshrl.u32 %v770, 7
          %v772 = vsub.s32 %v769, %v771
          %v773 = vrot.slane %v764, %v772
          %v775 = vunpack.c.l.s4 1966171168
          %v776 = vunpack.c.0.s8 %v775
          %v777 = vlaneseq
          %v778 = vshrl.u32 %v777, 7
          %v779 = vsub.s32 %v776, %v778
          %v780 = vrot.slane %v766, %v779
          %v781 = vcombine.high %v773, %v773
          %v782 = vcombine.high %v780, %v780
          %v784 = vunpack.c.l.s4 1966171168
          %v785 = vunpack.c.0.s8 %v784
          %v786 = vlaneseq
          %v787 = vshrl.u32 %v786, 7
          %v788 = vsub.s32 %v785, %v787
          %v789 = vrot.slane %v773, %v788
          %v791 = vunpack.c.l.s4 1966171168
          %v792 = vunpack.c.0.s8 %v791
          %v793 = vlaneseq
          %v794 = vshrl.u32 %v793, 7
          %v795 = vsub.s32 %v792, %v794
          %v796 = vrot.slane %v780, %v795
          %v798 = vunpack.c.l.s4 1966171168
          %v799 = vunpack.c.0.s8 %v798
          %v800 = vlaneseq
          %v801 = vshrl.u32 %v800, 7
          %v802 = vsub.s32 %v799, %v801
          %v803 = vrot.slane %v781, %v802
          %v805 = vunpack.c.l.s4 1966171168
          %v806 = vunpack.c.0.s8 %v805
          %v807 = vlaneseq
          %v808 = vshrl.u32 %v807, 7
          %v809 = vsub.s32 %v806, %v808
          %v810 = vrot.slane %v782, %v809
          %v811 = vcombine.high %v789, %v789
          %v812 = vcombine.high %v796, %v796
          %v813 = vcombine.high %v803, %v803
          %v814 = vcombine.high %v810, %v810
          %v815 = vlaneseq
          %v816 = vshrl.u32 %v815, 7
          %v817 = vsub.s32 0, %v816
          %v818 = vrot.slane %v789, %v817
          %v819 = vlaneseq
          %v820 = vshrl.u32 %v819, 7
          %v821 = vsub.s32 0, %v820
          %v822 = vrot.slane %v803, %v821
          %v823 = vlaneseq
          %v824 = vshrl.u32 %v823, 7
          %v825 = vsub.s32 0, %v824
          %v826 = vrot.slane %v811, %v825
          %v827 = vlaneseq
          %v828 = vshrl.u32 %v827, 7
          %v829 = vsub.s32 0, %v828
          %v830 = vrot.slane %v813, %v829
          %v831 = vlaneseq
          %v832 = vshrl.u32 %v831, 7
          %v833 = vsub.s32 0, %v832
          %v834 = vrot.slane %v796, %v833
          %v835 = vlaneseq
          %v836 = vshrl.u32 %v835, 7
          %v837 = vsub.s32 0, %v836
          %v838 = vrot.slane %v810, %v837
          %v839 = vlaneseq
          %v840 = vshrl.u32 %v839, 7
          %v841 = vsub.s32 0, %v840
          %v842 = vrot.slane %v812, %v841
          %v843 = vlaneseq
          %v844 = vshrl.u32 %v843, 7
          %v845 = vsub.s32 0, %v844
          %v846 = vrot.slane %v814, %v845
          %v855 = vadd.f32 %v756, %v818
          %v856 = vadd.f32 %v757, %v822
          %v857 = vadd.f32 %v758, %v826
          %v858 = vadd.f32 %v759, %v830
          %v859 = vadd.f32 %v760, %v834
          %v860 = vadd.f32 %v761, %v838
          %v861 = vadd.f32 %v762, %v842
          %v862 = vadd.f32 %v763, %v846
          %v871 = vcombine.low %v855, %v856
          %v872 = vcombine.low %v857, %v858
          %v874 = vunpack.c.l.s4 1983009808
          %v875 = vunpack.c.0.s8 %v874
          %v876 = vlaneseq
          %v877 = vshrl.u32 %v876, 7
          %v878 = vsub.s32 %v875, %v877
          %v879 = vrot.slane %v871, %v878
          %v881 = vunpack.c.l.s4 1983009808
          %v882 = vunpack.c.0.s8 %v881
          %v883 = vlaneseq
          %v884 = vshrl.u32 %v883, 7
          %v885 = vsub.s32 %v882, %v884
          %v886 = vrot.slane %v872, %v885
          %v887 = vcombine.low %v879, %v886
          %v888 = vcombine.low %v859, %v860
          %v889 = vcombine.low %v861, %v862
          %v891 = vunpack.c.l.s4 1983009808
          %v892 = vunpack.c.0.s8 %v891
          %v893 = vlaneseq
          %v894 = vshrl.u32 %v893, 7
          %v895 = vsub.s32 %v892, %v894
          %v896 = vrot.slane %v888, %v895
          %v898 = vunpack.c.l.s4 1983009808
          %v899 = vunpack.c.0.s8 %v898
          %v900 = vlaneseq
          %v901 = vshrl.u32 %v900, 7
          %v902 = vsub.s32 %v899, %v901
          %v903 = vrot.slane %v889, %v902
          %v904 = vcombine.low %v896, %v903
          %vm907 = vcmask 261120
          %908 = vst.msk [vmem:[#allocation2] sm:$0xff] %vm907, %v887
          %909 = vst.msk [vmem:[#allocation2 + $0x8] sm:$0xff] %vm907, %v904
        $region84: #{tpu_custom_call.1} parent=79 // pred_fallthru
          _
        %v910 = vld [vmem:[#allocation2] sm:$0xff]
        %v911 = vld [vmem:[#allocation2 + $0x8] sm:$0xff]
        %v912 = vpack.c.bf16 %v911, %v910
        %v913 = vld [vmem:[%s693] sm:$0xf]
        %v914 = vld [vmem:[%s693 + $0x4] sm:$0xf]
        %v915 = vld [vmem:[%s693 + $0x8] sm:$0xf]
        %v916 = vld [vmem:[%s693 + $0xc] sm:$0xf]
        %v917 = vld [vmem:[%s696] sm:$0x1]
        %v919 = vlaneseq
        %v920 = vshrl.u32 %v919, 7
        %v921 = vsub.s32 0, %v920
        %v922 = vrot.slane %v917, %v921
        %v928 = vunpack.c.l.b16 %v913
        %v929 = vunpack.c.l.b16 %v914
        %v930 = vunpack.c.l.b16 %v915
        %v931 = vunpack.c.l.b16 %v916
        %v932 = vpack.c.b16 %v929, %v928
        %v933 = vpack.c.b16 %v931, %v930
        %vm936 = vcmask 261120
        %v938 = vsel %vm936, %v912, 0
        %940 = vmatprep.subr.bf16.mxu0 0
        %941 = vmatpush1.bf16.msra.mxu0 0
        %942 = vmatprep.subr.bf16.mxu0 0
        %943 = vmatpush1.bf16.msra.mxu0 0
        %944 = vmatprep.subr.bf16.mxu0 0
        %945 = vmatpush1.bf16.msra.mxu0 0
        %946 = vmatprep.subr.bf16.mxu0 0
        %947 = vmatpush1.bf16.msra.mxu0 0
        %948 = vmatprep.subr.bf16.mxu0 0
        %949 = vmatpush1.bf16.msra.mxu0 0
        %950 = vmatprep.subr.bf16.mxu0 0
        %951 = vmatpush1.bf16.msra.mxu0 0
        %952 = vmatprep.subr.bf16.mxu0 0
        %953 = vmatpush1.bf16.msra.mxu0 %v933
        %954 = vmatprep.subr.bf16.mxu0 0
        %955 = vmatpush1.bf16.msra.mxu0 %v932
        %956 = vmatprep.subr.bf16.mxu0 0
        %957 = vmatpush2.bf16.msra.mxu0 0
        %958 = vmatprep.subr.bf16.mxu0 0
        %959 = vmatpush2.bf16.msra.mxu0 0
        %960 = vmatprep.subr.bf16.mxu0 0
        %961 = vmatpush2.bf16.msra.mxu0 0
        %962 = vmatprep.subr.bf16.mxu0 0
        %963 = vmatpush2.bf16.msra.mxu0 0
        %964 = vmatprep.subr.bf16.mxu0 0
        %965 = vmatpush2.bf16.msra.mxu0 0
        %966 = vmatprep.subr.bf16.mxu0 0
        %967 = vmatpush2.bf16.msra.mxu0 0
        %968 = vmatprep.subr.bf16.mxu0 0
        %969 = vmatpush2.bf16.msra.mxu0 0
        %970 = vmatprep.subr.bf16.mxu0 0
        %971 = vmatpush2.bf16.msra.mxu0 0
        %972 = vmatprep.mubr.bf16.mxu0 0
        %973 = vmatmul.mubr.bf16.gmra.mxu0 %v938
        %v974 = vpop.f32.mrf.mxu0
        %v975 = vadd.f32 %v922, %v974
        %v976 = vpop.f32.mrf.mxu0
        %v977 = vpop.f32.mrf.mxu0
        %v978 = vadd.f32 %v922, %v977
        %v979 = vpop.f32.mrf.mxu0
        %980 = vdwg.mxu0
        %v983 = vcombine.high %v975, %v975
        %v985 = vunpack.c.l.s4 1983009808
        %v986 = vunpack.c.0.s8 %v985
        %v987 = vlaneseq
        %v988 = vshrl.u32 %v987, 7
        %v989 = vsub.s32 %v986, %v988
        %v990 = vrot.slane %v975, %v989
        %v992 = vunpack.c.l.s4 1983009808
        %v993 = vunpack.c.0.s8 %v992
        %v994 = vlaneseq
        %v995 = vshrl.u32 %v994, 7
        %v996 = vsub.s32 %v993, %v995
        %v997 = vrot.slane %v983, %v996
        %v998 = vcombine.high %v990, %v990
        %v999 = vcombine.high %v997, %v997
        %v1000 = vcombine.high %v978, %v978
        %v1002 = vunpack.c.l.s4 1983009808
        %v1003 = vunpack.c.0.s8 %v1002
        %v1004 = vlaneseq
        %v1005 = vshrl.u32 %v1004, 7
        %v1006 = vsub.s32 %v1003, %v1005
        %v1007 = vrot.slane %v978, %v1006
        %v1009 = vunpack.c.l.s4 1983009808
        %v1010 = vunpack.c.0.s8 %v1009
        %v1011 = vlaneseq
        %v1012 = vshrl.u32 %v1011, 7
        %v1013 = vsub.s32 %v1010, %v1012
        %v1014 = vrot.slane %v1000, %v1013
        %v1015 = vcombine.high %v1007, %v1007
        %v1016 = vcombine.high %v1014, %v1014
        %v1018 = vunpack.c.l.s4 1983009808
        %v1019 = vunpack.c.0.s8 %v1018
        %v1020 = vlaneseq
        %v1021 = vshrl.u32 %v1020, 7
        %v1022 = vsub.s32 %v1019, %v1021
        %v1023 = vrot.slane %v990, %v1022
        %1024 = vrot.lane.b32.xlu0 %v1023, 96
        %v1025 = vpop.permute.xlu0 %1024
        %vm1026 = vcmask 64512
        %v1027 = vsel %vm1026, %v990, 0
        %v1029 = vsel %vm1026, %v1025, 0
        %1031 = vmatprep.subr.mxu0 0.0
        %1032 = vmatpush1.xpose.msra.mxu0 0.0
        %1033 = vmatprep.subr.mxu0 0.0
        %1034 = vmatpush1.xpose.msra.mxu0 0.0
        %1035 = vmatprep.subr.mxu0 0.0
        %1036 = vmatpush1.xpose.msra.mxu0 0.0
        %1037 = vmatprep.subr.mxu0 0.0
        %1038 = vmatpush1.xpose.msra.mxu0 0.0
        %1039 = vmatprep.subr.mxu0 0.0
        %1040 = vmatpush1.xpose.msra.mxu0 0.0
        %1041 = vmatprep.subr.mxu0 0.0
        %1042 = vmatpush1.xpose.msra.mxu0 0.0
        %1043 = vmatprep.subr.mxu0 0.0
        %1044 = vmatpush1.xpose.msra.mxu0 0.0
        %1045 = vmatprep.subr.mxu0 0.0
        %1046 = vmatpush1.xpose.msra.mxu0 0.0
        %1047 = vmatprep.subr.mxu0 0.0
        %1048 = vmatpush1.xpose.msra.mxu0 0.0
        %1049 = vmatprep.subr.mxu0 0.0
        %1050 = vmatpush1.xpose.msra.mxu0 0.0
        %1051 = vmatprep.subr.mxu0 0.0
        %1052 = vmatpush1.xpose.msra.mxu0 0.0
        %1053 = vmatprep.subr.mxu0 0.0
        %1054 = vmatpush1.xpose.msra.mxu0 0.0
        %1055 = vmatprep.subr.mxu0 0.0
        %1056 = vmatpush1.xpose.msra.mxu0 0.0
        %1057 = vmatprep.subr.mxu0 0.0
        %1058 = vmatpush1.xpose.msra.mxu0 0.0
        %1059 = vmatprep.subr.mxu0 0.0
        %1060 = vmatpush1.xpose.msra.mxu0 0.0
        %1061 = vmatprep.subr.mxu0 0.0
        %1062 = vmatpush1.xpose.msra.mxu0 %v1029
        %1063 = vmatprep.subr.mxu0 0.0
        %1064 = vmatpush2.xpose.msra.mxu0 0.0
        %1065 = vmatprep.subr.mxu0 0.0
        %1066 = vmatpush2.xpose.msra.mxu0 0.0
        %1067 = vmatprep.subr.mxu0 0.0
        %1068 = vmatpush2.xpose.msra.mxu0 0.0
        %1069 = vmatprep.subr.mxu0 0.0
        %1070 = vmatpush2.xpose.msra.mxu0 0.0
        %1071 = vmatprep.subr.mxu0 0.0
        %1072 = vmatpush2.xpose.msra.mxu0 0.0
        %1073 = vmatprep.subr.mxu0 0.0
        %1074 = vmatpush2.xpose.msra.mxu0 0.0
        %1075 = vmatprep.subr.mxu0 0.0
        %1076 = vmatpush2.xpose.msra.mxu0 0.0
        %1077 = vmatprep.subr.mxu0 0.0
        %1078 = vmatpush2.xpose.msra.mxu0 0.0
        %1079 = vmatprep.subr.mxu0 0.0
        %1080 = vmatpush2.xpose.msra.mxu0 0.0
        %1081 = vmatprep.subr.mxu0 0.0
        %1082 = vmatpush2.xpose.msra.mxu0 0.0
        %1083 = vmatprep.subr.mxu0 0.0
        %1084 = vmatpush2.xpose.msra.mxu0 0.0
        %1085 = vmatprep.subr.mxu0 0.0
        %1086 = vmatpush2.xpose.msra.mxu0 0.0
        %1087 = vmatprep.subr.mxu0 0.0
        %1088 = vmatpush2.xpose.msra.mxu0 0.0
        %1089 = vmatprep.subr.mxu0 0.0
        %1090 = vmatpush2.xpose.msra.mxu0 0.0
        %1091 = vmatprep.subr.mxu0 0.0
        %1092 = vmatpush2.xpose.msra.mxu0 0.0
        %1093 = vmatprep.subr.mxu0 0.0
        %1094 = vmatpush2.xpose.msra.mxu0 0.0
        %1095 = vmatprep.mubr.f32.mxu0 0.0
        %1096 = vmatmul.mubr.f32.gmra.mxu0 %v1027
        %v1097 = vpop.f32.mrf.mxu0
        %v1098 = vadd.f32 0.0, %v1097
        %v1099 = vpop.f32.mrf.mxu0
        %1100 = vdwg.mxu0
        %v1102 = vunpack.c.l.s4 1983009808
        %v1103 = vunpack.c.0.s8 %v1102
        %v1104 = vlaneseq
        %v1105 = vshrl.u32 %v1104, 7
        %v1106 = vsub.s32 %v1103, %v1105
        %v1107 = vrot.slane %v998, %v1106
        %1108 = vrot.lane.b32.xlu0 %v1107, 96
        %v1109 = vpop.permute.xlu0 %1108
        %v1110 = vsel %vm1026, %v998, 0
        %v1112 = vsel %vm1026, %v1109, 0
        %1114 = vmatprep.subr.mxu0 0.0
        %1115 = vmatpush1.xpose.msra.mxu0 0.0
        %1116 = vmatprep.subr.mxu0 0.0
        %1117 = vmatpush1.xpose.msra.mxu0 0.0
        %1118 = vmatprep.subr.mxu0 0.0
        %1119 = vmatpush1.xpose.msra.mxu0 0.0
        %1120 = vmatprep.subr.mxu0 0.0
        %1121 = vmatpush1.xpose.msra.mxu0 0.0
        %1122 = vmatprep.subr.mxu0 0.0
        %1123 = vmatpush1.xpose.msra.mxu0 0.0
        %1124 = vmatprep.subr.mxu0 0.0
        %1125 = vmatpush1.xpose.msra.mxu0 0.0
        %1126 = vmatprep.subr.mxu0 0.0
        %1127 = vmatpush1.xpose.msra.mxu0 0.0
        %1128 = vmatprep.subr.mxu0 0.0
        %1129 = vmatpush1.xpose.msra.mxu0 0.0
        %1130 = vmatprep.subr.mxu0 0.0
        %1131 = vmatpush1.xpose.msra.mxu0 0.0
        %1132 = vmatprep.subr.mxu0 0.0
        %1133 = vmatpush1.xpose.msra.mxu0 0.0
        %1134 = vmatprep.subr.mxu0 0.0
        %1135 = vmatpush1.xpose.msra.mxu0 0.0
        %1136 = vmatprep.subr.mxu0 0.0
        %1137 = vmatpush1.xpose.msra.mxu0 0.0
        %1138 = vmatprep.subr.mxu0 0.0
        %1139 = vmatpush1.xpose.msra.mxu0 0.0
        %1140 = vmatprep.subr.mxu0 0.0
        %1141 = vmatpush1.xpose.msra.mxu0 0.0
        %1142 = vmatprep.subr.mxu0 0.0
        %1143 = vmatpush1.xpose.msra.mxu0 0.0
        %1144 = vmatprep.subr.mxu0 0.0
        %1145 = vmatpush1.xpose.msra.mxu0 %v1112
        %1146 = vmatprep.subr.mxu0 0.0
        %1147 = vmatpush2.xpose.msra.mxu0 0.0
        %1148 = vmatprep.subr.mxu0 0.0
        %1149 = vmatpush2.xpose.msra.mxu0 0.0
        %1150 = vmatprep.subr.mxu0 0.0
        %1151 = vmatpush2.xpose.msra.mxu0 0.0
        %1152 = vmatprep.subr.mxu0 0.0
        %1153 = vmatpush2.xpose.msra.mxu0 0.0
        %1154 = vmatprep.subr.mxu0 0.0
        %1155 = vmatpush2.xpose.msra.mxu0 0.0
        %1156 = vmatprep.subr.mxu0 0.0
        %1157 = vmatpush2.xpose.msra.mxu0 0.0
        %1158 = vmatprep.subr.mxu0 0.0
        %1159 = vmatpush2.xpose.msra.mxu0 0.0
        %1160 = vmatprep.subr.mxu0 0.0
        %1161 = vmatpush2.xpose.msra.mxu0 0.0
        %1162 = vmatprep.subr.mxu0 0.0
        %1163 = vmatpush2.xpose.msra.mxu0 0.0
        %1164 = vmatprep.subr.mxu0 0.0
        %1165 = vmatpush2.xpose.msra.mxu0 0.0
        %1166 = vmatprep.subr.mxu0 0.0
        %1167 = vmatpush2.xpose.msra.mxu0 0.0
        %1168 = vmatprep.subr.mxu0 0.0
        %1169 = vmatpush2.xpose.msra.mxu0 0.0
        %1170 = vmatprep.subr.mxu0 0.0
        %1171 = vmatpush2.xpose.msra.mxu0 0.0
        %1172 = vmatprep.subr.mxu0 0.0
        %1173 = vmatpush2.xpose.msra.mxu0 0.0
        %1174 = vmatprep.subr.mxu0 0.0
        %1175 = vmatpush2.xpose.msra.mxu0 0.0
        %1176 = vmatprep.subr.mxu0 0.0
        %1177 = vmatpush2.xpose.msra.mxu0 0.0
        %1178 = vmatprep.mubr.f32.mxu0 0.0
        %1179 = vmatmul.mubr.f32.gmra.mxu0 %v1110
        %v1180 = vpop.f32.mrf.mxu0
        %v1181 = vadd.f32 0.0, %v1180
        %v1182 = vpop.f32.mrf.mxu0
        %1183 = vdwg.mxu0
        %v1185 = vunpack.c.l.s4 1983009808
        %v1186 = vunpack.c.0.s8 %v1185
        %v1187 = vlaneseq
        %v1188 = vshrl.u32 %v1187, 7
        %v1189 = vsub.s32 %v1186, %v1188
        %v1190 = vrot.slane %v997, %v1189
        %1191 = vrot.lane.b32.xlu0 %v1190, 96
        %v1192 = vpop.permute.xlu0 %1191
        %v1193 = vsel %vm1026, %v997, 0
        %v1195 = vsel %vm1026, %v1192, 0
        %1197 = vmatprep.subr.mxu0 0.0
        %1198 = vmatpush1.xpose.msra.mxu0 0.0
        %1199 = vmatprep.subr.mxu0 0.0
        %1200 = vmatpush1.xpose.msra.mxu0 0.0
        %1201 = vmatprep.subr.mxu0 0.0
        %1202 = vmatpush1.xpose.msra.mxu0 0.0
        %1203 = vmatprep.subr.mxu0 0.0
        %1204 = vmatpush1.xpose.msra.mxu0 0.0
        %1205 = vmatprep.subr.mxu0 0.0
        %1206 = vmatpush1.xpose.msra.mxu0 0.0
        %1207 = vmatprep.subr.mxu0 0.0
        %1208 = vmatpush1.xpose.msra.mxu0 0.0
        %1209 = vmatprep.subr.mxu0 0.0
        %1210 = vmatpush1.xpose.msra.mxu0 0.0
        %1211 = vmatprep.subr.mxu0 0.0
        %1212 = vmatpush1.xpose.msra.mxu0 0.0
        %1213 = vmatprep.subr.mxu0 0.0
        %1214 = vmatpush1.xpose.msra.mxu0 0.0
        %1215 = vmatprep.subr.mxu0 0.0
        %1216 = vmatpush1.xpose.msra.mxu0 0.0
        %1217 = vmatprep.subr.mxu0 0.0
        %1218 = vmatpush1.xpose.msra.mxu0 0.0
        %1219 = vmatprep.subr.mxu0 0.0
        %1220 = vmatpush1.xpose.msra.mxu0 0.0
        %1221 = vmatprep.subr.mxu0 0.0
        %1222 = vmatpush1.xpose.msra.mxu0 0.0
        %1223 = vmatprep.subr.mxu0 0.0
        %1224 = vmatpush1.xpose.msra.mxu0 0.0
        %1225 = vmatprep.subr.mxu0 0.0
        %1226 = vmatpush1.xpose.msra.mxu0 0.0
        %1227 = vmatprep.subr.mxu0 0.0
        %1228 = vmatpush1.xpose.msra.mxu0 %v1195
        %1229 = vmatprep.subr.mxu0 0.0
        %1230 = vmatpush2.xpose.msra.mxu0 0.0
        %1231 = vmatprep.subr.mxu0 0.0
        %1232 = vmatpush2.xpose.msra.mxu0 0.0
        %1233 = vmatprep.subr.mxu0 0.0
        %1234 = vmatpush2.xpose.msra.mxu0 0.0
        %1235 = vmatprep.subr.mxu0 0.0
        %1236 = vmatpush2.xpose.msra.mxu0 0.0
        %1237 = vmatprep.subr.mxu0 0.0
        %1238 = vmatpush2.xpose.msra.mxu0 0.0
        %1239 = vmatprep.subr.mxu0 0.0
        %1240 = vmatpush2.xpose.msra.mxu0 0.0
        %1241 = vmatprep.subr.mxu0 0.0
        %1242 = vmatpush2.xpose.msra.mxu0 0.0
        %1243 = vmatprep.subr.mxu0 0.0
        %1244 = vmatpush2.xpose.msra.mxu0 0.0
        %1245 = vmatprep.subr.mxu0 0.0
        %1246 = vmatpush2.xpose.msra.mxu0 0.0
        %1247 = vmatprep.subr.mxu0 0.0
        %1248 = vmatpush2.xpose.msra.mxu0 0.0
        %1249 = vmatprep.subr.mxu0 0.0
        %1250 = vmatpush2.xpose.msra.mxu0 0.0
        %1251 = vmatprep.subr.mxu0 0.0
        %1252 = vmatpush2.xpose.msra.mxu0 0.0
        %1253 = vmatprep.subr.mxu0 0.0
        %1254 = vmatpush2.xpose.msra.mxu0 0.0
        %1255 = vmatprep.subr.mxu0 0.0
        %1256 = vmatpush2.xpose.msra.mxu0 0.0
        %1257 = vmatprep.subr.mxu0 0.0
        %1258 = vmatpush2.xpose.msra.mxu0 0.0
        %1259 = vmatprep.subr.mxu0 0.0
        %1260 = vmatpush2.xpose.msra.mxu0 0.0
        %1261 = vmatprep.mubr.f32.mxu0 0.0
        %1262 = vmatmul.mubr.f32.gmra.mxu0 %v1193
        %v1263 = vpop.f32.mrf.mxu0
        %v1264 = vadd.f32 0.0, %v1263
        %v1265 = vpop.f32.mrf.mxu0
        %1266 = vdwg.mxu0
        %v1268 = vunpack.c.l.s4 1983009808
        %v1269 = vunpack.c.0.s8 %v1268
        %v1270 = vlaneseq
        %v1271 = vshrl.u32 %v1270, 7
        %v1272 = vsub.s32 %v1269, %v1271
        %v1273 = vrot.slane %v999, %v1272
        %1274 = vrot.lane.b32.xlu0 %v1273, 96
        %v1275 = vpop.permute.xlu0 %1274
        %v1276 = vsel %vm1026, %v999, 0
        %v1278 = vsel %vm1026, %v1275, 0
        %1280 = vmatprep.subr.mxu0 0.0
        %1281 = vmatpush1.xpose.msra.mxu0 0.0
        %1282 = vmatprep.subr.mxu0 0.0
        %1283 = vmatpush1.xpose.msra.mxu0 0.0
        %1284 = vmatprep.subr.mxu0 0.0
        %1285 = vmatpush1.xpose.msra.mxu0 0.0
        %1286 = vmatprep.subr.mxu0 0.0
        %1287 = vmatpush1.xpose.msra.mxu0 0.0
        %1288 = vmatprep.subr.mxu0 0.0
        %1289 = vmatpush1.xpose.msra.mxu0 0.0
        %1290 = vmatprep.subr.mxu0 0.0
        %1291 = vmatpush1.xpose.msra.mxu0 0.0
        %1292 = vmatprep.subr.mxu0 0.0
        %1293 = vmatpush1.xpose.msra.mxu0 0.0
        %1294 = vmatprep.subr.mxu0 0.0
        %1295 = vmatpush1.xpose.msra.mxu0 0.0
        %1296 = vmatprep.subr.mxu0 0.0
        %1297 = vmatpush1.xpose.msra.mxu0 0.0
        %1298 = vmatprep.subr.mxu0 0.0
        %1299 = vmatpush1.xpose.msra.mxu0 0.0
        %1300 = vmatprep.subr.mxu0 0.0
        %1301 = vmatpush1.xpose.msra.mxu0 0.0
        %1302 = vmatprep.subr.mxu0 0.0
        %1303 = vmatpush1.xpose.msra.mxu0 0.0
        %1304 = vmatprep.subr.mxu0 0.0
        %1305 = vmatpush1.xpose.msra.mxu0 0.0
        %1306 = vmatprep.subr.mxu0 0.0
        %1307 = vmatpush1.xpose.msra.mxu0 0.0
        %1308 = vmatprep.subr.mxu0 0.0
        %1309 = vmatpush1.xpose.msra.mxu0 0.0
        %1310 = vmatprep.subr.mxu0 0.0
        %1311 = vmatpush1.xpose.msra.mxu0 %v1278
        %1312 = vmatprep.subr.mxu0 0.0
        %1313 = vmatpush2.xpose.msra.mxu0 0.0
        %1314 = vmatprep.subr.mxu0 0.0
        %1315 = vmatpush2.xpose.msra.mxu0 0.0
        %1316 = vmatprep.subr.mxu0 0.0
        %1317 = vmatpush2.xpose.msra.mxu0 0.0
        %1318 = vmatprep.subr.mxu0 0.0
        %1319 = vmatpush2.xpose.msra.mxu0 0.0
        %1320 = vmatprep.subr.mxu0 0.0
        %1321 = vmatpush2.xpose.msra.mxu0 0.0
        %1322 = vmatprep.subr.mxu0 0.0
        %1323 = vmatpush2.xpose.msra.mxu0 0.0
        %1324 = vmatprep.subr.mxu0 0.0
        %1325 = vmatpush2.xpose.msra.mxu0 0.0
        %1326 = vmatprep.subr.mxu0 0.0
        %1327 = vmatpush2.xpose.msra.mxu0 0.0
        %1328 = vmatprep.subr.mxu0 0.0
        %1329 = vmatpush2.xpose.msra.mxu0 0.0
        %1330 = vmatprep.subr.mxu0 0.0
        %1331 = vmatpush2.xpose.msra.mxu0 0.0
        %1332 = vmatprep.subr.mxu0 0.0
        %1333 = vmatpush2.xpose.msra.mxu0 0.0
        %1334 = vmatprep.subr.mxu0 0.0
        %1335 = vmatpush2.xpose.msra.mxu0 0.0
        %1336 = vmatprep.subr.mxu0 0.0
        %1337 = vmatpush2.xpose.msra.mxu0 0.0
        %1338 = vmatprep.subr.mxu0 0.0
        %1339 = vmatpush2.xpose.msra.mxu0 0.0
        %1340 = vmatprep.subr.mxu0 0.0
        %1341 = vmatpush2.xpose.msra.mxu0 0.0
        %1342 = vmatprep.subr.mxu0 0.0
        %1343 = vmatpush2.xpose.msra.mxu0 0.0
        %1344 = vmatprep.mubr.f32.mxu0 0.0
        %1345 = vmatmul.mubr.f32.gmra.mxu0 %v1276
        %v1346 = vpop.f32.mrf.mxu0
        %v1347 = vadd.f32 0.0, %v1346
        %v1348 = vpop.f32.mrf.mxu0
        %1349 = vdwg.mxu0
        %v1351 = vunpack.c.l.s4 1983009808
        %v1352 = vunpack.c.0.s8 %v1351
        %v1353 = vlaneseq
        %v1354 = vshrl.u32 %v1353, 7
        %v1355 = vsub.s32 %v1352, %v1354
        %v1356 = vrot.slane %v1007, %v1355
        %1357 = vrot.lane.b32.xlu0 %v1356, 96
        %v1358 = vpop.permute.xlu0 %1357
        %v1359 = vsel %vm1026, %v1007, 0
        %v1361 = vsel %vm1026, %v1358, 0
        %1363 = vmatprep.subr.mxu0 0.0
        %1364 = vmatpush1.xpose.msra.mxu0 0.0
        %1365 = vmatprep.subr.mxu0 0.0
        %1366 = vmatpush1.xpose.msra.mxu0 0.0
        %1367 = vmatprep.subr.mxu0 0.0
        %1368 = vmatpush1.xpose.msra.mxu0 0.0
        %1369 = vmatprep.subr.mxu0 0.0
        %1370 = vmatpush1.xpose.msra.mxu0 0.0
        %1371 = vmatprep.subr.mxu0 0.0
        %1372 = vmatpush1.xpose.msra.mxu0 0.0
        %1373 = vmatprep.subr.mxu0 0.0
        %1374 = vmatpush1.xpose.msra.mxu0 0.0
        %1375 = vmatprep.subr.mxu0 0.0
        %1376 = vmatpush1.xpose.msra.mxu0 0.0
        %1377 = vmatprep.subr.mxu0 0.0
        %1378 = vmatpush1.xpose.msra.mxu0 0.0
        %1379 = vmatprep.subr.mxu0 0.0
        %1380 = vmatpush1.xpose.msra.mxu0 0.0
        %1381 = vmatprep.subr.mxu0 0.0
        %1382 = vmatpush1.xpose.msra.mxu0 0.0
        %1383 = vmatprep.subr.mxu0 0.0
        %1384 = vmatpush1.xpose.msra.mxu0 0.0
        %1385 = vmatprep.subr.mxu0 0.0
        %1386 = vmatpush1.xpose.msra.mxu0 0.0
        %1387 = vmatprep.subr.mxu0 0.0
        %1388 = vmatpush1.xpose.msra.mxu0 0.0
        %1389 = vmatprep.subr.mxu0 0.0
        %1390 = vmatpush1.xpose.msra.mxu0 0.0
        %1391 = vmatprep.subr.mxu0 0.0
        %1392 = vmatpush1.xpose.msra.mxu0 0.0
        %1393 = vmatprep.subr.mxu0 0.0
        %1394 = vmatpush1.xpose.msra.mxu0 %v1361
        %1395 = vmatprep.subr.mxu0 0.0
        %1396 = vmatpush2.xpose.msra.mxu0 0.0
        %1397 = vmatprep.subr.mxu0 0.0
        %1398 = vmatpush2.xpose.msra.mxu0 0.0
        %1399 = vmatprep.subr.mxu0 0.0
        %1400 = vmatpush2.xpose.msra.mxu0 0.0
        %1401 = vmatprep.subr.mxu0 0.0
        %1402 = vmatpush2.xpose.msra.mxu0 0.0
        %1403 = vmatprep.subr.mxu0 0.0
        %1404 = vmatpush2.xpose.msra.mxu0 0.0
        %1405 = vmatprep.subr.mxu0 0.0
        %1406 = vmatpush2.xpose.msra.mxu0 0.0
        %1407 = vmatprep.subr.mxu0 0.0
        %1408 = vmatpush2.xpose.msra.mxu0 0.0
        %1409 = vmatprep.subr.mxu0 0.0
        %1410 = vmatpush2.xpose.msra.mxu0 0.0
        %1411 = vmatprep.subr.mxu0 0.0
        %1412 = vmatpush2.xpose.msra.mxu0 0.0
        %1413 = vmatprep.subr.mxu0 0.0
        %1414 = vmatpush2.xpose.msra.mxu0 0.0
        %1415 = vmatprep.subr.mxu0 0.0
        %1416 = vmatpush2.xpose.msra.mxu0 0.0
        %1417 = vmatprep.subr.mxu0 0.0
        %1418 = vmatpush2.xpose.msra.mxu0 0.0
        %1419 = vmatprep.subr.mxu0 0.0
        %1420 = vmatpush2.xpose.msra.mxu0 0.0
        %1421 = vmatprep.subr.mxu0 0.0
        %1422 = vmatpush2.xpose.msra.mxu0 0.0
        %1423 = vmatprep.subr.mxu0 0.0
        %1424 = vmatpush2.xpose.msra.mxu0 0.0
        %1425 = vmatprep.subr.mxu0 0.0
        %1426 = vmatpush2.xpose.msra.mxu0 0.0
        %1427 = vmatprep.mubr.f32.mxu0 0.0
        %1428 = vmatmul.mubr.f32.gmra.mxu0 %v1359
        %v1429 = vpop.f32.mrf.mxu0
        %v1430 = vadd.f32 0.0, %v1429
        %v1431 = vpop.f32.mrf.mxu0
        %1432 = vdwg.mxu0
        %v1434 = vunpack.c.l.s4 1983009808
        %v1435 = vunpack.c.0.s8 %v1434
        %v1436 = vlaneseq
        %v1437 = vshrl.u32 %v1436, 7
        %v1438 = vsub.s32 %v1435, %v1437
        %v1439 = vrot.slane %v1015, %v1438
        %1440 = vrot.lane.b32.xlu0 %v1439, 96
        %v1441 = vpop.permute.xlu0 %1440
        %v1442 = vsel %vm1026, %v1015, 0
        %v1444 = vsel %vm1026, %v1441, 0
        %1446 = vmatprep.subr.mxu0 0.0
        %1447 = vmatpush1.xpose.msra.mxu0 0.0
        %1448 = vmatprep.subr.mxu0 0.0
        %1449 = vmatpush1.xpose.msra.mxu0 0.0
        %1450 = vmatprep.subr.mxu0 0.0
        %1451 = vmatpush1.xpose.msra.mxu0 0.0
        %1452 = vmatprep.subr.mxu0 0.0
        %1453 = vmatpush1.xpose.msra.mxu0 0.0
        %1454 = vmatprep.subr.mxu0 0.0
        %1455 = vmatpush1.xpose.msra.mxu0 0.0
        %1456 = vmatprep.subr.mxu0 0.0
        %1457 = vmatpush1.xpose.msra.mxu0 0.0
        %1458 = vmatprep.subr.mxu0 0.0
        %1459 = vmatpush1.xpose.msra.mxu0 0.0
        %1460 = vmatprep.subr.mxu0 0.0
        %1461 = vmatpush1.xpose.msra.mxu0 0.0
        %1462 = vmatprep.subr.mxu0 0.0
        %1463 = vmatpush1.xpose.msra.mxu0 0.0
        %1464 = vmatprep.subr.mxu0 0.0
        %1465 = vmatpush1.xpose.msra.mxu0 0.0
        %1466 = vmatprep.subr.mxu0 0.0
        %1467 = vmatpush1.xpose.msra.mxu0 0.0
        %1468 = vmatprep.subr.mxu0 0.0
        %1469 = vmatpush1.xpose.msra.mxu0 0.0
        %1470 = vmatprep.subr.mxu0 0.0
        %1471 = vmatpush1.xpose.msra.mxu0 0.0
        %1472 = vmatprep.subr.mxu0 0.0
        %1473 = vmatpush1.xpose.msra.mxu0 0.0
        %1474 = vmatprep.subr.mxu0 0.0
        %1475 = vmatpush1.xpose.msra.mxu0 0.0
        %1476 = vmatprep.subr.mxu0 0.0
        %1477 = vmatpush1.xpose.msra.mxu0 %v1444
        %1478 = vmatprep.subr.mxu0 0.0
        %1479 = vmatpush2.xpose.msra.mxu0 0.0
        %1480 = vmatprep.subr.mxu0 0.0
        %1481 = vmatpush2.xpose.msra.mxu0 0.0
        %1482 = vmatprep.subr.mxu0 0.0
        %1483 = vmatpush2.xpose.msra.mxu0 0.0
        %1484 = vmatprep.subr.mxu0 0.0
        %1485 = vmatpush2.xpose.msra.mxu0 0.0
        %1486 = vmatprep.subr.mxu0 0.0
        %1487 = vmatpush2.xpose.msra.mxu0 0.0
        %1488 = vmatprep.subr.mxu0 0.0
        %1489 = vmatpush2.xpose.msra.mxu0 0.0
        %1490 = vmatprep.subr.mxu0 0.0
        %1491 = vmatpush2.xpose.msra.mxu0 0.0
        %1492 = vmatprep.subr.mxu0 0.0
        %1493 = vmatpush2.xpose.msra.mxu0 0.0
        %1494 = vmatprep.subr.mxu0 0.0
        %1495 = vmatpush2.xpose.msra.mxu0 0.0
        %1496 = vmatprep.subr.mxu0 0.0
        %1497 = vmatpush2.xpose.msra.mxu0 0.0
        %1498 = vmatprep.subr.mxu0 0.0
        %1499 = vmatpush2.xpose.msra.mxu0 0.0
        %1500 = vmatprep.subr.mxu0 0.0
        %1501 = vmatpush2.xpose.msra.mxu0 0.0
        %1502 = vmatprep.subr.mxu0 0.0
        %1503 = vmatpush2.xpose.msra.mxu0 0.0
        %1504 = vmatprep.subr.mxu0 0.0
        %1505 = vmatpush2.xpose.msra.mxu0 0.0
        %1506 = vmatprep.subr.mxu0 0.0
        %1507 = vmatpush2.xpose.msra.mxu0 0.0
        %1508 = vmatprep.subr.mxu0 0.0
        %1509 = vmatpush2.xpose.msra.mxu0 0.0
        %1510 = vmatprep.mubr.f32.mxu0 0.0
        %1511 = vmatmul.mubr.f32.gmra.mxu0 %v1442
        %v1512 = vpop.f32.mrf.mxu0
        %v1513 = vadd.f32 0.0, %v1512
        %v1514 = vpop.f32.mrf.mxu0
        %1515 = vdwg.mxu0
        %v1517 = vunpack.c.l.s4 1983009808
        %v1518 = vunpack.c.0.s8 %v1517
        %v1519 = vlaneseq
        %v1520 = vshrl.u32 %v1519, 7
        %v1521 = vsub.s32 %v1518, %v1520
        %v1522 = vrot.slane %v1014, %v1521
        %1523 = vrot.lane.b32.xlu0 %v1522, 96
        %v1524 = vpop.permute.xlu0 %1523
        %v1525 = vsel %vm1026, %v1014, 0
        %v1527 = vsel %vm1026, %v1524, 0
        %1529 = vmatprep.subr.mxu0 0.0
        %1530 = vmatpush1.xpose.msra.mxu0 0.0
        %1531 = vmatprep.subr.mxu0 0.0
        %1532 = vmatpush1.xpose.msra.mxu0 0.0
        %1533 = vmatprep.subr.mxu0 0.0
        %1534 = vmatpush1.xpose.msra.mxu0 0.0
        %1535 = vmatprep.subr.mxu0 0.0
        %1536 = vmatpush1.xpose.msra.mxu0 0.0
        %1537 = vmatprep.subr.mxu0 0.0
        %1538 = vmatpush1.xpose.msra.mxu0 0.0
        %1539 = vmatprep.subr.mxu0 0.0
        %1540 = vmatpush1.xpose.msra.mxu0 0.0
        %1541 = vmatprep.subr.mxu0 0.0
        %1542 = vmatpush1.xpose.msra.mxu0 0.0
        %1543 = vmatprep.subr.mxu0 0.0
        %1544 = vmatpush1.xpose.msra.mxu0 0.0
        %1545 = vmatprep.subr.mxu0 0.0
        %1546 = vmatpush1.xpose.msra.mxu0 0.0
        %1547 = vmatprep.subr.mxu0 0.0
        %1548 = vmatpush1.xpose.msra.mxu0 0.0
        %1549 = vmatprep.subr.mxu0 0.0
        %1550 = vmatpush1.xpose.msra.mxu0 0.0
        %1551 = vmatprep.subr.mxu0 0.0
        %1552 = vmatpush1.xpose.msra.mxu0 0.0
        %1553 = vmatprep.subr.mxu0 0.0
        %1554 = vmatpush1.xpose.msra.mxu0 0.0
        %1555 = vmatprep.subr.mxu0 0.0
        %1556 = vmatpush1.xpose.msra.mxu0 0.0
        %1557 = vmatprep.subr.mxu0 0.0
        %1558 = vmatpush1.xpose.msra.mxu0 0.0
        %1559 = vmatprep.subr.mxu0 0.0
        %1560 = vmatpush1.xpose.msra.mxu0 %v1527
        %1561 = vmatprep.subr.mxu0 0.0
        %1562 = vmatpush2.xpose.msra.mxu0 0.0
        %1563 = vmatprep.subr.mxu0 0.0
        %1564 = vmatpush2.xpose.msra.mxu0 0.0
        %1565 = vmatprep.subr.mxu0 0.0
        %1566 = vmatpush2.xpose.msra.mxu0 0.0
        %1567 = vmatprep.subr.mxu0 0.0
        %1568 = vmatpush2.xpose.msra.mxu0 0.0
        %1569 = vmatprep.subr.mxu0 0.0
        %1570 = vmatpush2.xpose.msra.mxu0 0.0
        %1571 = vmatprep.subr.mxu0 0.0
        %1572 = vmatpush2.xpose.msra.mxu0 0.0
        %1573 = vmatprep.subr.mxu0 0.0
        %1574 = vmatpush2.xpose.msra.mxu0 0.0
        %1575 = vmatprep.subr.mxu0 0.0
        %1576 = vmatpush2.xpose.msra.mxu0 0.0
        %1577 = vmatprep.subr.mxu0 0.0
        %1578 = vmatpush2.xpose.msra.mxu0 0.0
        %1579 = vmatprep.subr.mxu0 0.0
        %1580 = vmatpush2.xpose.msra.mxu0 0.0
        %1581 = vmatprep.subr.mxu0 0.0
        %1582 = vmatpush2.xpose.msra.mxu0 0.0
        %1583 = vmatprep.subr.mxu0 0.0
        %1584 = vmatpush2.xpose.msra.mxu0 0.0
        %1585 = vmatprep.subr.mxu0 0.0
        %1586 = vmatpush2.xpose.msra.mxu0 0.0
        %1587 = vmatprep.subr.mxu0 0.0
        %1588 = vmatpush2.xpose.msra.mxu0 0.0
        %1589 = vmatprep.subr.mxu0 0.0
        %1590 = vmatpush2.xpose.msra.mxu0 0.0
        %1591 = vmatprep.subr.mxu0 0.0
        %1592 = vmatpush2.xpose.msra.mxu0 0.0
        %1593 = vmatprep.mubr.f32.mxu0 0.0
        %1594 = vmatmul.mubr.f32.gmra.mxu0 %v1525
        %v1595 = vpop.f32.mrf.mxu0
        %v1596 = vadd.f32 0.0, %v1595
        %v1597 = vpop.f32.mrf.mxu0
        %1598 = vdwg.mxu0
        %v1600 = vunpack.c.l.s4 1983009808
        %v1601 = vunpack.c.0.s8 %v1600
        %v1602 = vlaneseq
        %v1603 = vshrl.u32 %v1602, 7
        %v1604 = vsub.s32 %v1601, %v1603
        %v1605 = vrot.slane %v1016, %v1604
        %1606 = vrot.lane.b32.xlu0 %v1605, 96
        %v1607 = vpop.permute.xlu0 %1606
        %v1608 = vsel %vm1026, %v1016, 0
        %v1610 = vsel %vm1026, %v1607, 0
        %1612 = vmatprep.subr.mxu0 0.0
        %1613 = vmatpush1.xpose.msra.mxu0 0.0
        %1614 = vmatprep.subr.mxu0 0.0
        %1615 = vmatpush1.xpose.msra.mxu0 0.0
        %1616 = vmatprep.subr.mxu0 0.0
        %1617 = vmatpush1.xpose.msra.mxu0 0.0
        %1618 = vmatprep.subr.mxu0 0.0
        %1619 = vmatpush1.xpose.msra.mxu0 0.0
        %1620 = vmatprep.subr.mxu0 0.0
        %1621 = vmatpush1.xpose.msra.mxu0 0.0
        %1622 = vmatprep.subr.mxu0 0.0
        %1623 = vmatpush1.xpose.msra.mxu0 0.0
        %1624 = vmatprep.subr.mxu0 0.0
        %1625 = vmatpush1.xpose.msra.mxu0 0.0
        %1626 = vmatprep.subr.mxu0 0.0
        %1627 = vmatpush1.xpose.msra.mxu0 0.0
        %1628 = vmatprep.subr.mxu0 0.0
        %1629 = vmatpush1.xpose.msra.mxu0 0.0
        %1630 = vmatprep.subr.mxu0 0.0
        %1631 = vmatpush1.xpose.msra.mxu0 0.0
        %1632 = vmatprep.subr.mxu0 0.0
        %1633 = vmatpush1.xpose.msra.mxu0 0.0
        %1634 = vmatprep.subr.mxu0 0.0
        %1635 = vmatpush1.xpose.msra.mxu0 0.0
        %1636 = vmatprep.subr.mxu0 0.0
        %1637 = vmatpush1.xpose.msra.mxu0 0.0
        %1638 = vmatprep.subr.mxu0 0.0
        %1639 = vmatpush1.xpose.msra.mxu0 0.0
        %1640 = vmatprep.subr.mxu0 0.0
        %1641 = vmatpush1.xpose.msra.mxu0 0.0
        %1642 = vmatprep.subr.mxu0 0.0
        %1643 = vmatpush1.xpose.msra.mxu0 %v1610
        %1644 = vmatprep.subr.mxu0 0.0
        %1645 = vmatpush2.xpose.msra.mxu0 0.0
        %1646 = vmatprep.subr.mxu0 0.0
        %1647 = vmatpush2.xpose.msra.mxu0 0.0
        %1648 = vmatprep.subr.mxu0 0.0
        %1649 = vmatpush2.xpose.msra.mxu0 0.0
        %1650 = vmatprep.subr.mxu0 0.0
        %1651 = vmatpush2.xpose.msra.mxu0 0.0
        %1652 = vmatprep.subr.mxu0 0.0
        %1653 = vmatpush2.xpose.msra.mxu0 0.0
        %1654 = vmatprep.subr.mxu0 0.0
        %1655 = vmatpush2.xpose.msra.mxu0 0.0
        %1656 = vmatprep.subr.mxu0 0.0
        %1657 = vmatpush2.xpose.msra.mxu0 0.0
        %1658 = vmatprep.subr.mxu0 0.0
        %1659 = vmatpush2.xpose.msra.mxu0 0.0
        %1660 = vmatprep.subr.mxu0 0.0
        %1661 = vmatpush2.xpose.msra.mxu0 0.0
        %1662 = vmatprep.subr.mxu0 0.0
        %1663 = vmatpush2.xpose.msra.mxu0 0.0
        %1664 = vmatprep.subr.mxu0 0.0
        %1665 = vmatpush2.xpose.msra.mxu0 0.0
        %1666 = vmatprep.subr.mxu0 0.0
        %1667 = vmatpush2.xpose.msra.mxu0 0.0
        %1668 = vmatprep.subr.mxu0 0.0
        %1669 = vmatpush2.xpose.msra.mxu0 0.0
        %1670 = vmatprep.subr.mxu0 0.0
        %1671 = vmatpush2.xpose.msra.mxu0 0.0
        %1672 = vmatprep.subr.mxu0 0.0
        %1673 = vmatpush2.xpose.msra.mxu0 0.0
        %1674 = vmatprep.subr.mxu0 0.0
        %1675 = vmatpush2.xpose.msra.mxu0 0.0
        %1676 = vmatprep.mubr.f32.mxu0 0.0
        %1677 = vmatmul.mubr.f32.gmra.mxu0 %v1608
        %v1678 = vpop.f32.mrf.mxu0
        %v1679 = vadd.f32 0.0, %v1678
        %v1680 = vpop.f32.mrf.mxu0
        %1681 = vdwg.mxu0
        %v1682 = vmul.f32 %v1098, 0.35355338
        %v1683 = vmul.f32 %v1181, 0.35355338
        %v1684 = vmul.f32 %v1264, 0.35355338
        %v1685 = vmul.f32 %v1347, 0.35355338
        %v1686 = vmul.f32 %v1430, 0.35355338
        %v1687 = vmul.f32 %v1513, 0.35355338
        %v1688 = vmul.f32 %v1596, 0.35355338
        %v1689 = vmul.f32 %v1679, 0.35355338
        %vm1690 = vcmask 9216
        %v1691 = vsel %vm1690, %v1682, -inf
        %1692 = vmax.xlane.f32.xlu0 %v1691
        %v1693 = vpop.xlane.xlu0 %1692
        %v1694 = vsel %vm1690, %v1683, -inf
        %1695 = vmax.xlane.f32.xlu0 %v1694
        %v1696 = vpop.xlane.xlu0 %1695
        %v1697 = vsel %vm1690, %v1684, -inf
        %1698 = vmax.xlane.f32.xlu0 %v1697
        %v1699 = vpop.xlane.xlu0 %1698
        %v1700 = vsel %vm1690, %v1685, -inf
        %1701 = vmax.xlane.f32.xlu0 %v1700
        %v1702 = vpop.xlane.xlu0 %1701
        %v1703 = vsel %vm1690, %v1686, -inf
        %1704 = vmax.xlane.f32.xlu0 %v1703
        %v1705 = vpop.xlane.xlu0 %1704
        %v1706 = vsel %vm1690, %v1687, -inf
        %1707 = vmax.xlane.f32.xlu0 %v1706
        %v1708 = vpop.xlane.xlu0 %1707
        %v1709 = vsel %vm1690, %v1688, -inf
        %1710 = vmax.xlane.f32.xlu0 %v1709
        %v1711 = vpop.xlane.xlu0 %1710
        %v1712 = vsel %vm1690, %v1689, -inf
        %1713 = vmax.xlane.f32.xlu0 %v1712
        %v1714 = vpop.xlane.xlu0 %1713
        %v1715 = vsub.f32 %v1682, %v1693
        %v1716 = vsub.f32 %v1683, %v1696
        %v1717 = vsub.f32 %v1684, %v1699
        %v1718 = vsub.f32 %v1685, %v1702
        %v1719 = vsub.f32 %v1686, %v1705
        %v1720 = vsub.f32 %v1687, %v1708
        %v1721 = vsub.f32 %v1688, %v1711
        %v1722 = vsub.f32 %v1689, %v1714
        %v1723 = vmul.f32 %v1715, 1.442695
        %v1724 = vpow.pop %v1723
        %v1725 = vmul.f32 %v1716, 1.442695
        %v1726 = vpow.pop %v1725
        %v1727 = vmul.f32 %v1717, 1.442695
        %v1728 = vpow.pop %v1727
        %v1729 = vmul.f32 %v1718, 1.442695
        %v1730 = vpow.pop %v1729
        %v1731 = vmul.f32 %v1719, 1.442695
        %v1732 = vpow.pop %v1731
        %v1733 = vmul.f32 %v1720, 1.442695
        %v1734 = vpow.pop %v1733
        %v1735 = vmul.f32 %v1721, 1.442695
        %v1736 = vpow.pop %v1735
        %v1737 = vmul.f32 %v1722, 1.442695
        %v1738 = vpow.pop %v1737
        %v1739 = vsel %vm1690, %v1724, 0.0
        %1740 = vadd.xlane.f32.xlu0 %v1739
        %v1741 = vpop.xlane.xlu0 %1740
        %v1742 = vsel %vm1690, %v1726, 0.0
        %1743 = vadd.xlane.f32.xlu0 %v1742
        %v1744 = vpop.xlane.xlu0 %1743
        %v1745 = vsel %vm1690, %v1728, 0.0
        %1746 = vadd.xlane.f32.xlu0 %v1745
        %v1747 = vpop.xlane.xlu0 %1746
        %v1748 = vsel %vm1690, %v1730, 0.0
        %1749 = vadd.xlane.f32.xlu0 %v1748
        %v1750 = vpop.xlane.xlu0 %1749
        %v1751 = vsel %vm1690, %v1732, 0.0
        %1752 = vadd.xlane.f32.xlu0 %v1751
        %v1753 = vpop.xlane.xlu0 %1752
        %v1754 = vsel %vm1690, %v1734, 0.0
        %1755 = vadd.xlane.f32.xlu0 %v1754
        %v1756 = vpop.xlane.xlu0 %1755
        %v1757 = vsel %vm1690, %v1736, 0.0
        %1758 = vadd.xlane.f32.xlu0 %v1757
        %v1759 = vpop.xlane.xlu0 %1758
        %v1760 = vsel %vm1690, %v1738, 0.0
        %1761 = vadd.xlane.f32.xlu0 %v1760
        %v1762 = vpop.xlane.xlu0 %1761
        %v1763 = vrcp.pop %v1741
        %v1764 = vrcp.pop %v1744
        %v1765 = vrcp.pop %v1747
        %v1766 = vrcp.pop %v1750
        %v1767 = vrcp.pop %v1753
        %v1768 = vrcp.pop %v1756
        %v1769 = vrcp.pop %v1759
        %v1770 = vrcp.pop %v1762
        %v1771 = vmul.f32 %v1724, %v1763
        %v1772 = vmul.f32 %v1726, %v1764
        %v1773 = vmul.f32 %v1728, %v1765
        %v1774 = vmul.f32 %v1730, %v1766
        %v1775 = vmul.f32 %v1732, %v1767
        %v1776 = vmul.f32 %v1734, %v1768
        %v1777 = vmul.f32 %v1736, %v1769
        %v1778 = vmul.f32 %v1738, %v1770
        %1779 = vrot.lane.b32.xlu0 %v1023, 64
        %v1780 = vpop.permute.xlu0 %1779
        %vm1781 = vcmask 15360
        %v1783 = vsel %vm1781, %v1771, 0
        %vm1785 = vcmask 1041408
        %v1786 = vsel %vm1785, %v1780, 0
        %1788 = vmatprep.subr.mxu0 0.0
        %1789 = vmatpush1.msra.mxu0 0.0
        %1790 = vmatprep.subr.mxu0 0.0
        %1791 = vmatpush1.msra.mxu0 0.0
        %1792 = vmatprep.subr.mxu0 0.0
        %1793 = vmatpush1.msra.mxu0 0.0
        %1794 = vmatprep.subr.mxu0 0.0
        %1795 = vmatpush1.msra.mxu0 0.0
        %1796 = vmatprep.subr.mxu0 0.0
        %1797 = vmatpush1.msra.mxu0 0.0
        %1798 = vmatprep.subr.mxu0 0.0
        %1799 = vmatpush1.msra.mxu0 0.0
        %1800 = vmatprep.subr.mxu0 0.0
        %1801 = vmatpush1.msra.mxu0 0.0
        %1802 = vmatprep.subr.mxu0 0.0
        %1803 = vmatpush1.msra.mxu0 0.0
        %1804 = vmatprep.subr.mxu0 0.0
        %1805 = vmatpush1.msra.mxu0 0.0
        %1806 = vmatprep.subr.mxu0 0.0
        %1807 = vmatpush1.msra.mxu0 0.0
        %1808 = vmatprep.subr.mxu0 0.0
        %1809 = vmatpush1.msra.mxu0 0.0
        %1810 = vmatprep.subr.mxu0 0.0
        %1811 = vmatpush1.msra.mxu0 0.0
        %1812 = vmatprep.subr.mxu0 0.0
        %1813 = vmatpush1.msra.mxu0 0.0
        %1814 = vmatprep.subr.mxu0 0.0
        %1815 = vmatpush1.msra.mxu0 0.0
        %1816 = vmatprep.subr.mxu0 0.0
        %1817 = vmatpush1.msra.mxu0 0.0
        %1818 = vmatprep.subr.mxu0 0.0
        %1819 = vmatpush1.msra.mxu0 %v1786
        %1820 = vmatprep.subr.mxu0 0.0
        %1821 = vmatpush2.msra.mxu0 0.0
        %1822 = vmatprep.subr.mxu0 0.0
        %1823 = vmatpush2.msra.mxu0 0.0
        %1824 = vmatprep.subr.mxu0 0.0
        %1825 = vmatpush2.msra.mxu0 0.0
        %1826 = vmatprep.subr.mxu0 0.0
        %1827 = vmatpush2.msra.mxu0 0.0
        %1828 = vmatprep.subr.mxu0 0.0
        %1829 = vmatpush2.msra.mxu0 0.0
        %1830 = vmatprep.subr.mxu0 0.0
        %1831 = vmatpush2.msra.mxu0 0.0
        %1832 = vmatprep.subr.mxu0 0.0
        %1833 = vmatpush2.msra.mxu0 0.0
        %1834 = vmatprep.subr.mxu0 0.0
        %1835 = vmatpush2.msra.mxu0 0.0
        %1836 = vmatprep.subr.mxu0 0.0
        %1837 = vmatpush2.msra.mxu0 0.0
        %1838 = vmatprep.subr.mxu0 0.0
        %1839 = vmatpush2.msra.mxu0 0.0
        %1840 = vmatprep.subr.mxu0 0.0
        %1841 = vmatpush2.msra.mxu0 0.0
        %1842 = vmatprep.subr.mxu0 0.0
        %1843 = vmatpush2.msra.mxu0 0.0
        %1844 = vmatprep.subr.mxu0 0.0
        %1845 = vmatpush2.msra.mxu0 0.0
        %1846 = vmatprep.subr.mxu0 0.0
        %1847 = vmatpush2.msra.mxu0 0.0
        %1848 = vmatprep.subr.mxu0 0.0
        %1849 = vmatpush2.msra.mxu0 0.0
        %1850 = vmatprep.subr.mxu0 0.0
        %1851 = vmatpush2.msra.mxu0 0.0
        %1852 = vmatprep.mubr.f32.mxu0 0.0
        %1853 = vmatmul.mubr.f32.gmra.mxu0 %v1783
        %v1854 = vpop.f32.mrf.mxu0
        %v1855 = vadd.f32 0.0, %v1854
        %v1856 = vpop.f32.mrf.mxu0
        %1857 = vdwg.mxu0
        %1858 = vrot.lane.b32.xlu0 %v1107, 64
        %v1859 = vpop.permute.xlu0 %1858
        %v1861 = vsel %vm1781, %v1772, 0
        %v1863 = vsel %vm1785, %v1859, 0
        %1865 = vmatprep.subr.mxu0 0.0
        %1866 = vmatpush1.msra.mxu0 0.0
        %1867 = vmatprep.subr.mxu0 0.0
        %1868 = vmatpush1.msra.mxu0 0.0
        %1869 = vmatprep.subr.mxu0 0.0
        %1870 = vmatpush1.msra.mxu0 0.0
        %1871 = vmatprep.subr.mxu0 0.0
        %1872 = vmatpush1.msra.mxu0 0.0
        %1873 = vmatprep.subr.mxu0 0.0
        %1874 = vmatpush1.msra.mxu0 0.0
        %1875 = vmatprep.subr.mxu0 0.0
        %1876 = vmatpush1.msra.mxu0 0.0
        %1877 = vmatprep.subr.mxu0 0.0
        %1878 = vmatpush1.msra.mxu0 0.0
        %1879 = vmatprep.subr.mxu0 0.0
        %1880 = vmatpush1.msra.mxu0 0.0
        %1881 = vmatprep.subr.mxu0 0.0
        %1882 = vmatpush1.msra.mxu0 0.0
        %1883 = vmatprep.subr.mxu0 0.0
        %1884 = vmatpush1.msra.mxu0 0.0
        %1885 = vmatprep.subr.mxu0 0.0
        %1886 = vmatpush1.msra.mxu0 0.0
        %1887 = vmatprep.subr.mxu0 0.0
        %1888 = vmatpush1.msra.mxu0 0.0
        %1889 = vmatprep.subr.mxu0 0.0
        %1890 = vmatpush1.msra.mxu0 0.0
        %1891 = vmatprep.subr.mxu0 0.0
        %1892 = vmatpush1.msra.mxu0 0.0
        %1893 = vmatprep.subr.mxu0 0.0
        %1894 = vmatpush1.msra.mxu0 0.0
        %1895 = vmatprep.subr.mxu0 0.0
        %1896 = vmatpush1.msra.mxu0 %v1863
        %1897 = vmatprep.subr.mxu0 0.0
        %1898 = vmatpush2.msra.mxu0 0.0
        %1899 = vmatprep.subr.mxu0 0.0
        %1900 = vmatpush2.msra.mxu0 0.0
        %1901 = vmatprep.subr.mxu0 0.0
        %1902 = vmatpush2.msra.mxu0 0.0
        %1903 = vmatprep.subr.mxu0 0.0
        %1904 = vmatpush2.msra.mxu0 0.0
        %1905 = vmatprep.subr.mxu0 0.0
        %1906 = vmatpush2.msra.mxu0 0.0
        %1907 = vmatprep.subr.mxu0 0.0
        %1908 = vmatpush2.msra.mxu0 0.0
        %1909 = vmatprep.subr.mxu0 0.0
        %1910 = vmatpush2.msra.mxu0 0.0
        %1911 = vmatprep.subr.mxu0 0.0
        %1912 = vmatpush2.msra.mxu0 0.0
        %1913 = vmatprep.subr.mxu0 0.0
        %1914 = vmatpush2.msra.mxu0 0.0
        %1915 = vmatprep.subr.mxu0 0.0
        %1916 = vmatpush2.msra.mxu0 0.0
        %1917 = vmatprep.subr.mxu0 0.0
        %1918 = vmatpush2.msra.mxu0 0.0
        %1919 = vmatprep.subr.mxu0 0.0
        %1920 = vmatpush2.msra.mxu0 0.0
        %1921 = vmatprep.subr.mxu0 0.0
        %1922 = vmatpush2.msra.mxu0 0.0
        %1923 = vmatprep.subr.mxu0 0.0
        %1924 = vmatpush2.msra.mxu0 0.0
        %1925 = vmatprep.subr.mxu0 0.0
        %1926 = vmatpush2.msra.mxu0 0.0
        %1927 = vmatprep.subr.mxu0 0.0
        %1928 = vmatpush2.msra.mxu0 0.0
        %1929 = vmatprep.mubr.f32.mxu0 0.0
        %1930 = vmatmul.mubr.f32.gmra.mxu0 %v1861
        %v1931 = vpop.f32.mrf.mxu0
        %v1932 = vadd.f32 0.0, %v1931
        %v1933 = vpop.f32.mrf.mxu0
        %1934 = vdwg.mxu0
        %1935 = vrot.lane.b32.xlu0 %v1190, 64
        %v1936 = vpop.permute.xlu0 %1935
        %v1938 = vsel %vm1781, %v1773, 0
        %v1940 = vsel %vm1785, %v1936, 0
        %1942 = vmatprep.subr.mxu0 0.0
        %1943 = vmatpush1.msra.mxu0 0.0
        %1944 = vmatprep.subr.mxu0 0.0
        %1945 = vmatpush1.msra.mxu0 0.0
        %1946 = vmatprep.subr.mxu0 0.0
        %1947 = vmatpush1.msra.mxu0 0.0
        %1948 = vmatprep.subr.mxu0 0.0
        %1949 = vmatpush1.msra.mxu0 0.0
        %1950 = vmatprep.subr.mxu0 0.0
        %1951 = vmatpush1.msra.mxu0 0.0
        %1952 = vmatprep.subr.mxu0 0.0
        %1953 = vmatpush1.msra.mxu0 0.0
        %1954 = vmatprep.subr.mxu0 0.0
        %1955 = vmatpush1.msra.mxu0 0.0
        %1956 = vmatprep.subr.mxu0 0.0
        %1957 = vmatpush1.msra.mxu0 0.0
        %1958 = vmatprep.subr.mxu0 0.0
        %1959 = vmatpush1.msra.mxu0 0.0
        %1960 = vmatprep.subr.mxu0 0.0
        %1961 = vmatpush1.msra.mxu0 0.0
        %1962 = vmatprep.subr.mxu0 0.0
        %1963 = vmatpush1.msra.mxu0 0.0
        %1964 = vmatprep.subr.mxu0 0.0
        %1965 = vmatpush1.msra.mxu0 0.0
        %1966 = vmatprep.subr.mxu0 0.0
        %1967 = vmatpush1.msra.mxu0 0.0
        %1968 = vmatprep.subr.mxu0 0.0
        %1969 = vmatpush1.msra.mxu0 0.0
        %1970 = vmatprep.subr.mxu0 0.0
        %1971 = vmatpush1.msra.mxu0 0.0
        %1972 = vmatprep.subr.mxu0 0.0
        %1973 = vmatpush1.msra.mxu0 %v1940
        %1974 = vmatprep.subr.mxu0 0.0
        %1975 = vmatpush2.msra.mxu0 0.0
        %1976 = vmatprep.subr.mxu0 0.0
        %1977 = vmatpush2.msra.mxu0 0.0
        %1978 = vmatprep.subr.mxu0 0.0
        %1979 = vmatpush2.msra.mxu0 0.0
        %1980 = vmatprep.subr.mxu0 0.0
        %1981 = vmatpush2.msra.mxu0 0.0
        %1982 = vmatprep.subr.mxu0 0.0
        %1983 = vmatpush2.msra.mxu0 0.0
        %1984 = vmatprep.subr.mxu0 0.0
        %1985 = vmatpush2.msra.mxu0 0.0
        %1986 = vmatprep.subr.mxu0 0.0
        %1987 = vmatpush2.msra.mxu0 0.0
        %1988 = vmatprep.subr.mxu0 0.0
        %1989 = vmatpush2.msra.mxu0 0.0
        %1990 = vmatprep.subr.mxu0 0.0
        %1991 = vmatpush2.msra.mxu0 0.0
        %1992 = vmatprep.subr.mxu0 0.0
        %1993 = vmatpush2.msra.mxu0 0.0
        %1994 = vmatprep.subr.mxu0 0.0
        %1995 = vmatpush2.msra.mxu0 0.0
        %1996 = vmatprep.subr.mxu0 0.0
        %1997 = vmatpush2.msra.mxu0 0.0
        %1998 = vmatprep.subr.mxu0 0.0
        %1999 = vmatpush2.msra.mxu0 0.0
        %2000 = vmatprep.subr.mxu0 0.0
        %2001 = vmatpush2.msra.mxu0 0.0
        %2002 = vmatprep.subr.mxu0 0.0
        %2003 = vmatpush2.msra.mxu0 0.0
        %2004 = vmatprep.subr.mxu0 0.0
        %2005 = vmatpush2.msra.mxu0 0.0
        %2006 = vmatprep.mubr.f32.mxu0 0.0
        %2007 = vmatmul.mubr.f32.gmra.mxu0 %v1938
        %v2008 = vpop.f32.mrf.mxu0
        %v2009 = vadd.f32 0.0, %v2008
        %v2010 = vpop.f32.mrf.mxu0
        %2011 = vdwg.mxu0
        %2012 = vrot.lane.b32.xlu0 %v1273, 64
        %v2013 = vpop.permute.xlu0 %2012
        %v2015 = vsel %vm1781, %v1774, 0
        %v2017 = vsel %vm1785, %v2013, 0
        %2019 = vmatprep.subr.mxu0 0.0
        %2020 = vmatpush1.msra.mxu0 0.0
        %2021 = vmatprep.subr.mxu0 0.0
        %2022 = vmatpush1.msra.mxu0 0.0
        %2023 = vmatprep.subr.mxu0 0.0
        %2024 = vmatpush1.msra.mxu0 0.0
        %2025 = vmatprep.subr.mxu0 0.0
        %2026 = vmatpush1.msra.mxu0 0.0
        %2027 = vmatprep.subr.mxu0 0.0
        %2028 = vmatpush1.msra.mxu0 0.0
        %2029 = vmatprep.subr.mxu0 0.0
        %2030 = vmatpush1.msra.mxu0 0.0
        %2031 = vmatprep.subr.mxu0 0.0
        %2032 = vmatpush1.msra.mxu0 0.0
        %2033 = vmatprep.subr.mxu0 0.0
        %2034 = vmatpush1.msra.mxu0 0.0
        %2035 = vmatprep.subr.mxu0 0.0
        %2036 = vmatpush1.msra.mxu0 0.0
        %2037 = vmatprep.subr.mxu0 0.0
        %2038 = vmatpush1.msra.mxu0 0.0
        %2039 = vmatprep.subr.mxu0 0.0
        %2040 = vmatpush1.msra.mxu0 0.0
        %2041 = vmatprep.subr.mxu0 0.0
        %2042 = vmatpush1.msra.mxu0 0.0
        %2043 = vmatprep.subr.mxu0 0.0
        %2044 = vmatpush1.msra.mxu0 0.0
        %2045 = vmatprep.subr.mxu0 0.0
        %2046 = vmatpush1.msra.mxu0 0.0
        %2047 = vmatprep.subr.mxu0 0.0
        %2048 = vmatpush1.msra.mxu0 0.0
        %2049 = vmatprep.subr.mxu0 0.0
        %2050 = vmatpush1.msra.mxu0 %v2017
        %2051 = vmatprep.subr.mxu0 0.0
        %2052 = vmatpush2.msra.mxu0 0.0
        %2053 = vmatprep.subr.mxu0 0.0
        %2054 = vmatpush2.msra.mxu0 0.0
        %2055 = vmatprep.subr.mxu0 0.0
        %2056 = vmatpush2.msra.mxu0 0.0
        %2057 = vmatprep.subr.mxu0 0.0
        %2058 = vmatpush2.msra.mxu0 0.0
        %2059 = vmatprep.subr.mxu0 0.0
        %2060 = vmatpush2.msra.mxu0 0.0
        %2061 = vmatprep.subr.mxu0 0.0
        %2062 = vmatpush2.msra.mxu0 0.0
        %2063 = vmatprep.subr.mxu0 0.0
        %2064 = vmatpush2.msra.mxu0 0.0
        %2065 = vmatprep.subr.mxu0 0.0
        %2066 = vmatpush2.msra.mxu0 0.0
        %2067 = vmatprep.subr.mxu0 0.0
        %2068 = vmatpush2.msra.mxu0 0.0
        %2069 = vmatprep.subr.mxu0 0.0
        %2070 = vmatpush2.msra.mxu0 0.0
        %2071 = vmatprep.subr.mxu0 0.0
        %2072 = vmatpush2.msra.mxu0 0.0
        %2073 = vmatprep.subr.mxu0 0.0
        %2074 = vmatpush2.msra.mxu0 0.0
        %2075 = vmatprep.subr.mxu0 0.0
        %2076 = vmatpush2.msra.mxu0 0.0
        %2077 = vmatprep.subr.mxu0 0.0
        %2078 = vmatpush2.msra.mxu0 0.0
        %2079 = vmatprep.subr.mxu0 0.0
        %2080 = vmatpush2.msra.mxu0 0.0
        %2081 = vmatprep.subr.mxu0 0.0
        %2082 = vmatpush2.msra.mxu0 0.0
        %2083 = vmatprep.mubr.f32.mxu0 0.0
        %2084 = vmatmul.mubr.f32.gmra.mxu0 %v2015
        %v2085 = vpop.f32.mrf.mxu0
        %v2086 = vadd.f32 0.0, %v2085
        %v2087 = vpop.f32.mrf.mxu0
        %2088 = vdwg.mxu0
        %2089 = vrot.lane.b32.xlu0 %v1356, 64
        %v2090 = vpop.permute.xlu0 %2089
        %v2092 = vsel %vm1781, %v1775, 0
        %v2094 = vsel %vm1785, %v2090, 0
        %2096 = vmatprep.subr.mxu0 0.0
        %2097 = vmatpush1.msra.mxu0 0.0
        %2098 = vmatprep.subr.mxu0 0.0
        %2099 = vmatpush1.msra.mxu0 0.0
        %2100 = vmatprep.subr.mxu0 0.0
        %2101 = vmatpush1.msra.mxu0 0.0
        %2102 = vmatprep.subr.mxu0 0.0
        %2103 = vmatpush1.msra.mxu0 0.0
        %2104 = vmatprep.subr.mxu0 0.0
        %2105 = vmatpush1.msra.mxu0 0.0
        %2106 = vmatprep.subr.mxu0 0.0
        %2107 = vmatpush1.msra.mxu0 0.0
        %2108 = vmatprep.subr.mxu0 0.0
        %2109 = vmatpush1.msra.mxu0 0.0
        %2110 = vmatprep.subr.mxu0 0.0
        %2111 = vmatpush1.msra.mxu0 0.0
        %2112 = vmatprep.subr.mxu0 0.0
        %2113 = vmatpush1.msra.mxu0 0.0
        %2114 = vmatprep.subr.mxu0 0.0
        %2115 = vmatpush1.msra.mxu0 0.0
        %2116 = vmatprep.subr.mxu0 0.0
        %2117 = vmatpush1.msra.mxu0 0.0
        %2118 = vmatprep.subr.mxu0 0.0
        %2119 = vmatpush1.msra.mxu0 0.0
        %2120 = vmatprep.subr.mxu0 0.0
        %2121 = vmatpush1.msra.mxu0 0.0
        %2122 = vmatprep.subr.mxu0 0.0
        %2123 = vmatpush1.msra.mxu0 0.0
        %2124 = vmatprep.subr.mxu0 0.0
        %2125 = vmatpush1.msra.mxu0 0.0
        %2126 = vmatprep.subr.mxu0 0.0
        %2127 = vmatpush1.msra.mxu0 %v2094
        %2128 = vmatprep.subr.mxu0 0.0
        %2129 = vmatpush2.msra.mxu0 0.0
        %2130 = vmatprep.subr.mxu0 0.0
        %2131 = vmatpush2.msra.mxu0 0.0
        %2132 = vmatprep.subr.mxu0 0.0
        %2133 = vmatpush2.msra.mxu0 0.0
        %2134 = vmatprep.subr.mxu0 0.0
        %2135 = vmatpush2.msra.mxu0 0.0
        %2136 = vmatprep.subr.mxu0 0.0
        %2137 = vmatpush2.msra.mxu0 0.0
        %2138 = vmatprep.subr.mxu0 0.0
        %2139 = vmatpush2.msra.mxu0 0.0
        %2140 = vmatprep.subr.mxu0 0.0
        %2141 = vmatpush2.msra.mxu0 0.0
        %2142 = vmatprep.subr.mxu0 0.0
        %2143 = vmatpush2.msra.mxu0 0.0
        %2144 = vmatprep.subr.mxu0 0.0
        %2145 = vmatpush2.msra.mxu0 0.0
        %2146 = vmatprep.subr.mxu0 0.0
        %2147 = vmatpush2.msra.mxu0 0.0
        %2148 = vmatprep.subr.mxu0 0.0
        %2149 = vmatpush2.msra.mxu0 0.0
        %2150 = vmatprep.subr.mxu0 0.0
        %2151 = vmatpush2.msra.mxu0 0.0
        %2152 = vmatprep.subr.mxu0 0.0
        %2153 = vmatpush2.msra.mxu0 0.0
        %2154 = vmatprep.subr.mxu0 0.0
        %2155 = vmatpush2.msra.mxu0 0.0
        %2156 = vmatprep.subr.mxu0 0.0
        %2157 = vmatpush2.msra.mxu0 0.0
        %2158 = vmatprep.subr.mxu0 0.0
        %2159 = vmatpush2.msra.mxu0 0.0
        %2160 = vmatprep.mubr.f32.mxu0 0.0
        %2161 = vmatmul.mubr.f32.gmra.mxu0 %v2092
        %v2162 = vpop.f32.mrf.mxu0
        %v2163 = vadd.f32 0.0, %v2162
        %v2164 = vpop.f32.mrf.mxu0
        %2165 = vdwg.mxu0
        %2166 = vrot.lane.b32.xlu0 %v1439, 64
        %v2167 = vpop.permute.xlu0 %2166
        %v2169 = vsel %vm1781, %v1776, 0
        %v2171 = vsel %vm1785, %v2167, 0
        %2173 = vmatprep.subr.mxu0 0.0
        %2174 = vmatpush1.msra.mxu0 0.0
        %2175 = vmatprep.subr.mxu0 0.0
        %2176 = vmatpush1.msra.mxu0 0.0
        %2177 = vmatprep.subr.mxu0 0.0
        %2178 = vmatpush1.msra.mxu0 0.0
        %2179 = vmatprep.subr.mxu0 0.0
        %2180 = vmatpush1.msra.mxu0 0.0
        %2181 = vmatprep.subr.mxu0 0.0
        %2182 = vmatpush1.msra.mxu0 0.0
        %2183 = vmatprep.subr.mxu0 0.0
        %2184 = vmatpush1.msra.mxu0 0.0
        %2185 = vmatprep.subr.mxu0 0.0
        %2186 = vmatpush1.msra.mxu0 0.0
        %2187 = vmatprep.subr.mxu0 0.0
        %2188 = vmatpush1.msra.mxu0 0.0
        %2189 = vmatprep.subr.mxu0 0.0
        %2190 = vmatpush1.msra.mxu0 0.0
        %2191 = vmatprep.subr.mxu0 0.0
        %2192 = vmatpush1.msra.mxu0 0.0
        %2193 = vmatprep.subr.mxu0 0.0
        %2194 = vmatpush1.msra.mxu0 0.0
        %2195 = vmatprep.subr.mxu0 0.0
        %2196 = vmatpush1.msra.mxu0 0.0
        %2197 = vmatprep.subr.mxu0 0.0
        %2198 = vmatpush1.msra.mxu0 0.0
        %2199 = vmatprep.subr.mxu0 0.0
        %2200 = vmatpush1.msra.mxu0 0.0
        %2201 = vmatprep.subr.mxu0 0.0
        %2202 = vmatpush1.msra.mxu0 0.0
        %2203 = vmatprep.subr.mxu0 0.0
        %2204 = vmatpush1.msra.mxu0 %v2171
        %2205 = vmatprep.subr.mxu0 0.0
        %2206 = vmatpush2.msra.mxu0 0.0
        %2207 = vmatprep.subr.mxu0 0.0
        %2208 = vmatpush2.msra.mxu0 0.0
        %2209 = vmatprep.subr.mxu0 0.0
        %2210 = vmatpush2.msra.mxu0 0.0
        %2211 = vmatprep.subr.mxu0 0.0
        %2212 = vmatpush2.msra.mxu0 0.0
        %2213 = vmatprep.subr.mxu0 0.0
        %2214 = vmatpush2.msra.mxu0 0.0
        %2215 = vmatprep.subr.mxu0 0.0
        %2216 = vmatpush2.msra.mxu0 0.0
        %2217 = vmatprep.subr.mxu0 0.0
        %2218 = vmatpush2.msra.mxu0 0.0
        %2219 = vmatprep.subr.mxu0 0.0
        %2220 = vmatpush2.msra.mxu0 0.0
        %2221 = vmatprep.subr.mxu0 0.0
        %2222 = vmatpush2.msra.mxu0 0.0
        %2223 = vmatprep.subr.mxu0 0.0
        %2224 = vmatpush2.msra.mxu0 0.0
        %2225 = vmatprep.subr.mxu0 0.0
        %2226 = vmatpush2.msra.mxu0 0.0
        %2227 = vmatprep.subr.mxu0 0.0
        %2228 = vmatpush2.msra.mxu0 0.0
        %2229 = vmatprep.subr.mxu0 0.0
        %2230 = vmatpush2.msra.mxu0 0.0
        %2231 = vmatprep.subr.mxu0 0.0
        %2232 = vmatpush2.msra.mxu0 0.0
        %2233 = vmatprep.subr.mxu0 0.0
        %2234 = vmatpush2.msra.mxu0 0.0
        %2235 = vmatprep.subr.mxu0 0.0
        %2236 = vmatpush2.msra.mxu0 0.0
        %2237 = vmatprep.mubr.f32.mxu0 0.0
        %2238 = vmatmul.mubr.f32.gmra.mxu0 %v2169
        %v2239 = vpop.f32.mrf.mxu0
        %v2240 = vadd.f32 0.0, %v2239
        %v2241 = vpop.f32.mrf.mxu0
        %2242 = vdwg.mxu0
        %2243 = vrot.lane.b32.xlu0 %v1522, 64
        %v2244 = vpop.permute.xlu0 %2243
        %v2246 = vsel %vm1781, %v1777, 0
        %v2248 = vsel %vm1785, %v2244, 0
        %2250 = vmatprep.subr.mxu0 0.0
        %2251 = vmatpush1.msra.mxu0 0.0
        %2252 = vmatprep.subr.mxu0 0.0
        %2253 = vmatpush1.msra.mxu0 0.0
        %2254 = vmatprep.subr.mxu0 0.0
        %2255 = vmatpush1.msra.mxu0 0.0
        %2256 = vmatprep.subr.mxu0 0.0
        %2257 = vmatpush1.msra.mxu0 0.0
        %2258 = vmatprep.subr.mxu0 0.0
        %2259 = vmatpush1.msra.mxu0 0.0
        %2260 = vmatprep.subr.mxu0 0.0
        %2261 = vmatpush1.msra.mxu0 0.0
        %2262 = vmatprep.subr.mxu0 0.0
        %2263 = vmatpush1.msra.mxu0 0.0
        %2264 = vmatprep.subr.mxu0 0.0
        %2265 = vmatpush1.msra.mxu0 0.0
        %2266 = vmatprep.subr.mxu0 0.0
        %2267 = vmatpush1.msra.mxu0 0.0
        %2268 = vmatprep.subr.mxu0 0.0
        %2269 = vmatpush1.msra.mxu0 0.0
        %2270 = vmatprep.subr.mxu0 0.0
        %2271 = vmatpush1.msra.mxu0 0.0
        %2272 = vmatprep.subr.mxu0 0.0
        %2273 = vmatpush1.msra.mxu0 0.0
        %2274 = vmatprep.subr.mxu0 0.0
        %2275 = vmatpush1.msra.mxu0 0.0
        %2276 = vmatprep.subr.mxu0 0.0
        %2277 = vmatpush1.msra.mxu0 0.0
        %2278 = vmatprep.subr.mxu0 0.0
        %2279 = vmatpush1.msra.mxu0 0.0
        %2280 = vmatprep.subr.mxu0 0.0
        %2281 = vmatpush1.msra.mxu0 %v2248
        %2282 = vmatprep.subr.mxu0 0.0
        %2283 = vmatpush2.msra.mxu0 0.0
        %2284 = vmatprep.subr.mxu0 0.0
        %2285 = vmatpush2.msra.mxu0 0.0
        %2286 = vmatprep.subr.mxu0 0.0
        %2287 = vmatpush2.msra.mxu0 0.0
        %2288 = vmatprep.subr.mxu0 0.0
        %2289 = vmatpush2.msra.mxu0 0.0
        %2290 = vmatprep.subr.mxu0 0.0
        %2291 = vmatpush2.msra.mxu0 0.0
        %2292 = vmatprep.subr.mxu0 0.0
        %2293 = vmatpush2.msra.mxu0 0.0
        %2294 = vmatprep.subr.mxu0 0.0
        %2295 = vmatpush2.msra.mxu0 0.0
        %2296 = vmatprep.subr.mxu0 0.0
        %2297 = vmatpush2.msra.mxu0 0.0
        %2298 = vmatprep.subr.mxu0 0.0
        %2299 = vmatpush2.msra.mxu0 0.0
        %2300 = vmatprep.subr.mxu0 0.0
        %2301 = vmatpush2.msra.mxu0 0.0
        %2302 = vmatprep.subr.mxu0 0.0
        %2303 = vmatpush2.msra.mxu0 0.0
        %2304 = vmatprep.subr.mxu0 0.0
        %2305 = vmatpush2.msra.mxu0 0.0
        %2306 = vmatprep.subr.mxu0 0.0
        %2307 = vmatpush2.msra.mxu0 0.0
        %2308 = vmatprep.subr.mxu0 0.0
        %2309 = vmatpush2.msra.mxu0 0.0
        %2310 = vmatprep.subr.mxu0 0.0
        %2311 = vmatpush2.msra.mxu0 0.0
        %2312 = vmatprep.subr.mxu0 0.0
        %2313 = vmatpush2.msra.mxu0 0.0
        %2314 = vmatprep.mubr.f32.mxu0 0.0
        %2315 = vmatmul.mubr.f32.gmra.mxu0 %v2246
        %v2316 = vpop.f32.mrf.mxu0
        %v2317 = vadd.f32 0.0, %v2316
        %v2318 = vpop.f32.mrf.mxu0
        %2319 = vdwg.mxu0
        %2320 = vrot.lane.b32.xlu0 %v1605, 64
        %v2321 = vpop.permute.xlu0 %2320
        %v2323 = vsel %vm1781, %v1778, 0
        %v2325 = vsel %vm1785, %v2321, 0
        %2327 = vmatprep.subr.mxu0 0.0
        %2328 = vmatpush1.msra.mxu0 0.0
        %2329 = vmatprep.subr.mxu0 0.0
        %2330 = vmatpush1.msra.mxu0 0.0
        %2331 = vmatprep.subr.mxu0 0.0
        %2332 = vmatpush1.msra.mxu0 0.0
        %2333 = vmatprep.subr.mxu0 0.0
        %2334 = vmatpush1.msra.mxu0 0.0
        %2335 = vmatprep.subr.mxu0 0.0
        %2336 = vmatpush1.msra.mxu0 0.0
        %2337 = vmatprep.subr.mxu0 0.0
        %2338 = vmatpush1.msra.mxu0 0.0
        %2339 = vmatprep.subr.mxu0 0.0
        %2340 = vmatpush1.msra.mxu0 0.0
        %2341 = vmatprep.subr.mxu0 0.0
        %2342 = vmatpush1.msra.mxu0 0.0
        %2343 = vmatprep.subr.mxu0 0.0
        %2344 = vmatpush1.msra.mxu0 0.0
        %2345 = vmatprep.subr.mxu0 0.0
        %2346 = vmatpush1.msra.mxu0 0.0
        %2347 = vmatprep.subr.mxu0 0.0
        %2348 = vmatpush1.msra.mxu0 0.0
        %2349 = vmatprep.subr.mxu0 0.0
        %2350 = vmatpush1.msra.mxu0 0.0
        %2351 = vmatprep.subr.mxu0 0.0
        %2352 = vmatpush1.msra.mxu0 0.0
        %2353 = vmatprep.subr.mxu0 0.0
        %2354 = vmatpush1.msra.mxu0 0.0
        %2355 = vmatprep.subr.mxu0 0.0
        %2356 = vmatpush1.msra.mxu0 0.0
        %2357 = vmatprep.subr.mxu0 0.0
        %2358 = vmatpush1.msra.mxu0 %v2325
        %2359 = vmatprep.subr.mxu0 0.0
        %2360 = vmatpush2.msra.mxu0 0.0
        %2361 = vmatprep.subr.mxu0 0.0
        %2362 = vmatpush2.msra.mxu0 0.0
        %2363 = vmatprep.subr.mxu0 0.0
        %2364 = vmatpush2.msra.mxu0 0.0
        %2365 = vmatprep.subr.mxu0 0.0
        %2366 = vmatpush2.msra.mxu0 0.0
        %2367 = vmatprep.subr.mxu0 0.0
        %2368 = vmatpush2.msra.mxu0 0.0
        %2369 = vmatprep.subr.mxu0 0.0
        %2370 = vmatpush2.msra.mxu0 0.0
        %2371 = vmatprep.subr.mxu0 0.0
        %2372 = vmatpush2.msra.mxu0 0.0
        %2373 = vmatprep.subr.mxu0 0.0
        %2374 = vmatpush2.msra.mxu0 0.0
        %2375 = vmatprep.subr.mxu0 0.0
        %2376 = vmatpush2.msra.mxu0 0.0
        %2377 = vmatprep.subr.mxu0 0.0
        %2378 = vmatpush2.msra.mxu0 0.0
        %2379 = vmatprep.subr.mxu0 0.0
        %2380 = vmatpush2.msra.mxu0 0.0
        %2381 = vmatprep.subr.mxu0 0.0
        %2382 = vmatpush2.msra.mxu0 0.0
        %2383 = vmatprep.subr.mxu0 0.0
        %2384 = vmatpush2.msra.mxu0 0.0
        %2385 = vmatprep.subr.mxu0 0.0
        %2386 = vmatpush2.msra.mxu0 0.0
        %2387 = vmatprep.subr.mxu0 0.0
        %2388 = vmatpush2.msra.mxu0 0.0
        %2389 = vmatprep.subr.mxu0 0.0
        %2390 = vmatpush2.msra.mxu0 0.0
        %2391 = vmatprep.mubr.f32.mxu0 0.0
        %2392 = vmatmul.mubr.f32.gmra.mxu0 %v2323
        %v2393 = vpop.f32.mrf.mxu0
        %v2394 = vadd.f32 0.0, %v2393
        %v2395 = vpop.f32.mrf.mxu0
        %2396 = vdwg.mxu0
        %2397 = vrot.lane.b32.xlu0 %v1023, 120
        %v2398 = vpop.permute.xlu0 %2397
        %2399 = vrot.lane.b32.xlu0 %v1023, 88
        %v2400 = vpop.permute.xlu0 %2399
        %v2401 = vsel %vm1026, %v2398, 0
        %v2403 = vsel %vm1026, %v2400, 0
        %2405 = vmatprep.subr.mxu0 0.0
        %2406 = vmatpush1.xpose.msra.mxu0 0.0
        %2407 = vmatprep.subr.mxu0 0.0
        %2408 = vmatpush1.xpose.msra.mxu0 0.0
        %2409 = vmatprep.subr.mxu0 0.0
        %2410 = vmatpush1.xpose.msra.mxu0 0.0
        %2411 = vmatprep.subr.mxu0 0.0
        %2412 = vmatpush1.xpose.msra.mxu0 0.0
        %2413 = vmatprep.subr.mxu0 0.0
        %2414 = vmatpush1.xpose.msra.mxu0 0.0
        %2415 = vmatprep.subr.mxu0 0.0
        %2416 = vmatpush1.xpose.msra.mxu0 0.0
        %2417 = vmatprep.subr.mxu0 0.0
        %2418 = vmatpush1.xpose.msra.mxu0 0.0
        %2419 = vmatprep.subr.mxu0 0.0
        %2420 = vmatpush1.xpose.msra.mxu0 0.0
        %2421 = vmatprep.subr.mxu0 0.0
        %2422 = vmatpush1.xpose.msra.mxu0 0.0
        %2423 = vmatprep.subr.mxu0 0.0
        %2424 = vmatpush1.xpose.msra.mxu0 0.0
        %2425 = vmatprep.subr.mxu0 0.0
        %2426 = vmatpush1.xpose.msra.mxu0 0.0
        %2427 = vmatprep.subr.mxu0 0.0
        %2428 = vmatpush1.xpose.msra.mxu0 0.0
        %2429 = vmatprep.subr.mxu0 0.0
        %2430 = vmatpush1.xpose.msra.mxu0 0.0
        %2431 = vmatprep.subr.mxu0 0.0
        %2432 = vmatpush1.xpose.msra.mxu0 0.0
        %2433 = vmatprep.subr.mxu0 0.0
        %2434 = vmatpush1.xpose.msra.mxu0 0.0
        %2435 = vmatprep.subr.mxu0 0.0
        %2436 = vmatpush1.xpose.msra.mxu0 %v2403
        %2437 = vmatprep.subr.mxu0 0.0
        %2438 = vmatpush2.xpose.msra.mxu0 0.0
        %2439 = vmatprep.subr.mxu0 0.0
        %2440 = vmatpush2.xpose.msra.mxu0 0.0
        %2441 = vmatprep.subr.mxu0 0.0
        %2442 = vmatpush2.xpose.msra.mxu0 0.0
        %2443 = vmatprep.subr.mxu0 0.0
        %2444 = vmatpush2.xpose.msra.mxu0 0.0
        %2445 = vmatprep.subr.mxu0 0.0
        %2446 = vmatpush2.xpose.msra.mxu0 0.0
        %2447 = vmatprep.subr.mxu0 0.0
        %2448 = vmatpush2.xpose.msra.mxu0 0.0
        %2449 = vmatprep.subr.mxu0 0.0
        %2450 = vmatpush2.xpose.msra.mxu0 0.0
        %2451 = vmatprep.subr.mxu0 0.0
        %2452 = vmatpush2.xpose.msra.mxu0 0.0
        %2453 = vmatprep.subr.mxu0 0.0
        %2454 = vmatpush2.xpose.msra.mxu0 0.0
        %2455 = vmatprep.subr.mxu0 0.0
        %2456 = vmatpush2.xpose.msra.mxu0 0.0
        %2457 = vmatprep.subr.mxu0 0.0
        %2458 = vmatpush2.xpose.msra.mxu0 0.0
        %2459 = vmatprep.subr.mxu0 0.0
        %2460 = vmatpush2.xpose.msra.mxu0 0.0
        %2461 = vmatprep.subr.mxu0 0.0
        %2462 = vmatpush2.xpose.msra.mxu0 0.0
        %2463 = vmatprep.subr.mxu0 0.0
        %2464 = vmatpush2.xpose.msra.mxu0 0.0
        %2465 = vmatprep.subr.mxu0 0.0
        %2466 = vmatpush2.xpose.msra.mxu0 0.0
        %2467 = vmatprep.subr.mxu0 0.0
        %2468 = vmatpush2.xpose.msra.mxu0 0.0
        %2469 = vmatprep.mubr.f32.mxu0 0.0
        %2470 = vmatmul.mubr.f32.gmra.mxu0 %v2401
        %v2471 = vpop.f32.mrf.mxu0
        %v2472 = vadd.f32 0.0, %v2471
        %v2473 = vpop.f32.mrf.mxu0
        %2474 = vdwg.mxu0
        %2475 = vrot.lane.b32.xlu0 %v1107, 120
        %v2476 = vpop.permute.xlu0 %2475
        %2477 = vrot.lane.b32.xlu0 %v1107, 88
        %v2478 = vpop.permute.xlu0 %2477
        %v2479 = vsel %vm1026, %v2476, 0
        %v2481 = vsel %vm1026, %v2478, 0
        %2483 = vmatprep.subr.mxu0 0.0
        %2484 = vmatpush1.xpose.msra.mxu0 0.0
        %2485 = vmatprep.subr.mxu0 0.0
        %2486 = vmatpush1.xpose.msra.mxu0 0.0
        %2487 = vmatprep.subr.mxu0 0.0
        %2488 = vmatpush1.xpose.msra.mxu0 0.0
        %2489 = vmatprep.subr.mxu0 0.0
        %2490 = vmatpush1.xpose.msra.mxu0 0.0
        %2491 = vmatprep.subr.mxu0 0.0
        %2492 = vmatpush1.xpose.msra.mxu0 0.0
        %2493 = vmatprep.subr.mxu0 0.0
        %2494 = vmatpush1.xpose.msra.mxu0 0.0
        %2495 = vmatprep.subr.mxu0 0.0
        %2496 = vmatpush1.xpose.msra.mxu0 0.0
        %2497 = vmatprep.subr.mxu0 0.0
        %2498 = vmatpush1.xpose.msra.mxu0 0.0
        %2499 = vmatprep.subr.mxu0 0.0
        %2500 = vmatpush1.xpose.msra.mxu0 0.0
        %2501 = vmatprep.subr.mxu0 0.0
        %2502 = vmatpush1.xpose.msra.mxu0 0.0
        %2503 = vmatprep.subr.mxu0 0.0
        %2504 = vmatpush1.xpose.msra.mxu0 0.0
        %2505 = vmatprep.subr.mxu0 0.0
        %2506 = vmatpush1.xpose.msra.mxu0 0.0
        %2507 = vmatprep.subr.mxu0 0.0
        %2508 = vmatpush1.xpose.msra.mxu0 0.0
        %2509 = vmatprep.subr.mxu0 0.0
        %2510 = vmatpush1.xpose.msra.mxu0 0.0
        %2511 = vmatprep.subr.mxu0 0.0
        %2512 = vmatpush1.xpose.msra.mxu0 0.0
        %2513 = vmatprep.subr.mxu0 0.0
        %2514 = vmatpush1.xpose.msra.mxu0 %v2481
        %2515 = vmatprep.subr.mxu0 0.0
        %2516 = vmatpush2.xpose.msra.mxu0 0.0
        %2517 = vmatprep.subr.mxu0 0.0
        %2518 = vmatpush2.xpose.msra.mxu0 0.0
        %2519 = vmatprep.subr.mxu0 0.0
        %2520 = vmatpush2.xpose.msra.mxu0 0.0
        %2521 = vmatprep.subr.mxu0 0.0
        %2522 = vmatpush2.xpose.msra.mxu0 0.0
        %2523 = vmatprep.subr.mxu0 0.0
        %2524 = vmatpush2.xpose.msra.mxu0 0.0
        %2525 = vmatprep.subr.mxu0 0.0
        %2526 = vmatpush2.xpose.msra.mxu0 0.0
        %2527 = vmatprep.subr.mxu0 0.0
        %2528 = vmatpush2.xpose.msra.mxu0 0.0
        %2529 = vmatprep.subr.mxu0 0.0
        %2530 = vmatpush2.xpose.msra.mxu0 0.0
        %2531 = vmatprep.subr.mxu0 0.0
        %2532 = vmatpush2.xpose.msra.mxu0 0.0
        %2533 = vmatprep.subr.mxu0 0.0
        %2534 = vmatpush2.xpose.msra.mxu0 0.0
        %2535 = vmatprep.subr.mxu0 0.0
        %2536 = vmatpush2.xpose.msra.mxu0 0.0
        %2537 = vmatprep.subr.mxu0 0.0
        %2538 = vmatpush2.xpose.msra.mxu0 0.0
        %2539 = vmatprep.subr.mxu0 0.0
        %2540 = vmatpush2.xpose.msra.mxu0 0.0
        %2541 = vmatprep.subr.mxu0 0.0
        %2542 = vmatpush2.xpose.msra.mxu0 0.0
        %2543 = vmatprep.subr.mxu0 0.0
        %2544 = vmatpush2.xpose.msra.mxu0 0.0
        %2545 = vmatprep.subr.mxu0 0.0
        %2546 = vmatpush2.xpose.msra.mxu0 0.0
        %2547 = vmatprep.mubr.f32.mxu0 0.0
        %2548 = vmatmul.mubr.f32.gmra.mxu0 %v2479
        %v2549 = vpop.f32.mrf.mxu0
        %v2550 = vadd.f32 0.0, %v2549
        %v2551 = vpop.f32.mrf.mxu0
        %2552 = vdwg.mxu0
        %2553 = vrot.lane.b32.xlu0 %v1190, 120
        %v2554 = vpop.permute.xlu0 %2553
        %2555 = vrot.lane.b32.xlu0 %v1190, 88
        %v2556 = vpop.permute.xlu0 %2555
        %v2557 = vsel %vm1026, %v2554, 0
        %v2559 = vsel %vm1026, %v2556, 0
        %2561 = vmatprep.subr.mxu0 0.0
        %2562 = vmatpush1.xpose.msra.mxu0 0.0
        %2563 = vmatprep.subr.mxu0 0.0
        %2564 = vmatpush1.xpose.msra.mxu0 0.0
        %2565 = vmatprep.subr.mxu0 0.0
        %2566 = vmatpush1.xpose.msra.mxu0 0.0
        %2567 = vmatprep.subr.mxu0 0.0
        %2568 = vmatpush1.xpose.msra.mxu0 0.0
        %2569 = vmatprep.subr.mxu0 0.0
        %2570 = vmatpush1.xpose.msra.mxu0 0.0
        %2571 = vmatprep.subr.mxu0 0.0
        %2572 = vmatpush1.xpose.msra.mxu0 0.0
        %2573 = vmatprep.subr.mxu0 0.0
        %2574 = vmatpush1.xpose.msra.mxu0 0.0
        %2575 = vmatprep.subr.mxu0 0.0
        %2576 = vmatpush1.xpose.msra.mxu0 0.0
        %2577 = vmatprep.subr.mxu0 0.0
        %2578 = vmatpush1.xpose.msra.mxu0 0.0
        %2579 = vmatprep.subr.mxu0 0.0
        %2580 = vmatpush1.xpose.msra.mxu0 0.0
        %2581 = vmatprep.subr.mxu0 0.0
        %2582 = vmatpush1.xpose.msra.mxu0 0.0
        %2583 = vmatprep.subr.mxu0 0.0
        %2584 = vmatpush1.xpose.msra.mxu0 0.0
        %2585 = vmatprep.subr.mxu0 0.0
        %2586 = vmatpush1.xpose.msra.mxu0 0.0
        %2587 = vmatprep.subr.mxu0 0.0
        %2588 = vmatpush1.xpose.msra.mxu0 0.0
        %2589 = vmatprep.subr.mxu0 0.0
        %2590 = vmatpush1.xpose.msra.mxu0 0.0
        %2591 = vmatprep.subr.mxu0 0.0
        %2592 = vmatpush1.xpose.msra.mxu0 %v2559
        %2593 = vmatprep.subr.mxu0 0.0
        %2594 = vmatpush2.xpose.msra.mxu0 0.0
        %2595 = vmatprep.subr.mxu0 0.0
        %2596 = vmatpush2.xpose.msra.mxu0 0.0
        %2597 = vmatprep.subr.mxu0 0.0
        %2598 = vmatpush2.xpose.msra.mxu0 0.0
        %2599 = vmatprep.subr.mxu0 0.0
        %2600 = vmatpush2.xpose.msra.mxu0 0.0
        %2601 = vmatprep.subr.mxu0 0.0
        %2602 = vmatpush2.xpose.msra.mxu0 0.0
        %2603 = vmatprep.subr.mxu0 0.0
        %2604 = vmatpush2.xpose.msra.mxu0 0.0
        %2605 = vmatprep.subr.mxu0 0.0
        %2606 = vmatpush2.xpose.msra.mxu0 0.0
        %2607 = vmatprep.subr.mxu0 0.0
        %2608 = vmatpush2.xpose.msra.mxu0 0.0
        %2609 = vmatprep.subr.mxu0 0.0
        %2610 = vmatpush2.xpose.msra.mxu0 0.0
        %2611 = vmatprep.subr.mxu0 0.0
        %2612 = vmatpush2.xpose.msra.mxu0 0.0
        %2613 = vmatprep.subr.mxu0 0.0
        %2614 = vmatpush2.xpose.msra.mxu0 0.0
        %2615 = vmatprep.subr.mxu0 0.0
        %2616 = vmatpush2.xpose.msra.mxu0 0.0
        %2617 = vmatprep.subr.mxu0 0.0
        %2618 = vmatpush2.xpose.msra.mxu0 0.0
        %2619 = vmatprep.subr.mxu0 0.0
        %2620 = vmatpush2.xpose.msra.mxu0 0.0
        %2621 = vmatprep.subr.mxu0 0.0
        %2622 = vmatpush2.xpose.msra.mxu0 0.0
        %2623 = vmatprep.subr.mxu0 0.0
        %2624 = vmatpush2.xpose.msra.mxu0 0.0
        %2625 = vmatprep.mubr.f32.mxu0 0.0
        %2626 = vmatmul.mubr.f32.gmra.mxu0 %v2557
        %v2627 = vpop.f32.mrf.mxu0
        %v2628 = vadd.f32 0.0, %v2627
        %v2629 = vpop.f32.mrf.mxu0
        %2630 = vdwg.mxu0
        %2631 = vrot.lane.b32.xlu0 %v1273, 120
        %v2632 = vpop.permute.xlu0 %2631
        %2633 = vrot.lane.b32.xlu0 %v1273, 88
        %v2634 = vpop.permute.xlu0 %2633
        %v2635 = vsel %vm1026, %v2632, 0
        %v2637 = vsel %vm1026, %v2634, 0
        %2639 = vmatprep.subr.mxu0 0.0
        %2640 = vmatpush1.xpose.msra.mxu0 0.0
        %2641 = vmatprep.subr.mxu0 0.0
        %2642 = vmatpush1.xpose.msra.mxu0 0.0
        %2643 = vmatprep.subr.mxu0 0.0
        %2644 = vmatpush1.xpose.msra.mxu0 0.0
        %2645 = vmatprep.subr.mxu0 0.0
        %2646 = vmatpush1.xpose.msra.mxu0 0.0
        %2647 = vmatprep.subr.mxu0 0.0
        %2648 = vmatpush1.xpose.msra.mxu0 0.0
        %2649 = vmatprep.subr.mxu0 0.0
        %2650 = vmatpush1.xpose.msra.mxu0 0.0
        %2651 = vmatprep.subr.mxu0 0.0
        %2652 = vmatpush1.xpose.msra.mxu0 0.0
        %2653 = vmatprep.subr.mxu0 0.0
        %2654 = vmatpush1.xpose.msra.mxu0 0.0
        %2655 = vmatprep.subr.mxu0 0.0
        %2656 = vmatpush1.xpose.msra.mxu0 0.0
        %2657 = vmatprep.subr.mxu0 0.0
        %2658 = vmatpush1.xpose.msra.mxu0 0.0
        %2659 = vmatprep.subr.mxu0 0.0
        %2660 = vmatpush1.xpose.msra.mxu0 0.0
        %2661 = vmatprep.subr.mxu0 0.0
        %2662 = vmatpush1.xpose.msra.mxu0 0.0
        %2663 = vmatprep.subr.mxu0 0.0
        %2664 = vmatpush1.xpose.msra.mxu0 0.0
        %2665 = vmatprep.subr.mxu0 0.0
        %2666 = vmatpush1.xpose.msra.mxu0 0.0
        %2667 = vmatprep.subr.mxu0 0.0
        %2668 = vmatpush1.xpose.msra.mxu0 0.0
        %2669 = vmatprep.subr.mxu0 0.0
        %2670 = vmatpush1.xpose.msra.mxu0 %v2637
        %2671 = vmatprep.subr.mxu0 0.0
        %2672 = vmatpush2.xpose.msra.mxu0 0.0
        %2673 = vmatprep.subr.mxu0 0.0
        %2674 = vmatpush2.xpose.msra.mxu0 0.0
        %2675 = vmatprep.subr.mxu0 0.0
        %2676 = vmatpush2.xpose.msra.mxu0 0.0
        %2677 = vmatprep.subr.mxu0 0.0
        %2678 = vmatpush2.xpose.msra.mxu0 0.0
        %2679 = vmatprep.subr.mxu0 0.0
        %2680 = vmatpush2.xpose.msra.mxu0 0.0
        %2681 = vmatprep.subr.mxu0 0.0
        %2682 = vmatpush2.xpose.msra.mxu0 0.0
        %2683 = vmatprep.subr.mxu0 0.0
        %2684 = vmatpush2.xpose.msra.mxu0 0.0
        %2685 = vmatprep.subr.mxu0 0.0
        %2686 = vmatpush2.xpose.msra.mxu0 0.0
        %2687 = vmatprep.subr.mxu0 0.0
        %2688 = vmatpush2.xpose.msra.mxu0 0.0
        %2689 = vmatprep.subr.mxu0 0.0
        %2690 = vmatpush2.xpose.msra.mxu0 0.0
        %2691 = vmatprep.subr.mxu0 0.0
        %2692 = vmatpush2.xpose.msra.mxu0 0.0
        %2693 = vmatprep.subr.mxu0 0.0
        %2694 = vmatpush2.xpose.msra.mxu0 0.0
        %2695 = vmatprep.subr.mxu0 0.0
        %2696 = vmatpush2.xpose.msra.mxu0 0.0
        %2697 = vmatprep.subr.mxu0 0.0
        %2698 = vmatpush2.xpose.msra.mxu0 0.0
        %2699 = vmatprep.subr.mxu0 0.0
        %2700 = vmatpush2.xpose.msra.mxu0 0.0
        %2701 = vmatprep.subr.mxu0 0.0
        %2702 = vmatpush2.xpose.msra.mxu0 0.0
        %2703 = vmatprep.mubr.f32.mxu0 0.0
        %2704 = vmatmul.mubr.f32.gmra.mxu0 %v2635
        %v2705 = vpop.f32.mrf.mxu0
        %v2706 = vadd.f32 0.0, %v2705
        %v2707 = vpop.f32.mrf.mxu0
        %2708 = vdwg.mxu0
        %2709 = vrot.lane.b32.xlu0 %v1356, 120
        %v2710 = vpop.permute.xlu0 %2709
        %2711 = vrot.lane.b32.xlu0 %v1356, 88
        %v2712 = vpop.permute.xlu0 %2711
        %v2713 = vsel %vm1026, %v2710, 0
        %v2715 = vsel %vm1026, %v2712, 0
        %2717 = vmatprep.subr.mxu0 0.0
        %2718 = vmatpush1.xpose.msra.mxu0 0.0
        %2719 = vmatprep.subr.mxu0 0.0
        %2720 = vmatpush1.xpose.msra.mxu0 0.0
        %2721 = vmatprep.subr.mxu0 0.0
        %2722 = vmatpush1.xpose.msra.mxu0 0.0
        %2723 = vmatprep.subr.mxu0 0.0
        %2724 = vmatpush1.xpose.msra.mxu0 0.0
        %2725 = vmatprep.subr.mxu0 0.0
        %2726 = vmatpush1.xpose.msra.mxu0 0.0
        %2727 = vmatprep.subr.mxu0 0.0
        %2728 = vmatpush1.xpose.msra.mxu0 0.0
        %2729 = vmatprep.subr.mxu0 0.0
        %2730 = vmatpush1.xpose.msra.mxu0 0.0
        %2731 = vmatprep.subr.mxu0 0.0
        %2732 = vmatpush1.xpose.msra.mxu0 0.0
        %2733 = vmatprep.subr.mxu0 0.0
        %2734 = vmatpush1.xpose.msra.mxu0 0.0
        %2735 = vmatprep.subr.mxu0 0.0
        %2736 = vmatpush1.xpose.msra.mxu0 0.0
        %2737 = vmatprep.subr.mxu0 0.0
        %2738 = vmatpush1.xpose.msra.mxu0 0.0
        %2739 = vmatprep.subr.mxu0 0.0
        %2740 = vmatpush1.xpose.msra.mxu0 0.0
        %2741 = vmatprep.subr.mxu0 0.0
        %2742 = vmatpush1.xpose.msra.mxu0 0.0
        %2743 = vmatprep.subr.mxu0 0.0
        %2744 = vmatpush1.xpose.msra.mxu0 0.0
        %2745 = vmatprep.subr.mxu0 0.0
        %2746 = vmatpush1.xpose.msra.mxu0 0.0
        %2747 = vmatprep.subr.mxu0 0.0
        %2748 = vmatpush1.xpose.msra.mxu0 %v2715
        %2749 = vmatprep.subr.mxu0 0.0
        %2750 = vmatpush2.xpose.msra.mxu0 0.0
        %2751 = vmatprep.subr.mxu0 0.0
        %2752 = vmatpush2.xpose.msra.mxu0 0.0
        %2753 = vmatprep.subr.mxu0 0.0
        %2754 = vmatpush2.xpose.msra.mxu0 0.0
        %2755 = vmatprep.subr.mxu0 0.0
        %2756 = vmatpush2.xpose.msra.mxu0 0.0
        %2757 = vmatprep.subr.mxu0 0.0
        %2758 = vmatpush2.xpose.msra.mxu0 0.0
        %2759 = vmatprep.subr.mxu0 0.0
        %2760 = vmatpush2.xpose.msra.mxu0 0.0
        %2761 = vmatprep.subr.mxu0 0.0
        %2762 = vmatpush2.xpose.msra.mxu0 0.0
        %2763 = vmatprep.subr.mxu0 0.0
        %2764 = vmatpush2.xpose.msra.mxu0 0.0
        %2765 = vmatprep.subr.mxu0 0.0
        %2766 = vmatpush2.xpose.msra.mxu0 0.0
        %2767 = vmatprep.subr.mxu0 0.0
        %2768 = vmatpush2.xpose.msra.mxu0 0.0
        %2769 = vmatprep.subr.mxu0 0.0
        %2770 = vmatpush2.xpose.msra.mxu0 0.0
        %2771 = vmatprep.subr.mxu0 0.0
        %2772 = vmatpush2.xpose.msra.mxu0 0.0
        %2773 = vmatprep.subr.mxu0 0.0
        %2774 = vmatpush2.xpose.msra.mxu0 0.0
        %2775 = vmatprep.subr.mxu0 0.0
        %2776 = vmatpush2.xpose.msra.mxu0 0.0
        %2777 = vmatprep.subr.mxu0 0.0
        %2778 = vmatpush2.xpose.msra.mxu0 0.0
        %2779 = vmatprep.subr.mxu0 0.0
        %2780 = vmatpush2.xpose.msra.mxu0 0.0
        %2781 = vmatprep.mubr.f32.mxu0 0.0
        %2782 = vmatmul.mubr.f32.gmra.mxu0 %v2713
        %v2783 = vpop.f32.mrf.mxu0
        %v2784 = vadd.f32 0.0, %v2783
        %v2785 = vpop.f32.mrf.mxu0
        %2786 = vdwg.mxu0
        %2787 = vrot.lane.b32.xlu0 %v1439, 120
        %v2788 = vpop.permute.xlu0 %2787
        %2789 = vrot.lane.b32.xlu0 %v1439, 88
        %v2790 = vpop.permute.xlu0 %2789
        %v2791 = vsel %vm1026, %v2788, 0
        %v2793 = vsel %vm1026, %v2790, 0
        %2795 = vmatprep.subr.mxu0 0.0
        %2796 = vmatpush1.xpose.msra.mxu0 0.0
        %2797 = vmatprep.subr.mxu0 0.0
        %2798 = vmatpush1.xpose.msra.mxu0 0.0
        %2799 = vmatprep.subr.mxu0 0.0
        %2800 = vmatpush1.xpose.msra.mxu0 0.0
        %2801 = vmatprep.subr.mxu0 0.0
        %2802 = vmatpush1.xpose.msra.mxu0 0.0
        %2803 = vmatprep.subr.mxu0 0.0
        %2804 = vmatpush1.xpose.msra.mxu0 0.0
        %2805 = vmatprep.subr.mxu0 0.0
        %2806 = vmatpush1.xpose.msra.mxu0 0.0
        %2807 = vmatprep.subr.mxu0 0.0
        %2808 = vmatpush1.xpose.msra.mxu0 0.0
        %2809 = vmatprep.subr.mxu0 0.0
        %2810 = vmatpush1.xpose.msra.mxu0 0.0
        %2811 = vmatprep.subr.mxu0 0.0
        %2812 = vmatpush1.xpose.msra.mxu0 0.0
        %2813 = vmatprep.subr.mxu0 0.0
        %2814 = vmatpush1.xpose.msra.mxu0 0.0
        %2815 = vmatprep.subr.mxu0 0.0
        %2816 = vmatpush1.xpose.msra.mxu0 0.0
        %2817 = vmatprep.subr.mxu0 0.0
        %2818 = vmatpush1.xpose.msra.mxu0 0.0
        %2819 = vmatprep.subr.mxu0 0.0
        %2820 = vmatpush1.xpose.msra.mxu0 0.0
        %2821 = vmatprep.subr.mxu0 0.0
        %2822 = vmatpush1.xpose.msra.mxu0 0.0
        %2823 = vmatprep.subr.mxu0 0.0
        %2824 = vmatpush1.xpose.msra.mxu0 0.0
        %2825 = vmatprep.subr.mxu0 0.0
        %2826 = vmatpush1.xpose.msra.mxu0 %v2793
        %2827 = vmatprep.subr.mxu0 0.0
        %2828 = vmatpush2.xpose.msra.mxu0 0.0
        %2829 = vmatprep.subr.mxu0 0.0
        %2830 = vmatpush2.xpose.msra.mxu0 0.0
        %2831 = vmatprep.subr.mxu0 0.0
        %2832 = vmatpush2.xpose.msra.mxu0 0.0
        %2833 = vmatprep.subr.mxu0 0.0
        %2834 = vmatpush2.xpose.msra.mxu0 0.0
        %2835 = vmatprep.subr.mxu0 0.0
        %2836 = vmatpush2.xpose.msra.mxu0 0.0
        %2837 = vmatprep.subr.mxu0 0.0
        %2838 = vmatpush2.xpose.msra.mxu0 0.0
        %2839 = vmatprep.subr.mxu0 0.0
        %2840 = vmatpush2.xpose.msra.mxu0 0.0
        %2841 = vmatprep.subr.mxu0 0.0
        %2842 = vmatpush2.xpose.msra.mxu0 0.0
        %2843 = vmatprep.subr.mxu0 0.0
        %2844 = vmatpush2.xpose.msra.mxu0 0.0
        %2845 = vmatprep.subr.mxu0 0.0
        %2846 = vmatpush2.xpose.msra.mxu0 0.0
        %2847 = vmatprep.subr.mxu0 0.0
        %2848 = vmatpush2.xpose.msra.mxu0 0.0
        %2849 = vmatprep.subr.mxu0 0.0
        %2850 = vmatpush2.xpose.msra.mxu0 0.0
        %2851 = vmatprep.subr.mxu0 0.0
        %2852 = vmatpush2.xpose.msra.mxu0 0.0
        %2853 = vmatprep.subr.mxu0 0.0
        %2854 = vmatpush2.xpose.msra.mxu0 0.0
        %2855 = vmatprep.subr.mxu0 0.0
        %2856 = vmatpush2.xpose.msra.mxu0 0.0
        %2857 = vmatprep.subr.mxu0 0.0
        %2858 = vmatpush2.xpose.msra.mxu0 0.0
        %2859 = vmatprep.mubr.f32.mxu0 0.0
        %2860 = vmatmul.mubr.f32.gmra.mxu0 %v2791
        %v2861 = vpop.f32.mrf.mxu0
        %v2862 = vadd.f32 0.0, %v2861
        %v2863 = vpop.f32.mrf.mxu0
        %2864 = vdwg.mxu0
        %2865 = vrot.lane.b32.xlu0 %v1522, 120
        %v2866 = vpop.permute.xlu0 %2865
        %2867 = vrot.lane.b32.xlu0 %v1522, 88
        %v2868 = vpop.permute.xlu0 %2867
        %v2869 = vsel %vm1026, %v2866, 0
        %v2871 = vsel %vm1026, %v2868, 0
        %2873 = vmatprep.subr.mxu0 0.0
        %2874 = vmatpush1.xpose.msra.mxu0 0.0
        %2875 = vmatprep.subr.mxu0 0.0
        %2876 = vmatpush1.xpose.msra.mxu0 0.0
        %2877 = vmatprep.subr.mxu0 0.0
        %2878 = vmatpush1.xpose.msra.mxu0 0.0
        %2879 = vmatprep.subr.mxu0 0.0
        %2880 = vmatpush1.xpose.msra.mxu0 0.0
        %2881 = vmatprep.subr.mxu0 0.0
        %2882 = vmatpush1.xpose.msra.mxu0 0.0
        %2883 = vmatprep.subr.mxu0 0.0
        %2884 = vmatpush1.xpose.msra.mxu0 0.0
        %2885 = vmatprep.subr.mxu0 0.0
        %2886 = vmatpush1.xpose.msra.mxu0 0.0
        %2887 = vmatprep.subr.mxu0 0.0
        %2888 = vmatpush1.xpose.msra.mxu0 0.0
        %2889 = vmatprep.subr.mxu0 0.0
        %2890 = vmatpush1.xpose.msra.mxu0 0.0
        %2891 = vmatprep.subr.mxu0 0.0
        %2892 = vmatpush1.xpose.msra.mxu0 0.0
        %2893 = vmatprep.subr.mxu0 0.0
        %2894 = vmatpush1.xpose.msra.mxu0 0.0
        %2895 = vmatprep.subr.mxu0 0.0
        %2896 = vmatpush1.xpose.msra.mxu0 0.0
        %2897 = vmatprep.subr.mxu0 0.0
        %2898 = vmatpush1.xpose.msra.mxu0 0.0
        %2899 = vmatprep.subr.mxu0 0.0
        %2900 = vmatpush1.xpose.msra.mxu0 0.0
        %2901 = vmatprep.subr.mxu0 0.0
        %2902 = vmatpush1.xpose.msra.mxu0 0.0
        %2903 = vmatprep.subr.mxu0 0.0
        %2904 = vmatpush1.xpose.msra.mxu0 %v2871
        %2905 = vmatprep.subr.mxu0 0.0
        %2906 = vmatpush2.xpose.msra.mxu0 0.0
        %2907 = vmatprep.subr.mxu0 0.0
        %2908 = vmatpush2.xpose.msra.mxu0 0.0
        %2909 = vmatprep.subr.mxu0 0.0
        %2910 = vmatpush2.xpose.msra.mxu0 0.0
        %2911 = vmatprep.subr.mxu0 0.0
        %2912 = vmatpush2.xpose.msra.mxu0 0.0
        %2913 = vmatprep.subr.mxu0 0.0
        %2914 = vmatpush2.xpose.msra.mxu0 0.0
        %2915 = vmatprep.subr.mxu0 0.0
        %2916 = vmatpush2.xpose.msra.mxu0 0.0
        %2917 = vmatprep.subr.mxu0 0.0
        %2918 = vmatpush2.xpose.msra.mxu0 0.0
        %2919 = vmatprep.subr.mxu0 0.0
        %2920 = vmatpush2.xpose.msra.mxu0 0.0
        %2921 = vmatprep.subr.mxu0 0.0
        %2922 = vmatpush2.xpose.msra.mxu0 0.0
        %2923 = vmatprep.subr.mxu0 0.0
        %2924 = vmatpush2.xpose.msra.mxu0 0.0
        %2925 = vmatprep.subr.mxu0 0.0
        %2926 = vmatpush2.xpose.msra.mxu0 0.0
        %2927 = vmatprep.subr.mxu0 0.0
        %2928 = vmatpush2.xpose.msra.mxu0 0.0
        %2929 = vmatprep.subr.mxu0 0.0
        %2930 = vmatpush2.xpose.msra.mxu0 0.0
        %2931 = vmatprep.subr.mxu0 0.0
        %2932 = vmatpush2.xpose.msra.mxu0 0.0
        %2933 = vmatprep.subr.mxu0 0.0
        %2934 = vmatpush2.xpose.msra.mxu0 0.0
        %2935 = vmatprep.subr.mxu0 0.0
        %2936 = vmatpush2.xpose.msra.mxu0 0.0
        %2937 = vmatprep.mubr.f32.mxu0 0.0
        %2938 = vmatmul.mubr.f32.gmra.mxu0 %v2869
        %v2939 = vpop.f32.mrf.mxu0
        %v2940 = vadd.f32 0.0, %v2939
        %v2941 = vpop.f32.mrf.mxu0
        %2942 = vdwg.mxu0
        %2943 = vrot.lane.b32.xlu0 %v1605, 120
        %v2944 = vpop.permute.xlu0 %2943
        %2945 = vrot.lane.b32.xlu0 %v1605, 88
        %v2946 = vpop.permute.xlu0 %2945
        %v2947 = vsel %vm1026, %v2944, 0
        %v2949 = vsel %vm1026, %v2946, 0
        %2951 = vmatprep.subr.mxu0 0.0
        %2952 = vmatpush1.xpose.msra.mxu0 0.0
        %2953 = vmatprep.subr.mxu0 0.0
        %2954 = vmatpush1.xpose.msra.mxu0 0.0
        %2955 = vmatprep.subr.mxu0 0.0
        %2956 = vmatpush1.xpose.msra.mxu0 0.0
        %2957 = vmatprep.subr.mxu0 0.0
        %2958 = vmatpush1.xpose.msra.mxu0 0.0
        %2959 = vmatprep.subr.mxu0 0.0
        %2960 = vmatpush1.xpose.msra.mxu0 0.0
        %2961 = vmatprep.subr.mxu0 0.0
        %2962 = vmatpush1.xpose.msra.mxu0 0.0
        %2963 = vmatprep.subr.mxu0 0.0
        %2964 = vmatpush1.xpose.msra.mxu0 0.0
        %2965 = vmatprep.subr.mxu0 0.0
        %2966 = vmatpush1.xpose.msra.mxu0 0.0
        %2967 = vmatprep.subr.mxu0 0.0
        %2968 = vmatpush1.xpose.msra.mxu0 0.0
        %2969 = vmatprep.subr.mxu0 0.0
        %2970 = vmatpush1.xpose.msra.mxu0 0.0
        %2971 = vmatprep.subr.mxu0 0.0
        %2972 = vmatpush1.xpose.msra.mxu0 0.0
        %2973 = vmatprep.subr.mxu0 0.0
        %2974 = vmatpush1.xpose.msra.mxu0 0.0
        %2975 = vmatprep.subr.mxu0 0.0
        %2976 = vmatpush1.xpose.msra.mxu0 0.0
        %2977 = vmatprep.subr.mxu0 0.0
        %2978 = vmatpush1.xpose.msra.mxu0 0.0
        %2979 = vmatprep.subr.mxu0 0.0
        %2980 = vmatpush1.xpose.msra.mxu0 0.0
        %2981 = vmatprep.subr.mxu0 0.0
        %2982 = vmatpush1.xpose.msra.mxu0 %v2949
        %2983 = vmatprep.subr.mxu0 0.0
        %2984 = vmatpush2.xpose.msra.mxu0 0.0
        %2985 = vmatprep.subr.mxu0 0.0
        %2986 = vmatpush2.xpose.msra.mxu0 0.0
        %2987 = vmatprep.subr.mxu0 0.0
        %2988 = vmatpush2.xpose.msra.mxu0 0.0
        %2989 = vmatprep.subr.mxu0 0.0
        %2990 = vmatpush2.xpose.msra.mxu0 0.0
        %2991 = vmatprep.subr.mxu0 0.0
        %2992 = vmatpush2.xpose.msra.mxu0 0.0
        %2993 = vmatprep.subr.mxu0 0.0
        %2994 = vmatpush2.xpose.msra.mxu0 0.0
        %2995 = vmatprep.subr.mxu0 0.0
        %2996 = vmatpush2.xpose.msra.mxu0 0.0
        %2997 = vmatprep.subr.mxu0 0.0
        %2998 = vmatpush2.xpose.msra.mxu0 0.0
        %2999 = vmatprep.subr.mxu0 0.0
        %3000 = vmatpush2.xpose.msra.mxu0 0.0
        %3001 = vmatprep.subr.mxu0 0.0
        %3002 = vmatpush2.xpose.msra.mxu0 0.0
        %3003 = vmatprep.subr.mxu0 0.0
        %3004 = vmatpush2.xpose.msra.mxu0 0.0
        %3005 = vmatprep.subr.mxu0 0.0
        %3006 = vmatpush2.xpose.msra.mxu0 0.0
        %3007 = vmatprep.subr.mxu0 0.0
        %3008 = vmatpush2.xpose.msra.mxu0 0.0
        %3009 = vmatprep.subr.mxu0 0.0
        %3010 = vmatpush2.xpose.msra.mxu0 0.0
        %3011 = vmatprep.subr.mxu0 0.0
        %3012 = vmatpush2.xpose.msra.mxu0 0.0
        %3013 = vmatprep.subr.mxu0 0.0
        %3014 = vmatpush2.xpose.msra.mxu0 0.0
        %3015 = vmatprep.mubr.f32.mxu0 0.0
        %3016 = vmatmul.mubr.f32.gmra.mxu0 %v2947
        %v3017 = vpop.f32.mrf.mxu0
        %v3018 = vadd.f32 0.0, %v3017
        %v3019 = vpop.f32.mrf.mxu0
        %3020 = vdwg.mxu0
        %v3021 = vmul.f32 %v2472, 0.35355338
        %v3022 = vmul.f32 %v2550, 0.35355338
        %v3023 = vmul.f32 %v2628, 0.35355338
        %v3024 = vmul.f32 %v2706, 0.35355338
        %v3025 = vmul.f32 %v2784, 0.35355338
        %v3026 = vmul.f32 %v2862, 0.35355338
        %v3027 = vmul.f32 %v2940, 0.35355338
        %v3028 = vmul.f32 %v3018, 0.35355338
        %v3029 = vsel %vm1690, %v3021, -inf
        %3030 = vmax.xlane.f32.xlu0 %v3029
        %v3031 = vpop.xlane.xlu0 %3030
        %v3032 = vsel %vm1690, %v3022, -inf
        %3033 = vmax.xlane.f32.xlu0 %v3032
        %v3034 = vpop.xlane.xlu0 %3033
        %v3035 = vsel %vm1690, %v3023, -inf
        %3036 = vmax.xlane.f32.xlu0 %v3035
        %v3037 = vpop.xlane.xlu0 %3036
        %v3038 = vsel %vm1690, %v3024, -inf
        %3039 = vmax.xlane.f32.xlu0 %v3038
        %v3040 = vpop.xlane.xlu0 %3039
        %v3041 = vsel %vm1690, %v3025, -inf
        %3042 = vmax.xlane.f32.xlu0 %v3041
        %v3043 = vpop.xlane.xlu0 %3042
        %v3044 = vsel %vm1690, %v3026, -inf
        %3045 = vmax.xlane.f32.xlu0 %v3044
        %v3046 = vpop.xlane.xlu0 %3045
        %v3047 = vsel %vm1690, %v3027, -inf
        %3048 = vmax.xlane.f32.xlu0 %v3047
        %v3049 = vpop.xlane.xlu0 %3048
        %v3050 = vsel %vm1690, %v3028, -inf
        %3051 = vmax.xlane.f32.xlu0 %v3050
        %v3052 = vpop.xlane.xlu0 %3051
        %v3053 = vsub.f32 %v3021, %v3031
        %v3054 = vsub.f32 %v3022, %v3034
        %v3055 = vsub.f32 %v3023, %v3037
        %v3056 = vsub.f32 %v3024, %v3040
        %v3057 = vsub.f32 %v3025, %v3043
        %v3058 = vsub.f32 %v3026, %v3046
        %v3059 = vsub.f32 %v3027, %v3049
        %v3060 = vsub.f32 %v3028, %v3052
        %v3061 = vmul.f32 %v3053, 1.442695
        %v3062 = vpow.pop %v3061
        %v3063 = vmul.f32 %v3054, 1.442695
        %v3064 = vpow.pop %v3063
        %v3065 = vmul.f32 %v3055, 1.442695
        %v3066 = vpow.pop %v3065
        %v3067 = vmul.f32 %v3056, 1.442695
        %v3068 = vpow.pop %v3067
        %v3069 = vmul.f32 %v3057, 1.442695
        %v3070 = vpow.pop %v3069
        %v3071 = vmul.f32 %v3058, 1.442695
        %v3072 = vpow.pop %v3071
        %v3073 = vmul.f32 %v3059, 1.442695
        %v3074 = vpow.pop %v3073
        %v3075 = vmul.f32 %v3060, 1.442695
        %v3076 = vpow.pop %v3075
        %v3077 = vsel %vm1690, %v3062, 0.0
        %3078 = vadd.xlane.f32.xlu0 %v3077
        %v3079 = vpop.xlane.xlu0 %3078
        %v3080 = vsel %vm1690, %v3064, 0.0
        %3081 = vadd.xlane.f32.xlu0 %v3080
        %v3082 = vpop.xlane.xlu0 %3081
        %v3083 = vsel %vm1690, %v3066, 0.0
        %3084 = vadd.xlane.f32.xlu0 %v3083
        %v3085 = vpop.xlane.xlu0 %3084
        %v3086 = vsel %vm1690, %v3068, 0.0
        %3087 = vadd.xlane.f32.xlu0 %v3086
        %v3088 = vpop.xlane.xlu0 %3087
        %v3089 = vsel %vm1690, %v3070, 0.0
        %3090 = vadd.xlane.f32.xlu0 %v3089
        %v3091 = vpop.xlane.xlu0 %3090
        %v3092 = vsel %vm1690, %v3072, 0.0
        %3093 = vadd.xlane.f32.xlu0 %v3092
        %v3094 = vpop.xlane.xlu0 %3093
        %v3095 = vsel %vm1690, %v3074, 0.0
        %3096 = vadd.xlane.f32.xlu0 %v3095
        %v3097 = vpop.xlane.xlu0 %3096
        %v3098 = vsel %vm1690, %v3076, 0.0
        %3099 = vadd.xlane.f32.xlu0 %v3098
        %v3100 = vpop.xlane.xlu0 %3099
        %v3101 = vrcp.pop %v3079
        %v3102 = vrcp.pop %v3082
        %v3103 = vrcp.pop %v3085
        %v3104 = vrcp.pop %v3088
        %v3105 = vrcp.pop %v3091
        %v3106 = vrcp.pop %v3094
        %v3107 = vrcp.pop %v3097
        %v3108 = vrcp.pop %v3100
        %v3109 = vmul.f32 %v3062, %v3101
        %v3110 = vmul.f32 %v3064, %v3102
        %v3111 = vmul.f32 %v3066, %v3103
        %v3112 = vmul.f32 %v3068, %v3104
        %v3113 = vmul.f32 %v3070, %v3105
        %v3114 = vmul.f32 %v3072, %v3106
        %v3115 = vmul.f32 %v3074, %v3107
        %v3116 = vmul.f32 %v3076, %v3108
        %3117 = vrot.lane.b32.xlu0 %v1023, 56
        %v3118 = vpop.permute.xlu0 %3117
        %v3120 = vsel %vm1781, %v3109, 0
        %v3122 = vsel %vm1785, %v3118, 0
        %3124 = vmatprep.subr.mxu0 0.0
        %3125 = vmatpush1.msra.mxu0 0.0
        %3126 = vmatprep.subr.mxu0 0.0
        %3127 = vmatpush1.msra.mxu0 0.0
        %3128 = vmatprep.subr.mxu0 0.0
        %3129 = vmatpush1.msra.mxu0 0.0
        %3130 = vmatprep.subr.mxu0 0.0
        %3131 = vmatpush1.msra.mxu0 0.0
        %3132 = vmatprep.subr.mxu0 0.0
        %3133 = vmatpush1.msra.mxu0 0.0
        %3134 = vmatprep.subr.mxu0 0.0
        %3135 = vmatpush1.msra.mxu0 0.0
        %3136 = vmatprep.subr.mxu0 0.0
        %3137 = vmatpush1.msra.mxu0 0.0
        %3138 = vmatprep.subr.mxu0 0.0
        %3139 = vmatpush1.msra.mxu0 0.0
        %3140 = vmatprep.subr.mxu0 0.0
        %3141 = vmatpush1.msra.mxu0 0.0
        %3142 = vmatprep.subr.mxu0 0.0
        %3143 = vmatpush1.msra.mxu0 0.0
        %3144 = vmatprep.subr.mxu0 0.0
        %3145 = vmatpush1.msra.mxu0 0.0
        %3146 = vmatprep.subr.mxu0 0.0
        %3147 = vmatpush1.msra.mxu0 0.0
        %3148 = vmatprep.subr.mxu0 0.0
        %3149 = vmatpush1.msra.mxu0 0.0
        %3150 = vmatprep.subr.mxu0 0.0
        %3151 = vmatpush1.msra.mxu0 0.0
        %3152 = vmatprep.subr.mxu0 0.0
        %3153 = vmatpush1.msra.mxu0 0.0
        %3154 = vmatprep.subr.mxu0 0.0
        %3155 = vmatpush1.msra.mxu0 %v3122
        %3156 = vmatprep.subr.mxu0 0.0
        %3157 = vmatpush2.msra.mxu0 0.0
        %3158 = vmatprep.subr.mxu0 0.0
        %3159 = vmatpush2.msra.mxu0 0.0
        %3160 = vmatprep.subr.mxu0 0.0
        %3161 = vmatpush2.msra.mxu0 0.0
        %3162 = vmatprep.subr.mxu0 0.0
        %3163 = vmatpush2.msra.mxu0 0.0
        %3164 = vmatprep.subr.mxu0 0.0
        %3165 = vmatpush2.msra.mxu0 0.0
        %3166 = vmatprep.subr.mxu0 0.0
        %3167 = vmatpush2.msra.mxu0 0.0
        %3168 = vmatprep.subr.mxu0 0.0
        %3169 = vmatpush2.msra.mxu0 0.0
        %3170 = vmatprep.subr.mxu0 0.0
        %3171 = vmatpush2.msra.mxu0 0.0
        %3172 = vmatprep.subr.mxu0 0.0
        %3173 = vmatpush2.msra.mxu0 0.0
        %3174 = vmatprep.subr.mxu0 0.0
        %3175 = vmatpush2.msra.mxu0 0.0
        %3176 = vmatprep.subr.mxu0 0.0
        %3177 = vmatpush2.msra.mxu0 0.0
        %3178 = vmatprep.subr.mxu0 0.0
        %3179 = vmatpush2.msra.mxu0 0.0
        %3180 = vmatprep.subr.mxu0 0.0
        %3181 = vmatpush2.msra.mxu0 0.0
        %3182 = vmatprep.subr.mxu0 0.0
        %3183 = vmatpush2.msra.mxu0 0.0
        %3184 = vmatprep.subr.mxu0 0.0
        %3185 = vmatpush2.msra.mxu0 0.0
        %3186 = vmatprep.subr.mxu0 0.0
        %3187 = vmatpush2.msra.mxu0 0.0
        %3188 = vmatprep.mubr.f32.mxu0 0.0
        %3189 = vmatmul.mubr.f32.gmra.mxu0 %v3120
        %v3190 = vpop.f32.mrf.mxu0
        %v3191 = vadd.f32 0.0, %v3190
        %v3192 = vpop.f32.mrf.mxu0
        %3193 = vdwg.mxu0
        %3194 = vrot.lane.b32.xlu0 %v1107, 56
        %v3195 = vpop.permute.xlu0 %3194
        %v3197 = vsel %vm1781, %v3110, 0
        %v3199 = vsel %vm1785, %v3195, 0
        %3201 = vmatprep.subr.mxu0 0.0
        %3202 = vmatpush1.msra.mxu0 0.0
        %3203 = vmatprep.subr.mxu0 0.0
        %3204 = vmatpush1.msra.mxu0 0.0
        %3205 = vmatprep.subr.mxu0 0.0
        %3206 = vmatpush1.msra.mxu0 0.0
        %3207 = vmatprep.subr.mxu0 0.0
        %3208 = vmatpush1.msra.mxu0 0.0
        %3209 = vmatprep.subr.mxu0 0.0
        %3210 = vmatpush1.msra.mxu0 0.0
        %3211 = vmatprep.subr.mxu0 0.0
        %3212 = vmatpush1.msra.mxu0 0.0
        %3213 = vmatprep.subr.mxu0 0.0
        %3214 = vmatpush1.msra.mxu0 0.0
        %3215 = vmatprep.subr.mxu0 0.0
        %3216 = vmatpush1.msra.mxu0 0.0
        %3217 = vmatprep.subr.mxu0 0.0
        %3218 = vmatpush1.msra.mxu0 0.0
        %3219 = vmatprep.subr.mxu0 0.0
        %3220 = vmatpush1.msra.mxu0 0.0
        %3221 = vmatprep.subr.mxu0 0.0
        %3222 = vmatpush1.msra.mxu0 0.0
        %3223 = vmatprep.subr.mxu0 0.0
        %3224 = vmatpush1.msra.mxu0 0.0
        %3225 = vmatprep.subr.mxu0 0.0
        %3226 = vmatpush1.msra.mxu0 0.0
        %3227 = vmatprep.subr.mxu0 0.0
        %3228 = vmatpush1.msra.mxu0 0.0
        %3229 = vmatprep.subr.mxu0 0.0
        %3230 = vmatpush1.msra.mxu0 0.0
        %3231 = vmatprep.subr.mxu0 0.0
        %3232 = vmatpush1.msra.mxu0 %v3199
        %3233 = vmatprep.subr.mxu0 0.0
        %3234 = vmatpush2.msra.mxu0 0.0
        %3235 = vmatprep.subr.mxu0 0.0
        %3236 = vmatpush2.msra.mxu0 0.0
        %3237 = vmatprep.subr.mxu0 0.0
        %3238 = vmatpush2.msra.mxu0 0.0
        %3239 = vmatprep.subr.mxu0 0.0
        %3240 = vmatpush2.msra.mxu0 0.0
        %3241 = vmatprep.subr.mxu0 0.0
        %3242 = vmatpush2.msra.mxu0 0.0
        %3243 = vmatprep.subr.mxu0 0.0
        %3244 = vmatpush2.msra.mxu0 0.0
        %3245 = vmatprep.subr.mxu0 0.0
        %3246 = vmatpush2.msra.mxu0 0.0
        %3247 = vmatprep.subr.mxu0 0.0
        %3248 = vmatpush2.msra.mxu0 0.0
        %3249 = vmatprep.subr.mxu0 0.0
        %3250 = vmatpush2.msra.mxu0 0.0
        %3251 = vmatprep.subr.mxu0 0.0
        %3252 = vmatpush2.msra.mxu0 0.0
        %3253 = vmatprep.subr.mxu0 0.0
        %3254 = vmatpush2.msra.mxu0 0.0
        %3255 = vmatprep.subr.mxu0 0.0
        %3256 = vmatpush2.msra.mxu0 0.0
        %3257 = vmatprep.subr.mxu0 0.0
        %3258 = vmatpush2.msra.mxu0 0.0
        %3259 = vmatprep.subr.mxu0 0.0
        %3260 = vmatpush2.msra.mxu0 0.0
        %3261 = vmatprep.subr.mxu0 0.0
        %3262 = vmatpush2.msra.mxu0 0.0
        %3263 = vmatprep.subr.mxu0 0.0
        %3264 = vmatpush2.msra.mxu0 0.0
        %3265 = vmatprep.mubr.f32.mxu0 0.0
        %3266 = vmatmul.mubr.f32.gmra.mxu0 %v3197
        %v3267 = vpop.f32.mrf.mxu0
        %v3268 = vadd.f32 0.0, %v3267
        %v3269 = vpop.f32.mrf.mxu0
        %3270 = vdwg.mxu0
        %3271 = vrot.lane.b32.xlu0 %v1190, 56
        %v3272 = vpop.permute.xlu0 %3271
        %v3274 = vsel %vm1781, %v3111, 0
        %v3276 = vsel %vm1785, %v3272, 0
        %3278 = vmatprep.subr.mxu0 0.0
        %3279 = vmatpush1.msra.mxu0 0.0
        %3280 = vmatprep.subr.mxu0 0.0
        %3281 = vmatpush1.msra.mxu0 0.0
        %3282 = vmatprep.subr.mxu0 0.0
        %3283 = vmatpush1.msra.mxu0 0.0
        %3284 = vmatprep.subr.mxu0 0.0
        %3285 = vmatpush1.msra.mxu0 0.0
        %3286 = vmatprep.subr.mxu0 0.0
        %3287 = vmatpush1.msra.mxu0 0.0
        %3288 = vmatprep.subr.mxu0 0.0
        %3289 = vmatpush1.msra.mxu0 0.0
        %3290 = vmatprep.subr.mxu0 0.0
        %3291 = vmatpush1.msra.mxu0 0.0
        %3292 = vmatprep.subr.mxu0 0.0
        %3293 = vmatpush1.msra.mxu0 0.0
        %3294 = vmatprep.subr.mxu0 0.0
        %3295 = vmatpush1.msra.mxu0 0.0
        %3296 = vmatprep.subr.mxu0 0.0
        %3297 = vmatpush1.msra.mxu0 0.0
        %3298 = vmatprep.subr.mxu0 0.0
        %3299 = vmatpush1.msra.mxu0 0.0
        %3300 = vmatprep.subr.mxu0 0.0
        %3301 = vmatpush1.msra.mxu0 0.0
        %3302 = vmatprep.subr.mxu0 0.0
        %3303 = vmatpush1.msra.mxu0 0.0
        %3304 = vmatprep.subr.mxu0 0.0
        %3305 = vmatpush1.msra.mxu0 0.0
        %3306 = vmatprep.subr.mxu0 0.0
        %3307 = vmatpush1.msra.mxu0 0.0
        %3308 = vmatprep.subr.mxu0 0.0
        %3309 = vmatpush1.msra.mxu0 %v3276
        %3310 = vmatprep.subr.mxu0 0.0
        %3311 = vmatpush2.msra.mxu0 0.0
        %3312 = vmatprep.subr.mxu0 0.0
        %3313 = vmatpush2.msra.mxu0 0.0
        %3314 = vmatprep.subr.mxu0 0.0
        %3315 = vmatpush2.msra.mxu0 0.0
        %3316 = vmatprep.subr.mxu0 0.0
        %3317 = vmatpush2.msra.mxu0 0.0
        %3318 = vmatprep.subr.mxu0 0.0
        %3319 = vmatpush2.msra.mxu0 0.0
        %3320 = vmatprep.subr.mxu0 0.0
        %3321 = vmatpush2.msra.mxu0 0.0
        %3322 = vmatprep.subr.mxu0 0.0
        %3323 = vmatpush2.msra.mxu0 0.0
        %3324 = vmatprep.subr.mxu0 0.0
        %3325 = vmatpush2.msra.mxu0 0.0
        %3326 = vmatprep.subr.mxu0 0.0
        %3327 = vmatpush2.msra.mxu0 0.0
        %3328 = vmatprep.subr.mxu0 0.0
        %3329 = vmatpush2.msra.mxu0 0.0
        %3330 = vmatprep.subr.mxu0 0.0
        %3331 = vmatpush2.msra.mxu0 0.0
        %3332 = vmatprep.subr.mxu0 0.0
        %3333 = vmatpush2.msra.mxu0 0.0
        %3334 = vmatprep.subr.mxu0 0.0
        %3335 = vmatpush2.msra.mxu0 0.0
        %3336 = vmatprep.subr.mxu0 0.0
        %3337 = vmatpush2.msra.mxu0 0.0
        %3338 = vmatprep.subr.mxu0 0.0
        %3339 = vmatpush2.msra.mxu0 0.0
        %3340 = vmatprep.subr.mxu0 0.0
        %3341 = vmatpush2.msra.mxu0 0.0
        %3342 = vmatprep.mubr.f32.mxu0 0.0
        %3343 = vmatmul.mubr.f32.gmra.mxu0 %v3274
        %v3344 = vpop.f32.mrf.mxu0
        %v3345 = vadd.f32 0.0, %v3344
        %v3346 = vpop.f32.mrf.mxu0
        %3347 = vdwg.mxu0
        %3348 = vrot.lane.b32.xlu0 %v1273, 56
        %v3349 = vpop.permute.xlu0 %3348
        %v3351 = vsel %vm1781, %v3112, 0
        %v3353 = vsel %vm1785, %v3349, 0
        %3355 = vmatprep.subr.mxu0 0.0
        %3356 = vmatpush1.msra.mxu0 0.0
        %3357 = vmatprep.subr.mxu0 0.0
        %3358 = vmatpush1.msra.mxu0 0.0
        %3359 = vmatprep.subr.mxu0 0.0
        %3360 = vmatpush1.msra.mxu0 0.0
        %3361 = vmatprep.subr.mxu0 0.0
        %3362 = vmatpush1.msra.mxu0 0.0
        %3363 = vmatprep.subr.mxu0 0.0
        %3364 = vmatpush1.msra.mxu0 0.0
        %3365 = vmatprep.subr.mxu0 0.0
        %3366 = vmatpush1.msra.mxu0 0.0
        %3367 = vmatprep.subr.mxu0 0.0
        %3368 = vmatpush1.msra.mxu0 0.0
        %3369 = vmatprep.subr.mxu0 0.0
        %3370 = vmatpush1.msra.mxu0 0.0
        %3371 = vmatprep.subr.mxu0 0.0
        %3372 = vmatpush1.msra.mxu0 0.0
        %3373 = vmatprep.subr.mxu0 0.0
        %3374 = vmatpush1.msra.mxu0 0.0
        %3375 = vmatprep.subr.mxu0 0.0
        %3376 = vmatpush1.msra.mxu0 0.0
        %3377 = vmatprep.subr.mxu0 0.0
        %3378 = vmatpush1.msra.mxu0 0.0
        %3379 = vmatprep.subr.mxu0 0.0
        %3380 = vmatpush1.msra.mxu0 0.0
        %3381 = vmatprep.subr.mxu0 0.0
        %3382 = vmatpush1.msra.mxu0 0.0
        %3383 = vmatprep.subr.mxu0 0.0
        %3384 = vmatpush1.msra.mxu0 0.0
        %3385 = vmatprep.subr.mxu0 0.0
        %3386 = vmatpush1.msra.mxu0 %v3353
        %3387 = vmatprep.subr.mxu0 0.0
        %3388 = vmatpush2.msra.mxu0 0.0
        %3389 = vmatprep.subr.mxu0 0.0
        %3390 = vmatpush2.msra.mxu0 0.0
        %3391 = vmatprep.subr.mxu0 0.0
        %3392 = vmatpush2.msra.mxu0 0.0
        %3393 = vmatprep.subr.mxu0 0.0
        %3394 = vmatpush2.msra.mxu0 0.0
        %3395 = vmatprep.subr.mxu0 0.0
        %3396 = vmatpush2.msra.mxu0 0.0
        %3397 = vmatprep.subr.mxu0 0.0
        %3398 = vmatpush2.msra.mxu0 0.0
        %3399 = vmatprep.subr.mxu0 0.0
        %3400 = vmatpush2.msra.mxu0 0.0
        %3401 = vmatprep.subr.mxu0 0.0
        %3402 = vmatpush2.msra.mxu0 0.0
        %3403 = vmatprep.subr.mxu0 0.0
        %3404 = vmatpush2.msra.mxu0 0.0
        %3405 = vmatprep.subr.mxu0 0.0
        %3406 = vmatpush2.msra.mxu0 0.0
        %3407 = vmatprep.subr.mxu0 0.0
        %3408 = vmatpush2.msra.mxu0 0.0
        %3409 = vmatprep.subr.mxu0 0.0
        %3410 = vmatpush2.msra.mxu0 0.0
        %3411 = vmatprep.subr.mxu0 0.0
        %3412 = vmatpush2.msra.mxu0 0.0
        %3413 = vmatprep.subr.mxu0 0.0
        %3414 = vmatpush2.msra.mxu0 0.0
        %3415 = vmatprep.subr.mxu0 0.0
        %3416 = vmatpush2.msra.mxu0 0.0
        %3417 = vmatprep.subr.mxu0 0.0
        %3418 = vmatpush2.msra.mxu0 0.0
        %3419 = vmatprep.mubr.f32.mxu0 0.0
        %3420 = vmatmul.mubr.f32.gmra.mxu0 %v3351
        %v3421 = vpop.f32.mrf.mxu0
        %v3422 = vadd.f32 0.0, %v3421
        %v3423 = vpop.f32.mrf.mxu0
        %3424 = vdwg.mxu0
        %3425 = vrot.lane.b32.xlu0 %v1356, 56
        %v3426 = vpop.permute.xlu0 %3425
        %v3428 = vsel %vm1781, %v3113, 0
        %v3430 = vsel %vm1785, %v3426, 0
        %3432 = vmatprep.subr.mxu0 0.0
        %3433 = vmatpush1.msra.mxu0 0.0
        %3434 = vmatprep.subr.mxu0 0.0
        %3435 = vmatpush1.msra.mxu0 0.0
        %3436 = vmatprep.subr.mxu0 0.0
        %3437 = vmatpush1.msra.mxu0 0.0
        %3438 = vmatprep.subr.mxu0 0.0
        %3439 = vmatpush1.msra.mxu0 0.0
        %3440 = vmatprep.subr.mxu0 0.0
        %3441 = vmatpush1.msra.mxu0 0.0
        %3442 = vmatprep.subr.mxu0 0.0
        %3443 = vmatpush1.msra.mxu0 0.0
        %3444 = vmatprep.subr.mxu0 0.0
        %3445 = vmatpush1.msra.mxu0 0.0
        %3446 = vmatprep.subr.mxu0 0.0
        %3447 = vmatpush1.msra.mxu0 0.0
        %3448 = vmatprep.subr.mxu0 0.0
        %3449 = vmatpush1.msra.mxu0 0.0
        %3450 = vmatprep.subr.mxu0 0.0
        %3451 = vmatpush1.msra.mxu0 0.0
        %3452 = vmatprep.subr.mxu0 0.0
        %3453 = vmatpush1.msra.mxu0 0.0
        %3454 = vmatprep.subr.mxu0 0.0
        %3455 = vmatpush1.msra.mxu0 0.0
        %3456 = vmatprep.subr.mxu0 0.0
        %3457 = vmatpush1.msra.mxu0 0.0
        %3458 = vmatprep.subr.mxu0 0.0
        %3459 = vmatpush1.msra.mxu0 0.0
        %3460 = vmatprep.subr.mxu0 0.0
        %3461 = vmatpush1.msra.mxu0 0.0
        %3462 = vmatprep.subr.mxu0 0.0
        %3463 = vmatpush1.msra.mxu0 %v3430
        %3464 = vmatprep.subr.mxu0 0.0
        %3465 = vmatpush2.msra.mxu0 0.0
        %3466 = vmatprep.subr.mxu0 0.0
        %3467 = vmatpush2.msra.mxu0 0.0
        %3468 = vmatprep.subr.mxu0 0.0
        %3469 = vmatpush2.msra.mxu0 0.0
        %3470 = vmatprep.subr.mxu0 0.0
        %3471 = vmatpush2.msra.mxu0 0.0
        %3472 = vmatprep.subr.mxu0 0.0
        %3473 = vmatpush2.msra.mxu0 0.0
        %3474 = vmatprep.subr.mxu0 0.0
        %3475 = vmatpush2.msra.mxu0 0.0
        %3476 = vmatprep.subr.mxu0 0.0
        %3477 = vmatpush2.msra.mxu0 0.0
        %3478 = vmatprep.subr.mxu0 0.0
        %3479 = vmatpush2.msra.mxu0 0.0
        %3480 = vmatprep.subr.mxu0 0.0
        %3481 = vmatpush2.msra.mxu0 0.0
        %3482 = vmatprep.subr.mxu0 0.0
        %3483 = vmatpush2.msra.mxu0 0.0
        %3484 = vmatprep.subr.mxu0 0.0
        %3485 = vmatpush2.msra.mxu0 0.0
        %3486 = vmatprep.subr.mxu0 0.0
        %3487 = vmatpush2.msra.mxu0 0.0
        %3488 = vmatprep.subr.mxu0 0.0
        %3489 = vmatpush2.msra.mxu0 0.0
        %3490 = vmatprep.subr.mxu0 0.0
        %3491 = vmatpush2.msra.mxu0 0.0
        %3492 = vmatprep.subr.mxu0 0.0
        %3493 = vmatpush2.msra.mxu0 0.0
        %3494 = vmatprep.subr.mxu0 0.0
        %3495 = vmatpush2.msra.mxu0 0.0
        %3496 = vmatprep.mubr.f32.mxu0 0.0
        %3497 = vmatmul.mubr.f32.gmra.mxu0 %v3428
        %v3498 = vpop.f32.mrf.mxu0
        %v3499 = vadd.f32 0.0, %v3498
        %v3500 = vpop.f32.mrf.mxu0
        %3501 = vdwg.mxu0
        %3502 = vrot.lane.b32.xlu0 %v1439, 56
        %v3503 = vpop.permute.xlu0 %3502
        %v3505 = vsel %vm1781, %v3114, 0
        %v3507 = vsel %vm1785, %v3503, 0
        %3509 = vmatprep.subr.mxu0 0.0
        %3510 = vmatpush1.msra.mxu0 0.0
        %3511 = vmatprep.subr.mxu0 0.0
        %3512 = vmatpush1.msra.mxu0 0.0
        %3513 = vmatprep.subr.mxu0 0.0
        %3514 = vmatpush1.msra.mxu0 0.0
        %3515 = vmatprep.subr.mxu0 0.0
        %3516 = vmatpush1.msra.mxu0 0.0
        %3517 = vmatprep.subr.mxu0 0.0
        %3518 = vmatpush1.msra.mxu0 0.0
        %3519 = vmatprep.subr.mxu0 0.0
        %3520 = vmatpush1.msra.mxu0 0.0
        %3521 = vmatprep.subr.mxu0 0.0
        %3522 = vmatpush1.msra.mxu0 0.0
        %3523 = vmatprep.subr.mxu0 0.0
        %3524 = vmatpush1.msra.mxu0 0.0
        %3525 = vmatprep.subr.mxu0 0.0
        %3526 = vmatpush1.msra.mxu0 0.0
        %3527 = vmatprep.subr.mxu0 0.0
        %3528 = vmatpush1.msra.mxu0 0.0
        %3529 = vmatprep.subr.mxu0 0.0
        %3530 = vmatpush1.msra.mxu0 0.0
        %3531 = vmatprep.subr.mxu0 0.0
        %3532 = vmatpush1.msra.mxu0 0.0
        %3533 = vmatprep.subr.mxu0 0.0
        %3534 = vmatpush1.msra.mxu0 0.0
        %3535 = vmatprep.subr.mxu0 0.0
        %3536 = vmatpush1.msra.mxu0 0.0
        %3537 = vmatprep.subr.mxu0 0.0
        %3538 = vmatpush1.msra.mxu0 0.0
        %3539 = vmatprep.subr.mxu0 0.0
        %3540 = vmatpush1.msra.mxu0 %v3507
        %3541 = vmatprep.subr.mxu0 0.0
        %3542 = vmatpush2.msra.mxu0 0.0
        %3543 = vmatprep.subr.mxu0 0.0
        %3544 = vmatpush2.msra.mxu0 0.0
        %3545 = vmatprep.subr.mxu0 0.0
        %3546 = vmatpush2.msra.mxu0 0.0
        %3547 = vmatprep.subr.mxu0 0.0
        %3548 = vmatpush2.msra.mxu0 0.0
        %3549 = vmatprep.subr.mxu0 0.0
        %3550 = vmatpush2.msra.mxu0 0.0
        %3551 = vmatprep.subr.mxu0 0.0
        %3552 = vmatpush2.msra.mxu0 0.0
        %3553 = vmatprep.subr.mxu0 0.0
        %3554 = vmatpush2.msra.mxu0 0.0
        %3555 = vmatprep.subr.mxu0 0.0
        %3556 = vmatpush2.msra.mxu0 0.0
        %3557 = vmatprep.subr.mxu0 0.0
        %3558 = vmatpush2.msra.mxu0 0.0
        %3559 = vmatprep.subr.mxu0 0.0
        %3560 = vmatpush2.msra.mxu0 0.0
        %3561 = vmatprep.subr.mxu0 0.0
        %3562 = vmatpush2.msra.mxu0 0.0
        %3563 = vmatprep.subr.mxu0 0.0
        %3564 = vmatpush2.msra.mxu0 0.0
        %3565 = vmatprep.subr.mxu0 0.0
        %3566 = vmatpush2.msra.mxu0 0.0
        %3567 = vmatprep.subr.mxu0 0.0
        %3568 = vmatpush2.msra.mxu0 0.0
        %3569 = vmatprep.subr.mxu0 0.0
        %3570 = vmatpush2.msra.mxu0 0.0
        %3571 = vmatprep.subr.mxu0 0.0
        %3572 = vmatpush2.msra.mxu0 0.0
        %3573 = vmatprep.mubr.f32.mxu0 0.0
        %3574 = vmatmul.mubr.f32.gmra.mxu0 %v3505
        %v3575 = vpop.f32.mrf.mxu0
        %v3576 = vadd.f32 0.0, %v3575
        %v3577 = vpop.f32.mrf.mxu0
        %3578 = vdwg.mxu0
        %3579 = vrot.lane.b32.xlu0 %v1522, 56
        %v3580 = vpop.permute.xlu0 %3579
        %v3582 = vsel %vm1781, %v3115, 0
        %v3584 = vsel %vm1785, %v3580, 0
        %3586 = vmatprep.subr.mxu0 0.0
        %3587 = vmatpush1.msra.mxu0 0.0
        %3588 = vmatprep.subr.mxu0 0.0
        %3589 = vmatpush1.msra.mxu0 0.0
        %3590 = vmatprep.subr.mxu0 0.0
        %3591 = vmatpush1.msra.mxu0 0.0
        %3592 = vmatprep.subr.mxu0 0.0
        %3593 = vmatpush1.msra.mxu0 0.0
        %3594 = vmatprep.subr.mxu0 0.0
        %3595 = vmatpush1.msra.mxu0 0.0
        %3596 = vmatprep.subr.mxu0 0.0
        %3597 = vmatpush1.msra.mxu0 0.0
        %3598 = vmatprep.subr.mxu0 0.0
        %3599 = vmatpush1.msra.mxu0 0.0
        %3600 = vmatprep.subr.mxu0 0.0
        %3601 = vmatpush1.msra.mxu0 0.0
        %3602 = vmatprep.subr.mxu0 0.0
        %3603 = vmatpush1.msra.mxu0 0.0
        %3604 = vmatprep.subr.mxu0 0.0
        %3605 = vmatpush1.msra.mxu0 0.0
        %3606 = vmatprep.subr.mxu0 0.0
        %3607 = vmatpush1.msra.mxu0 0.0
        %3608 = vmatprep.subr.mxu0 0.0
        %3609 = vmatpush1.msra.mxu0 0.0
        %3610 = vmatprep.subr.mxu0 0.0
        %3611 = vmatpush1.msra.mxu0 0.0
        %3612 = vmatprep.subr.mxu0 0.0
        %3613 = vmatpush1.msra.mxu0 0.0
        %3614 = vmatprep.subr.mxu0 0.0
        %3615 = vmatpush1.msra.mxu0 0.0
        %3616 = vmatprep.subr.mxu0 0.0
        %3617 = vmatpush1.msra.mxu0 %v3584
        %3618 = vmatprep.subr.mxu0 0.0
        %3619 = vmatpush2.msra.mxu0 0.0
        %3620 = vmatprep.subr.mxu0 0.0
        %3621 = vmatpush2.msra.mxu0 0.0
        %3622 = vmatprep.subr.mxu0 0.0
        %3623 = vmatpush2.msra.mxu0 0.0
        %3624 = vmatprep.subr.mxu0 0.0
        %3625 = vmatpush2.msra.mxu0 0.0
        %3626 = vmatprep.subr.mxu0 0.0
        %3627 = vmatpush2.msra.mxu0 0.0
        %3628 = vmatprep.subr.mxu0 0.0
        %3629 = vmatpush2.msra.mxu0 0.0
        %3630 = vmatprep.subr.mxu0 0.0
        %3631 = vmatpush2.msra.mxu0 0.0
        %3632 = vmatprep.subr.mxu0 0.0
        %3633 = vmatpush2.msra.mxu0 0.0
        %3634 = vmatprep.subr.mxu0 0.0
        %3635 = vmatpush2.msra.mxu0 0.0
        %3636 = vmatprep.subr.mxu0 0.0
        %3637 = vmatpush2.msra.mxu0 0.0
        %3638 = vmatprep.subr.mxu0 0.0
        %3639 = vmatpush2.msra.mxu0 0.0
        %3640 = vmatprep.subr.mxu0 0.0
        %3641 = vmatpush2.msra.mxu0 0.0
        %3642 = vmatprep.subr.mxu0 0.0
        %3643 = vmatpush2.msra.mxu0 0.0
        %3644 = vmatprep.subr.mxu0 0.0
        %3645 = vmatpush2.msra.mxu0 0.0
        %3646 = vmatprep.subr.mxu0 0.0
        %3647 = vmatpush2.msra.mxu0 0.0
        %3648 = vmatprep.subr.mxu0 0.0
        %3649 = vmatpush2.msra.mxu0 0.0
        %3650 = vmatprep.mubr.f32.mxu0 0.0
        %3651 = vmatmul.mubr.f32.gmra.mxu0 %v3582
        %v3652 = vpop.f32.mrf.mxu0
        %v3653 = vadd.f32 0.0, %v3652
        %v3654 = vpop.f32.mrf.mxu0
        %3655 = vdwg.mxu0
        %3656 = vrot.lane.b32.xlu0 %v1605, 56
        %v3657 = vpop.permute.xlu0 %3656
        %v3659 = vsel %vm1781, %v3116, 0
        %v3661 = vsel %vm1785, %v3657, 0
        %3663 = vmatprep.subr.mxu0 0.0
        %3664 = vmatpush1.msra.mxu0 0.0
        %3665 = vmatprep.subr.mxu0 0.0
        %3666 = vmatpush1.msra.mxu0 0.0
        %3667 = vmatprep.subr.mxu0 0.0
        %3668 = vmatpush1.msra.mxu0 0.0
        %3669 = vmatprep.subr.mxu0 0.0
        %3670 = vmatpush1.msra.mxu0 0.0
        %3671 = vmatprep.subr.mxu0 0.0
        %3672 = vmatpush1.msra.mxu0 0.0
        %3673 = vmatprep.subr.mxu0 0.0
        %3674 = vmatpush1.msra.mxu0 0.0
        %3675 = vmatprep.subr.mxu0 0.0
        %3676 = vmatpush1.msra.mxu0 0.0
        %3677 = vmatprep.subr.mxu0 0.0
        %3678 = vmatpush1.msra.mxu0 0.0
        %3679 = vmatprep.subr.mxu0 0.0
        %3680 = vmatpush1.msra.mxu0 0.0
        %3681 = vmatprep.subr.mxu0 0.0
        %3682 = vmatpush1.msra.mxu0 0.0
        %3683 = vmatprep.subr.mxu0 0.0
        %3684 = vmatpush1.msra.mxu0 0.0
        %3685 = vmatprep.subr.mxu0 0.0
        %3686 = vmatpush1.msra.mxu0 0.0
        %3687 = vmatprep.subr.mxu0 0.0
        %3688 = vmatpush1.msra.mxu0 0.0
        %3689 = vmatprep.subr.mxu0 0.0
        %3690 = vmatpush1.msra.mxu0 0.0
        %3691 = vmatprep.subr.mxu0 0.0
        %3692 = vmatpush1.msra.mxu0 0.0
        %3693 = vmatprep.subr.mxu0 0.0
        %3694 = vmatpush1.msra.mxu0 %v3661
        %3695 = vmatprep.subr.mxu0 0.0
        %3696 = vmatpush2.msra.mxu0 0.0
        %3697 = vmatprep.subr.mxu0 0.0
        %3698 = vmatpush2.msra.mxu0 0.0
        %3699 = vmatprep.subr.mxu0 0.0
        %3700 = vmatpush2.msra.mxu0 0.0
        %3701 = vmatprep.subr.mxu0 0.0
        %3702 = vmatpush2.msra.mxu0 0.0
        %3703 = vmatprep.subr.mxu0 0.0
        %3704 = vmatpush2.msra.mxu0 0.0
        %3705 = vmatprep.subr.mxu0 0.0
        %3706 = vmatpush2.msra.mxu0 0.0
        %3707 = vmatprep.subr.mxu0 0.0
        %3708 = vmatpush2.msra.mxu0 0.0
        %3709 = vmatprep.subr.mxu0 0.0
        %3710 = vmatpush2.msra.mxu0 0.0
        %3711 = vmatprep.subr.mxu0 0.0
        %3712 = vmatpush2.msra.mxu0 0.0
        %3713 = vmatprep.subr.mxu0 0.0
        %3714 = vmatpush2.msra.mxu0 0.0
        %3715 = vmatprep.subr.mxu0 0.0
        %3716 = vmatpush2.msra.mxu0 0.0
        %3717 = vmatprep.subr.mxu0 0.0
        %3718 = vmatpush2.msra.mxu0 0.0
        %3719 = vmatprep.subr.mxu0 0.0
        %3720 = vmatpush2.msra.mxu0 0.0
        %3721 = vmatprep.subr.mxu0 0.0
        %3722 = vmatpush2.msra.mxu0 0.0
        %3723 = vmatprep.subr.mxu0 0.0
        %3724 = vmatpush2.msra.mxu0 0.0
        %3725 = vmatprep.subr.mxu0 0.0
        %3726 = vmatpush2.msra.mxu0 0.0
        %3727 = vmatprep.mubr.f32.mxu0 0.0
        %3728 = vmatmul.mubr.f32.gmra.mxu0 %v3659
        %v3729 = vpop.f32.mrf.mxu0
        %v3730 = vadd.f32 0.0, %v3729
        %v3731 = vpop.f32.mrf.mxu0
        %3732 = vdwg.mxu0
        %3733 = vrot.lane.b32.xlu0 %v1023, 112
        %v3734 = vpop.permute.xlu0 %3733
        %3735 = vrot.lane.b32.xlu0 %v1023, 80
        %v3736 = vpop.permute.xlu0 %3735
        %v3737 = vsel %vm1026, %v3734, 0
        %v3739 = vsel %vm1026, %v3736, 0
        %3741 = vmatprep.subr.mxu0 0.0
        %3742 = vmatpush1.xpose.msra.mxu0 0.0
        %3743 = vmatprep.subr.mxu0 0.0
        %3744 = vmatpush1.xpose.msra.mxu0 0.0
        %3745 = vmatprep.subr.mxu0 0.0
        %3746 = vmatpush1.xpose.msra.mxu0 0.0
        %3747 = vmatprep.subr.mxu0 0.0
        %3748 = vmatpush1.xpose.msra.mxu0 0.0
        %3749 = vmatprep.subr.mxu0 0.0
        %3750 = vmatpush1.xpose.msra.mxu0 0.0
        %3751 = vmatprep.subr.mxu0 0.0
        %3752 = vmatpush1.xpose.msra.mxu0 0.0
        %3753 = vmatprep.subr.mxu0 0.0
        %3754 = vmatpush1.xpose.msra.mxu0 0.0
        %3755 = vmatprep.subr.mxu0 0.0
        %3756 = vmatpush1.xpose.msra.mxu0 0.0
        %3757 = vmatprep.subr.mxu0 0.0
        %3758 = vmatpush1.xpose.msra.mxu0 0.0
        %3759 = vmatprep.subr.mxu0 0.0
        %3760 = vmatpush1.xpose.msra.mxu0 0.0
        %3761 = vmatprep.subr.mxu0 0.0
        %3762 = vmatpush1.xpose.msra.mxu0 0.0
        %3763 = vmatprep.subr.mxu0 0.0
        %3764 = vmatpush1.xpose.msra.mxu0 0.0
        %3765 = vmatprep.subr.mxu0 0.0
        %3766 = vmatpush1.xpose.msra.mxu0 0.0
        %3767 = vmatprep.subr.mxu0 0.0
        %3768 = vmatpush1.xpose.msra.mxu0 0.0
        %3769 = vmatprep.subr.mxu0 0.0
        %3770 = vmatpush1.xpose.msra.mxu0 0.0
        %3771 = vmatprep.subr.mxu0 0.0
        %3772 = vmatpush1.xpose.msra.mxu0 %v3739
        %3773 = vmatprep.subr.mxu0 0.0
        %3774 = vmatpush2.xpose.msra.mxu0 0.0
        %3775 = vmatprep.subr.mxu0 0.0
        %3776 = vmatpush2.xpose.msra.mxu0 0.0
        %3777 = vmatprep.subr.mxu0 0.0
        %3778 = vmatpush2.xpose.msra.mxu0 0.0
        %3779 = vmatprep.subr.mxu0 0.0
        %3780 = vmatpush2.xpose.msra.mxu0 0.0
        %3781 = vmatprep.subr.mxu0 0.0
        %3782 = vmatpush2.xpose.msra.mxu0 0.0
        %3783 = vmatprep.subr.mxu0 0.0
        %3784 = vmatpush2.xpose.msra.mxu0 0.0
        %3785 = vmatprep.subr.mxu0 0.0
        %3786 = vmatpush2.xpose.msra.mxu0 0.0
        %3787 = vmatprep.subr.mxu0 0.0
        %3788 = vmatpush2.xpose.msra.mxu0 0.0
        %3789 = vmatprep.subr.mxu0 0.0
        %3790 = vmatpush2.xpose.msra.mxu0 0.0
        %3791 = vmatprep.subr.mxu0 0.0
        %3792 = vmatpush2.xpose.msra.mxu0 0.0
        %3793 = vmatprep.subr.mxu0 0.0
        %3794 = vmatpush2.xpose.msra.mxu0 0.0
        %3795 = vmatprep.subr.mxu0 0.0
        %3796 = vmatpush2.xpose.msra.mxu0 0.0
        %3797 = vmatprep.subr.mxu0 0.0
        %3798 = vmatpush2.xpose.msra.mxu0 0.0
        %3799 = vmatprep.subr.mxu0 0.0
        %3800 = vmatpush2.xpose.msra.mxu0 0.0
        %3801 = vmatprep.subr.mxu0 0.0
        %3802 = vmatpush2.xpose.msra.mxu0 0.0
        %3803 = vmatprep.subr.mxu0 0.0
        %3804 = vmatpush2.xpose.msra.mxu0 0.0
        %3805 = vmatprep.mubr.f32.mxu0 0.0
        %3806 = vmatmul.mubr.f32.gmra.mxu0 %v3737
        %v3807 = vpop.f32.mrf.mxu0
        %v3808 = vadd.f32 0.0, %v3807
        %v3809 = vpop.f32.mrf.mxu0
        %3810 = vdwg.mxu0
        %3811 = vrot.lane.b32.xlu0 %v1107, 112
        %v3812 = vpop.permute.xlu0 %3811
        %3813 = vrot.lane.b32.xlu0 %v1107, 80
        %v3814 = vpop.permute.xlu0 %3813
        %v3815 = vsel %vm1026, %v3812, 0
        %v3817 = vsel %vm1026, %v3814, 0
        %3819 = vmatprep.subr.mxu0 0.0
        %3820 = vmatpush1.xpose.msra.mxu0 0.0
        %3821 = vmatprep.subr.mxu0 0.0
        %3822 = vmatpush1.xpose.msra.mxu0 0.0
        %3823 = vmatprep.subr.mxu0 0.0
        %3824 = vmatpush1.xpose.msra.mxu0 0.0
        %3825 = vmatprep.subr.mxu0 0.0
        %3826 = vmatpush1.xpose.msra.mxu0 0.0
        %3827 = vmatprep.subr.mxu0 0.0
        %3828 = vmatpush1.xpose.msra.mxu0 0.0
        %3829 = vmatprep.subr.mxu0 0.0
        %3830 = vmatpush1.xpose.msra.mxu0 0.0
        %3831 = vmatprep.subr.mxu0 0.0
        %3832 = vmatpush1.xpose.msra.mxu0 0.0
        %3833 = vmatprep.subr.mxu0 0.0
        %3834 = vmatpush1.xpose.msra.mxu0 0.0
        %3835 = vmatprep.subr.mxu0 0.0
        %3836 = vmatpush1.xpose.msra.mxu0 0.0
        %3837 = vmatprep.subr.mxu0 0.0
        %3838 = vmatpush1.xpose.msra.mxu0 0.0
        %3839 = vmatprep.subr.mxu0 0.0
        %3840 = vmatpush1.xpose.msra.mxu0 0.0
        %3841 = vmatprep.subr.mxu0 0.0
        %3842 = vmatpush1.xpose.msra.mxu0 0.0
        %3843 = vmatprep.subr.mxu0 0.0
        %3844 = vmatpush1.xpose.msra.mxu0 0.0
        %3845 = vmatprep.subr.mxu0 0.0
        %3846 = vmatpush1.xpose.msra.mxu0 0.0
        %3847 = vmatprep.subr.mxu0 0.0
        %3848 = vmatpush1.xpose.msra.mxu0 0.0
        %3849 = vmatprep.subr.mxu0 0.0
        %3850 = vmatpush1.xpose.msra.mxu0 %v3817
        %3851 = vmatprep.subr.mxu0 0.0
        %3852 = vmatpush2.xpose.msra.mxu0 0.0
        %3853 = vmatprep.subr.mxu0 0.0
        %3854 = vmatpush2.xpose.msra.mxu0 0.0
        %3855 = vmatprep.subr.mxu0 0.0
        %3856 = vmatpush2.xpose.msra.mxu0 0.0
        %3857 = vmatprep.subr.mxu0 0.0
        %3858 = vmatpush2.xpose.msra.mxu0 0.0
        %3859 = vmatprep.subr.mxu0 0.0
        %3860 = vmatpush2.xpose.msra.mxu0 0.0
        %3861 = vmatprep.subr.mxu0 0.0
        %3862 = vmatpush2.xpose.msra.mxu0 0.0
        %3863 = vmatprep.subr.mxu0 0.0
        %3864 = vmatpush2.xpose.msra.mxu0 0.0
        %3865 = vmatprep.subr.mxu0 0.0
        %3866 = vmatpush2.xpose.msra.mxu0 0.0
        %3867 = vmatprep.subr.mxu0 0.0
        %3868 = vmatpush2.xpose.msra.mxu0 0.0
        %3869 = vmatprep.subr.mxu0 0.0
        %3870 = vmatpush2.xpose.msra.mxu0 0.0
        %3871 = vmatprep.subr.mxu0 0.0
        %3872 = vmatpush2.xpose.msra.mxu0 0.0
        %3873 = vmatprep.subr.mxu0 0.0
        %3874 = vmatpush2.xpose.msra.mxu0 0.0
        %3875 = vmatprep.subr.mxu0 0.0
        %3876 = vmatpush2.xpose.msra.mxu0 0.0
        %3877 = vmatprep.subr.mxu0 0.0
        %3878 = vmatpush2.xpose.msra.mxu0 0.0
        %3879 = vmatprep.subr.mxu0 0.0
        %3880 = vmatpush2.xpose.msra.mxu0 0.0
        %3881 = vmatprep.subr.mxu0 0.0
        %3882 = vmatpush2.xpose.msra.mxu0 0.0
        %3883 = vmatprep.mubr.f32.mxu0 0.0
        %3884 = vmatmul.mubr.f32.gmra.mxu0 %v3815
        %v3885 = vpop.f32.mrf.mxu0
        %v3886 = vadd.f32 0.0, %v3885
        %v3887 = vpop.f32.mrf.mxu0
        %3888 = vdwg.mxu0
        %3889 = vrot.lane.b32.xlu0 %v1190, 112
        %v3890 = vpop.permute.xlu0 %3889
        %3891 = vrot.lane.b32.xlu0 %v1190, 80
        %v3892 = vpop.permute.xlu0 %3891
        %v3893 = vsel %vm1026, %v3890, 0
        %v3895 = vsel %vm1026, %v3892, 0
        %3897 = vmatprep.subr.mxu0 0.0
        %3898 = vmatpush1.xpose.msra.mxu0 0.0
        %3899 = vmatprep.subr.mxu0 0.0
        %3900 = vmatpush1.xpose.msra.mxu0 0.0
        %3901 = vmatprep.subr.mxu0 0.0
        %3902 = vmatpush1.xpose.msra.mxu0 0.0
        %3903 = vmatprep.subr.mxu0 0.0
        %3904 = vmatpush1.xpose.msra.mxu0 0.0
        %3905 = vmatprep.subr.mxu0 0.0
        %3906 = vmatpush1.xpose.msra.mxu0 0.0
        %3907 = vmatprep.subr.mxu0 0.0
        %3908 = vmatpush1.xpose.msra.mxu0 0.0
        %3909 = vmatprep.subr.mxu0 0.0
        %3910 = vmatpush1.xpose.msra.mxu0 0.0
        %3911 = vmatprep.subr.mxu0 0.0
        %3912 = vmatpush1.xpose.msra.mxu0 0.0
        %3913 = vmatprep.subr.mxu0 0.0
        %3914 = vmatpush1.xpose.msra.mxu0 0.0
        %3915 = vmatprep.subr.mxu0 0.0
        %3916 = vmatpush1.xpose.msra.mxu0 0.0
        %3917 = vmatprep.subr.mxu0 0.0
        %3918 = vmatpush1.xpose.msra.mxu0 0.0
        %3919 = vmatprep.subr.mxu0 0.0
        %3920 = vmatpush1.xpose.msra.mxu0 0.0
        %3921 = vmatprep.subr.mxu0 0.0
        %3922 = vmatpush1.xpose.msra.mxu0 0.0
        %3923 = vmatprep.subr.mxu0 0.0
        %3924 = vmatpush1.xpose.msra.mxu0 0.0
        %3925 = vmatprep.subr.mxu0 0.0
        %3926 = vmatpush1.xpose.msra.mxu0 0.0
        %3927 = vmatprep.subr.mxu0 0.0
        %3928 = vmatpush1.xpose.msra.mxu0 %v3895
        %3929 = vmatprep.subr.mxu0 0.0
        %3930 = vmatpush2.xpose.msra.mxu0 0.0
        %3931 = vmatprep.subr.mxu0 0.0
        %3932 = vmatpush2.xpose.msra.mxu0 0.0
        %3933 = vmatprep.subr.mxu0 0.0
        %3934 = vmatpush2.xpose.msra.mxu0 0.0
        %3935 = vmatprep.subr.mxu0 0.0
        %3936 = vmatpush2.xpose.msra.mxu0 0.0
        %3937 = vmatprep.subr.mxu0 0.0
        %3938 = vmatpush2.xpose.msra.mxu0 0.0
        %3939 = vmatprep.subr.mxu0 0.0
        %3940 = vmatpush2.xpose.msra.mxu0 0.0
        %3941 = vmatprep.subr.mxu0 0.0
        %3942 = vmatpush2.xpose.msra.mxu0 0.0
        %3943 = vmatprep.subr.mxu0 0.0
        %3944 = vmatpush2.xpose.msra.mxu0 0.0
        %3945 = vmatprep.subr.mxu0 0.0
        %3946 = vmatpush2.xpose.msra.mxu0 0.0
        %3947 = vmatprep.subr.mxu0 0.0
        %3948 = vmatpush2.xpose.msra.mxu0 0.0
        %3949 = vmatprep.subr.mxu0 0.0
        %3950 = vmatpush2.xpose.msra.mxu0 0.0
        %3951 = vmatprep.subr.mxu0 0.0
        %3952 = vmatpush2.xpose.msra.mxu0 0.0
        %3953 = vmatprep.subr.mxu0 0.0
        %3954 = vmatpush2.xpose.msra.mxu0 0.0
        %3955 = vmatprep.subr.mxu0 0.0
        %3956 = vmatpush2.xpose.msra.mxu0 0.0
        %3957 = vmatprep.subr.mxu0 0.0
        %3958 = vmatpush2.xpose.msra.mxu0 0.0
        %3959 = vmatprep.subr.mxu0 0.0
        %3960 = vmatpush2.xpose.msra.mxu0 0.0
        %3961 = vmatprep.mubr.f32.mxu0 0.0
        %3962 = vmatmul.mubr.f32.gmra.mxu0 %v3893
        %v3963 = vpop.f32.mrf.mxu0
        %v3964 = vadd.f32 0.0, %v3963
        %v3965 = vpop.f32.mrf.mxu0
        %3966 = vdwg.mxu0
        %3967 = vrot.lane.b32.xlu0 %v1273, 112
        %v3968 = vpop.permute.xlu0 %3967
        %3969 = vrot.lane.b32.xlu0 %v1273, 80
        %v3970 = vpop.permute.xlu0 %3969
        %v3971 = vsel %vm1026, %v3968, 0
        %v3973 = vsel %vm1026, %v3970, 0
        %3975 = vmatprep.subr.mxu0 0.0
        %3976 = vmatpush1.xpose.msra.mxu0 0.0
        %3977 = vmatprep.subr.mxu0 0.0
        %3978 = vmatpush1.xpose.msra.mxu0 0.0
        %3979 = vmatprep.subr.mxu0 0.0
        %3980 = vmatpush1.xpose.msra.mxu0 0.0
        %3981 = vmatprep.subr.mxu0 0.0
        %3982 = vmatpush1.xpose.msra.mxu0 0.0
        %3983 = vmatprep.subr.mxu0 0.0
        %3984 = vmatpush1.xpose.msra.mxu0 0.0
        %3985 = vmatprep.subr.mxu0 0.0
        %3986 = vmatpush1.xpose.msra.mxu0 0.0
        %3987 = vmatprep.subr.mxu0 0.0
        %3988 = vmatpush1.xpose.msra.mxu0 0.0
        %3989 = vmatprep.subr.mxu0 0.0
        %3990 = vmatpush1.xpose.msra.mxu0 0.0
        %3991 = vmatprep.subr.mxu0 0.0
        %3992 = vmatpush1.xpose.msra.mxu0 0.0
        %3993 = vmatprep.subr.mxu0 0.0
        %3994 = vmatpush1.xpose.msra.mxu0 0.0
        %3995 = vmatprep.subr.mxu0 0.0
        %3996 = vmatpush1.xpose.msra.mxu0 0.0
        %3997 = vmatprep.subr.mxu0 0.0
        %3998 = vmatpush1.xpose.msra.mxu0 0.0
        %3999 = vmatprep.subr.mxu0 0.0
        %4000 = vmatpush1.xpose.msra.mxu0 0.0
        %4001 = vmatprep.subr.mxu0 0.0
        %4002 = vmatpush1.xpose.msra.mxu0 0.0
        %4003 = vmatprep.subr.mxu0 0.0
        %4004 = vmatpush1.xpose.msra.mxu0 0.0
        %4005 = vmatprep.subr.mxu0 0.0
        %4006 = vmatpush1.xpose.msra.mxu0 %v3973
        %4007 = vmatprep.subr.mxu0 0.0
        %4008 = vmatpush2.xpose.msra.mxu0 0.0
        %4009 = vmatprep.subr.mxu0 0.0
        %4010 = vmatpush2.xpose.msra.mxu0 0.0
        %4011 = vmatprep.subr.mxu0 0.0
        %4012 = vmatpush2.xpose.msra.mxu0 0.0
        %4013 = vmatprep.subr.mxu0 0.0
        %4014 = vmatpush2.xpose.msra.mxu0 0.0
        %4015 = vmatprep.subr.mxu0 0.0
        %4016 = vmatpush2.xpose.msra.mxu0 0.0
        %4017 = vmatprep.subr.mxu0 0.0
        %4018 = vmatpush2.xpose.msra.mxu0 0.0
        %4019 = vmatprep.subr.mxu0 0.0
        %4020 = vmatpush2.xpose.msra.mxu0 0.0
        %4021 = vmatprep.subr.mxu0 0.0
        %4022 = vmatpush2.xpose.msra.mxu0 0.0
        %4023 = vmatprep.subr.mxu0 0.0
        %4024 = vmatpush2.xpose.msra.mxu0 0.0
        %4025 = vmatprep.subr.mxu0 0.0
        %4026 = vmatpush2.xpose.msra.mxu0 0.0
        %4027 = vmatprep.subr.mxu0 0.0
        %4028 = vmatpush2.xpose.msra.mxu0 0.0
        %4029 = vmatprep.subr.mxu0 0.0
        %4030 = vmatpush2.xpose.msra.mxu0 0.0
        %4031 = vmatprep.subr.mxu0 0.0
        %4032 = vmatpush2.xpose.msra.mxu0 0.0
        %4033 = vmatprep.subr.mxu0 0.0
        %4034 = vmatpush2.xpose.msra.mxu0 0.0
        %4035 = vmatprep.subr.mxu0 0.0
        %4036 = vmatpush2.xpose.msra.mxu0 0.0
        %4037 = vmatprep.subr.mxu0 0.0
        %4038 = vmatpush2.xpose.msra.mxu0 0.0
        %4039 = vmatprep.mubr.f32.mxu0 0.0
        %4040 = vmatmul.mubr.f32.gmra.mxu0 %v3971
        %v4041 = vpop.f32.mrf.mxu0
        %v4042 = vadd.f32 0.0, %v4041
        %v4043 = vpop.f32.mrf.mxu0
        %4044 = vdwg.mxu0
        %4045 = vrot.lane.b32.xlu0 %v1356, 112
        %v4046 = vpop.permute.xlu0 %4045
        %4047 = vrot.lane.b32.xlu0 %v1356, 80
        %v4048 = vpop.permute.xlu0 %4047
        %v4049 = vsel %vm1026, %v4046, 0
        %v4051 = vsel %vm1026, %v4048, 0
        %4053 = vmatprep.subr.mxu0 0.0
        %4054 = vmatpush1.xpose.msra.mxu0 0.0
        %4055 = vmatprep.subr.mxu0 0.0
        %4056 = vmatpush1.xpose.msra.mxu0 0.0
        %4057 = vmatprep.subr.mxu0 0.0
        %4058 = vmatpush1.xpose.msra.mxu0 0.0
        %4059 = vmatprep.subr.mxu0 0.0
        %4060 = vmatpush1.xpose.msra.mxu0 0.0
        %4061 = vmatprep.subr.mxu0 0.0
        %4062 = vmatpush1.xpose.msra.mxu0 0.0
        %4063 = vmatprep.subr.mxu0 0.0
        %4064 = vmatpush1.xpose.msra.mxu0 0.0
        %4065 = vmatprep.subr.mxu0 0.0
        %4066 = vmatpush1.xpose.msra.mxu0 0.0
        %4067 = vmatprep.subr.mxu0 0.0
        %4068 = vmatpush1.xpose.msra.mxu0 0.0
        %4069 = vmatprep.subr.mxu0 0.0
        %4070 = vmatpush1.xpose.msra.mxu0 0.0
        %4071 = vmatprep.subr.mxu0 0.0
        %4072 = vmatpush1.xpose.msra.mxu0 0.0
        %4073 = vmatprep.subr.mxu0 0.0
        %4074 = vmatpush1.xpose.msra.mxu0 0.0
        %4075 = vmatprep.subr.mxu0 0.0
        %4076 = vmatpush1.xpose.msra.mxu0 0.0
        %4077 = vmatprep.subr.mxu0 0.0
        %4078 = vmatpush1.xpose.msra.mxu0 0.0
        %4079 = vmatprep.subr.mxu0 0.0
        %4080 = vmatpush1.xpose.msra.mxu0 0.0
        %4081 = vmatprep.subr.mxu0 0.0
        %4082 = vmatpush1.xpose.msra.mxu0 0.0
        %4083 = vmatprep.subr.mxu0 0.0
        %4084 = vmatpush1.xpose.msra.mxu0 %v4051
        %4085 = vmatprep.subr.mxu0 0.0
        %4086 = vmatpush2.xpose.msra.mxu0 0.0
        %4087 = vmatprep.subr.mxu0 0.0
        %4088 = vmatpush2.xpose.msra.mxu0 0.0
        %4089 = vmatprep.subr.mxu0 0.0
        %4090 = vmatpush2.xpose.msra.mxu0 0.0
        %4091 = vmatprep.subr.mxu0 0.0
        %4092 = vmatpush2.xpose.msra.mxu0 0.0
        %4093 = vmatprep.subr.mxu0 0.0
        %4094 = vmatpush2.xpose.msra.mxu0 0.0
        %4095 = vmatprep.subr.mxu0 0.0
        %4096 = vmatpush2.xpose.msra.mxu0 0.0
        %4097 = vmatprep.subr.mxu0 0.0
        %4098 = vmatpush2.xpose.msra.mxu0 0.0
        %4099 = vmatprep.subr.mxu0 0.0
        %4100 = vmatpush2.xpose.msra.mxu0 0.0
        %4101 = vmatprep.subr.mxu0 0.0
        %4102 = vmatpush2.xpose.msra.mxu0 0.0
        %4103 = vmatprep.subr.mxu0 0.0
        %4104 = vmatpush2.xpose.msra.mxu0 0.0
        %4105 = vmatprep.subr.mxu0 0.0
        %4106 = vmatpush2.xpose.msra.mxu0 0.0
        %4107 = vmatprep.subr.mxu0 0.0
        %4108 = vmatpush2.xpose.msra.mxu0 0.0
        %4109 = vmatprep.subr.mxu0 0.0
        %4110 = vmatpush2.xpose.msra.mxu0 0.0
        %4111 = vmatprep.subr.mxu0 0.0
        %4112 = vmatpush2.xpose.msra.mxu0 0.0
        %4113 = vmatprep.subr.mxu0 0.0
        %4114 = vmatpush2.xpose.msra.mxu0 0.0
        %4115 = vmatprep.subr.mxu0 0.0
        %4116 = vmatpush2.xpose.msra.mxu0 0.0
        %4117 = vmatprep.mubr.f32.mxu0 0.0
        %4118 = vmatmul.mubr.f32.gmra.mxu0 %v4049
        %v4119 = vpop.f32.mrf.mxu0
        %v4120 = vadd.f32 0.0, %v4119
        %v4121 = vpop.f32.mrf.mxu0
        %4122 = vdwg.mxu0
        %4123 = vrot.lane.b32.xlu0 %v1439, 112
        %v4124 = vpop.permute.xlu0 %4123
        %4125 = vrot.lane.b32.xlu0 %v1439, 80
        %v4126 = vpop.permute.xlu0 %4125
        %v4127 = vsel %vm1026, %v4124, 0
        %v4129 = vsel %vm1026, %v4126, 0
        %4131 = vmatprep.subr.mxu0 0.0
        %4132 = vmatpush1.xpose.msra.mxu0 0.0
        %4133 = vmatprep.subr.mxu0 0.0
        %4134 = vmatpush1.xpose.msra.mxu0 0.0
        %4135 = vmatprep.subr.mxu0 0.0
        %4136 = vmatpush1.xpose.msra.mxu0 0.0
        %4137 = vmatprep.subr.mxu0 0.0
        %4138 = vmatpush1.xpose.msra.mxu0 0.0
        %4139 = vmatprep.subr.mxu0 0.0
        %4140 = vmatpush1.xpose.msra.mxu0 0.0
        %4141 = vmatprep.subr.mxu0 0.0
        %4142 = vmatpush1.xpose.msra.mxu0 0.0
        %4143 = vmatprep.subr.mxu0 0.0
        %4144 = vmatpush1.xpose.msra.mxu0 0.0
        %4145 = vmatprep.subr.mxu0 0.0
        %4146 = vmatpush1.xpose.msra.mxu0 0.0
        %4147 = vmatprep.subr.mxu0 0.0
        %4148 = vmatpush1.xpose.msra.mxu0 0.0
        %4149 = vmatprep.subr.mxu0 0.0
        %4150 = vmatpush1.xpose.msra.mxu0 0.0
        %4151 = vmatprep.subr.mxu0 0.0
        %4152 = vmatpush1.xpose.msra.mxu0 0.0
        %4153 = vmatprep.subr.mxu0 0.0
        %4154 = vmatpush1.xpose.msra.mxu0 0.0
        %4155 = vmatprep.subr.mxu0 0.0
        %4156 = vmatpush1.xpose.msra.mxu0 0.0
        %4157 = vmatprep.subr.mxu0 0.0
        %4158 = vmatpush1.xpose.msra.mxu0 0.0
        %4159 = vmatprep.subr.mxu0 0.0
        %4160 = vmatpush1.xpose.msra.mxu0 0.0
        %4161 = vmatprep.subr.mxu0 0.0
        %4162 = vmatpush1.xpose.msra.mxu0 %v4129
        %4163 = vmatprep.subr.mxu0 0.0
        %4164 = vmatpush2.xpose.msra.mxu0 0.0
        %4165 = vmatprep.subr.mxu0 0.0
        %4166 = vmatpush2.xpose.msra.mxu0 0.0
        %4167 = vmatprep.subr.mxu0 0.0
        %4168 = vmatpush2.xpose.msra.mxu0 0.0
        %4169 = vmatprep.subr.mxu0 0.0
        %4170 = vmatpush2.xpose.msra.mxu0 0.0
        %4171 = vmatprep.subr.mxu0 0.0
        %4172 = vmatpush2.xpose.msra.mxu0 0.0
        %4173 = vmatprep.subr.mxu0 0.0
        %4174 = vmatpush2.xpose.msra.mxu0 0.0
        %4175 = vmatprep.subr.mxu0 0.0
        %4176 = vmatpush2.xpose.msra.mxu0 0.0
        %4177 = vmatprep.subr.mxu0 0.0
        %4178 = vmatpush2.xpose.msra.mxu0 0.0
        %4179 = vmatprep.subr.mxu0 0.0
        %4180 = vmatpush2.xpose.msra.mxu0 0.0
        %4181 = vmatprep.subr.mxu0 0.0
        %4182 = vmatpush2.xpose.msra.mxu0 0.0
        %4183 = vmatprep.subr.mxu0 0.0
        %4184 = vmatpush2.xpose.msra.mxu0 0.0
        %4185 = vmatprep.subr.mxu0 0.0
        %4186 = vmatpush2.xpose.msra.mxu0 0.0
        %4187 = vmatprep.subr.mxu0 0.0
        %4188 = vmatpush2.xpose.msra.mxu0 0.0
        %4189 = vmatprep.subr.mxu0 0.0
        %4190 = vmatpush2.xpose.msra.mxu0 0.0
        %4191 = vmatprep.subr.mxu0 0.0
        %4192 = vmatpush2.xpose.msra.mxu0 0.0
        %4193 = vmatprep.subr.mxu0 0.0
        %4194 = vmatpush2.xpose.msra.mxu0 0.0
        %4195 = vmatprep.mubr.f32.mxu0 0.0
        %4196 = vmatmul.mubr.f32.gmra.mxu0 %v4127
        %v4197 = vpop.f32.mrf.mxu0
        %v4198 = vadd.f32 0.0, %v4197
        %v4199 = vpop.f32.mrf.mxu0
        %4200 = vdwg.mxu0
        %4201 = vrot.lane.b32.xlu0 %v1522, 112
        %v4202 = vpop.permute.xlu0 %4201
        %4203 = vrot.lane.b32.xlu0 %v1522, 80
        %v4204 = vpop.permute.xlu0 %4203
        %v4205 = vsel %vm1026, %v4202, 0
        %v4207 = vsel %vm1026, %v4204, 0
        %4209 = vmatprep.subr.mxu0 0.0
        %4210 = vmatpush1.xpose.msra.mxu0 0.0
        %4211 = vmatprep.subr.mxu0 0.0
        %4212 = vmatpush1.xpose.msra.mxu0 0.0
        %4213 = vmatprep.subr.mxu0 0.0
        %4214 = vmatpush1.xpose.msra.mxu0 0.0
        %4215 = vmatprep.subr.mxu0 0.0
        %4216 = vmatpush1.xpose.msra.mxu0 0.0
        %4217 = vmatprep.subr.mxu0 0.0
        %4218 = vmatpush1.xpose.msra.mxu0 0.0
        %4219 = vmatprep.subr.mxu0 0.0
        %4220 = vmatpush1.xpose.msra.mxu0 0.0
        %4221 = vmatprep.subr.mxu0 0.0
        %4222 = vmatpush1.xpose.msra.mxu0 0.0
        %4223 = vmatprep.subr.mxu0 0.0
        %4224 = vmatpush1.xpose.msra.mxu0 0.0
        %4225 = vmatprep.subr.mxu0 0.0
        %4226 = vmatpush1.xpose.msra.mxu0 0.0
        %4227 = vmatprep.subr.mxu0 0.0
        %4228 = vmatpush1.xpose.msra.mxu0 0.0
        %4229 = vmatprep.subr.mxu0 0.0
        %4230 = vmatpush1.xpose.msra.mxu0 0.0
        %4231 = vmatprep.subr.mxu0 0.0
        %4232 = vmatpush1.xpose.msra.mxu0 0.0
        %4233 = vmatprep.subr.mxu0 0.0
        %4234 = vmatpush1.xpose.msra.mxu0 0.0
        %4235 = vmatprep.subr.mxu0 0.0
        %4236 = vmatpush1.xpose.msra.mxu0 0.0
        %4237 = vmatprep.subr.mxu0 0.0
        %4238 = vmatpush1.xpose.msra.mxu0 0.0
        %4239 = vmatprep.subr.mxu0 0.0
        %4240 = vmatpush1.xpose.msra.mxu0 %v4207
        %4241 = vmatprep.subr.mxu0 0.0
        %4242 = vmatpush2.xpose.msra.mxu0 0.0
        %4243 = vmatprep.subr.mxu0 0.0
        %4244 = vmatpush2.xpose.msra.mxu0 0.0
        %4245 = vmatprep.subr.mxu0 0.0
        %4246 = vmatpush2.xpose.msra.mxu0 0.0
        %4247 = vmatprep.subr.mxu0 0.0
        %4248 = vmatpush2.xpose.msra.mxu0 0.0
        %4249 = vmatprep.subr.mxu0 0.0
        %4250 = vmatpush2.xpose.msra.mxu0 0.0
        %4251 = vmatprep.subr.mxu0 0.0
        %4252 = vmatpush2.xpose.msra.mxu0 0.0
        %4253 = vmatprep.subr.mxu0 0.0
        %4254 = vmatpush2.xpose.msra.mxu0 0.0
        %4255 = vmatprep.subr.mxu0 0.0
        %4256 = vmatpush2.xpose.msra.mxu0 0.0
        %4257 = vmatprep.subr.mxu0 0.0
        %4258 = vmatpush2.xpose.msra.mxu0 0.0
        %4259 = vmatprep.subr.mxu0 0.0
        %4260 = vmatpush2.xpose.msra.mxu0 0.0
        %4261 = vmatprep.subr.mxu0 0.0
        %4262 = vmatpush2.xpose.msra.mxu0 0.0
        %4263 = vmatprep.subr.mxu0 0.0
        %4264 = vmatpush2.xpose.msra.mxu0 0.0
        %4265 = vmatprep.subr.mxu0 0.0
        %4266 = vmatpush2.xpose.msra.mxu0 0.0
        %4267 = vmatprep.subr.mxu0 0.0
        %4268 = vmatpush2.xpose.msra.mxu0 0.0
        %4269 = vmatprep.subr.mxu0 0.0
        %4270 = vmatpush2.xpose.msra.mxu0 0.0
        %4271 = vmatprep.subr.mxu0 0.0
        %4272 = vmatpush2.xpose.msra.mxu0 0.0
        %4273 = vmatprep.mubr.f32.mxu0 0.0
        %4274 = vmatmul.mubr.f32.gmra.mxu0 %v4205
        %v4275 = vpop.f32.mrf.mxu0
        %v4276 = vadd.f32 0.0, %v4275
        %v4277 = vpop.f32.mrf.mxu0
        %4278 = vdwg.mxu0
        %4279 = vrot.lane.b32.xlu0 %v1605, 112
        %v4280 = vpop.permute.xlu0 %4279
        %4281 = vrot.lane.b32.xlu0 %v1605, 80
        %v4282 = vpop.permute.xlu0 %4281
        %v4283 = vsel %vm1026, %v4280, 0
        %v4285 = vsel %vm1026, %v4282, 0
        %4287 = vmatprep.subr.mxu0 0.0
        %4288 = vmatpush1.xpose.msra.mxu0 0.0
        %4289 = vmatprep.subr.mxu0 0.0
        %4290 = vmatpush1.xpose.msra.mxu0 0.0
        %4291 = vmatprep.subr.mxu0 0.0
        %4292 = vmatpush1.xpose.msra.mxu0 0.0
        %4293 = vmatprep.subr.mxu0 0.0
        %4294 = vmatpush1.xpose.msra.mxu0 0.0
        %4295 = vmatprep.subr.mxu0 0.0
        %4296 = vmatpush1.xpose.msra.mxu0 0.0
        %4297 = vmatprep.subr.mxu0 0.0
        %4298 = vmatpush1.xpose.msra.mxu0 0.0
        %4299 = vmatprep.subr.mxu0 0.0
        %4300 = vmatpush1.xpose.msra.mxu0 0.0
        %4301 = vmatprep.subr.mxu0 0.0
        %4302 = vmatpush1.xpose.msra.mxu0 0.0
        %4303 = vmatprep.subr.mxu0 0.0
        %4304 = vmatpush1.xpose.msra.mxu0 0.0
        %4305 = vmatprep.subr.mxu0 0.0
        %4306 = vmatpush1.xpose.msra.mxu0 0.0
        %4307 = vmatprep.subr.mxu0 0.0
        %4308 = vmatpush1.xpose.msra.mxu0 0.0
        %4309 = vmatprep.subr.mxu0 0.0
        %4310 = vmatpush1.xpose.msra.mxu0 0.0
        %4311 = vmatprep.subr.mxu0 0.0
        %4312 = vmatpush1.xpose.msra.mxu0 0.0
        %4313 = vmatprep.subr.mxu0 0.0
        %4314 = vmatpush1.xpose.msra.mxu0 0.0
        %4315 = vmatprep.subr.mxu0 0.0
        %4316 = vmatpush1.xpose.msra.mxu0 0.0
        %4317 = vmatprep.subr.mxu0 0.0
        %4318 = vmatpush1.xpose.msra.mxu0 %v4285
        %4319 = vmatprep.subr.mxu0 0.0
        %4320 = vmatpush2.xpose.msra.mxu0 0.0
        %4321 = vmatprep.subr.mxu0 0.0
        %4322 = vmatpush2.xpose.msra.mxu0 0.0
        %4323 = vmatprep.subr.mxu0 0.0
        %4324 = vmatpush2.xpose.msra.mxu0 0.0
        %4325 = vmatprep.subr.mxu0 0.0
        %4326 = vmatpush2.xpose.msra.mxu0 0.0
        %4327 = vmatprep.subr.mxu0 0.0
        %4328 = vmatpush2.xpose.msra.mxu0 0.0
        %4329 = vmatprep.subr.mxu0 0.0
        %4330 = vmatpush2.xpose.msra.mxu0 0.0
        %4331 = vmatprep.subr.mxu0 0.0
        %4332 = vmatpush2.xpose.msra.mxu0 0.0
        %4333 = vmatprep.subr.mxu0 0.0
        %4334 = vmatpush2.xpose.msra.mxu0 0.0
        %4335 = vmatprep.subr.mxu0 0.0
        %4336 = vmatpush2.xpose.msra.mxu0 0.0
        %4337 = vmatprep.subr.mxu0 0.0
        %4338 = vmatpush2.xpose.msra.mxu0 0.0
        %4339 = vmatprep.subr.mxu0 0.0
        %4340 = vmatpush2.xpose.msra.mxu0 0.0
        %4341 = vmatprep.subr.mxu0 0.0
        %4342 = vmatpush2.xpose.msra.mxu0 0.0
        %4343 = vmatprep.subr.mxu0 0.0
        %4344 = vmatpush2.xpose.msra.mxu0 0.0
        %4345 = vmatprep.subr.mxu0 0.0
        %4346 = vmatpush2.xpose.msra.mxu0 0.0
        %4347 = vmatprep.subr.mxu0 0.0
        %4348 = vmatpush2.xpose.msra.mxu0 0.0
        %4349 = vmatprep.subr.mxu0 0.0
        %4350 = vmatpush2.xpose.msra.mxu0 0.0
        %4351 = vmatprep.mubr.f32.mxu0 0.0
        %4352 = vmatmul.mubr.f32.gmra.mxu0 %v4283
        %v4353 = vpop.f32.mrf.mxu0
        %v4354 = vadd.f32 0.0, %v4353
        %v4355 = vpop.f32.mrf.mxu0
        %4356 = vdwg.mxu0
        %v4357 = vmul.f32 %v3808, 0.35355338
        %v4358 = vmul.f32 %v3886, 0.35355338
        %v4359 = vmul.f32 %v3964, 0.35355338
        %v4360 = vmul.f32 %v4042, 0.35355338
        %v4361 = vmul.f32 %v4120, 0.35355338
        %v4362 = vmul.f32 %v4198, 0.35355338
        %v4363 = vmul.f32 %v4276, 0.35355338
        %v4364 = vmul.f32 %v4354, 0.35355338
        %v4365 = vsel %vm1690, %v4357, -inf
        %4366 = vmax.xlane.f32.xlu0 %v4365
        %v4367 = vpop.xlane.xlu0 %4366
        %v4368 = vsel %vm1690, %v4358, -inf
        %4369 = vmax.xlane.f32.xlu0 %v4368
        %v4370 = vpop.xlane.xlu0 %4369
        %v4371 = vsel %vm1690, %v4359, -inf
        %4372 = vmax.xlane.f32.xlu0 %v4371
        %v4373 = vpop.xlane.xlu0 %4372
        %v4374 = vsel %vm1690, %v4360, -inf
        %4375 = vmax.xlane.f32.xlu0 %v4374
        %v4376 = vpop.xlane.xlu0 %4375
        %v4377 = vsel %vm1690, %v4361, -inf
        %4378 = vmax.xlane.f32.xlu0 %v4377
        %v4379 = vpop.xlane.xlu0 %4378
        %v4380 = vsel %vm1690, %v4362, -inf
        %4381 = vmax.xlane.f32.xlu0 %v4380
        %v4382 = vpop.xlane.xlu0 %4381
        %v4383 = vsel %vm1690, %v4363, -inf
        %4384 = vmax.xlane.f32.xlu0 %v4383
        %v4385 = vpop.xlane.xlu0 %4384
        %v4386 = vsel %vm1690, %v4364, -inf
        %4387 = vmax.xlane.f32.xlu0 %v4386
        %v4388 = vpop.xlane.xlu0 %4387
        %v4389 = vsub.f32 %v4357, %v4367
        %v4390 = vsub.f32 %v4358, %v4370
        %v4391 = vsub.f32 %v4359, %v4373
        %v4392 = vsub.f32 %v4360, %v4376
        %v4393 = vsub.f32 %v4361, %v4379
        %v4394 = vsub.f32 %v4362, %v4382
        %v4395 = vsub.f32 %v4363, %v4385
        %v4396 = vsub.f32 %v4364, %v4388
        %v4397 = vmul.f32 %v4389, 1.442695
        %v4398 = vpow.pop %v4397
        %v4399 = vmul.f32 %v4390, 1.442695
        %v4400 = vpow.pop %v4399
        %v4401 = vmul.f32 %v4391, 1.442695
        %v4402 = vpow.pop %v4401
        %v4403 = vmul.f32 %v4392, 1.442695
        %v4404 = vpow.pop %v4403
        %v4405 = vmul.f32 %v4393, 1.442695
        %v4406 = vpow.pop %v4405
        %v4407 = vmul.f32 %v4394, 1.442695
        %v4408 = vpow.pop %v4407
        %v4409 = vmul.f32 %v4395, 1.442695
        %v4410 = vpow.pop %v4409
        %v4411 = vmul.f32 %v4396, 1.442695
        %v4412 = vpow.pop %v4411
        %v4413 = vsel %vm1690, %v4398, 0.0
        %4414 = vadd.xlane.f32.xlu0 %v4413
        %v4415 = vpop.xlane.xlu0 %4414
        %v4416 = vsel %vm1690, %v4400, 0.0
        %4417 = vadd.xlane.f32.xlu0 %v4416
        %v4418 = vpop.xlane.xlu0 %4417
        %v4419 = vsel %vm1690, %v4402, 0.0
        %4420 = vadd.xlane.f32.xlu0 %v4419
        %v4421 = vpop.xlane.xlu0 %4420
        %v4422 = vsel %vm1690, %v4404, 0.0
        %4423 = vadd.xlane.f32.xlu0 %v4422
        %v4424 = vpop.xlane.xlu0 %4423
        %v4425 = vsel %vm1690, %v4406, 0.0
        %4426 = vadd.xlane.f32.xlu0 %v4425
        %v4427 = vpop.xlane.xlu0 %4426
        %v4428 = vsel %vm1690, %v4408, 0.0
        %4429 = vadd.xlane.f32.xlu0 %v4428
        %v4430 = vpop.xlane.xlu0 %4429
        %v4431 = vsel %vm1690, %v4410, 0.0
        %4432 = vadd.xlane.f32.xlu0 %v4431
        %v4433 = vpop.xlane.xlu0 %4432
        %v4434 = vsel %vm1690, %v4412, 0.0
        %4435 = vadd.xlane.f32.xlu0 %v4434
        %v4436 = vpop.xlane.xlu0 %4435
        %v4437 = vrcp.pop %v4415
        %v4438 = vrcp.pop %v4418
        %v4439 = vrcp.pop %v4421
        %v4440 = vrcp.pop %v4424
        %v4441 = vrcp.pop %v4427
        %v4442 = vrcp.pop %v4430
        %v4443 = vrcp.pop %v4433
        %v4444 = vrcp.pop %v4436
        %v4445 = vmul.f32 %v4398, %v4437
        %v4446 = vmul.f32 %v4400, %v4438
        %v4447 = vmul.f32 %v4402, %v4439
        %v4448 = vmul.f32 %v4404, %v4440
        %v4449 = vmul.f32 %v4406, %v4441
        %v4450 = vmul.f32 %v4408, %v4442
        %v4451 = vmul.f32 %v4410, %v4443
        %v4452 = vmul.f32 %v4412, %v4444
        %4453 = vrot.lane.b32.xlu0 %v1023, 48
        %v4454 = vpop.permute.xlu0 %4453
        %v4456 = vsel %vm1781, %v4445, 0
        %v4458 = vsel %vm1785, %v4454, 0
        %4460 = vmatprep.subr.mxu0 0.0
        %4461 = vmatpush1.msra.mxu0 0.0
        %4462 = vmatprep.subr.mxu0 0.0
        %4463 = vmatpush1.msra.mxu0 0.0
        %4464 = vmatprep.subr.mxu0 0.0
        %4465 = vmatpush1.msra.mxu0 0.0
        %4466 = vmatprep.subr.mxu0 0.0
        %4467 = vmatpush1.msra.mxu0 0.0
        %4468 = vmatprep.subr.mxu0 0.0
        %4469 = vmatpush1.msra.mxu0 0.0
        %4470 = vmatprep.subr.mxu0 0.0
        %4471 = vmatpush1.msra.mxu0 0.0
        %4472 = vmatprep.subr.mxu0 0.0
        %4473 = vmatpush1.msra.mxu0 0.0
        %4474 = vmatprep.subr.mxu0 0.0
        %4475 = vmatpush1.msra.mxu0 0.0
        %4476 = vmatprep.subr.mxu0 0.0
        %4477 = vmatpush1.msra.mxu0 0.0
        %4478 = vmatprep.subr.mxu0 0.0
        %4479 = vmatpush1.msra.mxu0 0.0
        %4480 = vmatprep.subr.mxu0 0.0
        %4481 = vmatpush1.msra.mxu0 0.0
        %4482 = vmatprep.subr.mxu0 0.0
        %4483 = vmatpush1.msra.mxu0 0.0
        %4484 = vmatprep.subr.mxu0 0.0
        %4485 = vmatpush1.msra.mxu0 0.0
        %4486 = vmatprep.subr.mxu0 0.0
        %4487 = vmatpush1.msra.mxu0 0.0
        %4488 = vmatprep.subr.mxu0 0.0
        %4489 = vmatpush1.msra.mxu0 0.0
        %4490 = vmatprep.subr.mxu0 0.0
        %4491 = vmatpush1.msra.mxu0 %v4458
        %4492 = vmatprep.subr.mxu0 0.0
        %4493 = vmatpush2.msra.mxu0 0.0
        %4494 = vmatprep.subr.mxu0 0.0
        %4495 = vmatpush2.msra.mxu0 0.0
        %4496 = vmatprep.subr.mxu0 0.0
        %4497 = vmatpush2.msra.mxu0 0.0
        %4498 = vmatprep.subr.mxu0 0.0
        %4499 = vmatpush2.msra.mxu0 0.0
        %4500 = vmatprep.subr.mxu0 0.0
        %4501 = vmatpush2.msra.mxu0 0.0
        %4502 = vmatprep.subr.mxu0 0.0
        %4503 = vmatpush2.msra.mxu0 0.0
        %4504 = vmatprep.subr.mxu0 0.0
        %4505 = vmatpush2.msra.mxu0 0.0
        %4506 = vmatprep.subr.mxu0 0.0
        %4507 = vmatpush2.msra.mxu0 0.0
        %4508 = vmatprep.subr.mxu0 0.0
        %4509 = vmatpush2.msra.mxu0 0.0
        %4510 = vmatprep.subr.mxu0 0.0
        %4511 = vmatpush2.msra.mxu0 0.0
        %4512 = vmatprep.subr.mxu0 0.0
        %4513 = vmatpush2.msra.mxu0 0.0
        %4514 = vmatprep.subr.mxu0 0.0
        %4515 = vmatpush2.msra.mxu0 0.0
        %4516 = vmatprep.subr.mxu0 0.0
        %4517 = vmatpush2.msra.mxu0 0.0
        %4518 = vmatprep.subr.mxu0 0.0
        %4519 = vmatpush2.msra.mxu0 0.0
        %4520 = vmatprep.subr.mxu0 0.0
        %4521 = vmatpush2.msra.mxu0 0.0
        %4522 = vmatprep.subr.mxu0 0.0
        %4523 = vmatpush2.msra.mxu0 0.0
        %4524 = vmatprep.mubr.f32.mxu0 0.0
        %4525 = vmatmul.mubr.f32.gmra.mxu0 %v4456
        %v4526 = vpop.f32.mrf.mxu0
        %v4527 = vadd.f32 0.0, %v4526
        %v4528 = vpop.f32.mrf.mxu0
        %4529 = vdwg.mxu0
        %4530 = vrot.lane.b32.xlu0 %v1107, 48
        %v4531 = vpop.permute.xlu0 %4530
        %v4533 = vsel %vm1781, %v4446, 0
        %v4535 = vsel %vm1785, %v4531, 0
        %4537 = vmatprep.subr.mxu0 0.0
        %4538 = vmatpush1.msra.mxu0 0.0
        %4539 = vmatprep.subr.mxu0 0.0
        %4540 = vmatpush1.msra.mxu0 0.0
        %4541 = vmatprep.subr.mxu0 0.0
        %4542 = vmatpush1.msra.mxu0 0.0
        %4543 = vmatprep.subr.mxu0 0.0
        %4544 = vmatpush1.msra.mxu0 0.0
        %4545 = vmatprep.subr.mxu0 0.0
        %4546 = vmatpush1.msra.mxu0 0.0
        %4547 = vmatprep.subr.mxu0 0.0
        %4548 = vmatpush1.msra.mxu0 0.0
        %4549 = vmatprep.subr.mxu0 0.0
        %4550 = vmatpush1.msra.mxu0 0.0
        %4551 = vmatprep.subr.mxu0 0.0
        %4552 = vmatpush1.msra.mxu0 0.0
        %4553 = vmatprep.subr.mxu0 0.0
        %4554 = vmatpush1.msra.mxu0 0.0
        %4555 = vmatprep.subr.mxu0 0.0
        %4556 = vmatpush1.msra.mxu0 0.0
        %4557 = vmatprep.subr.mxu0 0.0
        %4558 = vmatpush1.msra.mxu0 0.0
        %4559 = vmatprep.subr.mxu0 0.0
        %4560 = vmatpush1.msra.mxu0 0.0
        %4561 = vmatprep.subr.mxu0 0.0
        %4562 = vmatpush1.msra.mxu0 0.0
        %4563 = vmatprep.subr.mxu0 0.0
        %4564 = vmatpush1.msra.mxu0 0.0
        %4565 = vmatprep.subr.mxu0 0.0
        %4566 = vmatpush1.msra.mxu0 0.0
        %4567 = vmatprep.subr.mxu0 0.0
        %4568 = vmatpush1.msra.mxu0 %v4535
        %4569 = vmatprep.subr.mxu0 0.0
        %4570 = vmatpush2.msra.mxu0 0.0
        %4571 = vmatprep.subr.mxu0 0.0
        %4572 = vmatpush2.msra.mxu0 0.0
        %4573 = vmatprep.subr.mxu0 0.0
        %4574 = vmatpush2.msra.mxu0 0.0
        %4575 = vmatprep.subr.mxu0 0.0
        %4576 = vmatpush2.msra.mxu0 0.0
        %4577 = vmatprep.subr.mxu0 0.0
        %4578 = vmatpush2.msra.mxu0 0.0
        %4579 = vmatprep.subr.mxu0 0.0
        %4580 = vmatpush2.msra.mxu0 0.0
        %4581 = vmatprep.subr.mxu0 0.0
        %4582 = vmatpush2.msra.mxu0 0.0
        %4583 = vmatprep.subr.mxu0 0.0
        %4584 = vmatpush2.msra.mxu0 0.0
        %4585 = vmatprep.subr.mxu0 0.0
        %4586 = vmatpush2.msra.mxu0 0.0
        %4587 = vmatprep.subr.mxu0 0.0
        %4588 = vmatpush2.msra.mxu0 0.0
        %4589 = vmatprep.subr.mxu0 0.0
        %4590 = vmatpush2.msra.mxu0 0.0
        %4591 = vmatprep.subr.mxu0 0.0
        %4592 = vmatpush2.msra.mxu0 0.0
        %4593 = vmatprep.subr.mxu0 0.0
        %4594 = vmatpush2.msra.mxu0 0.0
        %4595 = vmatprep.subr.mxu0 0.0
        %4596 = vmatpush2.msra.mxu0 0.0
        %4597 = vmatprep.subr.mxu0 0.0
        %4598 = vmatpush2.msra.mxu0 0.0
        %4599 = vmatprep.subr.mxu0 0.0
        %4600 = vmatpush2.msra.mxu0 0.0
        %4601 = vmatprep.mubr.f32.mxu0 0.0
        %4602 = vmatmul.mubr.f32.gmra.mxu0 %v4533
        %v4603 = vpop.f32.mrf.mxu0
        %v4604 = vadd.f32 0.0, %v4603
        %v4605 = vpop.f32.mrf.mxu0
        %4606 = vdwg.mxu0
        %4607 = vrot.lane.b32.xlu0 %v1190, 48
        %v4608 = vpop.permute.xlu0 %4607
        %v4610 = vsel %vm1781, %v4447, 0
        %v4612 = vsel %vm1785, %v4608, 0
        %4614 = vmatprep.subr.mxu0 0.0
        %4615 = vmatpush1.msra.mxu0 0.0
        %4616 = vmatprep.subr.mxu0 0.0
        %4617 = vmatpush1.msra.mxu0 0.0
        %4618 = vmatprep.subr.mxu0 0.0
        %4619 = vmatpush1.msra.mxu0 0.0
        %4620 = vmatprep.subr.mxu0 0.0
        %4621 = vmatpush1.msra.mxu0 0.0
        %4622 = vmatprep.subr.mxu0 0.0
        %4623 = vmatpush1.msra.mxu0 0.0
        %4624 = vmatprep.subr.mxu0 0.0
        %4625 = vmatpush1.msra.mxu0 0.0
        %4626 = vmatprep.subr.mxu0 0.0
        %4627 = vmatpush1.msra.mxu0 0.0
        %4628 = vmatprep.subr.mxu0 0.0
        %4629 = vmatpush1.msra.mxu0 0.0
        %4630 = vmatprep.subr.mxu0 0.0
        %4631 = vmatpush1.msra.mxu0 0.0
        %4632 = vmatprep.subr.mxu0 0.0
        %4633 = vmatpush1.msra.mxu0 0.0
        %4634 = vmatprep.subr.mxu0 0.0
        %4635 = vmatpush1.msra.mxu0 0.0
        %4636 = vmatprep.subr.mxu0 0.0
        %4637 = vmatpush1.msra.mxu0 0.0
        %4638 = vmatprep.subr.mxu0 0.0
        %4639 = vmatpush1.msra.mxu0 0.0
        %4640 = vmatprep.subr.mxu0 0.0
        %4641 = vmatpush1.msra.mxu0 0.0
        %4642 = vmatprep.subr.mxu0 0.0
        %4643 = vmatpush1.msra.mxu0 0.0
        %4644 = vmatprep.subr.mxu0 0.0
        %4645 = vmatpush1.msra.mxu0 %v4612
        %4646 = vmatprep.subr.mxu0 0.0
        %4647 = vmatpush2.msra.mxu0 0.0
        %4648 = vmatprep.subr.mxu0 0.0
        %4649 = vmatpush2.msra.mxu0 0.0
        %4650 = vmatprep.subr.mxu0 0.0
        %4651 = vmatpush2.msra.mxu0 0.0
        %4652 = vmatprep.subr.mxu0 0.0
        %4653 = vmatpush2.msra.mxu0 0.0
        %4654 = vmatprep.subr.mxu0 0.0
        %4655 = vmatpush2.msra.mxu0 0.0
        %4656 = vmatprep.subr.mxu0 0.0
        %4657 = vmatpush2.msra.mxu0 0.0
        %4658 = vmatprep.subr.mxu0 0.0
        %4659 = vmatpush2.msra.mxu0 0.0
        %4660 = vmatprep.subr.mxu0 0.0
        %4661 = vmatpush2.msra.mxu0 0.0
        %4662 = vmatprep.subr.mxu0 0.0
        %4663 = vmatpush2.msra.mxu0 0.0
        %4664 = vmatprep.subr.mxu0 0.0
        %4665 = vmatpush2.msra.mxu0 0.0
        %4666 = vmatprep.subr.mxu0 0.0
        %4667 = vmatpush2.msra.mxu0 0.0
        %4668 = vmatprep.subr.mxu0 0.0
        %4669 = vmatpush2.msra.mxu0 0.0
        %4670 = vmatprep.subr.mxu0 0.0
        %4671 = vmatpush2.msra.mxu0 0.0
        %4672 = vmatprep.subr.mxu0 0.0
        %4673 = vmatpush2.msra.mxu0 0.0
        %4674 = vmatprep.subr.mxu0 0.0
        %4675 = vmatpush2.msra.mxu0 0.0
        %4676 = vmatprep.subr.mxu0 0.0
        %4677 = vmatpush2.msra.mxu0 0.0
        %4678 = vmatprep.mubr.f32.mxu0 0.0
        %4679 = vmatmul.mubr.f32.gmra.mxu0 %v4610
        %v4680 = vpop.f32.mrf.mxu0
        %v4681 = vadd.f32 0.0, %v4680
        %v4682 = vpop.f32.mrf.mxu0
        %4683 = vdwg.mxu0
        %4684 = vrot.lane.b32.xlu0 %v1273, 48
        %v4685 = vpop.permute.xlu0 %4684
        %v4687 = vsel %vm1781, %v4448, 0
        %v4689 = vsel %vm1785, %v4685, 0
        %4691 = vmatprep.subr.mxu0 0.0
        %4692 = vmatpush1.msra.mxu0 0.0
        %4693 = vmatprep.subr.mxu0 0.0
        %4694 = vmatpush1.msra.mxu0 0.0
        %4695 = vmatprep.subr.mxu0 0.0
        %4696 = vmatpush1.msra.mxu0 0.0
        %4697 = vmatprep.subr.mxu0 0.0
        %4698 = vmatpush1.msra.mxu0 0.0
        %4699 = vmatprep.subr.mxu0 0.0
        %4700 = vmatpush1.msra.mxu0 0.0
        %4701 = vmatprep.subr.mxu0 0.0
        %4702 = vmatpush1.msra.mxu0 0.0
        %4703 = vmatprep.subr.mxu0 0.0
        %4704 = vmatpush1.msra.mxu0 0.0
        %4705 = vmatprep.subr.mxu0 0.0
        %4706 = vmatpush1.msra.mxu0 0.0
        %4707 = vmatprep.subr.mxu0 0.0
        %4708 = vmatpush1.msra.mxu0 0.0
        %4709 = vmatprep.subr.mxu0 0.0
        %4710 = vmatpush1.msra.mxu0 0.0
        %4711 = vmatprep.subr.mxu0 0.0
        %4712 = vmatpush1.msra.mxu0 0.0
        %4713 = vmatprep.subr.mxu0 0.0
        %4714 = vmatpush1.msra.mxu0 0.0
        %4715 = vmatprep.subr.mxu0 0.0
        %4716 = vmatpush1.msra.mxu0 0.0
        %4717 = vmatprep.subr.mxu0 0.0
        %4718 = vmatpush1.msra.mxu0 0.0
        %4719 = vmatprep.subr.mxu0 0.0
        %4720 = vmatpush1.msra.mxu0 0.0
        %4721 = vmatprep.subr.mxu0 0.0
        %4722 = vmatpush1.msra.mxu0 %v4689
        %4723 = vmatprep.subr.mxu0 0.0
        %4724 = vmatpush2.msra.mxu0 0.0
        %4725 = vmatprep.subr.mxu0 0.0
        %4726 = vmatpush2.msra.mxu0 0.0
        %4727 = vmatprep.subr.mxu0 0.0
        %4728 = vmatpush2.msra.mxu0 0.0
        %4729 = vmatprep.subr.mxu0 0.0
        %4730 = vmatpush2.msra.mxu0 0.0
        %4731 = vmatprep.subr.mxu0 0.0
        %4732 = vmatpush2.msra.mxu0 0.0
        %4733 = vmatprep.subr.mxu0 0.0
        %4734 = vmatpush2.msra.mxu0 0.0
        %4735 = vmatprep.subr.mxu0 0.0
        %4736 = vmatpush2.msra.mxu0 0.0
        %4737 = vmatprep.subr.mxu0 0.0
        %4738 = vmatpush2.msra.mxu0 0.0
        %4739 = vmatprep.subr.mxu0 0.0
        %4740 = vmatpush2.msra.mxu0 0.0
        %4741 = vmatprep.subr.mxu0 0.0
        %4742 = vmatpush2.msra.mxu0 0.0
        %4743 = vmatprep.subr.mxu0 0.0
        %4744 = vmatpush2.msra.mxu0 0.0
        %4745 = vmatprep.subr.mxu0 0.0
        %4746 = vmatpush2.msra.mxu0 0.0
        %4747 = vmatprep.subr.mxu0 0.0
        %4748 = vmatpush2.msra.mxu0 0.0
        %4749 = vmatprep.subr.mxu0 0.0
        %4750 = vmatpush2.msra.mxu0 0.0
        %4751 = vmatprep.subr.mxu0 0.0
        %4752 = vmatpush2.msra.mxu0 0.0
        %4753 = vmatprep.subr.mxu0 0.0
        %4754 = vmatpush2.msra.mxu0 0.0
        %4755 = vmatprep.mubr.f32.mxu0 0.0
        %4756 = vmatmul.mubr.f32.gmra.mxu0 %v4687
        %v4757 = vpop.f32.mrf.mxu0
        %v4758 = vadd.f32 0.0, %v4757
        %v4759 = vpop.f32.mrf.mxu0
        %4760 = vdwg.mxu0
        %4761 = vrot.lane.b32.xlu0 %v1356, 48
        %v4762 = vpop.permute.xlu0 %4761
        %v4764 = vsel %vm1781, %v4449, 0
        %v4766 = vsel %vm1785, %v4762, 0
        %4768 = vmatprep.subr.mxu0 0.0
        %4769 = vmatpush1.msra.mxu0 0.0
        %4770 = vmatprep.subr.mxu0 0.0
        %4771 = vmatpush1.msra.mxu0 0.0
        %4772 = vmatprep.subr.mxu0 0.0
        %4773 = vmatpush1.msra.mxu0 0.0
        %4774 = vmatprep.subr.mxu0 0.0
        %4775 = vmatpush1.msra.mxu0 0.0
        %4776 = vmatprep.subr.mxu0 0.0
        %4777 = vmatpush1.msra.mxu0 0.0
        %4778 = vmatprep.subr.mxu0 0.0
        %4779 = vmatpush1.msra.mxu0 0.0
        %4780 = vmatprep.subr.mxu0 0.0
        %4781 = vmatpush1.msra.mxu0 0.0
        %4782 = vmatprep.subr.mxu0 0.0
        %4783 = vmatpush1.msra.mxu0 0.0
        %4784 = vmatprep.subr.mxu0 0.0
        %4785 = vmatpush1.msra.mxu0 0.0
        %4786 = vmatprep.subr.mxu0 0.0
        %4787 = vmatpush1.msra.mxu0 0.0
        %4788 = vmatprep.subr.mxu0 0.0
        %4789 = vmatpush1.msra.mxu0 0.0
        %4790 = vmatprep.subr.mxu0 0.0
        %4791 = vmatpush1.msra.mxu0 0.0
        %4792 = vmatprep.subr.mxu0 0.0
        %4793 = vmatpush1.msra.mxu0 0.0
        %4794 = vmatprep.subr.mxu0 0.0
        %4795 = vmatpush1.msra.mxu0 0.0
        %4796 = vmatprep.subr.mxu0 0.0
        %4797 = vmatpush1.msra.mxu0 0.0
        %4798 = vmatprep.subr.mxu0 0.0
        %4799 = vmatpush1.msra.mxu0 %v4766
        %4800 = vmatprep.subr.mxu0 0.0
        %4801 = vmatpush2.msra.mxu0 0.0
        %4802 = vmatprep.subr.mxu0 0.0
        %4803 = vmatpush2.msra.mxu0 0.0
        %4804 = vmatprep.subr.mxu0 0.0
        %4805 = vmatpush2.msra.mxu0 0.0
        %4806 = vmatprep.subr.mxu0 0.0
        %4807 = vmatpush2.msra.mxu0 0.0
        %4808 = vmatprep.subr.mxu0 0.0
        %4809 = vmatpush2.msra.mxu0 0.0
        %4810 = vmatprep.subr.mxu0 0.0
        %4811 = vmatpush2.msra.mxu0 0.0
        %4812 = vmatprep.subr.mxu0 0.0
        %4813 = vmatpush2.msra.mxu0 0.0
        %4814 = vmatprep.subr.mxu0 0.0
        %4815 = vmatpush2.msra.mxu0 0.0
        %4816 = vmatprep.subr.mxu0 0.0
        %4817 = vmatpush2.msra.mxu0 0.0
        %4818 = vmatprep.subr.mxu0 0.0
        %4819 = vmatpush2.msra.mxu0 0.0
        %4820 = vmatprep.subr.mxu0 0.0
        %4821 = vmatpush2.msra.mxu0 0.0
        %4822 = vmatprep.subr.mxu0 0.0
        %4823 = vmatpush2.msra.mxu0 0.0
        %4824 = vmatprep.subr.mxu0 0.0
        %4825 = vmatpush2.msra.mxu0 0.0
        %4826 = vmatprep.subr.mxu0 0.0
        %4827 = vmatpush2.msra.mxu0 0.0
        %4828 = vmatprep.subr.mxu0 0.0
        %4829 = vmatpush2.msra.mxu0 0.0
        %4830 = vmatprep.subr.mxu0 0.0
        %4831 = vmatpush2.msra.mxu0 0.0
        %4832 = vmatprep.mubr.f32.mxu0 0.0
        %4833 = vmatmul.mubr.f32.gmra.mxu0 %v4764
        %v4834 = vpop.f32.mrf.mxu0
        %v4835 = vadd.f32 0.0, %v4834
        %v4836 = vpop.f32.mrf.mxu0
        %4837 = vdwg.mxu0
        %4838 = vrot.lane.b32.xlu0 %v1439, 48
        %v4839 = vpop.permute.xlu0 %4838
        %v4841 = vsel %vm1781, %v4450, 0
        %v4843 = vsel %vm1785, %v4839, 0
        %4845 = vmatprep.subr.mxu0 0.0
        %4846 = vmatpush1.msra.mxu0 0.0
        %4847 = vmatprep.subr.mxu0 0.0
        %4848 = vmatpush1.msra.mxu0 0.0
        %4849 = vmatprep.subr.mxu0 0.0
        %4850 = vmatpush1.msra.mxu0 0.0
        %4851 = vmatprep.subr.mxu0 0.0
        %4852 = vmatpush1.msra.mxu0 0.0
        %4853 = vmatprep.subr.mxu0 0.0
        %4854 = vmatpush1.msra.mxu0 0.0
        %4855 = vmatprep.subr.mxu0 0.0
        %4856 = vmatpush1.msra.mxu0 0.0
        %4857 = vmatprep.subr.mxu0 0.0
        %4858 = vmatpush1.msra.mxu0 0.0
        %4859 = vmatprep.subr.mxu0 0.0
        %4860 = vmatpush1.msra.mxu0 0.0
        %4861 = vmatprep.subr.mxu0 0.0
        %4862 = vmatpush1.msra.mxu0 0.0
        %4863 = vmatprep.subr.mxu0 0.0
        %4864 = vmatpush1.msra.mxu0 0.0
        %4865 = vmatprep.subr.mxu0 0.0
        %4866 = vmatpush1.msra.mxu0 0.0
        %4867 = vmatprep.subr.mxu0 0.0
        %4868 = vmatpush1.msra.mxu0 0.0
        %4869 = vmatprep.subr.mxu0 0.0
        %4870 = vmatpush1.msra.mxu0 0.0
        %4871 = vmatprep.subr.mxu0 0.0
        %4872 = vmatpush1.msra.mxu0 0.0
        %4873 = vmatprep.subr.mxu0 0.0
        %4874 = vmatpush1.msra.mxu0 0.0
        %4875 = vmatprep.subr.mxu0 0.0
        %4876 = vmatpush1.msra.mxu0 %v4843
        %4877 = vmatprep.subr.mxu0 0.0
        %4878 = vmatpush2.msra.mxu0 0.0
        %4879 = vmatprep.subr.mxu0 0.0
        %4880 = vmatpush2.msra.mxu0 0.0
        %4881 = vmatprep.subr.mxu0 0.0
        %4882 = vmatpush2.msra.mxu0 0.0
        %4883 = vmatprep.subr.mxu0 0.0
        %4884 = vmatpush2.msra.mxu0 0.0
        %4885 = vmatprep.subr.mxu0 0.0
        %4886 = vmatpush2.msra.mxu0 0.0
        %4887 = vmatprep.subr.mxu0 0.0
        %4888 = vmatpush2.msra.mxu0 0.0
        %4889 = vmatprep.subr.mxu0 0.0
        %4890 = vmatpush2.msra.mxu0 0.0
        %4891 = vmatprep.subr.mxu0 0.0
        %4892 = vmatpush2.msra.mxu0 0.0
        %4893 = vmatprep.subr.mxu0 0.0
        %4894 = vmatpush2.msra.mxu0 0.0
        %4895 = vmatprep.subr.mxu0 0.0
        %4896 = vmatpush2.msra.mxu0 0.0
        %4897 = vmatprep.subr.mxu0 0.0
        %4898 = vmatpush2.msra.mxu0 0.0
        %4899 = vmatprep.subr.mxu0 0.0
        %4900 = vmatpush2.msra.mxu0 0.0
        %4901 = vmatprep.subr.mxu0 0.0
        %4902 = vmatpush2.msra.mxu0 0.0
        %4903 = vmatprep.subr.mxu0 0.0
        %4904 = vmatpush2.msra.mxu0 0.0
        %4905 = vmatprep.subr.mxu0 0.0
        %4906 = vmatpush2.msra.mxu0 0.0
        %4907 = vmatprep.subr.mxu0 0.0
        %4908 = vmatpush2.msra.mxu0 0.0
        %4909 = vmatprep.mubr.f32.mxu0 0.0
        %4910 = vmatmul.mubr.f32.gmra.mxu0 %v4841
        %v4911 = vpop.f32.mrf.mxu0
        %v4912 = vadd.f32 0.0, %v4911
        %v4913 = vpop.f32.mrf.mxu0
        %4914 = vdwg.mxu0
        %4915 = vrot.lane.b32.xlu0 %v1522, 48
        %v4916 = vpop.permute.xlu0 %4915
        %v4918 = vsel %vm1781, %v4451, 0
        %v4920 = vsel %vm1785, %v4916, 0
        %4922 = vmatprep.subr.mxu0 0.0
        %4923 = vmatpush1.msra.mxu0 0.0
        %4924 = vmatprep.subr.mxu0 0.0
        %4925 = vmatpush1.msra.mxu0 0.0
        %4926 = vmatprep.subr.mxu0 0.0
        %4927 = vmatpush1.msra.mxu0 0.0
        %4928 = vmatprep.subr.mxu0 0.0
        %4929 = vmatpush1.msra.mxu0 0.0
        %4930 = vmatprep.subr.mxu0 0.0
        %4931 = vmatpush1.msra.mxu0 0.0
        %4932 = vmatprep.subr.mxu0 0.0
        %4933 = vmatpush1.msra.mxu0 0.0
        %4934 = vmatprep.subr.mxu0 0.0
        %4935 = vmatpush1.msra.mxu0 0.0
        %4936 = vmatprep.subr.mxu0 0.0
        %4937 = vmatpush1.msra.mxu0 0.0
        %4938 = vmatprep.subr.mxu0 0.0
        %4939 = vmatpush1.msra.mxu0 0.0
        %4940 = vmatprep.subr.mxu0 0.0
        %4941 = vmatpush1.msra.mxu0 0.0
        %4942 = vmatprep.subr.mxu0 0.0
        %4943 = vmatpush1.msra.mxu0 0.0
        %4944 = vmatprep.subr.mxu0 0.0
        %4945 = vmatpush1.msra.mxu0 0.0
        %4946 = vmatprep.subr.mxu0 0.0
        %4947 = vmatpush1.msra.mxu0 0.0
        %4948 = vmatprep.subr.mxu0 0.0
        %4949 = vmatpush1.msra.mxu0 0.0
        %4950 = vmatprep.subr.mxu0 0.0
        %4951 = vmatpush1.msra.mxu0 0.0
        %4952 = vmatprep.subr.mxu0 0.0
        %4953 = vmatpush1.msra.mxu0 %v4920
        %4954 = vmatprep.subr.mxu0 0.0
        %4955 = vmatpush2.msra.mxu0 0.0
        %4956 = vmatprep.subr.mxu0 0.0
        %4957 = vmatpush2.msra.mxu0 0.0
        %4958 = vmatprep.subr.mxu0 0.0
        %4959 = vmatpush2.msra.mxu0 0.0
        %4960 = vmatprep.subr.mxu0 0.0
        %4961 = vmatpush2.msra.mxu0 0.0
        %4962 = vmatprep.subr.mxu0 0.0
        %4963 = vmatpush2.msra.mxu0 0.0
        %4964 = vmatprep.subr.mxu0 0.0
        %4965 = vmatpush2.msra.mxu0 0.0
        %4966 = vmatprep.subr.mxu0 0.0
        %4967 = vmatpush2.msra.mxu0 0.0
        %4968 = vmatprep.subr.mxu0 0.0
        %4969 = vmatpush2.msra.mxu0 0.0
        %4970 = vmatprep.subr.mxu0 0.0
        %4971 = vmatpush2.msra.mxu0 0.0
        %4972 = vmatprep.subr.mxu0 0.0
        %4973 = vmatpush2.msra.mxu0 0.0
        %4974 = vmatprep.subr.mxu0 0.0
        %4975 = vmatpush2.msra.mxu0 0.0
        %4976 = vmatprep.subr.mxu0 0.0
        %4977 = vmatpush2.msra.mxu0 0.0
        %4978 = vmatprep.subr.mxu0 0.0
        %4979 = vmatpush2.msra.mxu0 0.0
        %4980 = vmatprep.subr.mxu0 0.0
        %4981 = vmatpush2.msra.mxu0 0.0
        %4982 = vmatprep.subr.mxu0 0.0
        %4983 = vmatpush2.msra.mxu0 0.0
        %4984 = vmatprep.subr.mxu0 0.0
        %4985 = vmatpush2.msra.mxu0 0.0
        %4986 = vmatprep.mubr.f32.mxu0 0.0
        %4987 = vmatmul.mubr.f32.gmra.mxu0 %v4918
        %v4988 = vpop.f32.mrf.mxu0
        %v4989 = vadd.f32 0.0, %v4988
        %v4990 = vpop.f32.mrf.mxu0
        %4991 = vdwg.mxu0
        %4992 = vrot.lane.b32.xlu0 %v1605, 48
        %v4993 = vpop.permute.xlu0 %4992
        %v4995 = vsel %vm1781, %v4452, 0
        %v4997 = vsel %vm1785, %v4993, 0
        %4999 = vmatprep.subr.mxu0 0.0
        %5000 = vmatpush1.msra.mxu0 0.0
        %5001 = vmatprep.subr.mxu0 0.0
        %5002 = vmatpush1.msra.mxu0 0.0
        %5003 = vmatprep.subr.mxu0 0.0
        %5004 = vmatpush1.msra.mxu0 0.0
        %5005 = vmatprep.subr.mxu0 0.0
        %5006 = vmatpush1.msra.mxu0 0.0
        %5007 = vmatprep.subr.mxu0 0.0
        %5008 = vmatpush1.msra.mxu0 0.0
        %5009 = vmatprep.subr.mxu0 0.0
        %5010 = vmatpush1.msra.mxu0 0.0
        %5011 = vmatprep.subr.mxu0 0.0
        %5012 = vmatpush1.msra.mxu0 0.0
        %5013 = vmatprep.subr.mxu0 0.0
        %5014 = vmatpush1.msra.mxu0 0.0
        %5015 = vmatprep.subr.mxu0 0.0
        %5016 = vmatpush1.msra.mxu0 0.0
        %5017 = vmatprep.subr.mxu0 0.0
        %5018 = vmatpush1.msra.mxu0 0.0
        %5019 = vmatprep.subr.mxu0 0.0
        %5020 = vmatpush1.msra.mxu0 0.0
        %5021 = vmatprep.subr.mxu0 0.0
        %5022 = vmatpush1.msra.mxu0 0.0
        %5023 = vmatprep.subr.mxu0 0.0
        %5024 = vmatpush1.msra.mxu0 0.0
        %5025 = vmatprep.subr.mxu0 0.0
        %5026 = vmatpush1.msra.mxu0 0.0
        %5027 = vmatprep.subr.mxu0 0.0
        %5028 = vmatpush1.msra.mxu0 0.0
        %5029 = vmatprep.subr.mxu0 0.0
        %5030 = vmatpush1.msra.mxu0 %v4997
        %5031 = vmatprep.subr.mxu0 0.0
        %5032 = vmatpush2.msra.mxu0 0.0
        %5033 = vmatprep.subr.mxu0 0.0
        %5034 = vmatpush2.msra.mxu0 0.0
        %5035 = vmatprep.subr.mxu0 0.0
        %5036 = vmatpush2.msra.mxu0 0.0
        %5037 = vmatprep.subr.mxu0 0.0
        %5038 = vmatpush2.msra.mxu0 0.0
        %5039 = vmatprep.subr.mxu0 0.0
        %5040 = vmatpush2.msra.mxu0 0.0
        %5041 = vmatprep.subr.mxu0 0.0
        %5042 = vmatpush2.msra.mxu0 0.0
        %5043 = vmatprep.subr.mxu0 0.0
        %5044 = vmatpush2.msra.mxu0 0.0
        %5045 = vmatprep.subr.mxu0 0.0
        %5046 = vmatpush2.msra.mxu0 0.0
        %5047 = vmatprep.subr.mxu0 0.0
        %5048 = vmatpush2.msra.mxu0 0.0
        %5049 = vmatprep.subr.mxu0 0.0
        %5050 = vmatpush2.msra.mxu0 0.0
        %5051 = vmatprep.subr.mxu0 0.0
        %5052 = vmatpush2.msra.mxu0 0.0
        %5053 = vmatprep.subr.mxu0 0.0
        %5054 = vmatpush2.msra.mxu0 0.0
        %5055 = vmatprep.subr.mxu0 0.0
        %5056 = vmatpush2.msra.mxu0 0.0
        %5057 = vmatprep.subr.mxu0 0.0
        %5058 = vmatpush2.msra.mxu0 0.0
        %5059 = vmatprep.subr.mxu0 0.0
        %5060 = vmatpush2.msra.mxu0 0.0
        %5061 = vmatprep.subr.mxu0 0.0
        %5062 = vmatpush2.msra.mxu0 0.0
        %5063 = vmatprep.mubr.f32.mxu0 0.0
        %5064 = vmatmul.mubr.f32.gmra.mxu0 %v4995
        %v5065 = vpop.f32.mrf.mxu0
        %v5066 = vadd.f32 0.0, %v5065
        %v5067 = vpop.f32.mrf.mxu0
        %5068 = vdwg.mxu0
        %5069 = vrot.lane.b32.xlu0 %v1023, 104
        %v5070 = vpop.permute.xlu0 %5069
        %5071 = vrot.lane.b32.xlu0 %v1023, 72
        %v5072 = vpop.permute.xlu0 %5071
        %v5073 = vsel %vm1026, %v5070, 0
        %v5075 = vsel %vm1026, %v5072, 0
        %5077 = vmatprep.subr.mxu0 0.0
        %5078 = vmatpush1.xpose.msra.mxu0 0.0
        %5079 = vmatprep.subr.mxu0 0.0
        %5080 = vmatpush1.xpose.msra.mxu0 0.0
        %5081 = vmatprep.subr.mxu0 0.0
        %5082 = vmatpush1.xpose.msra.mxu0 0.0
        %5083 = vmatprep.subr.mxu0 0.0
        %5084 = vmatpush1.xpose.msra.mxu0 0.0
        %5085 = vmatprep.subr.mxu0 0.0
        %5086 = vmatpush1.xpose.msra.mxu0 0.0
        %5087 = vmatprep.subr.mxu0 0.0
        %5088 = vmatpush1.xpose.msra.mxu0 0.0
        %5089 = vmatprep.subr.mxu0 0.0
        %5090 = vmatpush1.xpose.msra.mxu0 0.0
        %5091 = vmatprep.subr.mxu0 0.0
        %5092 = vmatpush1.xpose.msra.mxu0 0.0
        %5093 = vmatprep.subr.mxu0 0.0
        %5094 = vmatpush1.xpose.msra.mxu0 0.0
        %5095 = vmatprep.subr.mxu0 0.0
        %5096 = vmatpush1.xpose.msra.mxu0 0.0
        %5097 = vmatprep.subr.mxu0 0.0
        %5098 = vmatpush1.xpose.msra.mxu0 0.0
        %5099 = vmatprep.subr.mxu0 0.0
        %5100 = vmatpush1.xpose.msra.mxu0 0.0
        %5101 = vmatprep.subr.mxu0 0.0
        %5102 = vmatpush1.xpose.msra.mxu0 0.0
        %5103 = vmatprep.subr.mxu0 0.0
        %5104 = vmatpush1.xpose.msra.mxu0 0.0
        %5105 = vmatprep.subr.mxu0 0.0
        %5106 = vmatpush1.xpose.msra.mxu0 0.0
        %5107 = vmatprep.subr.mxu0 0.0
        %5108 = vmatpush1.xpose.msra.mxu0 %v5075
        %5109 = vmatprep.subr.mxu0 0.0
        %5110 = vmatpush2.xpose.msra.mxu0 0.0
        %5111 = vmatprep.subr.mxu0 0.0
        %5112 = vmatpush2.xpose.msra.mxu0 0.0
        %5113 = vmatprep.subr.mxu0 0.0
        %5114 = vmatpush2.xpose.msra.mxu0 0.0
        %5115 = vmatprep.subr.mxu0 0.0
        %5116 = vmatpush2.xpose.msra.mxu0 0.0
        %5117 = vmatprep.subr.mxu0 0.0
        %5118 = vmatpush2.xpose.msra.mxu0 0.0
        %5119 = vmatprep.subr.mxu0 0.0
        %5120 = vmatpush2.xpose.msra.mxu0 0.0
        %5121 = vmatprep.subr.mxu0 0.0
        %5122 = vmatpush2.xpose.msra.mxu0 0.0
        %5123 = vmatprep.subr.mxu0 0.0
        %5124 = vmatpush2.xpose.msra.mxu0 0.0
        %5125 = vmatprep.subr.mxu0 0.0
        %5126 = vmatpush2.xpose.msra.mxu0 0.0
        %5127 = vmatprep.subr.mxu0 0.0
        %5128 = vmatpush2.xpose.msra.mxu0 0.0
        %5129 = vmatprep.subr.mxu0 0.0
        %5130 = vmatpush2.xpose.msra.mxu0 0.0
        %5131 = vmatprep.subr.mxu0 0.0
        %5132 = vmatpush2.xpose.msra.mxu0 0.0
        %5133 = vmatprep.subr.mxu0 0.0
        %5134 = vmatpush2.xpose.msra.mxu0 0.0
        %5135 = vmatprep.subr.mxu0 0.0
        %5136 = vmatpush2.xpose.msra.mxu0 0.0
        %5137 = vmatprep.subr.mxu0 0.0
        %5138 = vmatpush2.xpose.msra.mxu0 0.0
        %5139 = vmatprep.subr.mxu0 0.0
        %5140 = vmatpush2.xpose.msra.mxu0 0.0
        %5141 = vmatprep.mubr.f32.mxu0 0.0
        %5142 = vmatmul.mubr.f32.gmra.mxu0 %v5073
        %v5143 = vpop.f32.mrf.mxu0
        %v5144 = vadd.f32 0.0, %v5143
        %v5145 = vpop.f32.mrf.mxu0
        %5146 = vdwg.mxu0
        %5147 = vrot.lane.b32.xlu0 %v1107, 104
        %v5148 = vpop.permute.xlu0 %5147
        %5149 = vrot.lane.b32.xlu0 %v1107, 72
        %v5150 = vpop.permute.xlu0 %5149
        %v5151 = vsel %vm1026, %v5148, 0
        %v5153 = vsel %vm1026, %v5150, 0
        %5155 = vmatprep.subr.mxu0 0.0
        %5156 = vmatpush1.xpose.msra.mxu0 0.0
        %5157 = vmatprep.subr.mxu0 0.0
        %5158 = vmatpush1.xpose.msra.mxu0 0.0
        %5159 = vmatprep.subr.mxu0 0.0
        %5160 = vmatpush1.xpose.msra.mxu0 0.0
        %5161 = vmatprep.subr.mxu0 0.0
        %5162 = vmatpush1.xpose.msra.mxu0 0.0
        %5163 = vmatprep.subr.mxu0 0.0
        %5164 = vmatpush1.xpose.msra.mxu0 0.0
        %5165 = vmatprep.subr.mxu0 0.0
        %5166 = vmatpush1.xpose.msra.mxu0 0.0
        %5167 = vmatprep.subr.mxu0 0.0
        %5168 = vmatpush1.xpose.msra.mxu0 0.0
        %5169 = vmatprep.subr.mxu0 0.0
        %5170 = vmatpush1.xpose.msra.mxu0 0.0
        %5171 = vmatprep.subr.mxu0 0.0
        %5172 = vmatpush1.xpose.msra.mxu0 0.0
        %5173 = vmatprep.subr.mxu0 0.0
        %5174 = vmatpush1.xpose.msra.mxu0 0.0
        %5175 = vmatprep.subr.mxu0 0.0
        %5176 = vmatpush1.xpose.msra.mxu0 0.0
        %5177 = vmatprep.subr.mxu0 0.0
        %5178 = vmatpush1.xpose.msra.mxu0 0.0
        %5179 = vmatprep.subr.mxu0 0.0
        %5180 = vmatpush1.xpose.msra.mxu0 0.0
        %5181 = vmatprep.subr.mxu0 0.0
        %5182 = vmatpush1.xpose.msra.mxu0 0.0
        %5183 = vmatprep.subr.mxu0 0.0
        %5184 = vmatpush1.xpose.msra.mxu0 0.0
        %5185 = vmatprep.subr.mxu0 0.0
        %5186 = vmatpush1.xpose.msra.mxu0 %v5153
        %5187 = vmatprep.subr.mxu0 0.0
        %5188 = vmatpush2.xpose.msra.mxu0 0.0
        %5189 = vmatprep.subr.mxu0 0.0
        %5190 = vmatpush2.xpose.msra.mxu0 0.0
        %5191 = vmatprep.subr.mxu0 0.0
        %5192 = vmatpush2.xpose.msra.mxu0 0.0
        %5193 = vmatprep.subr.mxu0 0.0
        %5194 = vmatpush2.xpose.msra.mxu0 0.0
        %5195 = vmatprep.subr.mxu0 0.0
        %5196 = vmatpush2.xpose.msra.mxu0 0.0
        %5197 = vmatprep.subr.mxu0 0.0
        %5198 = vmatpush2.xpose.msra.mxu0 0.0
        %5199 = vmatprep.subr.mxu0 0.0
        %5200 = vmatpush2.xpose.msra.mxu0 0.0
        %5201 = vmatprep.subr.mxu0 0.0
        %5202 = vmatpush2.xpose.msra.mxu0 0.0
        %5203 = vmatprep.subr.mxu0 0.0
        %5204 = vmatpush2.xpose.msra.mxu0 0.0
        %5205 = vmatprep.subr.mxu0 0.0
        %5206 = vmatpush2.xpose.msra.mxu0 0.0
        %5207 = vmatprep.subr.mxu0 0.0
        %5208 = vmatpush2.xpose.msra.mxu0 0.0
        %5209 = vmatprep.subr.mxu0 0.0
        %5210 = vmatpush2.xpose.msra.mxu0 0.0
        %5211 = vmatprep.subr.mxu0 0.0
        %5212 = vmatpush2.xpose.msra.mxu0 0.0
        %5213 = vmatprep.subr.mxu0 0.0
        %5214 = vmatpush2.xpose.msra.mxu0 0.0
        %5215 = vmatprep.subr.mxu0 0.0
        %5216 = vmatpush2.xpose.msra.mxu0 0.0
        %5217 = vmatprep.subr.mxu0 0.0
        %5218 = vmatpush2.xpose.msra.mxu0 0.0
        %5219 = vmatprep.mubr.f32.mxu0 0.0
        %5220 = vmatmul.mubr.f32.gmra.mxu0 %v5151
        %v5221 = vpop.f32.mrf.mxu0
        %v5222 = vadd.f32 0.0, %v5221
        %v5223 = vpop.f32.mrf.mxu0
        %5224 = vdwg.mxu0
        %5225 = vrot.lane.b32.xlu0 %v1190, 104
        %v5226 = vpop.permute.xlu0 %5225
        %5227 = vrot.lane.b32.xlu0 %v1190, 72
        %v5228 = vpop.permute.xlu0 %5227
        %v5229 = vsel %vm1026, %v5226, 0
        %v5231 = vsel %vm1026, %v5228, 0
        %5233 = vmatprep.subr.mxu0 0.0
        %5234 = vmatpush1.xpose.msra.mxu0 0.0
        %5235 = vmatprep.subr.mxu0 0.0
        %5236 = vmatpush1.xpose.msra.mxu0 0.0
        %5237 = vmatprep.subr.mxu0 0.0
        %5238 = vmatpush1.xpose.msra.mxu0 0.0
        %5239 = vmatprep.subr.mxu0 0.0
        %5240 = vmatpush1.xpose.msra.mxu0 0.0
        %5241 = vmatprep.subr.mxu0 0.0
        %5242 = vmatpush1.xpose.msra.mxu0 0.0
        %5243 = vmatprep.subr.mxu0 0.0
        %5244 = vmatpush1.xpose.msra.mxu0 0.0
        %5245 = vmatprep.subr.mxu0 0.0
        %5246 = vmatpush1.xpose.msra.mxu0 0.0
        %5247 = vmatprep.subr.mxu0 0.0
        %5248 = vmatpush1.xpose.msra.mxu0 0.0
        %5249 = vmatprep.subr.mxu0 0.0
        %5250 = vmatpush1.xpose.msra.mxu0 0.0
        %5251 = vmatprep.subr.mxu0 0.0
        %5252 = vmatpush1.xpose.msra.mxu0 0.0
        %5253 = vmatprep.subr.mxu0 0.0
        %5254 = vmatpush1.xpose.msra.mxu0 0.0
        %5255 = vmatprep.subr.mxu0 0.0
        %5256 = vmatpush1.xpose.msra.mxu0 0.0
        %5257 = vmatprep.subr.mxu0 0.0
        %5258 = vmatpush1.xpose.msra.mxu0 0.0
        %5259 = vmatprep.subr.mxu0 0.0
        %5260 = vmatpush1.xpose.msra.mxu0 0.0
        %5261 = vmatprep.subr.mxu0 0.0
        %5262 = vmatpush1.xpose.msra.mxu0 0.0
        %5263 = vmatprep.subr.mxu0 0.0
        %5264 = vmatpush1.xpose.msra.mxu0 %v5231
        %5265 = vmatprep.subr.mxu0 0.0
        %5266 = vmatpush2.xpose.msra.mxu0 0.0
        %5267 = vmatprep.subr.mxu0 0.0
        %5268 = vmatpush2.xpose.msra.mxu0 0.0
        %5269 = vmatprep.subr.mxu0 0.0
        %5270 = vmatpush2.xpose.msra.mxu0 0.0
        %5271 = vmatprep.subr.mxu0 0.0
        %5272 = vmatpush2.xpose.msra.mxu0 0.0
        %5273 = vmatprep.subr.mxu0 0.0
        %5274 = vmatpush2.xpose.msra.mxu0 0.0
        %5275 = vmatprep.subr.mxu0 0.0
        %5276 = vmatpush2.xpose.msra.mxu0 0.0
        %5277 = vmatprep.subr.mxu0 0.0
        %5278 = vmatpush2.xpose.msra.mxu0 0.0
        %5279 = vmatprep.subr.mxu0 0.0
        %5280 = vmatpush2.xpose.msra.mxu0 0.0
        %5281 = vmatprep.subr.mxu0 0.0
        %5282 = vmatpush2.xpose.msra.mxu0 0.0
        %5283 = vmatprep.subr.mxu0 0.0
        %5284 = vmatpush2.xpose.msra.mxu0 0.0
        %5285 = vmatprep.subr.mxu0 0.0
        %5286 = vmatpush2.xpose.msra.mxu0 0.0
        %5287 = vmatprep.subr.mxu0 0.0
        %5288 = vmatpush2.xpose.msra.mxu0 0.0
        %5289 = vmatprep.subr.mxu0 0.0
        %5290 = vmatpush2.xpose.msra.mxu0 0.0
        %5291 = vmatprep.subr.mxu0 0.0
        %5292 = vmatpush2.xpose.msra.mxu0 0.0
        %5293 = vmatprep.subr.mxu0 0.0
        %5294 = vmatpush2.xpose.msra.mxu0 0.0
        %5295 = vmatprep.subr.mxu0 0.0
        %5296 = vmatpush2.xpose.msra.mxu0 0.0
        %5297 = vmatprep.mubr.f32.mxu0 0.0
        %5298 = vmatmul.mubr.f32.gmra.mxu0 %v5229
        %v5299 = vpop.f32.mrf.mxu0
        %v5300 = vadd.f32 0.0, %v5299
        %v5301 = vpop.f32.mrf.mxu0
        %5302 = vdwg.mxu0
        %5303 = vrot.lane.b32.xlu0 %v1273, 104
        %v5304 = vpop.permute.xlu0 %5303
        %5305 = vrot.lane.b32.xlu0 %v1273, 72
        %v5306 = vpop.permute.xlu0 %5305
        %v5307 = vsel %vm1026, %v5304, 0
        %v5309 = vsel %vm1026, %v5306, 0
        %5311 = vmatprep.subr.mxu0 0.0
        %5312 = vmatpush1.xpose.msra.mxu0 0.0
        %5313 = vmatprep.subr.mxu0 0.0
        %5314 = vmatpush1.xpose.msra.mxu0 0.0
        %5315 = vmatprep.subr.mxu0 0.0
        %5316 = vmatpush1.xpose.msra.mxu0 0.0
        %5317 = vmatprep.subr.mxu0 0.0
        %5318 = vmatpush1.xpose.msra.mxu0 0.0
        %5319 = vmatprep.subr.mxu0 0.0
        %5320 = vmatpush1.xpose.msra.mxu0 0.0
        %5321 = vmatprep.subr.mxu0 0.0
        %5322 = vmatpush1.xpose.msra.mxu0 0.0
        %5323 = vmatprep.subr.mxu0 0.0
        %5324 = vmatpush1.xpose.msra.mxu0 0.0
        %5325 = vmatprep.subr.mxu0 0.0
        %5326 = vmatpush1.xpose.msra.mxu0 0.0
        %5327 = vmatprep.subr.mxu0 0.0
        %5328 = vmatpush1.xpose.msra.mxu0 0.0
        %5329 = vmatprep.subr.mxu0 0.0
        %5330 = vmatpush1.xpose.msra.mxu0 0.0
        %5331 = vmatprep.subr.mxu0 0.0
        %5332 = vmatpush1.xpose.msra.mxu0 0.0
        %5333 = vmatprep.subr.mxu0 0.0
        %5334 = vmatpush1.xpose.msra.mxu0 0.0
        %5335 = vmatprep.subr.mxu0 0.0
        %5336 = vmatpush1.xpose.msra.mxu0 0.0
        %5337 = vmatprep.subr.mxu0 0.0
        %5338 = vmatpush1.xpose.msra.mxu0 0.0
        %5339 = vmatprep.subr.mxu0 0.0
        %5340 = vmatpush1.xpose.msra.mxu0 0.0
        %5341 = vmatprep.subr.mxu0 0.0
        %5342 = vmatpush1.xpose.msra.mxu0 %v5309
        %5343 = vmatprep.subr.mxu0 0.0
        %5344 = vmatpush2.xpose.msra.mxu0 0.0
        %5345 = vmatprep.subr.mxu0 0.0
        %5346 = vmatpush2.xpose.msra.mxu0 0.0
        %5347 = vmatprep.subr.mxu0 0.0
        %5348 = vmatpush2.xpose.msra.mxu0 0.0
        %5349 = vmatprep.subr.mxu0 0.0
        %5350 = vmatpush2.xpose.msra.mxu0 0.0
        %5351 = vmatprep.subr.mxu0 0.0
        %5352 = vmatpush2.xpose.msra.mxu0 0.0
        %5353 = vmatprep.subr.mxu0 0.0
        %5354 = vmatpush2.xpose.msra.mxu0 0.0
        %5355 = vmatprep.subr.mxu0 0.0
        %5356 = vmatpush2.xpose.msra.mxu0 0.0
        %5357 = vmatprep.subr.mxu0 0.0
        %5358 = vmatpush2.xpose.msra.mxu0 0.0
        %5359 = vmatprep.subr.mxu0 0.0
        %5360 = vmatpush2.xpose.msra.mxu0 0.0
        %5361 = vmatprep.subr.mxu0 0.0
        %5362 = vmatpush2.xpose.msra.mxu0 0.0
        %5363 = vmatprep.subr.mxu0 0.0
        %5364 = vmatpush2.xpose.msra.mxu0 0.0
        %5365 = vmatprep.subr.mxu0 0.0
        %5366 = vmatpush2.xpose.msra.mxu0 0.0
        %5367 = vmatprep.subr.mxu0 0.0
        %5368 = vmatpush2.xpose.msra.mxu0 0.0
        %5369 = vmatprep.subr.mxu0 0.0
        %5370 = vmatpush2.xpose.msra.mxu0 0.0
        %5371 = vmatprep.subr.mxu0 0.0
        %5372 = vmatpush2.xpose.msra.mxu0 0.0
        %5373 = vmatprep.subr.mxu0 0.0
        %5374 = vmatpush2.xpose.msra.mxu0 0.0
        %5375 = vmatprep.mubr.f32.mxu0 0.0
        %5376 = vmatmul.mubr.f32.gmra.mxu0 %v5307
        %v5377 = vpop.f32.mrf.mxu0
        %v5378 = vadd.f32 0.0, %v5377
        %v5379 = vpop.f32.mrf.mxu0
        %5380 = vdwg.mxu0
        %5381 = vrot.lane.b32.xlu0 %v1356, 104
        %v5382 = vpop.permute.xlu0 %5381
        %5383 = vrot.lane.b32.xlu0 %v1356, 72
        %v5384 = vpop.permute.xlu0 %5383
        %v5385 = vsel %vm1026, %v5382, 0
        %v5387 = vsel %vm1026, %v5384, 0
        %5389 = vmatprep.subr.mxu0 0.0
        %5390 = vmatpush1.xpose.msra.mxu0 0.0
        %5391 = vmatprep.subr.mxu0 0.0
        %5392 = vmatpush1.xpose.msra.mxu0 0.0
        %5393 = vmatprep.subr.mxu0 0.0
        %5394 = vmatpush1.xpose.msra.mxu0 0.0
        %5395 = vmatprep.subr.mxu0 0.0
        %5396 = vmatpush1.xpose.msra.mxu0 0.0
        %5397 = vmatprep.subr.mxu0 0.0
        %5398 = vmatpush1.xpose.msra.mxu0 0.0
        %5399 = vmatprep.subr.mxu0 0.0
        %5400 = vmatpush1.xpose.msra.mxu0 0.0
        %5401 = vmatprep.subr.mxu0 0.0
        %5402 = vmatpush1.xpose.msra.mxu0 0.0
        %5403 = vmatprep.subr.mxu0 0.0
        %5404 = vmatpush1.xpose.msra.mxu0 0.0
        %5405 = vmatprep.subr.mxu0 0.0
        %5406 = vmatpush1.xpose.msra.mxu0 0.0
        %5407 = vmatprep.subr.mxu0 0.0
        %5408 = vmatpush1.xpose.msra.mxu0 0.0
        %5409 = vmatprep.subr.mxu0 0.0
        %5410 = vmatpush1.xpose.msra.mxu0 0.0
        %5411 = vmatprep.subr.mxu0 0.0
        %5412 = vmatpush1.xpose.msra.mxu0 0.0
        %5413 = vmatprep.subr.mxu0 0.0
        %5414 = vmatpush1.xpose.msra.mxu0 0.0
        %5415 = vmatprep.subr.mxu0 0.0
        %5416 = vmatpush1.xpose.msra.mxu0 0.0
        %5417 = vmatprep.subr.mxu0 0.0
        %5418 = vmatpush1.xpose.msra.mxu0 0.0
        %5419 = vmatprep.subr.mxu0 0.0
        %5420 = vmatpush1.xpose.msra.mxu0 %v5387
        %5421 = vmatprep.subr.mxu0 0.0
        %5422 = vmatpush2.xpose.msra.mxu0 0.0
        %5423 = vmatprep.subr.mxu0 0.0
        %5424 = vmatpush2.xpose.msra.mxu0 0.0
        %5425 = vmatprep.subr.mxu0 0.0
        %5426 = vmatpush2.xpose.msra.mxu0 0.0
        %5427 = vmatprep.subr.mxu0 0.0
        %5428 = vmatpush2.xpose.msra.mxu0 0.0
        %5429 = vmatprep.subr.mxu0 0.0
        %5430 = vmatpush2.xpose.msra.mxu0 0.0
        %5431 = vmatprep.subr.mxu0 0.0
        %5432 = vmatpush2.xpose.msra.mxu0 0.0
        %5433 = vmatprep.subr.mxu0 0.0
        %5434 = vmatpush2.xpose.msra.mxu0 0.0
        %5435 = vmatprep.subr.mxu0 0.0
        %5436 = vmatpush2.xpose.msra.mxu0 0.0
        %5437 = vmatprep.subr.mxu0 0.0
        %5438 = vmatpush2.xpose.msra.mxu0 0.0
        %5439 = vmatprep.subr.mxu0 0.0
        %5440 = vmatpush2.xpose.msra.mxu0 0.0
        %5441 = vmatprep.subr.mxu0 0.0
        %5442 = vmatpush2.xpose.msra.mxu0 0.0
        %5443 = vmatprep.subr.mxu0 0.0
        %5444 = vmatpush2.xpose.msra.mxu0 0.0
        %5445 = vmatprep.subr.mxu0 0.0
        %5446 = vmatpush2.xpose.msra.mxu0 0.0
        %5447 = vmatprep.subr.mxu0 0.0
        %5448 = vmatpush2.xpose.msra.mxu0 0.0
        %5449 = vmatprep.subr.mxu0 0.0
        %5450 = vmatpush2.xpose.msra.mxu0 0.0
        %5451 = vmatprep.subr.mxu0 0.0
        %5452 = vmatpush2.xpose.msra.mxu0 0.0
        %5453 = vmatprep.mubr.f32.mxu0 0.0
        %5454 = vmatmul.mubr.f32.gmra.mxu0 %v5385
        %v5455 = vpop.f32.mrf.mxu0
        %v5456 = vadd.f32 0.0, %v5455
        %v5457 = vpop.f32.mrf.mxu0
        %5458 = vdwg.mxu0
        %5459 = vrot.lane.b32.xlu0 %v1439, 104
        %v5460 = vpop.permute.xlu0 %5459
        %5461 = vrot.lane.b32.xlu0 %v1439, 72
        %v5462 = vpop.permute.xlu0 %5461
        %v5463 = vsel %vm1026, %v5460, 0
        %v5465 = vsel %vm1026, %v5462, 0
        %5467 = vmatprep.subr.mxu0 0.0
        %5468 = vmatpush1.xpose.msra.mxu0 0.0
        %5469 = vmatprep.subr.mxu0 0.0
        %5470 = vmatpush1.xpose.msra.mxu0 0.0
        %5471 = vmatprep.subr.mxu0 0.0
        %5472 = vmatpush1.xpose.msra.mxu0 0.0
        %5473 = vmatprep.subr.mxu0 0.0
        %5474 = vmatpush1.xpose.msra.mxu0 0.0
        %5475 = vmatprep.subr.mxu0 0.0
        %5476 = vmatpush1.xpose.msra.mxu0 0.0
        %5477 = vmatprep.subr.mxu0 0.0
        %5478 = vmatpush1.xpose.msra.mxu0 0.0
        %5479 = vmatprep.subr.mxu0 0.0
        %5480 = vmatpush1.xpose.msra.mxu0 0.0
        %5481 = vmatprep.subr.mxu0 0.0
        %5482 = vmatpush1.xpose.msra.mxu0 0.0
        %5483 = vmatprep.subr.mxu0 0.0
        %5484 = vmatpush1.xpose.msra.mxu0 0.0
        %5485 = vmatprep.subr.mxu0 0.0
        %5486 = vmatpush1.xpose.msra.mxu0 0.0
        %5487 = vmatprep.subr.mxu0 0.0
        %5488 = vmatpush1.xpose.msra.mxu0 0.0
        %5489 = vmatprep.subr.mxu0 0.0
        %5490 = vmatpush1.xpose.msra.mxu0 0.0
        %5491 = vmatprep.subr.mxu0 0.0
        %5492 = vmatpush1.xpose.msra.mxu0 0.0
        %5493 = vmatprep.subr.mxu0 0.0
        %5494 = vmatpush1.xpose.msra.mxu0 0.0
        %5495 = vmatprep.subr.mxu0 0.0
        %5496 = vmatpush1.xpose.msra.mxu0 0.0
        %5497 = vmatprep.subr.mxu0 0.0
        %5498 = vmatpush1.xpose.msra.mxu0 %v5465
        %5499 = vmatprep.subr.mxu0 0.0
        %5500 = vmatpush2.xpose.msra.mxu0 0.0
        %5501 = vmatprep.subr.mxu0 0.0
        %5502 = vmatpush2.xpose.msra.mxu0 0.0
        %5503 = vmatprep.subr.mxu0 0.0
        %5504 = vmatpush2.xpose.msra.mxu0 0.0
        %5505 = vmatprep.subr.mxu0 0.0
        %5506 = vmatpush2.xpose.msra.mxu0 0.0
        %5507 = vmatprep.subr.mxu0 0.0
        %5508 = vmatpush2.xpose.msra.mxu0 0.0
        %5509 = vmatprep.subr.mxu0 0.0
        %5510 = vmatpush2.xpose.msra.mxu0 0.0
        %5511 = vmatprep.subr.mxu0 0.0
        %5512 = vmatpush2.xpose.msra.mxu0 0.0
        %5513 = vmatprep.subr.mxu0 0.0
        %5514 = vmatpush2.xpose.msra.mxu0 0.0
        %5515 = vmatprep.subr.mxu0 0.0
        %5516 = vmatpush2.xpose.msra.mxu0 0.0
        %5517 = vmatprep.subr.mxu0 0.0
        %5518 = vmatpush2.xpose.msra.mxu0 0.0
        %5519 = vmatprep.subr.mxu0 0.0
        %5520 = vmatpush2.xpose.msra.mxu0 0.0
        %5521 = vmatprep.subr.mxu0 0.0
        %5522 = vmatpush2.xpose.msra.mxu0 0.0
        %5523 = vmatprep.subr.mxu0 0.0
        %5524 = vmatpush2.xpose.msra.mxu0 0.0
        %5525 = vmatprep.subr.mxu0 0.0
        %5526 = vmatpush2.xpose.msra.mxu0 0.0
        %5527 = vmatprep.subr.mxu0 0.0
        %5528 = vmatpush2.xpose.msra.mxu0 0.0
        %5529 = vmatprep.subr.mxu0 0.0
        %5530 = vmatpush2.xpose.msra.mxu0 0.0
        %5531 = vmatprep.mubr.f32.mxu0 0.0
        %5532 = vmatmul.mubr.f32.gmra.mxu0 %v5463
        %v5533 = vpop.f32.mrf.mxu0
        %v5534 = vadd.f32 0.0, %v5533
        %v5535 = vpop.f32.mrf.mxu0
        %5536 = vdwg.mxu0
        %5537 = vrot.lane.b32.xlu0 %v1522, 104
        %v5538 = vpop.permute.xlu0 %5537
        %5539 = vrot.lane.b32.xlu0 %v1522, 72
        %v5540 = vpop.permute.xlu0 %5539
        %v5541 = vsel %vm1026, %v5538, 0
        %v5543 = vsel %vm1026, %v5540, 0
        %5545 = vmatprep.subr.mxu0 0.0
        %5546 = vmatpush1.xpose.msra.mxu0 0.0
        %5547 = vmatprep.subr.mxu0 0.0
        %5548 = vmatpush1.xpose.msra.mxu0 0.0
        %5549 = vmatprep.subr.mxu0 0.0
        %5550 = vmatpush1.xpose.msra.mxu0 0.0
        %5551 = vmatprep.subr.mxu0 0.0
        %5552 = vmatpush1.xpose.msra.mxu0 0.0
        %5553 = vmatprep.subr.mxu0 0.0
        %5554 = vmatpush1.xpose.msra.mxu0 0.0
        %5555 = vmatprep.subr.mxu0 0.0
        %5556 = vmatpush1.xpose.msra.mxu0 0.0
        %5557 = vmatprep.subr.mxu0 0.0
        %5558 = vmatpush1.xpose.msra.mxu0 0.0
        %5559 = vmatprep.subr.mxu0 0.0
        %5560 = vmatpush1.xpose.msra.mxu0 0.0
        %5561 = vmatprep.subr.mxu0 0.0
        %5562 = vmatpush1.xpose.msra.mxu0 0.0
        %5563 = vmatprep.subr.mxu0 0.0
        %5564 = vmatpush1.xpose.msra.mxu0 0.0
        %5565 = vmatprep.subr.mxu0 0.0
        %5566 = vmatpush1.xpose.msra.mxu0 0.0
        %5567 = vmatprep.subr.mxu0 0.0
        %5568 = vmatpush1.xpose.msra.mxu0 0.0
        %5569 = vmatprep.subr.mxu0 0.0
        %5570 = vmatpush1.xpose.msra.mxu0 0.0
        %5571 = vmatprep.subr.mxu0 0.0
        %5572 = vmatpush1.xpose.msra.mxu0 0.0
        %5573 = vmatprep.subr.mxu0 0.0
        %5574 = vmatpush1.xpose.msra.mxu0 0.0
        %5575 = vmatprep.subr.mxu0 0.0
        %5576 = vmatpush1.xpose.msra.mxu0 %v5543
        %5577 = vmatprep.subr.mxu0 0.0
        %5578 = vmatpush2.xpose.msra.mxu0 0.0
        %5579 = vmatprep.subr.mxu0 0.0
        %5580 = vmatpush2.xpose.msra.mxu0 0.0
        %5581 = vmatprep.subr.mxu0 0.0
        %5582 = vmatpush2.xpose.msra.mxu0 0.0
        %5583 = vmatprep.subr.mxu0 0.0
        %5584 = vmatpush2.xpose.msra.mxu0 0.0
        %5585 = vmatprep.subr.mxu0 0.0
        %5586 = vmatpush2.xpose.msra.mxu0 0.0
        %5587 = vmatprep.subr.mxu0 0.0
        %5588 = vmatpush2.xpose.msra.mxu0 0.0
        %5589 = vmatprep.subr.mxu0 0.0
        %5590 = vmatpush2.xpose.msra.mxu0 0.0
        %5591 = vmatprep.subr.mxu0 0.0
        %5592 = vmatpush2.xpose.msra.mxu0 0.0
        %5593 = vmatprep.subr.mxu0 0.0
        %5594 = vmatpush2.xpose.msra.mxu0 0.0
        %5595 = vmatprep.subr.mxu0 0.0
        %5596 = vmatpush2.xpose.msra.mxu0 0.0
        %5597 = vmatprep.subr.mxu0 0.0
        %5598 = vmatpush2.xpose.msra.mxu0 0.0
        %5599 = vmatprep.subr.mxu0 0.0
        %5600 = vmatpush2.xpose.msra.mxu0 0.0
        %5601 = vmatprep.subr.mxu0 0.0
        %5602 = vmatpush2.xpose.msra.mxu0 0.0
        %5603 = vmatprep.subr.mxu0 0.0
        %5604 = vmatpush2.xpose.msra.mxu0 0.0
        %5605 = vmatprep.subr.mxu0 0.0
        %5606 = vmatpush2.xpose.msra.mxu0 0.0
        %5607 = vmatprep.subr.mxu0 0.0
        %5608 = vmatpush2.xpose.msra.mxu0 0.0
        %5609 = vmatprep.mubr.f32.mxu0 0.0
        %5610 = vmatmul.mubr.f32.gmra.mxu0 %v5541
        %v5611 = vpop.f32.mrf.mxu0
        %v5612 = vadd.f32 0.0, %v5611
        %v5613 = vpop.f32.mrf.mxu0
        %5614 = vdwg.mxu0
        %5615 = vrot.lane.b32.xlu0 %v1605, 104
        %v5616 = vpop.permute.xlu0 %5615
        %5617 = vrot.lane.b32.xlu0 %v1605, 72
        %v5618 = vpop.permute.xlu0 %5617
        %v5619 = vsel %vm1026, %v5616, 0
        %v5621 = vsel %vm1026, %v5618, 0
        %5623 = vmatprep.subr.mxu0 0.0
        %5624 = vmatpush1.xpose.msra.mxu0 0.0
        %5625 = vmatprep.subr.mxu0 0.0
        %5626 = vmatpush1.xpose.msra.mxu0 0.0
        %5627 = vmatprep.subr.mxu0 0.0
        %5628 = vmatpush1.xpose.msra.mxu0 0.0
        %5629 = vmatprep.subr.mxu0 0.0
        %5630 = vmatpush1.xpose.msra.mxu0 0.0
        %5631 = vmatprep.subr.mxu0 0.0
        %5632 = vmatpush1.xpose.msra.mxu0 0.0
        %5633 = vmatprep.subr.mxu0 0.0
        %5634 = vmatpush1.xpose.msra.mxu0 0.0
        %5635 = vmatprep.subr.mxu0 0.0
        %5636 = vmatpush1.xpose.msra.mxu0 0.0
        %5637 = vmatprep.subr.mxu0 0.0
        %5638 = vmatpush1.xpose.msra.mxu0 0.0
        %5639 = vmatprep.subr.mxu0 0.0
        %5640 = vmatpush1.xpose.msra.mxu0 0.0
        %5641 = vmatprep.subr.mxu0 0.0
        %5642 = vmatpush1.xpose.msra.mxu0 0.0
        %5643 = vmatprep.subr.mxu0 0.0
        %5644 = vmatpush1.xpose.msra.mxu0 0.0
        %5645 = vmatprep.subr.mxu0 0.0
        %5646 = vmatpush1.xpose.msra.mxu0 0.0
        %5647 = vmatprep.subr.mxu0 0.0
        %5648 = vmatpush1.xpose.msra.mxu0 0.0
        %5649 = vmatprep.subr.mxu0 0.0
        %5650 = vmatpush1.xpose.msra.mxu0 0.0
        %5651 = vmatprep.subr.mxu0 0.0
        %5652 = vmatpush1.xpose.msra.mxu0 0.0
        %5653 = vmatprep.subr.mxu0 0.0
        %5654 = vmatpush1.xpose.msra.mxu0 %v5621
        %5655 = vmatprep.subr.mxu0 0.0
        %5656 = vmatpush2.xpose.msra.mxu0 0.0
        %5657 = vmatprep.subr.mxu0 0.0
        %5658 = vmatpush2.xpose.msra.mxu0 0.0
        %5659 = vmatprep.subr.mxu0 0.0
        %5660 = vmatpush2.xpose.msra.mxu0 0.0
        %5661 = vmatprep.subr.mxu0 0.0
        %5662 = vmatpush2.xpose.msra.mxu0 0.0
        %5663 = vmatprep.subr.mxu0 0.0
        %5664 = vmatpush2.xpose.msra.mxu0 0.0
        %5665 = vmatprep.subr.mxu0 0.0
        %5666 = vmatpush2.xpose.msra.mxu0 0.0
        %5667 = vmatprep.subr.mxu0 0.0
        %5668 = vmatpush2.xpose.msra.mxu0 0.0
        %5669 = vmatprep.subr.mxu0 0.0
        %5670 = vmatpush2.xpose.msra.mxu0 0.0
        %5671 = vmatprep.subr.mxu0 0.0
        %5672 = vmatpush2.xpose.msra.mxu0 0.0
        %5673 = vmatprep.subr.mxu0 0.0
        %5674 = vmatpush2.xpose.msra.mxu0 0.0
        %5675 = vmatprep.subr.mxu0 0.0
        %5676 = vmatpush2.xpose.msra.mxu0 0.0
        %5677 = vmatprep.subr.mxu0 0.0
        %5678 = vmatpush2.xpose.msra.mxu0 0.0
        %5679 = vmatprep.subr.mxu0 0.0
        %5680 = vmatpush2.xpose.msra.mxu0 0.0
        %5681 = vmatprep.subr.mxu0 0.0
        %5682 = vmatpush2.xpose.msra.mxu0 0.0
        %5683 = vmatprep.subr.mxu0 0.0
        %5684 = vmatpush2.xpose.msra.mxu0 0.0
        %5685 = vmatprep.subr.mxu0 0.0
        %5686 = vmatpush2.xpose.msra.mxu0 0.0
        %5687 = vmatprep.mubr.f32.mxu0 0.0
        %5688 = vmatmul.mubr.f32.gmra.mxu0 %v5619
        %v5689 = vpop.f32.mrf.mxu0
        %v5690 = vadd.f32 0.0, %v5689
        %v5691 = vpop.f32.mrf.mxu0
        %5692 = vdwg.mxu0
        %v5693 = vmul.f32 %v5144, 0.35355338
        %v5694 = vmul.f32 %v5222, 0.35355338
        %v5695 = vmul.f32 %v5300, 0.35355338
        %v5696 = vmul.f32 %v5378, 0.35355338
        %v5697 = vmul.f32 %v5456, 0.35355338
        %v5698 = vmul.f32 %v5534, 0.35355338
        %v5699 = vmul.f32 %v5612, 0.35355338
        %v5700 = vmul.f32 %v5690, 0.35355338
        %v5701 = vsel %vm1690, %v5693, -inf
        %5702 = vmax.xlane.f32.xlu0 %v5701
        %v5703 = vpop.xlane.xlu0 %5702
        %v5704 = vsel %vm1690, %v5694, -inf
        %5705 = vmax.xlane.f32.xlu0 %v5704
        %v5706 = vpop.xlane.xlu0 %5705
        %v5707 = vsel %vm1690, %v5695, -inf
        %5708 = vmax.xlane.f32.xlu0 %v5707
        %v5709 = vpop.xlane.xlu0 %5708
        %v5710 = vsel %vm1690, %v5696, -inf
        %5711 = vmax.xlane.f32.xlu0 %v5710
        %v5712 = vpop.xlane.xlu0 %5711
        %v5713 = vsel %vm1690, %v5697, -inf
        %5714 = vmax.xlane.f32.xlu0 %v5713
        %v5715 = vpop.xlane.xlu0 %5714
        %v5716 = vsel %vm1690, %v5698, -inf
        %5717 = vmax.xlane.f32.xlu0 %v5716
        %v5718 = vpop.xlane.xlu0 %5717
        %v5719 = vsel %vm1690, %v5699, -inf
        %5720 = vmax.xlane.f32.xlu0 %v5719
        %v5721 = vpop.xlane.xlu0 %5720
        %v5722 = vsel %vm1690, %v5700, -inf
        %5723 = vmax.xlane.f32.xlu0 %v5722
        %v5724 = vpop.xlane.xlu0 %5723
        %v5725 = vsub.f32 %v5693, %v5703
        %v5726 = vsub.f32 %v5694, %v5706
        %v5727 = vsub.f32 %v5695, %v5709
        %v5728 = vsub.f32 %v5696, %v5712
        %v5729 = vsub.f32 %v5697, %v5715
        %v5730 = vsub.f32 %v5698, %v5718
        %v5731 = vsub.f32 %v5699, %v5721
        %v5732 = vsub.f32 %v5700, %v5724
        %v5733 = vmul.f32 %v5725, 1.442695
        %v5734 = vpow.pop %v5733
        %v5735 = vmul.f32 %v5726, 1.442695
        %v5736 = vpow.pop %v5735
        %v5737 = vmul.f32 %v5727, 1.442695
        %v5738 = vpow.pop %v5737
        %v5739 = vmul.f32 %v5728, 1.442695
        %v5740 = vpow.pop %v5739
        %v5741 = vmul.f32 %v5729, 1.442695
        %v5742 = vpow.pop %v5741
        %v5743 = vmul.f32 %v5730, 1.442695
        %v5744 = vpow.pop %v5743
        %v5745 = vmul.f32 %v5731, 1.442695
        %v5746 = vpow.pop %v5745
        %v5747 = vmul.f32 %v5732, 1.442695
        %v5748 = vpow.pop %v5747
        %v5749 = vsel %vm1690, %v5734, 0.0
        %5750 = vadd.xlane.f32.xlu0 %v5749
        %v5751 = vpop.xlane.xlu0 %5750
        %v5752 = vsel %vm1690, %v5736, 0.0
        %5753 = vadd.xlane.f32.xlu0 %v5752
        %v5754 = vpop.xlane.xlu0 %5753
        %v5755 = vsel %vm1690, %v5738, 0.0
        %5756 = vadd.xlane.f32.xlu0 %v5755
        %v5757 = vpop.xlane.xlu0 %5756
        %v5758 = vsel %vm1690, %v5740, 0.0
        %5759 = vadd.xlane.f32.xlu0 %v5758
        %v5760 = vpop.xlane.xlu0 %5759
        %v5761 = vsel %vm1690, %v5742, 0.0
        %5762 = vadd.xlane.f32.xlu0 %v5761
        %v5763 = vpop.xlane.xlu0 %5762
        %v5764 = vsel %vm1690, %v5744, 0.0
        %5765 = vadd.xlane.f32.xlu0 %v5764
        %v5766 = vpop.xlane.xlu0 %5765
        %v5767 = vsel %vm1690, %v5746, 0.0
        %5768 = vadd.xlane.f32.xlu0 %v5767
        %v5769 = vpop.xlane.xlu0 %5768
        %v5770 = vsel %vm1690, %v5748, 0.0
        %5771 = vadd.xlane.f32.xlu0 %v5770
        %v5772 = vpop.xlane.xlu0 %5771
        %v5773 = vrcp.pop %v5751
        %v5774 = vrcp.pop %v5754
        %v5775 = vrcp.pop %v5757
        %v5776 = vrcp.pop %v5760
        %v5777 = vrcp.pop %v5763
        %v5778 = vrcp.pop %v5766
        %v5779 = vrcp.pop %v5769
        %v5780 = vrcp.pop %v5772
        %v5781 = vmul.f32 %v5734, %v5773
        %v5782 = vmul.f32 %v5736, %v5774
        %v5783 = vmul.f32 %v5738, %v5775
        %v5784 = vmul.f32 %v5740, %v5776
        %v5785 = vmul.f32 %v5742, %v5777
        %v5786 = vmul.f32 %v5744, %v5778
        %v5787 = vmul.f32 %v5746, %v5779
        %v5788 = vmul.f32 %v5748, %v5780
        %5789 = vrot.lane.b32.xlu0 %v1023, 40
        %v5790 = vpop.permute.xlu0 %5789
        %v5792 = vsel %vm1781, %v5781, 0
        %v5794 = vsel %vm1785, %v5790, 0
        %5796 = vmatprep.subr.mxu0 0.0
        %5797 = vmatpush1.msra.mxu0 0.0
        %5798 = vmatprep.subr.mxu0 0.0
        %5799 = vmatpush1.msra.mxu0 0.0
        %5800 = vmatprep.subr.mxu0 0.0
        %5801 = vmatpush1.msra.mxu0 0.0
        %5802 = vmatprep.subr.mxu0 0.0
        %5803 = vmatpush1.msra.mxu0 0.0
        %5804 = vmatprep.subr.mxu0 0.0
        %5805 = vmatpush1.msra.mxu0 0.0
        %5806 = vmatprep.subr.mxu0 0.0
        %5807 = vmatpush1.msra.mxu0 0.0
        %5808 = vmatprep.subr.mxu0 0.0
        %5809 = vmatpush1.msra.mxu0 0.0
        %5810 = vmatprep.subr.mxu0 0.0
        %5811 = vmatpush1.msra.mxu0 0.0
        %5812 = vmatprep.subr.mxu0 0.0
        %5813 = vmatpush1.msra.mxu0 0.0
        %5814 = vmatprep.subr.mxu0 0.0
        %5815 = vmatpush1.msra.mxu0 0.0
        %5816 = vmatprep.subr.mxu0 0.0
        %5817 = vmatpush1.msra.mxu0 0.0
        %5818 = vmatprep.subr.mxu0 0.0
        %5819 = vmatpush1.msra.mxu0 0.0
        %5820 = vmatprep.subr.mxu0 0.0
        %5821 = vmatpush1.msra.mxu0 0.0
        %5822 = vmatprep.subr.mxu0 0.0
        %5823 = vmatpush1.msra.mxu0 0.0
        %5824 = vmatprep.subr.mxu0 0.0
        %5825 = vmatpush1.msra.mxu0 0.0
        %5826 = vmatprep.subr.mxu0 0.0
        %5827 = vmatpush1.msra.mxu0 %v5794
        %5828 = vmatprep.subr.mxu0 0.0
        %5829 = vmatpush2.msra.mxu0 0.0
        %5830 = vmatprep.subr.mxu0 0.0
        %5831 = vmatpush2.msra.mxu0 0.0
        %5832 = vmatprep.subr.mxu0 0.0
        %5833 = vmatpush2.msra.mxu0 0.0
        %5834 = vmatprep.subr.mxu0 0.0
        %5835 = vmatpush2.msra.mxu0 0.0
        %5836 = vmatprep.subr.mxu0 0.0
        %5837 = vmatpush2.msra.mxu0 0.0
        %5838 = vmatprep.subr.mxu0 0.0
        %5839 = vmatpush2.msra.mxu0 0.0
        %5840 = vmatprep.subr.mxu0 0.0
        %5841 = vmatpush2.msra.mxu0 0.0
        %5842 = vmatprep.subr.mxu0 0.0
        %5843 = vmatpush2.msra.mxu0 0.0
        %5844 = vmatprep.subr.mxu0 0.0
        %5845 = vmatpush2.msra.mxu0 0.0
        %5846 = vmatprep.subr.mxu0 0.0
        %5847 = vmatpush2.msra.mxu0 0.0
        %5848 = vmatprep.subr.mxu0 0.0
        %5849 = vmatpush2.msra.mxu0 0.0
        %5850 = vmatprep.subr.mxu0 0.0
        %5851 = vmatpush2.msra.mxu0 0.0
        %5852 = vmatprep.subr.mxu0 0.0
        %5853 = vmatpush2.msra.mxu0 0.0
        %5854 = vmatprep.subr.mxu0 0.0
        %5855 = vmatpush2.msra.mxu0 0.0
        %5856 = vmatprep.subr.mxu0 0.0
        %5857 = vmatpush2.msra.mxu0 0.0
        %5858 = vmatprep.subr.mxu0 0.0
        %5859 = vmatpush2.msra.mxu0 0.0
        %5860 = vmatprep.mubr.f32.mxu0 0.0
        %5861 = vmatmul.mubr.f32.gmra.mxu0 %v5792
        %v5862 = vpop.f32.mrf.mxu0
        %v5863 = vadd.f32 0.0, %v5862
        %v5864 = vpop.f32.mrf.mxu0
        %5865 = vdwg.mxu0
        %5866 = vrot.lane.b32.xlu0 %v1107, 40
        %v5867 = vpop.permute.xlu0 %5866
        %v5869 = vsel %vm1781, %v5782, 0
        %v5871 = vsel %vm1785, %v5867, 0
        %5873 = vmatprep.subr.mxu0 0.0
        %5874 = vmatpush1.msra.mxu0 0.0
        %5875 = vmatprep.subr.mxu0 0.0
        %5876 = vmatpush1.msra.mxu0 0.0
        %5877 = vmatprep.subr.mxu0 0.0
        %5878 = vmatpush1.msra.mxu0 0.0
        %5879 = vmatprep.subr.mxu0 0.0
        %5880 = vmatpush1.msra.mxu0 0.0
        %5881 = vmatprep.subr.mxu0 0.0
        %5882 = vmatpush1.msra.mxu0 0.0
        %5883 = vmatprep.subr.mxu0 0.0
        %5884 = vmatpush1.msra.mxu0 0.0
        %5885 = vmatprep.subr.mxu0 0.0
        %5886 = vmatpush1.msra.mxu0 0.0
        %5887 = vmatprep.subr.mxu0 0.0
        %5888 = vmatpush1.msra.mxu0 0.0
        %5889 = vmatprep.subr.mxu0 0.0
        %5890 = vmatpush1.msra.mxu0 0.0
        %5891 = vmatprep.subr.mxu0 0.0
        %5892 = vmatpush1.msra.mxu0 0.0
        %5893 = vmatprep.subr.mxu0 0.0
        %5894 = vmatpush1.msra.mxu0 0.0
        %5895 = vmatprep.subr.mxu0 0.0
        %5896 = vmatpush1.msra.mxu0 0.0
        %5897 = vmatprep.subr.mxu0 0.0
        %5898 = vmatpush1.msra.mxu0 0.0
        %5899 = vmatprep.subr.mxu0 0.0
        %5900 = vmatpush1.msra.mxu0 0.0
        %5901 = vmatprep.subr.mxu0 0.0
        %5902 = vmatpush1.msra.mxu0 0.0
        %5903 = vmatprep.subr.mxu0 0.0
        %5904 = vmatpush1.msra.mxu0 %v5871
        %5905 = vmatprep.subr.mxu0 0.0
        %5906 = vmatpush2.msra.mxu0 0.0
        %5907 = vmatprep.subr.mxu0 0.0
        %5908 = vmatpush2.msra.mxu0 0.0
        %5909 = vmatprep.subr.mxu0 0.0
        %5910 = vmatpush2.msra.mxu0 0.0
        %5911 = vmatprep.subr.mxu0 0.0
        %5912 = vmatpush2.msra.mxu0 0.0
        %5913 = vmatprep.subr.mxu0 0.0
        %5914 = vmatpush2.msra.mxu0 0.0
        %5915 = vmatprep.subr.mxu0 0.0
        %5916 = vmatpush2.msra.mxu0 0.0
        %5917 = vmatprep.subr.mxu0 0.0
        %5918 = vmatpush2.msra.mxu0 0.0
        %5919 = vmatprep.subr.mxu0 0.0
        %5920 = vmatpush2.msra.mxu0 0.0
        %5921 = vmatprep.subr.mxu0 0.0
        %5922 = vmatpush2.msra.mxu0 0.0
        %5923 = vmatprep.subr.mxu0 0.0
        %5924 = vmatpush2.msra.mxu0 0.0
        %5925 = vmatprep.subr.mxu0 0.0
        %5926 = vmatpush2.msra.mxu0 0.0
        %5927 = vmatprep.subr.mxu0 0.0
        %5928 = vmatpush2.msra.mxu0 0.0
        %5929 = vmatprep.subr.mxu0 0.0
        %5930 = vmatpush2.msra.mxu0 0.0
        %5931 = vmatprep.subr.mxu0 0.0
        %5932 = vmatpush2.msra.mxu0 0.0
        %5933 = vmatprep.subr.mxu0 0.0
        %5934 = vmatpush2.msra.mxu0 0.0
        %5935 = vmatprep.subr.mxu0 0.0
        %5936 = vmatpush2.msra.mxu0 0.0
        %5937 = vmatprep.mubr.f32.mxu0 0.0
        %5938 = vmatmul.mubr.f32.gmra.mxu0 %v5869
        %v5939 = vpop.f32.mrf.mxu0
        %v5940 = vadd.f32 0.0, %v5939
        %v5941 = vpop.f32.mrf.mxu0
        %5942 = vdwg.mxu0
        %5943 = vrot.lane.b32.xlu0 %v1190, 40
        %v5944 = vpop.permute.xlu0 %5943
        %v5946 = vsel %vm1781, %v5783, 0
        %v5948 = vsel %vm1785, %v5944, 0
        %5950 = vmatprep.subr.mxu0 0.0
        %5951 = vmatpush1.msra.mxu0 0.0
        %5952 = vmatprep.subr.mxu0 0.0
        %5953 = vmatpush1.msra.mxu0 0.0
        %5954 = vmatprep.subr.mxu0 0.0
        %5955 = vmatpush1.msra.mxu0 0.0
        %5956 = vmatprep.subr.mxu0 0.0
        %5957 = vmatpush1.msra.mxu0 0.0
        %5958 = vmatprep.subr.mxu0 0.0
        %5959 = vmatpush1.msra.mxu0 0.0
        %5960 = vmatprep.subr.mxu0 0.0
        %5961 = vmatpush1.msra.mxu0 0.0
        %5962 = vmatprep.subr.mxu0 0.0
        %5963 = vmatpush1.msra.mxu0 0.0
        %5964 = vmatprep.subr.mxu0 0.0
        %5965 = vmatpush1.msra.mxu0 0.0
        %5966 = vmatprep.subr.mxu0 0.0
        %5967 = vmatpush1.msra.mxu0 0.0
        %5968 = vmatprep.subr.mxu0 0.0
        %5969 = vmatpush1.msra.mxu0 0.0
        %5970 = vmatprep.subr.mxu0 0.0
        %5971 = vmatpush1.msra.mxu0 0.0
        %5972 = vmatprep.subr.mxu0 0.0
        %5973 = vmatpush1.msra.mxu0 0.0
        %5974 = vmatprep.subr.mxu0 0.0
        %5975 = vmatpush1.msra.mxu0 0.0
        %5976 = vmatprep.subr.mxu0 0.0
        %5977 = vmatpush1.msra.mxu0 0.0
        %5978 = vmatprep.subr.mxu0 0.0
        %5979 = vmatpush1.msra.mxu0 0.0
        %5980 = vmatprep.subr.mxu0 0.0
        %5981 = vmatpush1.msra.mxu0 %v5948
        %5982 = vmatprep.subr.mxu0 0.0
        %5983 = vmatpush2.msra.mxu0 0.0
        %5984 = vmatprep.subr.mxu0 0.0
        %5985 = vmatpush2.msra.mxu0 0.0
        %5986 = vmatprep.subr.mxu0 0.0
        %5987 = vmatpush2.msra.mxu0 0.0
        %5988 = vmatprep.subr.mxu0 0.0
        %5989 = vmatpush2.msra.mxu0 0.0
        %5990 = vmatprep.subr.mxu0 0.0
        %5991 = vmatpush2.msra.mxu0 0.0
        %5992 = vmatprep.subr.mxu0 0.0
        %5993 = vmatpush2.msra.mxu0 0.0
        %5994 = vmatprep.subr.mxu0 0.0
        %5995 = vmatpush2.msra.mxu0 0.0
        %5996 = vmatprep.subr.mxu0 0.0
        %5997 = vmatpush2.msra.mxu0 0.0
        %5998 = vmatprep.subr.mxu0 0.0
        %5999 = vmatpush2.msra.mxu0 0.0
        %6000 = vmatprep.subr.mxu0 0.0
        %6001 = vmatpush2.msra.mxu0 0.0
        %6002 = vmatprep.subr.mxu0 0.0
        %6003 = vmatpush2.msra.mxu0 0.0
        %6004 = vmatprep.subr.mxu0 0.0
        %6005 = vmatpush2.msra.mxu0 0.0
        %6006 = vmatprep.subr.mxu0 0.0
        %6007 = vmatpush2.msra.mxu0 0.0
        %6008 = vmatprep.subr.mxu0 0.0
        %6009 = vmatpush2.msra.mxu0 0.0
        %6010 = vmatprep.subr.mxu0 0.0
        %6011 = vmatpush2.msra.mxu0 0.0
        %6012 = vmatprep.subr.mxu0 0.0
        %6013 = vmatpush2.msra.mxu0 0.0
        %6014 = vmatprep.mubr.f32.mxu0 0.0
        %6015 = vmatmul.mubr.f32.gmra.mxu0 %v5946
        %v6016 = vpop.f32.mrf.mxu0
        %v6017 = vadd.f32 0.0, %v6016
        %v6018 = vpop.f32.mrf.mxu0
        %6019 = vdwg.mxu0
        %6020 = vrot.lane.b32.xlu0 %v1273, 40
        %v6021 = vpop.permute.xlu0 %6020
        %v6023 = vsel %vm1781, %v5784, 0
        %v6025 = vsel %vm1785, %v6021, 0
        %6027 = vmatprep.subr.mxu0 0.0
        %6028 = vmatpush1.msra.mxu0 0.0
        %6029 = vmatprep.subr.mxu0 0.0
        %6030 = vmatpush1.msra.mxu0 0.0
        %6031 = vmatprep.subr.mxu0 0.0
        %6032 = vmatpush1.msra.mxu0 0.0
        %6033 = vmatprep.subr.mxu0 0.0
        %6034 = vmatpush1.msra.mxu0 0.0
        %6035 = vmatprep.subr.mxu0 0.0
        %6036 = vmatpush1.msra.mxu0 0.0
        %6037 = vmatprep.subr.mxu0 0.0
        %6038 = vmatpush1.msra.mxu0 0.0
        %6039 = vmatprep.subr.mxu0 0.0
        %6040 = vmatpush1.msra.mxu0 0.0
        %6041 = vmatprep.subr.mxu0 0.0
        %6042 = vmatpush1.msra.mxu0 0.0
        %6043 = vmatprep.subr.mxu0 0.0
        %6044 = vmatpush1.msra.mxu0 0.0
        %6045 = vmatprep.subr.mxu0 0.0
        %6046 = vmatpush1.msra.mxu0 0.0
        %6047 = vmatprep.subr.mxu0 0.0
        %6048 = vmatpush1.msra.mxu0 0.0
        %6049 = vmatprep.subr.mxu0 0.0
        %6050 = vmatpush1.msra.mxu0 0.0
        %6051 = vmatprep.subr.mxu0 0.0
        %6052 = vmatpush1.msra.mxu0 0.0
        %6053 = vmatprep.subr.mxu0 0.0
        %6054 = vmatpush1.msra.mxu0 0.0
        %6055 = vmatprep.subr.mxu0 0.0
        %6056 = vmatpush1.msra.mxu0 0.0
        %6057 = vmatprep.subr.mxu0 0.0
        %6058 = vmatpush1.msra.mxu0 %v6025
        %6059 = vmatprep.subr.mxu0 0.0
        %6060 = vmatpush2.msra.mxu0 0.0
        %6061 = vmatprep.subr.mxu0 0.0
        %6062 = vmatpush2.msra.mxu0 0.0
        %6063 = vmatprep.subr.mxu0 0.0
        %6064 = vmatpush2.msra.mxu0 0.0
        %6065 = vmatprep.subr.mxu0 0.0
        %6066 = vmatpush2.msra.mxu0 0.0
        %6067 = vmatprep.subr.mxu0 0.0
        %6068 = vmatpush2.msra.mxu0 0.0
        %6069 = vmatprep.subr.mxu0 0.0
        %6070 = vmatpush2.msra.mxu0 0.0
        %6071 = vmatprep.subr.mxu0 0.0
        %6072 = vmatpush2.msra.mxu0 0.0
        %6073 = vmatprep.subr.mxu0 0.0
        %6074 = vmatpush2.msra.mxu0 0.0
        %6075 = vmatprep.subr.mxu0 0.0
        %6076 = vmatpush2.msra.mxu0 0.0
        %6077 = vmatprep.subr.mxu0 0.0
        %6078 = vmatpush2.msra.mxu0 0.0
        %6079 = vmatprep.subr.mxu0 0.0
        %6080 = vmatpush2.msra.mxu0 0.0
        %6081 = vmatprep.subr.mxu0 0.0
        %6082 = vmatpush2.msra.mxu0 0.0
        %6083 = vmatprep.subr.mxu0 0.0
        %6084 = vmatpush2.msra.mxu0 0.0
        %6085 = vmatprep.subr.mxu0 0.0
        %6086 = vmatpush2.msra.mxu0 0.0
        %6087 = vmatprep.subr.mxu0 0.0
        %6088 = vmatpush2.msra.mxu0 0.0
        %6089 = vmatprep.subr.mxu0 0.0
        %6090 = vmatpush2.msra.mxu0 0.0
        %6091 = vmatprep.mubr.f32.mxu0 0.0
        %6092 = vmatmul.mubr.f32.gmra.mxu0 %v6023
        %v6093 = vpop.f32.mrf.mxu0
        %v6094 = vadd.f32 0.0, %v6093
        %v6095 = vpop.f32.mrf.mxu0
        %6096 = vdwg.mxu0
        %6097 = vrot.lane.b32.xlu0 %v1356, 40
        %v6098 = vpop.permute.xlu0 %6097
        %v6100 = vsel %vm1781, %v5785, 0
        %v6102 = vsel %vm1785, %v6098, 0
        %6104 = vmatprep.subr.mxu0 0.0
        %6105 = vmatpush1.msra.mxu0 0.0
        %6106 = vmatprep.subr.mxu0 0.0
        %6107 = vmatpush1.msra.mxu0 0.0
        %6108 = vmatprep.subr.mxu0 0.0
        %6109 = vmatpush1.msra.mxu0 0.0
        %6110 = vmatprep.subr.mxu0 0.0
        %6111 = vmatpush1.msra.mxu0 0.0
        %6112 = vmatprep.subr.mxu0 0.0
        %6113 = vmatpush1.msra.mxu0 0.0
        %6114 = vmatprep.subr.mxu0 0.0
        %6115 = vmatpush1.msra.mxu0 0.0
        %6116 = vmatprep.subr.mxu0 0.0
        %6117 = vmatpush1.msra.mxu0 0.0
        %6118 = vmatprep.subr.mxu0 0.0
        %6119 = vmatpush1.msra.mxu0 0.0
        %6120 = vmatprep.subr.mxu0 0.0
        %6121 = vmatpush1.msra.mxu0 0.0
        %6122 = vmatprep.subr.mxu0 0.0
        %6123 = vmatpush1.msra.mxu0 0.0
        %6124 = vmatprep.subr.mxu0 0.0
        %6125 = vmatpush1.msra.mxu0 0.0
        %6126 = vmatprep.subr.mxu0 0.0
        %6127 = vmatpush1.msra.mxu0 0.0
        %6128 = vmatprep.subr.mxu0 0.0
        %6129 = vmatpush1.msra.mxu0 0.0
        %6130 = vmatprep.subr.mxu0 0.0
        %6131 = vmatpush1.msra.mxu0 0.0
        %6132 = vmatprep.subr.mxu0 0.0
        %6133 = vmatpush1.msra.mxu0 0.0
        %6134 = vmatprep.subr.mxu0 0.0
        %6135 = vmatpush1.msra.mxu0 %v6102
        %6136 = vmatprep.subr.mxu0 0.0
        %6137 = vmatpush2.msra.mxu0 0.0
        %6138 = vmatprep.subr.mxu0 0.0
        %6139 = vmatpush2.msra.mxu0 0.0
        %6140 = vmatprep.subr.mxu0 0.0
        %6141 = vmatpush2.msra.mxu0 0.0
        %6142 = vmatprep.subr.mxu0 0.0
        %6143 = vmatpush2.msra.mxu0 0.0
        %6144 = vmatprep.subr.mxu0 0.0
        %6145 = vmatpush2.msra.mxu0 0.0
        %6146 = vmatprep.subr.mxu0 0.0
        %6147 = vmatpush2.msra.mxu0 0.0
        %6148 = vmatprep.subr.mxu0 0.0
        %6149 = vmatpush2.msra.mxu0 0.0
        %6150 = vmatprep.subr.mxu0 0.0
        %6151 = vmatpush2.msra.mxu0 0.0
        %6152 = vmatprep.subr.mxu0 0.0
        %6153 = vmatpush2.msra.mxu0 0.0
        %6154 = vmatprep.subr.mxu0 0.0
        %6155 = vmatpush2.msra.mxu0 0.0
        %6156 = vmatprep.subr.mxu0 0.0
        %6157 = vmatpush2.msra.mxu0 0.0
        %6158 = vmatprep.subr.mxu0 0.0
        %6159 = vmatpush2.msra.mxu0 0.0
        %6160 = vmatprep.subr.mxu0 0.0
        %6161 = vmatpush2.msra.mxu0 0.0
        %6162 = vmatprep.subr.mxu0 0.0
        %6163 = vmatpush2.msra.mxu0 0.0
        %6164 = vmatprep.subr.mxu0 0.0
        %6165 = vmatpush2.msra.mxu0 0.0
        %6166 = vmatprep.subr.mxu0 0.0
        %6167 = vmatpush2.msra.mxu0 0.0
        %6168 = vmatprep.mubr.f32.mxu0 0.0
        %6169 = vmatmul.mubr.f32.gmra.mxu0 %v6100
        %v6170 = vpop.f32.mrf.mxu0
        %v6171 = vadd.f32 0.0, %v6170
        %v6172 = vpop.f32.mrf.mxu0
        %6173 = vdwg.mxu0
        %6174 = vrot.lane.b32.xlu0 %v1439, 40
        %v6175 = vpop.permute.xlu0 %6174
        %v6177 = vsel %vm1781, %v5786, 0
        %v6179 = vsel %vm1785, %v6175, 0
        %6181 = vmatprep.subr.mxu0 0.0
        %6182 = vmatpush1.msra.mxu0 0.0
        %6183 = vmatprep.subr.mxu0 0.0
        %6184 = vmatpush1.msra.mxu0 0.0
        %6185 = vmatprep.subr.mxu0 0.0
        %6186 = vmatpush1.msra.mxu0 0.0
        %6187 = vmatprep.subr.mxu0 0.0
        %6188 = vmatpush1.msra.mxu0 0.0
        %6189 = vmatprep.subr.mxu0 0.0
        %6190 = vmatpush1.msra.mxu0 0.0
        %6191 = vmatprep.subr.mxu0 0.0
        %6192 = vmatpush1.msra.mxu0 0.0
        %6193 = vmatprep.subr.mxu0 0.0
        %6194 = vmatpush1.msra.mxu0 0.0
        %6195 = vmatprep.subr.mxu0 0.0
        %6196 = vmatpush1.msra.mxu0 0.0
        %6197 = vmatprep.subr.mxu0 0.0
        %6198 = vmatpush1.msra.mxu0 0.0
        %6199 = vmatprep.subr.mxu0 0.0
        %6200 = vmatpush1.msra.mxu0 0.0
        %6201 = vmatprep.subr.mxu0 0.0
        %6202 = vmatpush1.msra.mxu0 0.0
        %6203 = vmatprep.subr.mxu0 0.0
        %6204 = vmatpush1.msra.mxu0 0.0
        %6205 = vmatprep.subr.mxu0 0.0
        %6206 = vmatpush1.msra.mxu0 0.0
        %6207 = vmatprep.subr.mxu0 0.0
        %6208 = vmatpush1.msra.mxu0 0.0
        %6209 = vmatprep.subr.mxu0 0.0
        %6210 = vmatpush1.msra.mxu0 0.0
        %6211 = vmatprep.subr.mxu0 0.0
        %6212 = vmatpush1.msra.mxu0 %v6179
        %6213 = vmatprep.subr.mxu0 0.0
        %6214 = vmatpush2.msra.mxu0 0.0
        %6215 = vmatprep.subr.mxu0 0.0
        %6216 = vmatpush2.msra.mxu0 0.0
        %6217 = vmatprep.subr.mxu0 0.0
        %6218 = vmatpush2.msra.mxu0 0.0
        %6219 = vmatprep.subr.mxu0 0.0
        %6220 = vmatpush2.msra.mxu0 0.0
        %6221 = vmatprep.subr.mxu0 0.0
        %6222 = vmatpush2.msra.mxu0 0.0
        %6223 = vmatprep.subr.mxu0 0.0
        %6224 = vmatpush2.msra.mxu0 0.0
        %6225 = vmatprep.subr.mxu0 0.0
        %6226 = vmatpush2.msra.mxu0 0.0
        %6227 = vmatprep.subr.mxu0 0.0
        %6228 = vmatpush2.msra.mxu0 0.0
        %6229 = vmatprep.subr.mxu0 0.0
        %6230 = vmatpush2.msra.mxu0 0.0
        %6231 = vmatprep.subr.mxu0 0.0
        %6232 = vmatpush2.msra.mxu0 0.0
        %6233 = vmatprep.subr.mxu0 0.0
        %6234 = vmatpush2.msra.mxu0 0.0
        %6235 = vmatprep.subr.mxu0 0.0
        %6236 = vmatpush2.msra.mxu0 0.0
        %6237 = vmatprep.subr.mxu0 0.0
        %6238 = vmatpush2.msra.mxu0 0.0
        %6239 = vmatprep.subr.mxu0 0.0
        %6240 = vmatpush2.msra.mxu0 0.0
        %6241 = vmatprep.subr.mxu0 0.0
        %6242 = vmatpush2.msra.mxu0 0.0
        %6243 = vmatprep.subr.mxu0 0.0
        %6244 = vmatpush2.msra.mxu0 0.0
        %6245 = vmatprep.mubr.f32.mxu0 0.0
        %6246 = vmatmul.mubr.f32.gmra.mxu0 %v6177
        %v6247 = vpop.f32.mrf.mxu0
        %v6248 = vadd.f32 0.0, %v6247
        %v6249 = vpop.f32.mrf.mxu0
        %6250 = vdwg.mxu0
        %6251 = vrot.lane.b32.xlu0 %v1522, 40
        %v6252 = vpop.permute.xlu0 %6251
        %v6254 = vsel %vm1781, %v5787, 0
        %v6256 = vsel %vm1785, %v6252, 0
        %6258 = vmatprep.subr.mxu0 0.0
        %6259 = vmatpush1.msra.mxu0 0.0
        %6260 = vmatprep.subr.mxu0 0.0
        %6261 = vmatpush1.msra.mxu0 0.0
        %6262 = vmatprep.subr.mxu0 0.0
        %6263 = vmatpush1.msra.mxu0 0.0
        %6264 = vmatprep.subr.mxu0 0.0
        %6265 = vmatpush1.msra.mxu0 0.0
        %6266 = vmatprep.subr.mxu0 0.0
        %6267 = vmatpush1.msra.mxu0 0.0
        %6268 = vmatprep.subr.mxu0 0.0
        %6269 = vmatpush1.msra.mxu0 0.0
        %6270 = vmatprep.subr.mxu0 0.0
        %6271 = vmatpush1.msra.mxu0 0.0
        %6272 = vmatprep.subr.mxu0 0.0
        %6273 = vmatpush1.msra.mxu0 0.0
        %6274 = vmatprep.subr.mxu0 0.0
        %6275 = vmatpush1.msra.mxu0 0.0
        %6276 = vmatprep.subr.mxu0 0.0
        %6277 = vmatpush1.msra.mxu0 0.0
        %6278 = vmatprep.subr.mxu0 0.0
        %6279 = vmatpush1.msra.mxu0 0.0
        %6280 = vmatprep.subr.mxu0 0.0
        %6281 = vmatpush1.msra.mxu0 0.0
        %6282 = vmatprep.subr.mxu0 0.0
        %6283 = vmatpush1.msra.mxu0 0.0
        %6284 = vmatprep.subr.mxu0 0.0
        %6285 = vmatpush1.msra.mxu0 0.0
        %6286 = vmatprep.subr.mxu0 0.0
        %6287 = vmatpush1.msra.mxu0 0.0
        %6288 = vmatprep.subr.mxu0 0.0
        %6289 = vmatpush1.msra.mxu0 %v6256
        %6290 = vmatprep.subr.mxu0 0.0
        %6291 = vmatpush2.msra.mxu0 0.0
        %6292 = vmatprep.subr.mxu0 0.0
        %6293 = vmatpush2.msra.mxu0 0.0
        %6294 = vmatprep.subr.mxu0 0.0
        %6295 = vmatpush2.msra.mxu0 0.0
        %6296 = vmatprep.subr.mxu0 0.0
        %6297 = vmatpush2.msra.mxu0 0.0
        %6298 = vmatprep.subr.mxu0 0.0
        %6299 = vmatpush2.msra.mxu0 0.0
        %6300 = vmatprep.subr.mxu0 0.0
        %6301 = vmatpush2.msra.mxu0 0.0
        %6302 = vmatprep.subr.mxu0 0.0
        %6303 = vmatpush2.msra.mxu0 0.0
        %6304 = vmatprep.subr.mxu0 0.0
        %6305 = vmatpush2.msra.mxu0 0.0
        %6306 = vmatprep.subr.mxu0 0.0
        %6307 = vmatpush2.msra.mxu0 0.0
        %6308 = vmatprep.subr.mxu0 0.0
        %6309 = vmatpush2.msra.mxu0 0.0
        %6310 = vmatprep.subr.mxu0 0.0
        %6311 = vmatpush2.msra.mxu0 0.0
        %6312 = vmatprep.subr.mxu0 0.0
        %6313 = vmatpush2.msra.mxu0 0.0
        %6314 = vmatprep.subr.mxu0 0.0
        %6315 = vmatpush2.msra.mxu0 0.0
        %6316 = vmatprep.subr.mxu0 0.0
        %6317 = vmatpush2.msra.mxu0 0.0
        %6318 = vmatprep.subr.mxu0 0.0
        %6319 = vmatpush2.msra.mxu0 0.0
        %6320 = vmatprep.subr.mxu0 0.0
        %6321 = vmatpush2.msra.mxu0 0.0
        %6322 = vmatprep.mubr.f32.mxu0 0.0
        %6323 = vmatmul.mubr.f32.gmra.mxu0 %v6254
        %v6324 = vpop.f32.mrf.mxu0
        %v6325 = vadd.f32 0.0, %v6324
        %v6326 = vpop.f32.mrf.mxu0
        %6327 = vdwg.mxu0
        %6328 = vrot.lane.b32.xlu0 %v1605, 40
        %v6329 = vpop.permute.xlu0 %6328
        %v6331 = vsel %vm1781, %v5788, 0
        %v6333 = vsel %vm1785, %v6329, 0
        %6335 = vmatprep.subr.mxu0 0.0
        %6336 = vmatpush1.msra.mxu0 0.0
        %6337 = vmatprep.subr.mxu0 0.0
        %6338 = vmatpush1.msra.mxu0 0.0
        %6339 = vmatprep.subr.mxu0 0.0
        %6340 = vmatpush1.msra.mxu0 0.0
        %6341 = vmatprep.subr.mxu0 0.0
        %6342 = vmatpush1.msra.mxu0 0.0
        %6343 = vmatprep.subr.mxu0 0.0
        %6344 = vmatpush1.msra.mxu0 0.0
        %6345 = vmatprep.subr.mxu0 0.0
        %6346 = vmatpush1.msra.mxu0 0.0
        %6347 = vmatprep.subr.mxu0 0.0
        %6348 = vmatpush1.msra.mxu0 0.0
        %6349 = vmatprep.subr.mxu0 0.0
        %6350 = vmatpush1.msra.mxu0 0.0
        %6351 = vmatprep.subr.mxu0 0.0
        %6352 = vmatpush1.msra.mxu0 0.0
        %6353 = vmatprep.subr.mxu0 0.0
        %6354 = vmatpush1.msra.mxu0 0.0
        %6355 = vmatprep.subr.mxu0 0.0
        %6356 = vmatpush1.msra.mxu0 0.0
        %6357 = vmatprep.subr.mxu0 0.0
        %6358 = vmatpush1.msra.mxu0 0.0
        %6359 = vmatprep.subr.mxu0 0.0
        %6360 = vmatpush1.msra.mxu0 0.0
        %6361 = vmatprep.subr.mxu0 0.0
        %6362 = vmatpush1.msra.mxu0 0.0
        %6363 = vmatprep.subr.mxu0 0.0
        %6364 = vmatpush1.msra.mxu0 0.0
        %6365 = vmatprep.subr.mxu0 0.0
        %6366 = vmatpush1.msra.mxu0 %v6333
        %6367 = vmatprep.subr.mxu0 0.0
        %6368 = vmatpush2.msra.mxu0 0.0
        %6369 = vmatprep.subr.mxu0 0.0
        %6370 = vmatpush2.msra.mxu0 0.0
        %6371 = vmatprep.subr.mxu0 0.0
        %6372 = vmatpush2.msra.mxu0 0.0
        %6373 = vmatprep.subr.mxu0 0.0
        %6374 = vmatpush2.msra.mxu0 0.0
        %6375 = vmatprep.subr.mxu0 0.0
        %6376 = vmatpush2.msra.mxu0 0.0
        %6377 = vmatprep.subr.mxu0 0.0
        %6378 = vmatpush2.msra.mxu0 0.0
        %6379 = vmatprep.subr.mxu0 0.0
        %6380 = vmatpush2.msra.mxu0 0.0
        %6381 = vmatprep.subr.mxu0 0.0
        %6382 = vmatpush2.msra.mxu0 0.0
        %6383 = vmatprep.subr.mxu0 0.0
        %6384 = vmatpush2.msra.mxu0 0.0
        %6385 = vmatprep.subr.mxu0 0.0
        %6386 = vmatpush2.msra.mxu0 0.0
        %6387 = vmatprep.subr.mxu0 0.0
        %6388 = vmatpush2.msra.mxu0 0.0
        %6389 = vmatprep.subr.mxu0 0.0
        %6390 = vmatpush2.msra.mxu0 0.0
        %6391 = vmatprep.subr.mxu0 0.0
        %6392 = vmatpush2.msra.mxu0 0.0
        %6393 = vmatprep.subr.mxu0 0.0
        %6394 = vmatpush2.msra.mxu0 0.0
        %6395 = vmatprep.subr.mxu0 0.0
        %6396 = vmatpush2.msra.mxu0 0.0
        %6397 = vmatprep.subr.mxu0 0.0
        %6398 = vmatpush2.msra.mxu0 0.0
        %6399 = vmatprep.mubr.f32.mxu0 0.0
        %6400 = vmatmul.mubr.f32.gmra.mxu0 %v6331
        %v6401 = vpop.f32.mrf.mxu0
        %v6402 = vadd.f32 0.0, %v6401
        %v6403 = vpop.f32.mrf.mxu0
        %6404 = vdwg.mxu0
        %6413 = vrot.lane.b32.xlu0 %v3191, 8
        %v6414 = vpop.permute.xlu0 %6413
        %6415 = vrot.lane.b32.xlu0 %v3268, 8
        %v6416 = vpop.permute.xlu0 %6415
        %6417 = vrot.lane.b32.xlu0 %v3345, 8
        %v6418 = vpop.permute.xlu0 %6417
        %6419 = vrot.lane.b32.xlu0 %v3422, 8
        %v6420 = vpop.permute.xlu0 %6419
        %6421 = vrot.lane.b32.xlu0 %v3499, 8
        %v6422 = vpop.permute.xlu0 %6421
        %6423 = vrot.lane.b32.xlu0 %v3576, 8
        %v6424 = vpop.permute.xlu0 %6423
        %6425 = vrot.lane.b32.xlu0 %v3653, 8
        %v6426 = vpop.permute.xlu0 %6425
        %6427 = vrot.lane.b32.xlu0 %v3730, 8
        %v6428 = vpop.permute.xlu0 %6427
        %6445 = vrot.lane.b32.xlu0 %v4527, 16
        %v6446 = vpop.permute.xlu0 %6445
        %6447 = vrot.lane.b32.xlu0 %v4604, 16
        %v6448 = vpop.permute.xlu0 %6447
        %6449 = vrot.lane.b32.xlu0 %v4681, 16
        %v6450 = vpop.permute.xlu0 %6449
        %6451 = vrot.lane.b32.xlu0 %v4758, 16
        %v6452 = vpop.permute.xlu0 %6451
        %6453 = vrot.lane.b32.xlu0 %v4835, 16
        %v6454 = vpop.permute.xlu0 %6453
        %6455 = vrot.lane.b32.xlu0 %v4912, 16
        %v6456 = vpop.permute.xlu0 %6455
        %6457 = vrot.lane.b32.xlu0 %v4989, 16
        %v6458 = vpop.permute.xlu0 %6457
        %6459 = vrot.lane.b32.xlu0 %v5066, 16
        %v6460 = vpop.permute.xlu0 %6459
        %6477 = vrot.lane.b32.xlu0 %v5863, 24
        %v6478 = vpop.permute.xlu0 %6477
        %6479 = vrot.lane.b32.xlu0 %v5940, 24
        %v6480 = vpop.permute.xlu0 %6479
        %6481 = vrot.lane.b32.xlu0 %v6017, 24
        %v6482 = vpop.permute.xlu0 %6481
        %6483 = vrot.lane.b32.xlu0 %v6094, 24
        %v6484 = vpop.permute.xlu0 %6483
        %6485 = vrot.lane.b32.xlu0 %v6171, 24
        %v6486 = vpop.permute.xlu0 %6485
        %6487 = vrot.lane.b32.xlu0 %v6248, 24
        %v6488 = vpop.permute.xlu0 %6487
        %6489 = vrot.lane.b32.xlu0 %v6325, 24
        %v6490 = vpop.permute.xlu0 %6489
        %6491 = vrot.lane.b32.xlu0 %v6402, 24
        %v6492 = vpop.permute.xlu0 %6491
        %v6501 = vsel %vm1026, %v1855, %v6414
        %v6502 = vsel %vm1026, %v1932, %v6416
        %v6503 = vsel %vm1026, %v2009, %v6418
        %v6504 = vsel %vm1026, %v2086, %v6420
        %v6505 = vsel %vm1026, %v2163, %v6422
        %v6506 = vsel %vm1026, %v2240, %v6424
        %v6507 = vsel %vm1026, %v2317, %v6426
        %v6508 = vsel %vm1026, %v2394, %v6428
        %vm6509 = vcmask 130048
        %v6510 = vsel %vm6509, %v6501, %v6446
        %v6511 = vsel %vm6509, %v6502, %v6448
        %v6512 = vsel %vm6509, %v6503, %v6450
        %v6513 = vsel %vm6509, %v6504, %v6452
        %v6514 = vsel %vm6509, %v6505, %v6454
        %v6515 = vsel %vm6509, %v6506, %v6456
        %v6516 = vsel %vm6509, %v6507, %v6458
        %v6517 = vsel %vm6509, %v6508, %v6460
        %vm6518 = vcmask 195584
        %v6519 = vsel %vm6518, %v6510, %v6478
        %v6520 = vsel %vm6518, %v6511, %v6480
        %v6521 = vsel %vm6518, %v6512, %v6482
        %v6522 = vsel %vm6518, %v6513, %v6484
        %v6523 = vsel %vm6518, %v6514, %v6486
        %v6524 = vsel %vm6518, %v6515, %v6488
        %v6525 = vsel %vm6518, %v6516, %v6490
        %v6526 = vsel %vm6518, %v6517, %v6492
        %v6535 = vcombine.low %v6519, %v6520
        %v6536 = vcombine.low %v6521, %v6522
        %v6538 = vunpack.c.l.s4 1983009808
        %v6539 = vunpack.c.0.s8 %v6538
        %v6540 = vlaneseq
        %v6541 = vshrl.u32 %v6540, 7
        %v6542 = vsub.s32 %v6539, %v6541
        %v6543 = vrot.slane %v6535, %v6542
        %v6545 = vunpack.c.l.s4 1983009808
        %v6546 = vunpack.c.0.s8 %v6545
        %v6547 = vlaneseq
        %v6548 = vshrl.u32 %v6547, 7
        %v6549 = vsub.s32 %v6546, %v6548
        %v6550 = vrot.slane %v6536, %v6549
        %v6551 = vcombine.low %v6543, %v6550
        %v6552 = vcombine.low %v6523, %v6524
        %v6553 = vcombine.low %v6525, %v6526
        %v6555 = vunpack.c.l.s4 1983009808
        %v6556 = vunpack.c.0.s8 %v6555
        %v6557 = vlaneseq
        %v6558 = vshrl.u32 %v6557, 7
        %v6559 = vsub.s32 %v6556, %v6558
        %v6560 = vrot.slane %v6552, %v6559
        %v6562 = vunpack.c.l.s4 1983009808
        %v6563 = vunpack.c.0.s8 %v6562
        %v6564 = vlaneseq
        %v6565 = vshrl.u32 %v6564, 7
        %v6566 = vsub.s32 %v6563, %v6565
        %v6567 = vrot.slane %v6553, %v6566
        %v6568 = vcombine.low %v6560, %v6567
        %v6571 = vpack.c.bf16 %v6568, %v6551
        %v6572 = vld [vmem:[%s701] sm:$0xf]
        %v6573 = vld [vmem:[%s701 + $0x4] sm:$0xf]
        %v6574 = vld [vmem:[%s701 + $0x8] sm:$0xf]
        %v6575 = vld [vmem:[%s701 + $0xc] sm:$0xf]
        %v6576 = vld [vmem:[%s704] sm:$0x1]
        %v6578 = vlaneseq
        %v6579 = vshrl.u32 %v6578, 7
        %v6580 = vsub.s32 0, %v6579
        %v6581 = vrot.slane %v6576, %v6580
        %v6587 = vunpack.c.l.b16 %v6572
        %v6588 = vunpack.c.l.b16 %v6573
        %v6589 = vunpack.c.l.b16 %v6574
        %v6590 = vunpack.c.l.b16 %v6575
        %v6591 = vpack.c.b16 %v6588, %v6587
        %v6592 = vpack.c.b16 %v6590, %v6589
        %v6596 = vsel %vm936, %v6571, 0
        %6598 = vmatprep.subr.bf16.mxu0 0
        %6599 = vmatpush1.bf16.msra.mxu0 0
        %6600 = vmatprep.subr.bf16.mxu0 0
        %6601 = vmatpush1.bf16.msra.mxu0 0
        %6602 = vmatprep.subr.bf16.mxu0 0
        %6603 = vmatpush1.bf16.msra.mxu0 0
        %6604 = vmatprep.subr.bf16.mxu0 0
        %6605 = vmatpush1.bf16.msra.mxu0 0
        %6606 = vmatprep.subr.bf16.mxu0 0
        %6607 = vmatpush1.bf16.msra.mxu0 0
        %6608 = vmatprep.subr.bf16.mxu0 0
        %6609 = vmatpush1.bf16.msra.mxu0 0
        %6610 = vmatprep.subr.bf16.mxu0 0
        %6611 = vmatpush1.bf16.msra.mxu0 %v6592
        %6612 = vmatprep.subr.bf16.mxu0 0
        %6613 = vmatpush1.bf16.msra.mxu0 %v6591
        %6614 = vmatprep.subr.bf16.mxu0 0
        %6615 = vmatpush2.bf16.msra.mxu0 0
        %6616 = vmatprep.subr.bf16.mxu0 0
        %6617 = vmatpush2.bf16.msra.mxu0 0
        %6618 = vmatprep.subr.bf16.mxu0 0
        %6619 = vmatpush2.bf16.msra.mxu0 0
        %6620 = vmatprep.subr.bf16.mxu0 0
        %6621 = vmatpush2.bf16.msra.mxu0 0
        %6622 = vmatprep.subr.bf16.mxu0 0
        %6623 = vmatpush2.bf16.msra.mxu0 0
        %6624 = vmatprep.subr.bf16.mxu0 0
        %6625 = vmatpush2.bf16.msra.mxu0 0
        %6626 = vmatprep.subr.bf16.mxu0 0
        %6627 = vmatpush2.bf16.msra.mxu0 0
        %6628 = vmatprep.subr.bf16.mxu0 0
        %6629 = vmatpush2.bf16.msra.mxu0 0
        %6630 = vmatprep.mubr.bf16.mxu0 0
        %6631 = vmatmul.mubr.bf16.gmra.mxu0 %v6596
        %v6632 = vpop.f32.mrf.mxu0
        %v6633 = vadd.f32 %v6581, %v6632
        %v6634 = vpop.f32.mrf.mxu0
        %v6635 = vpop.f32.mrf.mxu0
        %v6636 = vadd.f32 %v6581, %v6635
        %v6637 = vpop.f32.mrf.mxu0
        %6638 = vdwg.mxu0
        %v6639 = vadd.f32 %v910, %v6633
        %v6640 = vadd.f32 %v911, %v6636
        %v6641 = vld [vmem:[%s707] sm:$0x1]
        %v6642 = vld [vmem:[%s710] sm:$0x1]
        %v6643 = vsel %vm936, %v6639, 0.0
        %6644 = vadd.xlane.f32.xlu0 %v6643
        %v6645 = vpop.xlane.xlu0 %6644
        %v6646 = vsel %vm936, %v6640, 0.0
        %6647 = vadd.xlane.f32.xlu0 %v6646
        %v6648 = vpop.xlane.xlu0 %6647
        %v6649 = vrcp.pop 32.0
        %v6650 = vmul.f32 %v6645, %v6649
        %v6651 = vmul.f32 %v6648, %v6649
        %v6652 = vsub.f32 %v6639, %v6650
        %v6653 = vsub.f32 %v6640, %v6651
        %v6654 = vmul.f32 %v6652, %v6652
        %v6655 = vmul.f32 %v6653, %v6653
        %v6656 = vsel %vm936, %v6654, 0.0
        %6657 = vadd.xlane.f32.xlu0 %v6656
        %v6658 = vpop.xlane.xlu0 %6657
        %v6659 = vsel %vm936, %v6655, 0.0
        %6660 = vadd.xlane.f32.xlu0 %v6659
        %v6661 = vpop.xlane.xlu0 %6660
        %v6662 = vmul.f32 %v6658, %v6649
        %v6663 = vmul.f32 %v6661, %v6649
        %v6664 = vadd.f32 %v6662, 1e-05
        %v6665 = vadd.f32 %v6663, 1e-05
        %v6666 = vrsqrt.pop %v6664
        %v6667 = vrsqrt.pop %v6665
        %v6668 = vmul.f32 %v6652, %v6666
        %v6669 = vmul.f32 %v6653, %v6667
        %v6671 = vlaneseq
        %v6672 = vshrl.u32 %v6671, 7
        %v6673 = vsub.s32 0, %v6672
        %v6674 = vrot.slane %v6641, %v6673
        %v6676 = vmul.f32 %v6668, %v6674
        %v6677 = vmul.f32 %v6669, %v6674
        %v6679 = vlaneseq
        %v6680 = vshrl.u32 %v6679, 7
        %v6681 = vsub.s32 0, %v6680
        %v6682 = vrot.slane %v6642, %v6681
        %v6684 = vadd.f32 %v6676, %v6682
        %v6685 = vadd.f32 %v6677, %v6682
        %v6686 = vpack.c.bf16 %v6685, %v6684
        %v6687 = vld [vmem:[%s721] sm:$0xff]
        %v6688 = vld [vmem:[%s721 + $0x8] sm:$0xff]
        %v6689 = vld [vmem:[%s721 + $0x10] sm:$0xff]
        %v6690 = vld [vmem:[%s721 + $0x18] sm:$0xff]
        %v6691 = vld [vmem:[%s721 + $0x20] sm:$0xff]
        %v6692 = vld [vmem:[%s721 + $0x28] sm:$0xff]
        %v6693 = vld [vmem:[%s721 + $0x30] sm:$0xff]
        %v6694 = vld [vmem:[%s721 + $0x38] sm:$0xff]
        %v6695 = vld [vmem:[%s721 + $0x40] sm:$0xff]
        %v6696 = vld [vmem:[%s721 + $0x48] sm:$0xff]
        %v6697 = vld [vmem:[%s721 + $0x50] sm:$0xff]
        %v6698 = vld [vmem:[%s721 + $0x58] sm:$0xff]
        %v6699 = vld [vmem:[%s721 + $0x60] sm:$0xff]
        %v6700 = vld [vmem:[%s721 + $0x68] sm:$0xff]
        %v6701 = vld [vmem:[%s721 + $0x70] sm:$0xff]
        %v6702 = vld [vmem:[%s721 + $0x78] sm:$0xff]
        %v6703 = vld [vmem:[%s721 + $0x80] sm:$0xff]
        %v6704 = vld [vmem:[%s721 + $0x88] sm:$0xff]
        %v6705 = vld [vmem:[%s721 + $0x90] sm:$0xff]
        %v6706 = vld [vmem:[%s721 + $0x98] sm:$0xff]
        %v6707 = vld [vmem:[%s721 + $0xa0] sm:$0xff]
        %v6708 = vld [vmem:[%s721 + $0xa8] sm:$0xff]
        %v6709 = vld [vmem:[%s721 + $0xb0] sm:$0xff]
        %v6710 = vld [vmem:[%s721 + $0xb8] sm:$0xff]
        %v6711 = vld [vmem:[%s721 + $0xc0] sm:$0xff]
        %v6712 = vld [vmem:[%s721 + $0xc8] sm:$0xff]
        %v6713 = vld [vmem:[%s721 + $0xd0] sm:$0xff]
        %v6714 = vld [vmem:[%s721 + $0xd8] sm:$0xff]
        %v6715 = vld [vmem:[%s721 + $0xe0] sm:$0xff]
        %v6716 = vld [vmem:[%s721 + $0xe8] sm:$0xff]
        %v6717 = vld [vmem:[%s721 + $0xf0] sm:$0xff]
        %v6718 = vld [vmem:[%s721 + $0xf8] sm:$0xff]
        %v6719 = vld [vmem:[%s725] sm:$0xff]
        %v6720 = vld [vmem:[%s725 + $0x8] sm:$0xff]
        %v6723 = vlaneseq
        %v6724 = vshrl.u32 %v6723, 7
        %v6725 = vsub.s32 0, %v6724
        %v6726 = vrot.slane %v6719, %v6725
        %v6727 = vlaneseq
        %v6728 = vshrl.u32 %v6727, 7
        %v6729 = vsub.s32 1, %v6728
        %v6730 = vrot.slane %v6719, %v6729
        %v6731 = vlaneseq
        %v6732 = vshrl.u32 %v6731, 7
        %v6733 = vsub.s32 2, %v6732
        %v6734 = vrot.slane %v6719, %v6733
        %v6735 = vlaneseq
        %v6736 = vshrl.u32 %v6735, 7
        %v6737 = vsub.s32 3, %v6736
        %v6738 = vrot.slane %v6719, %v6737
        %v6739 = vlaneseq
        %v6740 = vshrl.u32 %v6739, 7
        %v6741 = vsub.s32 4, %v6740
        %v6742 = vrot.slane %v6719, %v6741
        %v6743 = vlaneseq
        %v6744 = vshrl.u32 %v6743, 7
        %v6745 = vsub.s32 5, %v6744
        %v6746 = vrot.slane %v6719, %v6745
        %v6747 = vlaneseq
        %v6748 = vshrl.u32 %v6747, 7
        %v6749 = vsub.s32 6, %v6748
        %v6750 = vrot.slane %v6719, %v6749
        %v6751 = vlaneseq
        %v6752 = vshrl.u32 %v6751, 7
        %v6753 = vsub.s32 7, %v6752
        %v6754 = vrot.slane %v6719, %v6753
        %v6755 = vlaneseq
        %v6756 = vshrl.u32 %v6755, 7
        %v6757 = vsub.s32 0, %v6756
        %v6758 = vrot.slane %v6720, %v6757
        %v6759 = vlaneseq
        %v6760 = vshrl.u32 %v6759, 7
        %v6761 = vsub.s32 1, %v6760
        %v6762 = vrot.slane %v6720, %v6761
        %v6763 = vlaneseq
        %v6764 = vshrl.u32 %v6763, 7
        %v6765 = vsub.s32 2, %v6764
        %v6766 = vrot.slane %v6720, %v6765
        %v6767 = vlaneseq
        %v6768 = vshrl.u32 %v6767, 7
        %v6769 = vsub.s32 3, %v6768
        %v6770 = vrot.slane %v6720, %v6769
        %v6771 = vlaneseq
        %v6772 = vshrl.u32 %v6771, 7
        %v6773 = vsub.s32 4, %v6772
        %v6774 = vrot.slane %v6720, %v6773
        %v6775 = vlaneseq
        %v6776 = vshrl.u32 %v6775, 7
        %v6777 = vsub.s32 5, %v6776
        %v6778 = vrot.slane %v6720, %v6777
        %v6779 = vlaneseq
        %v6780 = vshrl.u32 %v6779, 7
        %v6781 = vsub.s32 6, %v6780
        %v6782 = vrot.slane %v6720, %v6781
        %v6783 = vlaneseq
        %v6784 = vshrl.u32 %v6783, 7
        %v6785 = vsub.s32 7, %v6784
        %v6786 = vrot.slane %v6720, %v6785
        %v6835 = vunpack.c.l.b16 %v6687
        %v6836 = vunpack.c.h.b16 %v6687
        %v6837 = vunpack.c.l.b16 %v6688
        %v6838 = vunpack.c.h.b16 %v6688
        %v6839 = vunpack.c.l.b16 %v6689
        %v6840 = vunpack.c.h.b16 %v6689
        %v6841 = vunpack.c.l.b16 %v6690
        %v6842 = vunpack.c.h.b16 %v6690
        %v6843 = vunpack.c.l.b16 %v6691
        %v6844 = vunpack.c.h.b16 %v6691
        %v6845 = vunpack.c.l.b16 %v6692
        %v6846 = vunpack.c.h.b16 %v6692
        %v6847 = vunpack.c.l.b16 %v6693
        %v6848 = vunpack.c.h.b16 %v6693
        %v6849 = vunpack.c.l.b16 %v6694
        %v6850 = vunpack.c.h.b16 %v6694
        %v6851 = vunpack.c.l.b16 %v6695
        %v6852 = vunpack.c.h.b16 %v6695
        %v6853 = vunpack.c.l.b16 %v6696
        %v6854 = vunpack.c.h.b16 %v6696
        %v6855 = vunpack.c.l.b16 %v6697
        %v6856 = vunpack.c.h.b16 %v6697
        %v6857 = vunpack.c.l.b16 %v6698
        %v6858 = vunpack.c.h.b16 %v6698
        %v6859 = vunpack.c.l.b16 %v6699
        %v6860 = vunpack.c.h.b16 %v6699
        %v6861 = vunpack.c.l.b16 %v6700
        %v6862 = vunpack.c.h.b16 %v6700
        %v6863 = vunpack.c.l.b16 %v6701
        %v6864 = vunpack.c.h.b16 %v6701
        %v6865 = vunpack.c.l.b16 %v6702
        %v6866 = vunpack.c.h.b16 %v6702
        %v6867 = vunpack.c.l.b16 %v6703
        %v6868 = vunpack.c.h.b16 %v6703
        %v6869 = vunpack.c.l.b16 %v6704
        %v6870 = vunpack.c.h.b16 %v6704
        %v6871 = vunpack.c.l.b16 %v6705
        %v6872 = vunpack.c.h.b16 %v6705
        %v6873 = vunpack.c.l.b16 %v6706
        %v6874 = vunpack.c.h.b16 %v6706
        %v6875 = vunpack.c.l.b16 %v6707
        %v6876 = vunpack.c.h.b16 %v6707
        %v6877 = vunpack.c.l.b16 %v6708
        %v6878 = vunpack.c.h.b16 %v6708
        %v6879 = vunpack.c.l.b16 %v6709
        %v6880 = vunpack.c.h.b16 %v6709
        %v6881 = vunpack.c.l.b16 %v6710
        %v6882 = vunpack.c.h.b16 %v6710
        %v6883 = vunpack.c.l.b16 %v6711
        %v6884 = vunpack.c.h.b16 %v6711
        %v6885 = vunpack.c.l.b16 %v6712
        %v6886 = vunpack.c.h.b16 %v6712
        %v6887 = vunpack.c.l.b16 %v6713
        %v6888 = vunpack.c.h.b16 %v6713
        %v6889 = vunpack.c.l.b16 %v6714
        %v6890 = vunpack.c.h.b16 %v6714
        %v6891 = vunpack.c.l.b16 %v6715
        %v6892 = vunpack.c.h.b16 %v6715
        %v6893 = vunpack.c.l.b16 %v6716
        %v6894 = vunpack.c.h.b16 %v6716
        %v6895 = vunpack.c.l.b16 %v6717
        %v6896 = vunpack.c.h.b16 %v6717
        %v6897 = vunpack.c.l.b16 %v6718
        %v6898 = vunpack.c.h.b16 %v6718
        %v6899 = vpack.c.b16 %v6851, %v6835
        %v6900 = vpack.c.b16 %v6852, %v6836
        %v6901 = vpack.c.b16 %v6853, %v6837
        %v6902 = vpack.c.b16 %v6854, %v6838
        %v6903 = vpack.c.b16 %v6855, %v6839
        %v6904 = vpack.c.b16 %v6856, %v6840
        %v6905 = vpack.c.b16 %v6857, %v6841
        %v6906 = vpack.c.b16 %v6858, %v6842
        %v6907 = vpack.c.b16 %v6859, %v6843
        %v6908 = vpack.c.b16 %v6860, %v6844
        %v6909 = vpack.c.b16 %v6861, %v6845
        %v6910 = vpack.c.b16 %v6862, %v6846
        %v6911 = vpack.c.b16 %v6863, %v6847
        %v6912 = vpack.c.b16 %v6864, %v6848
        %v6913 = vpack.c.b16 %v6865, %v6849
        %v6914 = vpack.c.b16 %v6866, %v6850
        %v6915 = vpack.c.b16 %v6883, %v6867
        %v6916 = vpack.c.b16 %v6884, %v6868
        %v6917 = vpack.c.b16 %v6885, %v6869
        %v6918 = vpack.c.b16 %v6886, %v6870
        %v6919 = vpack.c.b16 %v6887, %v6871
        %v6920 = vpack.c.b16 %v6888, %v6872
        %v6921 = vpack.c.b16 %v6889, %v6873
        %v6922 = vpack.c.b16 %v6890, %v6874
        %v6923 = vpack.c.b16 %v6891, %v6875
        %v6924 = vpack.c.b16 %v6892, %v6876
        %v6925 = vpack.c.b16 %v6893, %v6877
        %v6926 = vpack.c.b16 %v6894, %v6878
        %v6927 = vpack.c.b16 %v6895, %v6879
        %v6928 = vpack.c.b16 %v6896, %v6880
        %v6929 = vpack.c.b16 %v6897, %v6881
        %v6930 = vpack.c.b16 %v6898, %v6882
        %v6964 = vsel %vm936, %v6686, 0
        %6966 = vmatprep.subr.bf16.mxu0 0
        %6967 = vmatpush1.bf16.msra.mxu0 0
        %6968 = vmatprep.subr.bf16.mxu0 0
        %6969 = vmatpush1.bf16.msra.mxu0 0
        %6970 = vmatprep.subr.bf16.mxu0 0
        %6971 = vmatpush1.bf16.msra.mxu0 0
        %6972 = vmatprep.subr.bf16.mxu0 0
        %6973 = vmatpush1.bf16.msra.mxu0 0
        %6974 = vmatprep.subr.bf16.mxu0 0
        %6975 = vmatpush1.bf16.msra.mxu0 0
        %6976 = vmatprep.subr.bf16.mxu0 0
        %6977 = vmatpush1.bf16.msra.mxu0 0
        %6978 = vmatprep.subr.bf16.mxu0 %v6916
        %6979 = vmatpush1.bf16.msra.mxu0 %v6915
        %6980 = vmatprep.subr.bf16.mxu0 %v6900
        %6981 = vmatpush1.bf16.msra.mxu0 %v6899
        %6982 = vmatprep.subr.bf16.mxu0 0
        %6983 = vmatpush2.bf16.msra.mxu0 0
        %6984 = vmatprep.subr.bf16.mxu0 0
        %6985 = vmatpush2.bf16.msra.mxu0 0
        %6986 = vmatprep.subr.bf16.mxu0 0
        %6987 = vmatpush2.bf16.msra.mxu0 0
        %6988 = vmatprep.subr.bf16.mxu0 0
        %6989 = vmatpush2.bf16.msra.mxu0 0
        %6990 = vmatprep.subr.bf16.mxu0 0
        %6991 = vmatpush2.bf16.msra.mxu0 0
        %6992 = vmatprep.subr.bf16.mxu0 0
        %6993 = vmatpush2.bf16.msra.mxu0 0
        %6994 = vmatprep.subr.bf16.mxu0 0
        %6995 = vmatpush2.bf16.msra.mxu0 0
        %6996 = vmatprep.subr.bf16.mxu0 0
        %6997 = vmatpush2.bf16.msra.mxu0 0
        %6998 = vmatprep.mubr.bf16.mxu0 0
        %6999 = vmatmul.mubr.bf16.gmra.mxu0 %v6964
        %v7000 = vpop.f32.mrf.mxu0
        %v7001 = vadd.f32 %v6726, %v7000
        %v7002 = vpop.f32.mrf.mxu0
        %v7003 = vadd.f32 %v6730, %v7002
        %v7004 = vpop.f32.mrf.mxu0
        %v7005 = vadd.f32 %v6726, %v7004
        %v7006 = vpop.f32.mrf.mxu0
        %v7007 = vadd.f32 %v6730, %v7006
        %7008 = vdwg.mxu0
        %7009 = vmatprep.subr.bf16.mxu0 0
        %7010 = vmatpush1.bf16.msra.mxu0 0
        %7011 = vmatprep.subr.bf16.mxu0 0
        %7012 = vmatpush1.bf16.msra.mxu0 0
        %7013 = vmatprep.subr.bf16.mxu0 0
        %7014 = vmatpush1.bf16.msra.mxu0 0
        %7015 = vmatprep.subr.bf16.mxu0 0
        %7016 = vmatpush1.bf16.msra.mxu0 0
        %7017 = vmatprep.subr.bf16.mxu0 0
        %7018 = vmatpush1.bf16.msra.mxu0 0
        %7019 = vmatprep.subr.bf16.mxu0 0
        %7020 = vmatpush1.bf16.msra.mxu0 0
        %7021 = vmatprep.subr.bf16.mxu0 %v6918
        %7022 = vmatpush1.bf16.msra.mxu0 %v6917
        %7023 = vmatprep.subr.bf16.mxu0 %v6902
        %7024 = vmatpush1.bf16.msra.mxu0 %v6901
        %7025 = vmatprep.subr.bf16.mxu0 0
        %7026 = vmatpush2.bf16.msra.mxu0 0
        %7027 = vmatprep.subr.bf16.mxu0 0
        %7028 = vmatpush2.bf16.msra.mxu0 0
        %7029 = vmatprep.subr.bf16.mxu0 0
        %7030 = vmatpush2.bf16.msra.mxu0 0
        %7031 = vmatprep.subr.bf16.mxu0 0
        %7032 = vmatpush2.bf16.msra.mxu0 0
        %7033 = vmatprep.subr.bf16.mxu0 0
        %7034 = vmatpush2.bf16.msra.mxu0 0
        %7035 = vmatprep.subr.bf16.mxu0 0
        %7036 = vmatpush2.bf16.msra.mxu0 0
        %7037 = vmatprep.subr.bf16.mxu0 0
        %7038 = vmatpush2.bf16.msra.mxu0 0
        %7039 = vmatprep.subr.bf16.mxu0 0
        %7040 = vmatpush2.bf16.msra.mxu0 0
        %7041 = vmatprep.mubr.bf16.mxu0 0
        %7042 = vmatmul.mubr.bf16.gmra.mxu0 %v6964
        %v7043 = vpop.f32.mrf.mxu0
        %v7044 = vadd.f32 %v6734, %v7043
        %v7045 = vpop.f32.mrf.mxu0
        %v7046 = vadd.f32 %v6738, %v7045
        %v7047 = vpop.f32.mrf.mxu0
        %v7048 = vadd.f32 %v6734, %v7047
        %v7049 = vpop.f32.mrf.mxu0
        %v7050 = vadd.f32 %v6738, %v7049
        %7051 = vdwg.mxu0
        %7052 = vmatprep.subr.bf16.mxu0 0
        %7053 = vmatpush1.bf16.msra.mxu0 0
        %7054 = vmatprep.subr.bf16.mxu0 0
        %7055 = vmatpush1.bf16.msra.mxu0 0
        %7056 = vmatprep.subr.bf16.mxu0 0
        %7057 = vmatpush1.bf16.msra.mxu0 0
        %7058 = vmatprep.subr.bf16.mxu0 0
        %7059 = vmatpush1.bf16.msra.mxu0 0
        %7060 = vmatprep.subr.bf16.mxu0 0
        %7061 = vmatpush1.bf16.msra.mxu0 0
        %7062 = vmatprep.subr.bf16.mxu0 0
        %7063 = vmatpush1.bf16.msra.mxu0 0
        %7064 = vmatprep.subr.bf16.mxu0 %v6920
        %7065 = vmatpush1.bf16.msra.mxu0 %v6919
        %7066 = vmatprep.subr.bf16.mxu0 %v6904
        %7067 = vmatpush1.bf16.msra.mxu0 %v6903
        %7068 = vmatprep.subr.bf16.mxu0 0
        %7069 = vmatpush2.bf16.msra.mxu0 0
        %7070 = vmatprep.subr.bf16.mxu0 0
        %7071 = vmatpush2.bf16.msra.mxu0 0
        %7072 = vmatprep.subr.bf16.mxu0 0
        %7073 = vmatpush2.bf16.msra.mxu0 0
        %7074 = vmatprep.subr.bf16.mxu0 0
        %7075 = vmatpush2.bf16.msra.mxu0 0
        %7076 = vmatprep.subr.bf16.mxu0 0
        %7077 = vmatpush2.bf16.msra.mxu0 0
        %7078 = vmatprep.subr.bf16.mxu0 0
        %7079 = vmatpush2.bf16.msra.mxu0 0
        %7080 = vmatprep.subr.bf16.mxu0 0
        %7081 = vmatpush2.bf16.msra.mxu0 0
        %7082 = vmatprep.subr.bf16.mxu0 0
        %7083 = vmatpush2.bf16.msra.mxu0 0
        %7084 = vmatprep.mubr.bf16.mxu0 0
        %7085 = vmatmul.mubr.bf16.gmra.mxu0 %v6964
        %v7086 = vpop.f32.mrf.mxu0
        %v7087 = vadd.f32 %v6742, %v7086
        %v7088 = vpop.f32.mrf.mxu0
        %v7089 = vadd.f32 %v6746, %v7088
        %v7090 = vpop.f32.mrf.mxu0
        %v7091 = vadd.f32 %v6742, %v7090
        %v7092 = vpop.f32.mrf.mxu0
        %v7093 = vadd.f32 %v6746, %v7092
        %7094 = vdwg.mxu0
        %7095 = vmatprep.subr.bf16.mxu0 0
        %7096 = vmatpush1.bf16.msra.mxu0 0
        %7097 = vmatprep.subr.bf16.mxu0 0
        %7098 = vmatpush1.bf16.msra.mxu0 0
        %7099 = vmatprep.subr.bf16.mxu0 0
        %7100 = vmatpush1.bf16.msra.mxu0 0
        %7101 = vmatprep.subr.bf16.mxu0 0
        %7102 = vmatpush1.bf16.msra.mxu0 0
        %7103 = vmatprep.subr.bf16.mxu0 0
        %7104 = vmatpush1.bf16.msra.mxu0 0
        %7105 = vmatprep.subr.bf16.mxu0 0
        %7106 = vmatpush1.bf16.msra.mxu0 0
        %7107 = vmatprep.subr.bf16.mxu0 %v6922
        %7108 = vmatpush1.bf16.msra.mxu0 %v6921
        %7109 = vmatprep.subr.bf16.mxu0 %v6906
        %7110 = vmatpush1.bf16.msra.mxu0 %v6905
        %7111 = vmatprep.subr.bf16.mxu0 0
        %7112 = vmatpush2.bf16.msra.mxu0 0
        %7113 = vmatprep.subr.bf16.mxu0 0
        %7114 = vmatpush2.bf16.msra.mxu0 0
        %7115 = vmatprep.subr.bf16.mxu0 0
        %7116 = vmatpush2.bf16.msra.mxu0 0
        %7117 = vmatprep.subr.bf16.mxu0 0
        %7118 = vmatpush2.bf16.msra.mxu0 0
        %7119 = vmatprep.subr.bf16.mxu0 0
        %7120 = vmatpush2.bf16.msra.mxu0 0
        %7121 = vmatprep.subr.bf16.mxu0 0
        %7122 = vmatpush2.bf16.msra.mxu0 0
        %7123 = vmatprep.subr.bf16.mxu0 0
        %7124 = vmatpush2.bf16.msra.mxu0 0
        %7125 = vmatprep.subr.bf16.mxu0 0
        %7126 = vmatpush2.bf16.msra.mxu0 0
        %7127 = vmatprep.mubr.bf16.mxu0 0
        %7128 = vmatmul.mubr.bf16.gmra.mxu0 %v6964
        %v7129 = vpop.f32.mrf.mxu0
        %v7130 = vadd.f32 %v6750, %v7129
        %v7131 = vpop.f32.mrf.mxu0
        %v7132 = vadd.f32 %v6754, %v7131
        %v7133 = vpop.f32.mrf.mxu0
        %v7134 = vadd.f32 %v6750, %v7133
        %v7135 = vpop.f32.mrf.mxu0
        %v7136 = vadd.f32 %v6754, %v7135
        %7137 = vdwg.mxu0
        %7138 = vmatprep.subr.bf16.mxu0 0
        %7139 = vmatpush1.bf16.msra.mxu0 0
        %7140 = vmatprep.subr.bf16.mxu0 0
        %7141 = vmatpush1.bf16.msra.mxu0 0
        %7142 = vmatprep.subr.bf16.mxu0 0
        %7143 = vmatpush1.bf16.msra.mxu0 0
        %7144 = vmatprep.subr.bf16.mxu0 0
        %7145 = vmatpush1.bf16.msra.mxu0 0
        %7146 = vmatprep.subr.bf16.mxu0 0
        %7147 = vmatpush1.bf16.msra.mxu0 0
        %7148 = vmatprep.subr.bf16.mxu0 0
        %7149 = vmatpush1.bf16.msra.mxu0 0
        %7150 = vmatprep.subr.bf16.mxu0 %v6924
        %7151 = vmatpush1.bf16.msra.mxu0 %v6923
        %7152 = vmatprep.subr.bf16.mxu0 %v6908
        %7153 = vmatpush1.bf16.msra.mxu0 %v6907
        %7154 = vmatprep.subr.bf16.mxu0 0
        %7155 = vmatpush2.bf16.msra.mxu0 0
        %7156 = vmatprep.subr.bf16.mxu0 0
        %7157 = vmatpush2.bf16.msra.mxu0 0
        %7158 = vmatprep.subr.bf16.mxu0 0
        %7159 = vmatpush2.bf16.msra.mxu0 0
        %7160 = vmatprep.subr.bf16.mxu0 0
        %7161 = vmatpush2.bf16.msra.mxu0 0
        %7162 = vmatprep.subr.bf16.mxu0 0
        %7163 = vmatpush2.bf16.msra.mxu0 0
        %7164 = vmatprep.subr.bf16.mxu0 0
        %7165 = vmatpush2.bf16.msra.mxu0 0
        %7166 = vmatprep.subr.bf16.mxu0 0
        %7167 = vmatpush2.bf16.msra.mxu0 0
        %7168 = vmatprep.subr.bf16.mxu0 0
        %7169 = vmatpush2.bf16.msra.mxu0 0
        %7170 = vmatprep.mubr.bf16.mxu0 0
        %7171 = vmatmul.mubr.bf16.gmra.mxu0 %v6964
        %v7172 = vpop.f32.mrf.mxu0
        %v7173 = vadd.f32 %v6758, %v7172
        %v7174 = vpop.f32.mrf.mxu0
        %v7175 = vadd.f32 %v6762, %v7174
        %v7176 = vpop.f32.mrf.mxu0
        %v7177 = vadd.f32 %v6758, %v7176
        %v7178 = vpop.f32.mrf.mxu0
        %v7179 = vadd.f32 %v6762, %v7178
        %7180 = vdwg.mxu0
        %7181 = vmatprep.subr.bf16.mxu0 0
        %7182 = vmatpush1.bf16.msra.mxu0 0
        %7183 = vmatprep.subr.bf16.mxu0 0
        %7184 = vmatpush1.bf16.msra.mxu0 0
        %7185 = vmatprep.subr.bf16.mxu0 0
        %7186 = vmatpush1.bf16.msra.mxu0 0
        %7187 = vmatprep.subr.bf16.mxu0 0
        %7188 = vmatpush1.bf16.msra.mxu0 0
        %7189 = vmatprep.subr.bf16.mxu0 0
        %7190 = vmatpush1.bf16.msra.mxu0 0
        %7191 = vmatprep.subr.bf16.mxu0 0
        %7192 = vmatpush1.bf16.msra.mxu0 0
        %7193 = vmatprep.subr.bf16.mxu0 %v6926
        %7194 = vmatpush1.bf16.msra.mxu0 %v6925
        %7195 = vmatprep.subr.bf16.mxu0 %v6910
        %7196 = vmatpush1.bf16.msra.mxu0 %v6909
        %7197 = vmatprep.subr.bf16.mxu0 0
        %7198 = vmatpush2.bf16.msra.mxu0 0
        %7199 = vmatprep.subr.bf16.mxu0 0
        %7200 = vmatpush2.bf16.msra.mxu0 0
        %7201 = vmatprep.subr.bf16.mxu0 0
        %7202 = vmatpush2.bf16.msra.mxu0 0
        %7203 = vmatprep.subr.bf16.mxu0 0
        %7204 = vmatpush2.bf16.msra.mxu0 0
        %7205 = vmatprep.subr.bf16.mxu0 0
        %7206 = vmatpush2.bf16.msra.mxu0 0
        %7207 = vmatprep.subr.bf16.mxu0 0
        %7208 = vmatpush2.bf16.msra.mxu0 0
        %7209 = vmatprep.subr.bf16.mxu0 0
        %7210 = vmatpush2.bf16.msra.mxu0 0
        %7211 = vmatprep.subr.bf16.mxu0 0
        %7212 = vmatpush2.bf16.msra.mxu0 0
        %7213 = vmatprep.mubr.bf16.mxu0 0
        %7214 = vmatmul.mubr.bf16.gmra.mxu0 %v6964
        %v7215 = vpop.f32.mrf.mxu0
        %v7216 = vadd.f32 %v6766, %v7215
        %v7217 = vpop.f32.mrf.mxu0
        %v7218 = vadd.f32 %v6770, %v7217
        %v7219 = vpop.f32.mrf.mxu0
        %v7220 = vadd.f32 %v6766, %v7219
        %v7221 = vpop.f32.mrf.mxu0
        %v7222 = vadd.f32 %v6770, %v7221
        %7223 = vdwg.mxu0
        %7224 = vmatprep.subr.bf16.mxu0 0
        %7225 = vmatpush1.bf16.msra.mxu0 0
        %7226 = vmatprep.subr.bf16.mxu0 0
        %7227 = vmatpush1.bf16.msra.mxu0 0
        %7228 = vmatprep.subr.bf16.mxu0 0
        %7229 = vmatpush1.bf16.msra.mxu0 0
        %7230 = vmatprep.subr.bf16.mxu0 0
        %7231 = vmatpush1.bf16.msra.mxu0 0
        %7232 = vmatprep.subr.bf16.mxu0 0
        %7233 = vmatpush1.bf16.msra.mxu0 0
        %7234 = vmatprep.subr.bf16.mxu0 0
        %7235 = vmatpush1.bf16.msra.mxu0 0
        %7236 = vmatprep.subr.bf16.mxu0 %v6928
        %7237 = vmatpush1.bf16.msra.mxu0 %v6927
        %7238 = vmatprep.subr.bf16.mxu0 %v6912
        %7239 = vmatpush1.bf16.msra.mxu0 %v6911
        %7240 = vmatprep.subr.bf16.mxu0 0
        %7241 = vmatpush2.bf16.msra.mxu0 0
        %7242 = vmatprep.subr.bf16.mxu0 0
        %7243 = vmatpush2.bf16.msra.mxu0 0
        %7244 = vmatprep.subr.bf16.mxu0 0
        %7245 = vmatpush2.bf16.msra.mxu0 0
        %7246 = vmatprep.subr.bf16.mxu0 0
        %7247 = vmatpush2.bf16.msra.mxu0 0
        %7248 = vmatprep.subr.bf16.mxu0 0
        %7249 = vmatpush2.bf16.msra.mxu0 0
        %7250 = vmatprep.subr.bf16.mxu0 0
        %7251 = vmatpush2.bf16.msra.mxu0 0
        %7252 = vmatprep.subr.bf16.mxu0 0
        %7253 = vmatpush2.bf16.msra.mxu0 0
        %7254 = vmatprep.subr.bf16.mxu0 0
        %7255 = vmatpush2.bf16.msra.mxu0 0
        %7256 = vmatprep.mubr.bf16.mxu0 0
        %7257 = vmatmul.mubr.bf16.gmra.mxu0 %v6964
        %v7258 = vpop.f32.mrf.mxu0
        %v7259 = vadd.f32 %v6774, %v7258
        %v7260 = vpop.f32.mrf.mxu0
        %v7261 = vadd.f32 %v6778, %v7260
        %v7262 = vpop.f32.mrf.mxu0
        %v7263 = vadd.f32 %v6774, %v7262
        %v7264 = vpop.f32.mrf.mxu0
        %v7265 = vadd.f32 %v6778, %v7264
        %7266 = vdwg.mxu0
        %7267 = vmatprep.subr.bf16.mxu0 0
        %7268 = vmatpush1.bf16.msra.mxu0 0
        %7269 = vmatprep.subr.bf16.mxu0 0
        %7270 = vmatpush1.bf16.msra.mxu0 0
        %7271 = vmatprep.subr.bf16.mxu0 0
        %7272 = vmatpush1.bf16.msra.mxu0 0
        %7273 = vmatprep.subr.bf16.mxu0 0
        %7274 = vmatpush1.bf16.msra.mxu0 0
        %7275 = vmatprep.subr.bf16.mxu0 0
        %7276 = vmatpush1.bf16.msra.mxu0 0
        %7277 = vmatprep.subr.bf16.mxu0 0
        %7278 = vmatpush1.bf16.msra.mxu0 0
        %7279 = vmatprep.subr.bf16.mxu0 %v6930
        %7280 = vmatpush1.bf16.msra.mxu0 %v6929
        %7281 = vmatprep.subr.bf16.mxu0 %v6914
        %7282 = vmatpush1.bf16.msra.mxu0 %v6913
        %7283 = vmatprep.subr.bf16.mxu0 0
        %7284 = vmatpush2.bf16.msra.mxu0 0
        %7285 = vmatprep.subr.bf16.mxu0 0
        %7286 = vmatpush2.bf16.msra.mxu0 0
        %7287 = vmatprep.subr.bf16.mxu0 0
        %7288 = vmatpush2.bf16.msra.mxu0 0
        %7289 = vmatprep.subr.bf16.mxu0 0
        %7290 = vmatpush2.bf16.msra.mxu0 0
        %7291 = vmatprep.subr.bf16.mxu0 0
        %7292 = vmatpush2.bf16.msra.mxu0 0
        %7293 = vmatprep.subr.bf16.mxu0 0
        %7294 = vmatpush2.bf16.msra.mxu0 0
        %7295 = vmatprep.subr.bf16.mxu0 0
        %7296 = vmatpush2.bf16.msra.mxu0 0
        %7297 = vmatprep.subr.bf16.mxu0 0
        %7298 = vmatpush2.bf16.msra.mxu0 0
        %7299 = vmatprep.mubr.bf16.mxu0 0
        %7300 = vmatmul.mubr.bf16.gmra.mxu0 %v6964
        %v7301 = vpop.f32.mrf.mxu0
        %v7302 = vadd.f32 %v6782, %v7301
        %v7303 = vpop.f32.mrf.mxu0
        %v7304 = vadd.f32 %v6786, %v7303
        %v7305 = vpop.f32.mrf.mxu0
        %v7306 = vadd.f32 %v6782, %v7305
        %v7307 = vpop.f32.mrf.mxu0
        %v7308 = vadd.f32 %v6786, %v7307
        %7309 = vdwg.mxu0
        %v7310 = vmax.f32 %v7001, 0.0
        %v7311 = vmax.f32 %v7003, 0.0
        %v7312 = vmax.f32 %v7044, 0.0
        %v7313 = vmax.f32 %v7046, 0.0
        %v7314 = vmax.f32 %v7087, 0.0
        %v7315 = vmax.f32 %v7089, 0.0
        %v7316 = vmax.f32 %v7130, 0.0
        %v7317 = vmax.f32 %v7132, 0.0
        %v7318 = vmax.f32 %v7173, 0.0
        %v7319 = vmax.f32 %v7175, 0.0
        %v7320 = vmax.f32 %v7216, 0.0
        %v7321 = vmax.f32 %v7218, 0.0
        %v7322 = vmax.f32 %v7259, 0.0
        %v7323 = vmax.f32 %v7261, 0.0
        %v7324 = vmax.f32 %v7302, 0.0
        %v7325 = vmax.f32 %v7304, 0.0
        %v7326 = vmax.f32 %v7005, 0.0
        %v7327 = vmax.f32 %v7007, 0.0
        %v7328 = vmax.f32 %v7048, 0.0
        %v7329 = vmax.f32 %v7050, 0.0
        %v7330 = vmax.f32 %v7091, 0.0
        %v7331 = vmax.f32 %v7093, 0.0
        %v7332 = vmax.f32 %v7134, 0.0
        %v7333 = vmax.f32 %v7136, 0.0
        %v7334 = vmax.f32 %v7177, 0.0
        %v7335 = vmax.f32 %v7179, 0.0
        %v7336 = vmax.f32 %v7220, 0.0
        %v7337 = vmax.f32 %v7222, 0.0
        %v7338 = vmax.f32 %v7263, 0.0
        %v7339 = vmax.f32 %v7265, 0.0
        %v7340 = vmax.f32 %v7306, 0.0
        %v7341 = vmax.f32 %v7308, 0.0
        %v7342 = vpack.c.bf16 %v7326, %v7310
        %v7343 = vpack.c.bf16 %v7327, %v7311
        %v7344 = vpack.c.bf16 %v7328, %v7312
        %v7345 = vpack.c.bf16 %v7329, %v7313
        %v7346 = vpack.c.bf16 %v7330, %v7314
        %v7347 = vpack.c.bf16 %v7331, %v7315
        %v7348 = vpack.c.bf16 %v7332, %v7316
        %v7349 = vpack.c.bf16 %v7333, %v7317
        %v7350 = vpack.c.bf16 %v7334, %v7318
        %v7351 = vpack.c.bf16 %v7335, %v7319
        %v7352 = vpack.c.bf16 %v7336, %v7320
        %v7353 = vpack.c.bf16 %v7337, %v7321
        %v7354 = vpack.c.bf16 %v7338, %v7322
        %v7355 = vpack.c.bf16 %v7339, %v7323
        %v7356 = vpack.c.bf16 %v7340, %v7324
        %v7357 = vpack.c.bf16 %v7341, %v7325
        %v7358 = vld [vmem:[%s730] sm:$0xf]
        %v7359 = vld [vmem:[%s730 + $0x4] sm:$0xf]
        %v7360 = vld [vmem:[%s730 + $0x8] sm:$0xf]
        %v7361 = vld [vmem:[%s730 + $0xc] sm:$0xf]
        %v7362 = vld [vmem:[%s730 + $0x10] sm:$0xf]
        %v7363 = vld [vmem:[%s730 + $0x14] sm:$0xf]
        %v7364 = vld [vmem:[%s730 + $0x18] sm:$0xf]
        %v7365 = vld [vmem:[%s730 + $0x1c] sm:$0xf]
        %v7366 = vld [vmem:[%s730 + $0x20] sm:$0xf]
        %v7367 = vld [vmem:[%s730 + $0x24] sm:$0xf]
        %v7368 = vld [vmem:[%s730 + $0x28] sm:$0xf]
        %v7369 = vld [vmem:[%s730 + $0x2c] sm:$0xf]
        %v7370 = vld [vmem:[%s730 + $0x30] sm:$0xf]
        %v7371 = vld [vmem:[%s730 + $0x34] sm:$0xf]
        %v7372 = vld [vmem:[%s730 + $0x38] sm:$0xf]
        %v7373 = vld [vmem:[%s730 + $0x3c] sm:$0xf]
        %v7374 = vld [vmem:[%s730 + $0x40] sm:$0xf]
        %v7375 = vld [vmem:[%s730 + $0x44] sm:$0xf]
        %v7376 = vld [vmem:[%s730 + $0x48] sm:$0xf]
        %v7377 = vld [vmem:[%s730 + $0x4c] sm:$0xf]
        %v7378 = vld [vmem:[%s730 + $0x50] sm:$0xf]
        %v7379 = vld [vmem:[%s730 + $0x54] sm:$0xf]
        %v7380 = vld [vmem:[%s730 + $0x58] sm:$0xf]
        %v7381 = vld [vmem:[%s730 + $0x5c] sm:$0xf]
        %v7382 = vld [vmem:[%s730 + $0x60] sm:$0xf]
        %v7383 = vld [vmem:[%s730 + $0x64] sm:$0xf]
        %v7384 = vld [vmem:[%s730 + $0x68] sm:$0xf]
        %v7385 = vld [vmem:[%s730 + $0x6c] sm:$0xf]
        %v7386 = vld [vmem:[%s730 + $0x70] sm:$0xf]
        %v7387 = vld [vmem:[%s730 + $0x74] sm:$0xf]
        %v7388 = vld [vmem:[%s730 + $0x78] sm:$0xf]
        %v7389 = vld [vmem:[%s730 + $0x7c] sm:$0xf]
        %v7390 = vld [vmem:[%s730 + $0x80] sm:$0xf]
        %v7391 = vld [vmem:[%s730 + $0x84] sm:$0xf]
        %v7392 = vld [vmem:[%s730 + $0x88] sm:$0xf]
        %v7393 = vld [vmem:[%s730 + $0x8c] sm:$0xf]
        %v7394 = vld [vmem:[%s730 + $0x90] sm:$0xf]
        %v7395 = vld [vmem:[%s730 + $0x94] sm:$0xf]
        %v7396 = vld [vmem:[%s730 + $0x98] sm:$0xf]
        %v7397 = vld [vmem:[%s730 + $0x9c] sm:$0xf]
        %v7398 = vld [vmem:[%s730 + $0xa0] sm:$0xf]
        %v7399 = vld [vmem:[%s730 + $0xa4] sm:$0xf]
        %v7400 = vld [vmem:[%s730 + $0xa8] sm:$0xf]
        %v7401 = vld [vmem:[%s730 + $0xac] sm:$0xf]
        %v7402 = vld [vmem:[%s730 + $0xb0] sm:$0xf]
        %v7403 = vld [vmem:[%s730 + $0xb4] sm:$0xf]
        %v7404 = vld [vmem:[%s730 + $0xb8] sm:$0xf]
        %v7405 = vld [vmem:[%s730 + $0xbc] sm:$0xf]
        %v7406 = vld [vmem:[%s730 + $0xc0] sm:$0xf]
        %v7407 = vld [vmem:[%s730 + $0xc4] sm:$0xf]
        %v7408 = vld [vmem:[%s730 + $0xc8] sm:$0xf]
        %v7409 = vld [vmem:[%s730 + $0xcc] sm:$0xf]
        %v7410 = vld [vmem:[%s730 + $0xd0] sm:$0xf]
        %v7411 = vld [vmem:[%s730 + $0xd4] sm:$0xf]
        %v7412 = vld [vmem:[%s730 + $0xd8] sm:$0xf]
        %v7413 = vld [vmem:[%s730 + $0xdc] sm:$0xf]
        %v7414 = vld [vmem:[%s730 + $0xe0] sm:$0xf]
        %v7415 = vld [vmem:[%s730 + $0xe4] sm:$0xf]
        %v7416 = vld [vmem:[%s730 + $0xe8] sm:$0xf]
        %v7417 = vld [vmem:[%s730 + $0xec] sm:$0xf]
        %v7418 = vld [vmem:[%s730 + $0xf0] sm:$0xf]
        %v7419 = vld [vmem:[%s730 + $0xf4] sm:$0xf]
        %v7420 = vld [vmem:[%s730 + $0xf8] sm:$0xf]
        %v7421 = vld [vmem:[%s730 + $0xfc] sm:$0xf]
        %v7422 = vld [vmem:[%s730 + $0x100] sm:$0xf]
        %v7423 = vld [vmem:[%s730 + $0x104] sm:$0xf]
        %v7424 = vld [vmem:[%s730 + $0x108] sm:$0xf]
        %v7425 = vld [vmem:[%s730 + $0x10c] sm:$0xf]
        %v7426 = vld [vmem:[%s730 + $0x110] sm:$0xf]
        %v7427 = vld [vmem:[%s730 + $0x114] sm:$0xf]
        %v7428 = vld [vmem:[%s730 + $0x118] sm:$0xf]
        %v7429 = vld [vmem:[%s730 + $0x11c] sm:$0xf]
        %v7430 = vld [vmem:[%s730 + $0x120] sm:$0xf]
        %v7431 = vld [vmem:[%s730 + $0x124] sm:$0xf]
        %v7432 = vld [vmem:[%s730 + $0x128] sm:$0xf]
        %v7433 = vld [vmem:[%s730 + $0x12c] sm:$0xf]
        %v7434 = vld [vmem:[%s730 + $0x130] sm:$0xf]
        %v7435 = vld [vmem:[%s730 + $0x134] sm:$0xf]
        %v7436 = vld [vmem:[%s730 + $0x138] sm:$0xf]
        %v7437 = vld [vmem:[%s730 + $0x13c] sm:$0xf]
        %v7438 = vld [vmem:[%s730 + $0x140] sm:$0xf]
        %v7439 = vld [vmem:[%s730 + $0x144] sm:$0xf]
        %v7440 = vld [vmem:[%s730 + $0x148] sm:$0xf]
        %v7441 = vld [vmem:[%s730 + $0x14c] sm:$0xf]
        %v7442 = vld [vmem:[%s730 + $0x150] sm:$0xf]
        %v7443 = vld [vmem:[%s730 + $0x154] sm:$0xf]
        %v7444 = vld [vmem:[%s730 + $0x158] sm:$0xf]
        %v7445 = vld [vmem:[%s730 + $0x15c] sm:$0xf]
        %v7446 = vld [vmem:[%s730 + $0x160] sm:$0xf]
        %v7447 = vld [vmem:[%s730 + $0x164] sm:$0xf]
        %v7448 = vld [vmem:[%s730 + $0x168] sm:$0xf]
        %v7449 = vld [vmem:[%s730 + $0x16c] sm:$0xf]
        %v7450 = vld [vmem:[%s730 + $0x170] sm:$0xf]
        %v7451 = vld [vmem:[%s730 + $0x174] sm:$0xf]
        %v7452 = vld [vmem:[%s730 + $0x178] sm:$0xf]
        %v7453 = vld [vmem:[%s730 + $0x17c] sm:$0xf]
        %v7454 = vld [vmem:[%s730 + $0x180] sm:$0xf]
        %v7455 = vld [vmem:[%s730 + $0x184] sm:$0xf]
        %v7456 = vld [vmem:[%s730 + $0x188] sm:$0xf]
        %v7457 = vld [vmem:[%s730 + $0x18c] sm:$0xf]
        %v7458 = vld [vmem:[%s730 + $0x190] sm:$0xf]
        %v7459 = vld [vmem:[%s730 + $0x194] sm:$0xf]
        %v7460 = vld [vmem:[%s730 + $0x198] sm:$0xf]
        %v7461 = vld [vmem:[%s730 + $0x19c] sm:$0xf]
        %v7462 = vld [vmem:[%s730 + $0x1a0] sm:$0xf]
        %v7463 = vld [vmem:[%s730 + $0x1a4] sm:$0xf]
        %v7464 = vld [vmem:[%s730 + $0x1a8] sm:$0xf]
        %v7465 = vld [vmem:[%s730 + $0x1ac] sm:$0xf]
        %v7466 = vld [vmem:[%s730 + $0x1b0] sm:$0xf]
        %v7467 = vld [vmem:[%s730 + $0x1b4] sm:$0xf]
        %v7468 = vld [vmem:[%s730 + $0x1b8] sm:$0xf]
        %v7469 = vld [vmem:[%s730 + $0x1bc] sm:$0xf]
        %v7470 = vld [vmem:[%s730 + $0x1c0] sm:$0xf]
        %v7471 = vld [vmem:[%s730 + $0x1c4] sm:$0xf]
        %v7472 = vld [vmem:[%s730 + $0x1c8] sm:$0xf]
        %v7473 = vld [vmem:[%s730 + $0x1cc] sm:$0xf]
        %v7474 = vld [vmem:[%s730 + $0x1d0] sm:$0xf]
        %v7475 = vld [vmem:[%s730 + $0x1d4] sm:$0xf]
        %v7476 = vld [vmem:[%s730 + $0x1d8] sm:$0xf]
        %v7477 = vld [vmem:[%s730 + $0x1dc] sm:$0xf]
        %v7478 = vld [vmem:[%s730 + $0x1e0] sm:$0xf]
        %v7479 = vld [vmem:[%s730 + $0x1e4] sm:$0xf]
        %v7480 = vld [vmem:[%s730 + $0x1e8] sm:$0xf]
        %v7481 = vld [vmem:[%s730 + $0x1ec] sm:$0xf]
        %v7482 = vld [vmem:[%s730 + $0x1f0] sm:$0xf]
        %v7483 = vld [vmem:[%s730 + $0x1f4] sm:$0xf]
        %v7484 = vld [vmem:[%s730 + $0x1f8] sm:$0xf]
        %v7485 = vld [vmem:[%s730 + $0x1fc] sm:$0xf]
        %v7486 = vld [vmem:[%s730 + $0x200] sm:$0xf]
        %v7487 = vld [vmem:[%s730 + $0x204] sm:$0xf]
        %v7488 = vld [vmem:[%s730 + $0x208] sm:$0xf]
        %v7489 = vld [vmem:[%s730 + $0x20c] sm:$0xf]
        %v7490 = vld [vmem:[%s730 + $0x210] sm:$0xf]
        %v7491 = vld [vmem:[%s730 + $0x214] sm:$0xf]
        %v7492 = vld [vmem:[%s730 + $0x218] sm:$0xf]
        %v7493 = vld [vmem:[%s730 + $0x21c] sm:$0xf]
        %v7494 = vld [vmem:[%s730 + $0x220] sm:$0xf]
        %v7495 = vld [vmem:[%s730 + $0x224] sm:$0xf]
        %v7496 = vld [vmem:[%s730 + $0x228] sm:$0xf]
        %v7497 = vld [vmem:[%s730 + $0x22c] sm:$0xf]
        %v7498 = vld [vmem:[%s730 + $0x230] sm:$0xf]
        %v7499 = vld [vmem:[%s730 + $0x234] sm:$0xf]
        %v7500 = vld [vmem:[%s730 + $0x238] sm:$0xf]
        %v7501 = vld [vmem:[%s730 + $0x23c] sm:$0xf]
        %v7502 = vld [vmem:[%s730 + $0x240] sm:$0xf]
        %v7503 = vld [vmem:[%s730 + $0x244] sm:$0xf]
        %v7504 = vld [vmem:[%s730 + $0x248] sm:$0xf]
        %v7505 = vld [vmem:[%s730 + $0x24c] sm:$0xf]
        %v7506 = vld [vmem:[%s730 + $0x250] sm:$0xf]
        %v7507 = vld [vmem:[%s730 + $0x254] sm:$0xf]
        %v7508 = vld [vmem:[%s730 + $0x258] sm:$0xf]
        %v7509 = vld [vmem:[%s730 + $0x25c] sm:$0xf]
        %v7510 = vld [vmem:[%s730 + $0x260] sm:$0xf]
        %v7511 = vld [vmem:[%s730 + $0x264] sm:$0xf]
        %v7512 = vld [vmem:[%s730 + $0x268] sm:$0xf]
        %v7513 = vld [vmem:[%s730 + $0x26c] sm:$0xf]
        %v7514 = vld [vmem:[%s730 + $0x270] sm:$0xf]
        %v7515 = vld [vmem:[%s730 + $0x274] sm:$0xf]
        %v7516 = vld [vmem:[%s730 + $0x278] sm:$0xf]
        %v7517 = vld [vmem:[%s730 + $0x27c] sm:$0xf]
        %v7518 = vld [vmem:[%s730 + $0x280] sm:$0xf]
        %v7519 = vld [vmem:[%s730 + $0x284] sm:$0xf]
        %v7520 = vld [vmem:[%s730 + $0x288] sm:$0xf]
        %v7521 = vld [vmem:[%s730 + $0x28c] sm:$0xf]
        %v7522 = vld [vmem:[%s730 + $0x290] sm:$0xf]
        %v7523 = vld [vmem:[%s730 + $0x294] sm:$0xf]
        %v7524 = vld [vmem:[%s730 + $0x298] sm:$0xf]
        %v7525 = vld [vmem:[%s730 + $0x29c] sm:$0xf]
        %v7526 = vld [vmem:[%s730 + $0x2a0] sm:$0xf]
        %v7527 = vld [vmem:[%s730 + $0x2a4] sm:$0xf]
        %v7528 = vld [vmem:[%s730 + $0x2a8] sm:$0xf]
        %v7529 = vld [vmem:[%s730 + $0x2ac] sm:$0xf]
        %v7530 = vld [vmem:[%s730 + $0x2b0] sm:$0xf]
        %v7531 = vld [vmem:[%s730 + $0x2b4] sm:$0xf]
        %v7532 = vld [vmem:[%s730 + $0x2b8] sm:$0xf]
        %v7533 = vld [vmem:[%s730 + $0x2bc] sm:$0xf]
        %v7534 = vld [vmem:[%s730 + $0x2c0] sm:$0xf]
        %v7535 = vld [vmem:[%s730 + $0x2c4] sm:$0xf]
        %v7536 = vld [vmem:[%s730 + $0x2c8] sm:$0xf]
        %v7537 = vld [vmem:[%s730 + $0x2cc] sm:$0xf]
        %v7538 = vld [vmem:[%s730 + $0x2d0] sm:$0xf]
        %v7539 = vld [vmem:[%s730 + $0x2d4] sm:$0xf]
        %v7540 = vld [vmem:[%s730 + $0x2d8] sm:$0xf]
        %v7541 = vld [vmem:[%s730 + $0x2dc] sm:$0xf]
        %v7542 = vld [vmem:[%s730 + $0x2e0] sm:$0xf]
        %v7543 = vld [vmem:[%s730 + $0x2e4] sm:$0xf]
        %v7544 = vld [vmem:[%s730 + $0x2e8] sm:$0xf]
        %v7545 = vld [vmem:[%s730 + $0x2ec] sm:$0xf]
        %v7546 = vld [vmem:[%s730 + $0x2f0] sm:$0xf]
        %v7547 = vld [vmem:[%s730 + $0x2f4] sm:$0xf]
        %v7548 = vld [vmem:[%s730 + $0x2f8] sm:$0xf]
        %v7549 = vld [vmem:[%s730 + $0x2fc] sm:$0xf]
        %v7550 = vld [vmem:[%s730 + $0x300] sm:$0xf]
        %v7551 = vld [vmem:[%s730 + $0x304] sm:$0xf]
        %v7552 = vld [vmem:[%s730 + $0x308] sm:$0xf]
        %v7553 = vld [vmem:[%s730 + $0x30c] sm:$0xf]
        %v7554 = vld [vmem:[%s730 + $0x310] sm:$0xf]
        %v7555 = vld [vmem:[%s730 + $0x314] sm:$0xf]
        %v7556 = vld [vmem:[%s730 + $0x318] sm:$0xf]
        %v7557 = vld [vmem:[%s730 + $0x31c] sm:$0xf]
        %v7558 = vld [vmem:[%s730 + $0x320] sm:$0xf]
        %v7559 = vld [vmem:[%s730 + $0x324] sm:$0xf]
        %v7560 = vld [vmem:[%s730 + $0x328] sm:$0xf]
        %v7561 = vld [vmem:[%s730 + $0x32c] sm:$0xf]
        %v7562 = vld [vmem:[%s730 + $0x330] sm:$0xf]
        %v7563 = vld [vmem:[%s730 + $0x334] sm:$0xf]
        %v7564 = vld [vmem:[%s730 + $0x338] sm:$0xf]
        %v7565 = vld [vmem:[%s730 + $0x33c] sm:$0xf]
        %v7566 = vld [vmem:[%s730 + $0x340] sm:$0xf]
        %v7567 = vld [vmem:[%s730 + $0x344] sm:$0xf]
        %v7568 = vld [vmem:[%s730 + $0x348] sm:$0xf]
        %v7569 = vld [vmem:[%s730 + $0x34c] sm:$0xf]
        %v7570 = vld [vmem:[%s730 + $0x350] sm:$0xf]
        %v7571 = vld [vmem:[%s730 + $0x354] sm:$0xf]
        %v7572 = vld [vmem:[%s730 + $0x358] sm:$0xf]
        %v7573 = vld [vmem:[%s730 + $0x35c] sm:$0xf]
        %v7574 = vld [vmem:[%s730 + $0x360] sm:$0xf]
        %v7575 = vld [vmem:[%s730 + $0x364] sm:$0xf]
        %v7576 = vld [vmem:[%s730 + $0x368] sm:$0xf]
        %v7577 = vld [vmem:[%s730 + $0x36c] sm:$0xf]
        %v7578 = vld [vmem:[%s730 + $0x370] sm:$0xf]
        %v7579 = vld [vmem:[%s730 + $0x374] sm:$0xf]
        %v7580 = vld [vmem:[%s730 + $0x378] sm:$0xf]
        %v7581 = vld [vmem:[%s730 + $0x37c] sm:$0xf]
        %v7582 = vld [vmem:[%s730 + $0x380] sm:$0xf]
        %v7583 = vld [vmem:[%s730 + $0x384] sm:$0xf]
        %v7584 = vld [vmem:[%s730 + $0x388] sm:$0xf]
        %v7585 = vld [vmem:[%s730 + $0x38c] sm:$0xf]
        %v7586 = vld [vmem:[%s730 + $0x390] sm:$0xf]
        %v7587 = vld [vmem:[%s730 + $0x394] sm:$0xf]
        %v7588 = vld [vmem:[%s730 + $0x398] sm:$0xf]
        %v7589 = vld [vmem:[%s730 + $0x39c] sm:$0xf]
        %v7590 = vld [vmem:[%s730 + $0x3a0] sm:$0xf]
        %v7591 = vld [vmem:[%s730 + $0x3a4] sm:$0xf]
        %v7592 = vld [vmem:[%s730 + $0x3a8] sm:$0xf]
        %v7593 = vld [vmem:[%s730 + $0x3ac] sm:$0xf]
        %v7594 = vld [vmem:[%s730 + $0x3b0] sm:$0xf]
        %v7595 = vld [vmem:[%s730 + $0x3b4] sm:$0xf]
        %v7596 = vld [vmem:[%s730 + $0x3b8] sm:$0xf]
        %v7597 = vld [vmem:[%s730 + $0x3bc] sm:$0xf]
        %v7598 = vld [vmem:[%s730 + $0x3c0] sm:$0xf]
        %v7599 = vld [vmem:[%s730 + $0x3c4] sm:$0xf]
        %v7600 = vld [vmem:[%s730 + $0x3c8] sm:$0xf]
        %v7601 = vld [vmem:[%s730 + $0x3cc] sm:$0xf]
        %v7602 = vld [vmem:[%s730 + $0x3d0] sm:$0xf]
        %v7603 = vld [vmem:[%s730 + $0x3d4] sm:$0xf]
        %v7604 = vld [vmem:[%s730 + $0x3d8] sm:$0xf]
        %v7605 = vld [vmem:[%s730 + $0x3dc] sm:$0xf]
        %v7606 = vld [vmem:[%s730 + $0x3e0] sm:$0xf]
        %v7607 = vld [vmem:[%s730 + $0x3e4] sm:$0xf]
        %v7608 = vld [vmem:[%s730 + $0x3e8] sm:$0xf]
        %v7609 = vld [vmem:[%s730 + $0x3ec] sm:$0xf]
        %v7610 = vld [vmem:[%s730 + $0x3f0] sm:$0xf]
        %v7611 = vld [vmem:[%s730 + $0x3f4] sm:$0xf]
        %v7612 = vld [vmem:[%s730 + $0x3f8] sm:$0xf]
        %v7613 = vld [vmem:[%s730 + $0x3fc] sm:$0xf]
        %v7614 = vld [vmem:[%s733] sm:$0x1]
        %v7616 = vlaneseq
        %v7617 = vshrl.u32 %v7616, 7
        %v7618 = vsub.s32 0, %v7617
        %v7619 = vrot.slane %v7614, %v7618
        %v7877 = vunpack.c.l.b16 %v7358
        %v7878 = vunpack.c.l.b16 %v7359
        %v7879 = vunpack.c.l.b16 %v7360
        %v7880 = vunpack.c.l.b16 %v7361
        %v7881 = vunpack.c.l.b16 %v7362
        %v7882 = vunpack.c.l.b16 %v7363
        %v7883 = vunpack.c.l.b16 %v7364
        %v7884 = vunpack.c.l.b16 %v7365
        %v7885 = vunpack.c.l.b16 %v7366
        %v7886 = vunpack.c.l.b16 %v7367
        %v7887 = vunpack.c.l.b16 %v7368
        %v7888 = vunpack.c.l.b16 %v7369
        %v7889 = vunpack.c.l.b16 %v7370
        %v7890 = vunpack.c.l.b16 %v7371
        %v7891 = vunpack.c.l.b16 %v7372
        %v7892 = vunpack.c.l.b16 %v7373
        %v7893 = vunpack.c.l.b16 %v7374
        %v7894 = vunpack.c.l.b16 %v7375
        %v7895 = vunpack.c.l.b16 %v7376
        %v7896 = vunpack.c.l.b16 %v7377
        %v7897 = vunpack.c.l.b16 %v7378
        %v7898 = vunpack.c.l.b16 %v7379
        %v7899 = vunpack.c.l.b16 %v7380
        %v7900 = vunpack.c.l.b16 %v7381
        %v7901 = vunpack.c.l.b16 %v7382
        %v7902 = vunpack.c.l.b16 %v7383
        %v7903 = vunpack.c.l.b16 %v7384
        %v7904 = vunpack.c.l.b16 %v7385
        %v7905 = vunpack.c.l.b16 %v7386
        %v7906 = vunpack.c.l.b16 %v7387
        %v7907 = vunpack.c.l.b16 %v7388
        %v7908 = vunpack.c.l.b16 %v7389
        %v7909 = vunpack.c.l.b16 %v7390
        %v7910 = vunpack.c.l.b16 %v7391
        %v7911 = vunpack.c.l.b16 %v7392
        %v7912 = vunpack.c.l.b16 %v7393
        %v7913 = vunpack.c.l.b16 %v7394
        %v7914 = vunpack.c.l.b16 %v7395
        %v7915 = vunpack.c.l.b16 %v7396
        %v7916 = vunpack.c.l.b16 %v7397
        %v7917 = vunpack.c.l.b16 %v7398
        %v7918 = vunpack.c.l.b16 %v7399
        %v7919 = vunpack.c.l.b16 %v7400
        %v7920 = vunpack.c.l.b16 %v7401
        %v7921 = vunpack.c.l.b16 %v7402
        %v7922 = vunpack.c.l.b16 %v7403
        %v7923 = vunpack.c.l.b16 %v7404
        %v7924 = vunpack.c.l.b16 %v7405
        %v7925 = vunpack.c.l.b16 %v7406
        %v7926 = vunpack.c.l.b16 %v7407
        %v7927 = vunpack.c.l.b16 %v7408
        %v7928 = vunpack.c.l.b16 %v7409
        %v7929 = vunpack.c.l.b16 %v7410
        %v7930 = vunpack.c.l.b16 %v7411
        %v7931 = vunpack.c.l.b16 %v7412
        %v7932 = vunpack.c.l.b16 %v7413
        %v7933 = vunpack.c.l.b16 %v7414
        %v7934 = vunpack.c.l.b16 %v7415
        %v7935 = vunpack.c.l.b16 %v7416
        %v7936 = vunpack.c.l.b16 %v7417
        %v7937 = vunpack.c.l.b16 %v7418
        %v7938 = vunpack.c.l.b16 %v7419
        %v7939 = vunpack.c.l.b16 %v7420
        %v7940 = vunpack.c.l.b16 %v7421
        %v7941 = vunpack.c.l.b16 %v7422
        %v7942 = vunpack.c.l.b16 %v7423
        %v7943 = vunpack.c.l.b16 %v7424
        %v7944 = vunpack.c.l.b16 %v7425
        %v7945 = vunpack.c.l.b16 %v7426
        %v7946 = vunpack.c.l.b16 %v7427
        %v7947 = vunpack.c.l.b16 %v7428
        %v7948 = vunpack.c.l.b16 %v7429
        %v7949 = vunpack.c.l.b16 %v7430
        %v7950 = vunpack.c.l.b16 %v7431
        %v7951 = vunpack.c.l.b16 %v7432
        %v7952 = vunpack.c.l.b16 %v7433
        %v7953 = vunpack.c.l.b16 %v7434
        %v7954 = vunpack.c.l.b16 %v7435
        %v7955 = vunpack.c.l.b16 %v7436
        %v7956 = vunpack.c.l.b16 %v7437
        %v7957 = vunpack.c.l.b16 %v7438
        %v7958 = vunpack.c.l.b16 %v7439
        %v7959 = vunpack.c.l.b16 %v7440
        %v7960 = vunpack.c.l.b16 %v7441
        %v7961 = vunpack.c.l.b16 %v7442
        %v7962 = vunpack.c.l.b16 %v7443
        %v7963 = vunpack.c.l.b16 %v7444
        %v7964 = vunpack.c.l.b16 %v7445
        %v7965 = vunpack.c.l.b16 %v7446
        %v7966 = vunpack.c.l.b16 %v7447
        %v7967 = vunpack.c.l.b16 %v7448
        %v7968 = vunpack.c.l.b16 %v7449
        %v7969 = vunpack.c.l.b16 %v7450
        %v7970 = vunpack.c.l.b16 %v7451
        %v7971 = vunpack.c.l.b16 %v7452
        %v7972 = vunpack.c.l.b16 %v7453
        %v7973 = vunpack.c.l.b16 %v7454
        %v7974 = vunpack.c.l.b16 %v7455
        %v7975 = vunpack.c.l.b16 %v7456
        %v7976 = vunpack.c.l.b16 %v7457
        %v7977 = vunpack.c.l.b16 %v7458
        %v7978 = vunpack.c.l.b16 %v7459
        %v7979 = vunpack.c.l.b16 %v7460
        %v7980 = vunpack.c.l.b16 %v7461
        %v7981 = vunpack.c.l.b16 %v7462
        %v7982 = vunpack.c.l.b16 %v7463
        %v7983 = vunpack.c.l.b16 %v7464
        %v7984 = vunpack.c.l.b16 %v7465
        %v7985 = vunpack.c.l.b16 %v7466
        %v7986 = vunpack.c.l.b16 %v7467
        %v7987 = vunpack.c.l.b16 %v7468
        %v7988 = vunpack.c.l.b16 %v7469
        %v7989 = vunpack.c.l.b16 %v7470
        %v7990 = vunpack.c.l.b16 %v7471
        %v7991 = vunpack.c.l.b16 %v7472
        %v7992 = vunpack.c.l.b16 %v7473
        %v7993 = vunpack.c.l.b16 %v7474
        %v7994 = vunpack.c.l.b16 %v7475
        %v7995 = vunpack.c.l.b16 %v7476
        %v7996 = vunpack.c.l.b16 %v7477
        %v7997 = vunpack.c.l.b16 %v7478
        %v7998 = vunpack.c.l.b16 %v7479
        %v7999 = vunpack.c.l.b16 %v7480
        %v8000 = vunpack.c.l.b16 %v7481
        %v8001 = vunpack.c.l.b16 %v7482
        %v8002 = vunpack.c.l.b16 %v7483
        %v8003 = vunpack.c.l.b16 %v7484
        %v8004 = vunpack.c.l.b16 %v7485
        %v8005 = vunpack.c.l.b16 %v7486
        %v8006 = vunpack.c.l.b16 %v7487
        %v8007 = vunpack.c.l.b16 %v7488
        %v8008 = vunpack.c.l.b16 %v7489
        %v8009 = vunpack.c.l.b16 %v7490
        %v8010 = vunpack.c.l.b16 %v7491
        %v8011 = vunpack.c.l.b16 %v7492
        %v8012 = vunpack.c.l.b16 %v7493
        %v8013 = vunpack.c.l.b16 %v7494
        %v8014 = vunpack.c.l.b16 %v7495
        %v8015 = vunpack.c.l.b16 %v7496
        %v8016 = vunpack.c.l.b16 %v7497
        %v8017 = vunpack.c.l.b16 %v7498
        %v8018 = vunpack.c.l.b16 %v7499
        %v8019 = vunpack.c.l.b16 %v7500
        %v8020 = vunpack.c.l.b16 %v7501
        %v8021 = vunpack.c.l.b16 %v7502
        %v8022 = vunpack.c.l.b16 %v7503
        %v8023 = vunpack.c.l.b16 %v7504
        %v8024 = vunpack.c.l.b16 %v7505
        %v8025 = vunpack.c.l.b16 %v7506
        %v8026 = vunpack.c.l.b16 %v7507
        %v8027 = vunpack.c.l.b16 %v7508
        %v8028 = vunpack.c.l.b16 %v7509
        %v8029 = vunpack.c.l.b16 %v7510
        %v8030 = vunpack.c.l.b16 %v7511
        %v8031 = vunpack.c.l.b16 %v7512
        %v8032 = vunpack.c.l.b16 %v7513
        %v8033 = vunpack.c.l.b16 %v7514
        %v8034 = vunpack.c.l.b16 %v7515
        %v8035 = vunpack.c.l.b16 %v7516
        %v8036 = vunpack.c.l.b16 %v7517
        %v8037 = vunpack.c.l.b16 %v7518
        %v8038 = vunpack.c.l.b16 %v7519
        %v8039 = vunpack.c.l.b16 %v7520
        %v8040 = vunpack.c.l.b16 %v7521
        %v8041 = vunpack.c.l.b16 %v7522
        %v8042 = vunpack.c.l.b16 %v7523
        %v8043 = vunpack.c.l.b16 %v7524
        %v8044 = vunpack.c.l.b16 %v7525
        %v8045 = vunpack.c.l.b16 %v7526
        %v8046 = vunpack.c.l.b16 %v7527
        %v8047 = vunpack.c.l.b16 %v7528
        %v8048 = vunpack.c.l.b16 %v7529
        %v8049 = vunpack.c.l.b16 %v7530
        %v8050 = vunpack.c.l.b16 %v7531
        %v8051 = vunpack.c.l.b16 %v7532
        %v8052 = vunpack.c.l.b16 %v7533
        %v8053 = vunpack.c.l.b16 %v7534
        %v8054 = vunpack.c.l.b16 %v7535
        %v8055 = vunpack.c.l.b16 %v7536
        %v8056 = vunpack.c.l.b16 %v7537
        %v8057 = vunpack.c.l.b16 %v7538
        %v8058 = vunpack.c.l.b16 %v7539
        %v8059 = vunpack.c.l.b16 %v7540
        %v8060 = vunpack.c.l.b16 %v7541
        %v8061 = vunpack.c.l.b16 %v7542
        %v8062 = vunpack.c.l.b16 %v7543
        %v8063 = vunpack.c.l.b16 %v7544
        %v8064 = vunpack.c.l.b16 %v7545
        %v8065 = vunpack.c.l.b16 %v7546
        %v8066 = vunpack.c.l.b16 %v7547
        %v8067 = vunpack.c.l.b16 %v7548
        %v8068 = vunpack.c.l.b16 %v7549
        %v8069 = vunpack.c.l.b16 %v7550
        %v8070 = vunpack.c.l.b16 %v7551
        %v8071 = vunpack.c.l.b16 %v7552
        %v8072 = vunpack.c.l.b16 %v7553
        %v8073 = vunpack.c.l.b16 %v7554
        %v8074 = vunpack.c.l.b16 %v7555
        %v8075 = vunpack.c.l.b16 %v7556
        %v8076 = vunpack.c.l.b16 %v7557
        %v8077 = vunpack.c.l.b16 %v7558
        %v8078 = vunpack.c.l.b16 %v7559
        %v8079 = vunpack.c.l.b16 %v7560
        %v8080 = vunpack.c.l.b16 %v7561
        %v8081 = vunpack.c.l.b16 %v7562
        %v8082 = vunpack.c.l.b16 %v7563
        %v8083 = vunpack.c.l.b16 %v7564
        %v8084 = vunpack.c.l.b16 %v7565
        %v8085 = vunpack.c.l.b16 %v7566
        %v8086 = vunpack.c.l.b16 %v7567
        %v8087 = vunpack.c.l.b16 %v7568
        %v8088 = vunpack.c.l.b16 %v7569
        %v8089 = vunpack.c.l.b16 %v7570
        %v8090 = vunpack.c.l.b16 %v7571
        %v8091 = vunpack.c.l.b16 %v7572
        %v8092 = vunpack.c.l.b16 %v7573
        %v8093 = vunpack.c.l.b16 %v7574
        %v8094 = vunpack.c.l.b16 %v7575
        %v8095 = vunpack.c.l.b16 %v7576
        %v8096 = vunpack.c.l.b16 %v7577
        %v8097 = vunpack.c.l.b16 %v7578
        %v8098 = vunpack.c.l.b16 %v7579
        %v8099 = vunpack.c.l.b16 %v7580
        %v8100 = vunpack.c.l.b16 %v7581
        %v8101 = vunpack.c.l.b16 %v7582
        %v8102 = vunpack.c.l.b16 %v7583
        %v8103 = vunpack.c.l.b16 %v7584
        %v8104 = vunpack.c.l.b16 %v7585
        %v8105 = vunpack.c.l.b16 %v7586
        %v8106 = vunpack.c.l.b16 %v7587
        %v8107 = vunpack.c.l.b16 %v7588
        %v8108 = vunpack.c.l.b16 %v7589
        %v8109 = vunpack.c.l.b16 %v7590
        %v8110 = vunpack.c.l.b16 %v7591
        %v8111 = vunpack.c.l.b16 %v7592
        %v8112 = vunpack.c.l.b16 %v7593
        %v8113 = vunpack.c.l.b16 %v7594
        %v8114 = vunpack.c.l.b16 %v7595
        %v8115 = vunpack.c.l.b16 %v7596
        %v8116 = vunpack.c.l.b16 %v7597
        %v8117 = vunpack.c.l.b16 %v7598
        %v8118 = vunpack.c.l.b16 %v7599
        %v8119 = vunpack.c.l.b16 %v7600
        %v8120 = vunpack.c.l.b16 %v7601
        %v8121 = vunpack.c.l.b16 %v7602
        %v8122 = vunpack.c.l.b16 %v7603
        %v8123 = vunpack.c.l.b16 %v7604
        %v8124 = vunpack.c.l.b16 %v7605
        %v8125 = vunpack.c.l.b16 %v7606
        %v8126 = vunpack.c.l.b16 %v7607
        %v8127 = vunpack.c.l.b16 %v7608
        %v8128 = vunpack.c.l.b16 %v7609
        %v8129 = vunpack.c.l.b16 %v7610
        %v8130 = vunpack.c.l.b16 %v7611
        %v8131 = vunpack.c.l.b16 %v7612
        %v8132 = vunpack.c.l.b16 %v7613
        %v8133 = vpack.c.b16 %v7878, %v7877
        %v8134 = vpack.c.b16 %v7880, %v7879
        %v8135 = vpack.c.b16 %v7882, %v7881
        %v8136 = vpack.c.b16 %v7884, %v7883
        %v8137 = vpack.c.b16 %v7886, %v7885
        %v8138 = vpack.c.b16 %v7888, %v7887
        %v8139 = vpack.c.b16 %v7890, %v7889
        %v8140 = vpack.c.b16 %v7892, %v7891
        %v8141 = vpack.c.b16 %v7894, %v7893
        %v8142 = vpack.c.b16 %v7896, %v7895
        %v8143 = vpack.c.b16 %v7898, %v7897
        %v8144 = vpack.c.b16 %v7900, %v7899
        %v8145 = vpack.c.b16 %v7902, %v7901
        %v8146 = vpack.c.b16 %v7904, %v7903
        %v8147 = vpack.c.b16 %v7906, %v7905
        %v8148 = vpack.c.b16 %v7908, %v7907
        %v8149 = vpack.c.b16 %v7910, %v7909
        %v8150 = vpack.c.b16 %v7912, %v7911
        %v8151 = vpack.c.b16 %v7914, %v7913
        %v8152 = vpack.c.b16 %v7916, %v7915
        %v8153 = vpack.c.b16 %v7918, %v7917
        %v8154 = vpack.c.b16 %v7920, %v7919
        %v8155 = vpack.c.b16 %v7922, %v7921
        %v8156 = vpack.c.b16 %v7924, %v7923
        %v8157 = vpack.c.b16 %v7926, %v7925
        %v8158 = vpack.c.b16 %v7928, %v7927
        %v8159 = vpack.c.b16 %v7930, %v7929
        %v8160 = vpack.c.b16 %v7932, %v7931
        %v8161 = vpack.c.b16 %v7934, %v7933
        %v8162 = vpack.c.b16 %v7936, %v7935
        %v8163 = vpack.c.b16 %v7938, %v7937
        %v8164 = vpack.c.b16 %v7940, %v7939
        %v8165 = vpack.c.b16 %v7942, %v7941
        %v8166 = vpack.c.b16 %v7944, %v7943
        %v8167 = vpack.c.b16 %v7946, %v7945
        %v8168 = vpack.c.b16 %v7948, %v7947
        %v8169 = vpack.c.b16 %v7950, %v7949
        %v8170 = vpack.c.b16 %v7952, %v7951
        %v8171 = vpack.c.b16 %v7954, %v7953
        %v8172 = vpack.c.b16 %v7956, %v7955
        %v8173 = vpack.c.b16 %v7958, %v7957
        %v8174 = vpack.c.b16 %v7960, %v7959
        %v8175 = vpack.c.b16 %v7962, %v7961
        %v8176 = vpack.c.b16 %v7964, %v7963
        %v8177 = vpack.c.b16 %v7966, %v7965
        %v8178 = vpack.c.b16 %v7968, %v7967
        %v8179 = vpack.c.b16 %v7970, %v7969
        %v8180 = vpack.c.b16 %v7972, %v7971
        %v8181 = vpack.c.b16 %v7974, %v7973
        %v8182 = vpack.c.b16 %v7976, %v7975
        %v8183 = vpack.c.b16 %v7978, %v7977
        %v8184 = vpack.c.b16 %v7980, %v7979
        %v8185 = vpack.c.b16 %v7982, %v7981
        %v8186 = vpack.c.b16 %v7984, %v7983
        %v8187 = vpack.c.b16 %v7986, %v7985
        %v8188 = vpack.c.b16 %v7988, %v7987
        %v8189 = vpack.c.b16 %v7990, %v7989
        %v8190 = vpack.c.b16 %v7992, %v7991
        %v8191 = vpack.c.b16 %v7994, %v7993
        %v8192 = vpack.c.b16 %v7996, %v7995
        %v8193 = vpack.c.b16 %v7998, %v7997
        %v8194 = vpack.c.b16 %v8000, %v7999
        %v8195 = vpack.c.b16 %v8002, %v8001
        %v8196 = vpack.c.b16 %v8004, %v8003
        %v8197 = vpack.c.b16 %v8006, %v8005
        %v8198 = vpack.c.b16 %v8008, %v8007
        %v8199 = vpack.c.b16 %v8010, %v8009
        %v8200 = vpack.c.b16 %v8012, %v8011
        %v8201 = vpack.c.b16 %v8014, %v8013
        %v8202 = vpack.c.b16 %v8016, %v8015
        %v8203 = vpack.c.b16 %v8018, %v8017
        %v8204 = vpack.c.b16 %v8020, %v8019
        %v8205 = vpack.c.b16 %v8022, %v8021
        %v8206 = vpack.c.b16 %v8024, %v8023
        %v8207 = vpack.c.b16 %v8026, %v8025
        %v8208 = vpack.c.b16 %v8028, %v8027
        %v8209 = vpack.c.b16 %v8030, %v8029
        %v8210 = vpack.c.b16 %v8032, %v8031
        %v8211 = vpack.c.b16 %v8034, %v8033
        %v8212 = vpack.c.b16 %v8036, %v8035
        %v8213 = vpack.c.b16 %v8038, %v8037
        %v8214 = vpack.c.b16 %v8040, %v8039
        %v8215 = vpack.c.b16 %v8042, %v8041
        %v8216 = vpack.c.b16 %v8044, %v8043
        %v8217 = vpack.c.b16 %v8046, %v8045
        %v8218 = vpack.c.b16 %v8048, %v8047
        %v8219 = vpack.c.b16 %v8050, %v8049
        %v8220 = vpack.c.b16 %v8052, %v8051
        %v8221 = vpack.c.b16 %v8054, %v8053
        %v8222 = vpack.c.b16 %v8056, %v8055
        %v8223 = vpack.c.b16 %v8058, %v8057
        %v8224 = vpack.c.b16 %v8060, %v8059
        %v8225 = vpack.c.b16 %v8062, %v8061
        %v8226 = vpack.c.b16 %v8064, %v8063
        %v8227 = vpack.c.b16 %v8066, %v8065
        %v8228 = vpack.c.b16 %v8068, %v8067
        %v8229 = vpack.c.b16 %v8070, %v8069
        %v8230 = vpack.c.b16 %v8072, %v8071
        %v8231 = vpack.c.b16 %v8074, %v8073
        %v8232 = vpack.c.b16 %v8076, %v8075
        %v8233 = vpack.c.b16 %v8078, %v8077
        %v8234 = vpack.c.b16 %v8080, %v8079
        %v8235 = vpack.c.b16 %v8082, %v8081
        %v8236 = vpack.c.b16 %v8084, %v8083
        %v8237 = vpack.c.b16 %v8086, %v8085
        %v8238 = vpack.c.b16 %v8088, %v8087
        %v8239 = vpack.c.b16 %v8090, %v8089
        %v8240 = vpack.c.b16 %v8092, %v8091
        %v8241 = vpack.c.b16 %v8094, %v8093
        %v8242 = vpack.c.b16 %v8096, %v8095
        %v8243 = vpack.c.b16 %v8098, %v8097
        %v8244 = vpack.c.b16 %v8100, %v8099
        %v8245 = vpack.c.b16 %v8102, %v8101
        %v8246 = vpack.c.b16 %v8104, %v8103
        %v8247 = vpack.c.b16 %v8106, %v8105
        %v8248 = vpack.c.b16 %v8108, %v8107
        %v8249 = vpack.c.b16 %v8110, %v8109
        %v8250 = vpack.c.b16 %v8112, %v8111
        %v8251 = vpack.c.b16 %v8114, %v8113
        %v8252 = vpack.c.b16 %v8116, %v8115
        %v8253 = vpack.c.b16 %v8118, %v8117
        %v8254 = vpack.c.b16 %v8120, %v8119
        %v8255 = vpack.c.b16 %v8122, %v8121
        %v8256 = vpack.c.b16 %v8124, %v8123
        %v8257 = vpack.c.b16 %v8126, %v8125
        %v8258 = vpack.c.b16 %v8128, %v8127
        %v8259 = vpack.c.b16 %v8130, %v8129
        %v8260 = vpack.c.b16 %v8132, %v8131
        %8389 = vmatprep.subr.bf16.mxu0 0
        %8390 = vmatpush1.bf16.msra.mxu0 %v8140
        %8391 = vmatprep.subr.bf16.mxu0 0
        %8392 = vmatpush1.bf16.msra.mxu0 %v8139
        %8393 = vmatprep.subr.bf16.mxu0 0
        %8394 = vmatpush1.bf16.msra.mxu0 %v8138
        %8395 = vmatprep.subr.bf16.mxu0 0
        %8396 = vmatpush1.bf16.msra.mxu0 %v8137
        %8397 = vmatprep.subr.bf16.mxu0 0
        %8398 = vmatpush1.bf16.msra.mxu0 %v8136
        %8399 = vmatprep.subr.bf16.mxu0 0
        %8400 = vmatpush1.bf16.msra.mxu0 %v8135
        %8401 = vmatprep.subr.bf16.mxu0 0
        %8402 = vmatpush1.bf16.msra.mxu0 %v8134
        %8403 = vmatprep.subr.bf16.mxu0 0
        %8404 = vmatpush1.bf16.msra.mxu0 %v8133
        %8405 = vmatprep.subr.bf16.mxu0 0
        %8406 = vmatpush2.bf16.msra.mxu0 %v8148
        %8407 = vmatprep.subr.bf16.mxu0 0
        %8408 = vmatpush2.bf16.msra.mxu0 %v8147
        %8409 = vmatprep.subr.bf16.mxu0 0
        %8410 = vmatpush2.bf16.msra.mxu0 %v8146
        %8411 = vmatprep.subr.bf16.mxu0 0
        %8412 = vmatpush2.bf16.msra.mxu0 %v8145
        %8413 = vmatprep.subr.bf16.mxu0 0
        %8414 = vmatpush2.bf16.msra.mxu0 %v8144
        %8415 = vmatprep.subr.bf16.mxu0 0
        %8416 = vmatpush2.bf16.msra.mxu0 %v8143
        %8417 = vmatprep.subr.bf16.mxu0 0
        %8418 = vmatpush2.bf16.msra.mxu0 %v8142
        %8419 = vmatprep.subr.bf16.mxu0 0
        %8420 = vmatpush2.bf16.msra.mxu0 %v8141
        %8421 = vmatprep.mubr.bf16.mxu0 %v7343
        %8422 = vmatmul.mubr.bf16.gmra.mxu0 %v7342
        %v8423 = vpop.f32.mrf.mxu0
        %v8424 = vadd.f32 %v7619, %v8423
        %v8425 = vpop.f32.mrf.mxu0
        %v8426 = vpop.f32.mrf.mxu0
        %v8427 = vadd.f32 %v7619, %v8426
        %v8428 = vpop.f32.mrf.mxu0
        %8429 = vdwg.mxu0
        %8430 = vmatprep.subr.bf16.mxu0 0
        %8431 = vmatpush1.bf16.msra.mxu0 %v8156
        %8432 = vmatprep.subr.bf16.mxu0 0
        %8433 = vmatpush1.bf16.msra.mxu0 %v8155
        %8434 = vmatprep.subr.bf16.mxu0 0
        %8435 = vmatpush1.bf16.msra.mxu0 %v8154
        %8436 = vmatprep.subr.bf16.mxu0 0
        %8437 = vmatpush1.bf16.msra.mxu0 %v8153
        %8438 = vmatprep.subr.bf16.mxu0 0
        %8439 = vmatpush1.bf16.msra.mxu0 %v8152
        %8440 = vmatprep.subr.bf16.mxu0 0
        %8441 = vmatpush1.bf16.msra.mxu0 %v8151
        %8442 = vmatprep.subr.bf16.mxu0 0
        %8443 = vmatpush1.bf16.msra.mxu0 %v8150
        %8444 = vmatprep.subr.bf16.mxu0 0
        %8445 = vmatpush1.bf16.msra.mxu0 %v8149
        %8446 = vmatprep.subr.bf16.mxu0 0
        %8447 = vmatpush2.bf16.msra.mxu0 %v8164
        %8448 = vmatprep.subr.bf16.mxu0 0
        %8449 = vmatpush2.bf16.msra.mxu0 %v8163
        %8450 = vmatprep.subr.bf16.mxu0 0
        %8451 = vmatpush2.bf16.msra.mxu0 %v8162
        %8452 = vmatprep.subr.bf16.mxu0 0
        %8453 = vmatpush2.bf16.msra.mxu0 %v8161
        %8454 = vmatprep.subr.bf16.mxu0 0
        %8455 = vmatpush2.bf16.msra.mxu0 %v8160
        %8456 = vmatprep.subr.bf16.mxu0 0
        %8457 = vmatpush2.bf16.msra.mxu0 %v8159
        %8458 = vmatprep.subr.bf16.mxu0 0
        %8459 = vmatpush2.bf16.msra.mxu0 %v8158
        %8460 = vmatprep.subr.bf16.mxu0 0
        %8461 = vmatpush2.bf16.msra.mxu0 %v8157
        %8462 = vmatprep.mubr.bf16.mxu0 %v7345
        %8463 = vmatmul.mubr.bf16.gmra.mxu0 %v7344
        %v8464 = vpop.f32.mrf.mxu0
        %v8465 = vadd.f32 %v8424, %v8464
        %v8466 = vpop.f32.mrf.mxu0
        %v8467 = vpop.f32.mrf.mxu0
        %v8468 = vadd.f32 %v8427, %v8467
        %v8469 = vpop.f32.mrf.mxu0
        %8470 = vdwg.mxu0
        %8471 = vmatprep.subr.bf16.mxu0 0
        %8472 = vmatpush1.bf16.msra.mxu0 %v8172
        %8473 = vmatprep.subr.bf16.mxu0 0
        %8474 = vmatpush1.bf16.msra.mxu0 %v8171
        %8475 = vmatprep.subr.bf16.mxu0 0
        %8476 = vmatpush1.bf16.msra.mxu0 %v8170
        %8477 = vmatprep.subr.bf16.mxu0 0
        %8478 = vmatpush1.bf16.msra.mxu0 %v8169
        %8479 = vmatprep.subr.bf16.mxu0 0
        %8480 = vmatpush1.bf16.msra.mxu0 %v8168
        %8481 = vmatprep.subr.bf16.mxu0 0
        %8482 = vmatpush1.bf16.msra.mxu0 %v8167
        %8483 = vmatprep.subr.bf16.mxu0 0
        %8484 = vmatpush1.bf16.msra.mxu0 %v8166
        %8485 = vmatprep.subr.bf16.mxu0 0
        %8486 = vmatpush1.bf16.msra.mxu0 %v8165
        %8487 = vmatprep.subr.bf16.mxu0 0
        %8488 = vmatpush2.bf16.msra.mxu0 %v8180
        %8489 = vmatprep.subr.bf16.mxu0 0
        %8490 = vmatpush2.bf16.msra.mxu0 %v8179
        %8491 = vmatprep.subr.bf16.mxu0 0
        %8492 = vmatpush2.bf16.msra.mxu0 %v8178
        %8493 = vmatprep.subr.bf16.mxu0 0
        %8494 = vmatpush2.bf16.msra.mxu0 %v8177
        %8495 = vmatprep.subr.bf16.mxu0 0
        %8496 = vmatpush2.bf16.msra.mxu0 %v8176
        %8497 = vmatprep.subr.bf16.mxu0 0
        %8498 = vmatpush2.bf16.msra.mxu0 %v8175
        %8499 = vmatprep.subr.bf16.mxu0 0
        %8500 = vmatpush2.bf16.msra.mxu0 %v8174
        %8501 = vmatprep.subr.bf16.mxu0 0
        %8502 = vmatpush2.bf16.msra.mxu0 %v8173
        %8503 = vmatprep.mubr.bf16.mxu0 %v7347
        %8504 = vmatmul.mubr.bf16.gmra.mxu0 %v7346
        %v8505 = vpop.f32.mrf.mxu0
        %v8506 = vadd.f32 %v8465, %v8505
        %v8507 = vpop.f32.mrf.mxu0
        %v8508 = vpop.f32.mrf.mxu0
        %v8509 = vadd.f32 %v8468, %v8508
        %v8510 = vpop.f32.mrf.mxu0
        %8511 = vdwg.mxu0
        %8512 = vmatprep.subr.bf16.mxu0 0
        %8513 = vmatpush1.bf16.msra.mxu0 %v8188
        %8514 = vmatprep.subr.bf16.mxu0 0
        %8515 = vmatpush1.bf16.msra.mxu0 %v8187
        %8516 = vmatprep.subr.bf16.mxu0 0
        %8517 = vmatpush1.bf16.msra.mxu0 %v8186
        %8518 = vmatprep.subr.bf16.mxu0 0
        %8519 = vmatpush1.bf16.msra.mxu0 %v8185
        %8520 = vmatprep.subr.bf16.mxu0 0
        %8521 = vmatpush1.bf16.msra.mxu0 %v8184
        %8522 = vmatprep.subr.bf16.mxu0 0
        %8523 = vmatpush1.bf16.msra.mxu0 %v8183
        %8524 = vmatprep.subr.bf16.mxu0 0
        %8525 = vmatpush1.bf16.msra.mxu0 %v8182
        %8526 = vmatprep.subr.bf16.mxu0 0
        %8527 = vmatpush1.bf16.msra.mxu0 %v8181
        %8528 = vmatprep.subr.bf16.mxu0 0
        %8529 = vmatpush2.bf16.msra.mxu0 %v8196
        %8530 = vmatprep.subr.bf16.mxu0 0
        %8531 = vmatpush2.bf16.msra.mxu0 %v8195
        %8532 = vmatprep.subr.bf16.mxu0 0
        %8533 = vmatpush2.bf16.msra.mxu0 %v8194
        %8534 = vmatprep.subr.bf16.mxu0 0
        %8535 = vmatpush2.bf16.msra.mxu0 %v8193
        %8536 = vmatprep.subr.bf16.mxu0 0
        %8537 = vmatpush2.bf16.msra.mxu0 %v8192
        %8538 = vmatprep.subr.bf16.mxu0 0
        %8539 = vmatpush2.bf16.msra.mxu0 %v8191
        %8540 = vmatprep.subr.bf16.mxu0 0
        %8541 = vmatpush2.bf16.msra.mxu0 %v8190
        %8542 = vmatprep.subr.bf16.mxu0 0
        %8543 = vmatpush2.bf16.msra.mxu0 %v8189
        %8544 = vmatprep.mubr.bf16.mxu0 %v7349
        %8545 = vmatmul.mubr.bf16.gmra.mxu0 %v7348
        %v8546 = vpop.f32.mrf.mxu0
        %v8547 = vadd.f32 %v8506, %v8546
        %v8548 = vpop.f32.mrf.mxu0
        %v8549 = vpop.f32.mrf.mxu0
        %v8550 = vadd.f32 %v8509, %v8549
        %v8551 = vpop.f32.mrf.mxu0
        %8552 = vdwg.mxu0
        %8553 = vmatprep.subr.bf16.mxu0 0
        %8554 = vmatpush1.bf16.msra.mxu0 %v8204
        %8555 = vmatprep.subr.bf16.mxu0 0
        %8556 = vmatpush1.bf16.msra.mxu0 %v8203
        %8557 = vmatprep.subr.bf16.mxu0 0
        %8558 = vmatpush1.bf16.msra.mxu0 %v8202
        %8559 = vmatprep.subr.bf16.mxu0 0
        %8560 = vmatpush1.bf16.msra.mxu0 %v8201
        %8561 = vmatprep.subr.bf16.mxu0 0
        %8562 = vmatpush1.bf16.msra.mxu0 %v8200
        %8563 = vmatprep.subr.bf16.mxu0 0
        %8564 = vmatpush1.bf16.msra.mxu0 %v8199
        %8565 = vmatprep.subr.bf16.mxu0 0
        %8566 = vmatpush1.bf16.msra.mxu0 %v8198
        %8567 = vmatprep.subr.bf16.mxu0 0
        %8568 = vmatpush1.bf16.msra.mxu0 %v8197
        %8569 = vmatprep.subr.bf16.mxu0 0
        %8570 = vmatpush2.bf16.msra.mxu0 %v8212
        %8571 = vmatprep.subr.bf16.mxu0 0
        %8572 = vmatpush2.bf16.msra.mxu0 %v8211
        %8573 = vmatprep.subr.bf16.mxu0 0
        %8574 = vmatpush2.bf16.msra.mxu0 %v8210
        %8575 = vmatprep.subr.bf16.mxu0 0
        %8576 = vmatpush2.bf16.msra.mxu0 %v8209
        %8577 = vmatprep.subr.bf16.mxu0 0
        %8578 = vmatpush2.bf16.msra.mxu0 %v8208
        %8579 = vmatprep.subr.bf16.mxu0 0
        %8580 = vmatpush2.bf16.msra.mxu0 %v8207
        %8581 = vmatprep.subr.bf16.mxu0 0
        %8582 = vmatpush2.bf16.msra.mxu0 %v8206
        %8583 = vmatprep.subr.bf16.mxu0 0
        %8584 = vmatpush2.bf16.msra.mxu0 %v8205
        %8585 = vmatprep.mubr.bf16.mxu0 %v7351
        %8586 = vmatmul.mubr.bf16.gmra.mxu0 %v7350
        %v8587 = vpop.f32.mrf.mxu0
        %v8588 = vadd.f32 %v8547, %v8587
        %v8589 = vpop.f32.mrf.mxu0
        %v8590 = vpop.f32.mrf.mxu0
        %v8591 = vadd.f32 %v8550, %v8590
        %v8592 = vpop.f32.mrf.mxu0
        %8593 = vdwg.mxu0
        %8594 = vmatprep.subr.bf16.mxu0 0
        %8595 = vmatpush1.bf16.msra.mxu0 %v8220
        %8596 = vmatprep.subr.bf16.mxu0 0
        %8597 = vmatpush1.bf16.msra.mxu0 %v8219
        %8598 = vmatprep.subr.bf16.mxu0 0
        %8599 = vmatpush1.bf16.msra.mxu0 %v8218
        %8600 = vmatprep.subr.bf16.mxu0 0
        %8601 = vmatpush1.bf16.msra.mxu0 %v8217
        %8602 = vmatprep.subr.bf16.mxu0 0
        %8603 = vmatpush1.bf16.msra.mxu0 %v8216
        %8604 = vmatprep.subr.bf16.mxu0 0
        %8605 = vmatpush1.bf16.msra.mxu0 %v8215
        %8606 = vmatprep.subr.bf16.mxu0 0
        %8607 = vmatpush1.bf16.msra.mxu0 %v8214
        %8608 = vmatprep.subr.bf16.mxu0 0
        %8609 = vmatpush1.bf16.msra.mxu0 %v8213
        %8610 = vmatprep.subr.bf16.mxu0 0
        %8611 = vmatpush2.bf16.msra.mxu0 %v8228
        %8612 = vmatprep.subr.bf16.mxu0 0
        %8613 = vmatpush2.bf16.msra.mxu0 %v8227
        %8614 = vmatprep.subr.bf16.mxu0 0
        %8615 = vmatpush2.bf16.msra.mxu0 %v8226
        %8616 = vmatprep.subr.bf16.mxu0 0
        %8617 = vmatpush2.bf16.msra.mxu0 %v8225
        %8618 = vmatprep.subr.bf16.mxu0 0
        %8619 = vmatpush2.bf16.msra.mxu0 %v8224
        %8620 = vmatprep.subr.bf16.mxu0 0
        %8621 = vmatpush2.bf16.msra.mxu0 %v8223
        %8622 = vmatprep.subr.bf16.mxu0 0
        %8623 = vmatpush2.bf16.msra.mxu0 %v8222
        %8624 = vmatprep.subr.bf16.mxu0 0
        %8625 = vmatpush2.bf16.msra.mxu0 %v8221
        %8626 = vmatprep.mubr.bf16.mxu0 %v7353
        %8627 = vmatmul.mubr.bf16.gmra.mxu0 %v7352
        %v8628 = vpop.f32.mrf.mxu0
        %v8629 = vadd.f32 %v8588, %v8628
        %v8630 = vpop.f32.mrf.mxu0
        %v8631 = vpop.f32.mrf.mxu0
        %v8632 = vadd.f32 %v8591, %v8631
        %v8633 = vpop.f32.mrf.mxu0
        %8634 = vdwg.mxu0
        %8635 = vmatprep.subr.bf16.mxu0 0
        %8636 = vmatpush1.bf16.msra.mxu0 %v8236
        %8637 = vmatprep.subr.bf16.mxu0 0
        %8638 = vmatpush1.bf16.msra.mxu0 %v8235
        %8639 = vmatprep.subr.bf16.mxu0 0
        %8640 = vmatpush1.bf16.msra.mxu0 %v8234
        %8641 = vmatprep.subr.bf16.mxu0 0
        %8642 = vmatpush1.bf16.msra.mxu0 %v8233
        %8643 = vmatprep.subr.bf16.mxu0 0
        %8644 = vmatpush1.bf16.msra.mxu0 %v8232
        %8645 = vmatprep.subr.bf16.mxu0 0
        %8646 = vmatpush1.bf16.msra.mxu0 %v8231
        %8647 = vmatprep.subr.bf16.mxu0 0
        %8648 = vmatpush1.bf16.msra.mxu0 %v8230
        %8649 = vmatprep.subr.bf16.mxu0 0
        %8650 = vmatpush1.bf16.msra.mxu0 %v8229
        %8651 = vmatprep.subr.bf16.mxu0 0
        %8652 = vmatpush2.bf16.msra.mxu0 %v8244
        %8653 = vmatprep.subr.bf16.mxu0 0
        %8654 = vmatpush2.bf16.msra.mxu0 %v8243
        %8655 = vmatprep.subr.bf16.mxu0 0
        %8656 = vmatpush2.bf16.msra.mxu0 %v8242
        %8657 = vmatprep.subr.bf16.mxu0 0
        %8658 = vmatpush2.bf16.msra.mxu0 %v8241
        %8659 = vmatprep.subr.bf16.mxu0 0
        %8660 = vmatpush2.bf16.msra.mxu0 %v8240
        %8661 = vmatprep.subr.bf16.mxu0 0
        %8662 = vmatpush2.bf16.msra.mxu0 %v8239
        %8663 = vmatprep.subr.bf16.mxu0 0
        %8664 = vmatpush2.bf16.msra.mxu0 %v8238
        %8665 = vmatprep.subr.bf16.mxu0 0
        %8666 = vmatpush2.bf16.msra.mxu0 %v8237
        %8667 = vmatprep.mubr.bf16.mxu0 %v7355
        %8668 = vmatmul.mubr.bf16.gmra.mxu0 %v7354
        %v8669 = vpop.f32.mrf.mxu0
        %v8670 = vadd.f32 %v8629, %v8669
        %v8671 = vpop.f32.mrf.mxu0
        %v8672 = vpop.f32.mrf.mxu0
        %v8673 = vadd.f32 %v8632, %v8672
        %v8674 = vpop.f32.mrf.mxu0
        %8675 = vdwg.mxu0
        %8676 = vmatprep.subr.bf16.mxu0 0
        %8677 = vmatpush1.bf16.msra.mxu0 %v8252
        %8678 = vmatprep.subr.bf16.mxu0 0
        %8679 = vmatpush1.bf16.msra.mxu0 %v8251
        %8680 = vmatprep.subr.bf16.mxu0 0
        %8681 = vmatpush1.bf16.msra.mxu0 %v8250
        %8682 = vmatprep.subr.bf16.mxu0 0
        %8683 = vmatpush1.bf16.msra.mxu0 %v8249
        %8684 = vmatprep.subr.bf16.mxu0 0
        %8685 = vmatpush1.bf16.msra.mxu0 %v8248
        %8686 = vmatprep.subr.bf16.mxu0 0
        %8687 = vmatpush1.bf16.msra.mxu0 %v8247
        %8688 = vmatprep.subr.bf16.mxu0 0
        %8689 = vmatpush1.bf16.msra.mxu0 %v8246
        %8690 = vmatprep.subr.bf16.mxu0 0
        %8691 = vmatpush1.bf16.msra.mxu0 %v8245
        %8692 = vmatprep.subr.bf16.mxu0 0
        %8693 = vmatpush2.bf16.msra.mxu0 %v8260
        %8694 = vmatprep.subr.bf16.mxu0 0
        %8695 = vmatpush2.bf16.msra.mxu0 %v8259
        %8696 = vmatprep.subr.bf16.mxu0 0
        %8697 = vmatpush2.bf16.msra.mxu0 %v8258
        %8698 = vmatprep.subr.bf16.mxu0 0
        %8699 = vmatpush2.bf16.msra.mxu0 %v8257
        %8700 = vmatprep.subr.bf16.mxu0 0
        %8701 = vmatpush2.bf16.msra.mxu0 %v8256
        %8702 = vmatprep.subr.bf16.mxu0 0
        %8703 = vmatpush2.bf16.msra.mxu0 %v8255
        %8704 = vmatprep.subr.bf16.mxu0 0
        %8705 = vmatpush2.bf16.msra.mxu0 %v8254
        %8706 = vmatprep.subr.bf16.mxu0 0
        %8707 = vmatpush2.bf16.msra.mxu0 %v8253
        %8708 = vmatprep.mubr.bf16.mxu0 %v7357
        %8709 = vmatmul.mubr.bf16.gmra.mxu0 %v7356
        %v8710 = vpop.f32.mrf.mxu0
        %v8711 = vadd.f32 %v8670, %v8710
        %v8712 = vpop.f32.mrf.mxu0
        %v8713 = vpop.f32.mrf.mxu0
        %v8714 = vadd.f32 %v8673, %v8713
        %v8715 = vpop.f32.mrf.mxu0
        %8716 = vdwg.mxu0
        %v8717 = vadd.f32 %v6684, %v8711
        %v8718 = vadd.f32 %v6685, %v8714
        %v8719 = vld [vmem:[%s713] sm:$0x1]
        %v8720 = vld [vmem:[%s716] sm:$0x1]
        %v8721 = vsel %vm936, %v8717, 0.0
        %8722 = vadd.xlane.f32.xlu0 %v8721
        %v8723 = vpop.xlane.xlu0 %8722
        %v8724 = vsel %vm936, %v8718, 0.0
        %8725 = vadd.xlane.f32.xlu0 %v8724
        %v8726 = vpop.xlane.xlu0 %8725
        %v8727 = vmul.f32 %v8723, %v6649
        %v8728 = vmul.f32 %v8726, %v6649
        %v8729 = vsub.f32 %v8717, %v8727
        %v8730 = vsub.f32 %v8718, %v8728
        %v8731 = vmul.f32 %v8729, %v8729
        %v8732 = vmul.f32 %v8730, %v8730
        %v8733 = vsel %vm936, %v8731, 0.0
        %8734 = vadd.xlane.f32.xlu0 %v8733
        %v8735 = vpop.xlane.xlu0 %8734
        %v8736 = vsel %vm936, %v8732, 0.0
        %8737 = vadd.xlane.f32.xlu0 %v8736
        %v8738 = vpop.xlane.xlu0 %8737
        %v8739 = vmul.f32 %v8735, %v6649
        %v8740 = vmul.f32 %v8738, %v6649
        %v8741 = vadd.f32 %v8739, 1e-05
        %v8742 = vadd.f32 %v8740, 1e-05
        %v8743 = vrsqrt.pop %v8741
        %v8744 = vrsqrt.pop %v8742
        %v8745 = vmul.f32 %v8729, %v8743
        %v8746 = vmul.f32 %v8730, %v8744
        %v8748 = vlaneseq
        %v8749 = vshrl.u32 %v8748, 7
        %v8750 = vsub.s32 0, %v8749
        %v8751 = vrot.slane %v8719, %v8750
        %v8753 = vmul.f32 %v8745, %v8751
        %v8754 = vmul.f32 %v8746, %v8751
        %v8756 = vlaneseq
        %v8757 = vshrl.u32 %v8756, 7
        %v8758 = vsub.s32 0, %v8757
        %v8759 = vrot.slane %v8720, %v8758
        %v8761 = vadd.f32 %v8753, %v8759
        %v8762 = vadd.f32 %v8754, %v8759
        %8763 = vst.msk [vmem:[#allocation2] sm:$0xff] %vm936, %v8761
        %8764 = vst.msk [vmem:[#allocation2 + $0x8] sm:$0xff] %vm936, %v8762
        // Predicated region
        $region85: #{tpu_custom_call.1} parent=79 // pred_check
          %p8765 = pneg %p447
        $region86: #{tpu_custom_call.1} parent=79 // pred_check_branch
          %8767 = sbr.rel (%p8765) target = $region88
        $region87: #{tpu_custom_call.1} parent=79 // pred_region
          %s8768 = smul.u32 2, %s31
          %s8770 = ssub.s32 256, 256
          %8771 = vsyncadd [#allocation3], %s8770
          %s8772 = smul.addr %s8768, 128
          %s8773 = scalar_lea.hbm %s15, %s8772
          %s8774 = sshll.u32 [#allocation2], 4
          %s8775 = int_to_ptr.vmem [resolvable:$true] %s8774
          %8780 = dma.vmem_to_hbm [thread:$0]  %s8775, 256, %s8773, [#allocation3], 128, 128, 8
        $region88: #{tpu_custom_call.1} parent=79 // pred_fallthru
          _
        // Predicated region
        $region89: #{tpu_custom_call.1} parent=79 // pred_check
          %p8781 = pneg %p447
        $region90: #{tpu_custom_call.1} parent=79 // pred_check_branch
          %8783 = sbr.rel (%p8781) target = $region92
        $region91: #{tpu_custom_call.1} parent=79 // pred_region
          %8784 = dma.done [#allocation3], 256
        $region92: #{tpu_custom_call.1} parent=79 // pred_fallthru
          _
      $region80: #{tpu_custom_call.1} parent=5 // pred_fallthru
        _
      %p8785 = scmp.le.s32.totalorder 2, %s22
      // Predicated region
      $region93: #{tpu_custom_call.1} parent=5 // pred_check
        %p8786 = pneg %p8785
      $region94: #{tpu_custom_call.1} parent=5 // pred_check_branch
        %8788 = sbr.rel (%p8786) target = $region96
      $region95: #{tpu_custom_call.1} parent=5 // pred_region
        %s8789 = ssub.s32 %s22, 2
      $region96: #{tpu_custom_call.1} parent=5 // pred_fallthru
        _
    $region6: #{tpu_custom_call.1} parent=1 // loop_footer
      %s26 = sadd.s32 1, %s22
    $region7: #{tpu_custom_call.1} parent=1 // loop_footer_branch
      %21 = sbr.rel target = $region3
    $region8: #{tpu_custom_call.1} parent=1 // loop_exit
      _
    %8790 = vsyncpa [#allocation3], 1
    %s8791 = scalar_lea.sflag [#allocation3], 1
    %8792 = vsyncpa %s8791, 1

</llo_original>
